<compile_context>
chip_gen: v5e
topology: v5e:2x2
jax: 0.10.0
libtpu: 0.0.40
codegen_flags: <defaults>
</compile_context>

<pallas_src>
import functools

import jax
import jax.numpy as jnp
from jax.experimental import pallas as pl
from jax.experimental.pallas import tpu as pltpu


# ---------------------------------------------------------------------------
# Fused kernel: 3 residual units (branch a) + 3 residual units + final 1x1
# (branch b) + sigmoid gate, one batch element per grid step, all in VMEM.
# ---------------------------------------------------------------------------
def _attention_block_kernel(x_ref, w1_ref, b1_ref, w2_ref, b2_ref, w3_ref,
                            b3_ref, wf_ref, bf_ref, o_ref, pad_ref, *,
                            W, lpad, n_a, n_b, compute_dtype):
    """Whole AttentionBlock forward for one image, channels-first.

    x_ref / o_ref : (C, H*W)                activation tiles (batch dim squeezed)
    w1_ref : (U, Ch, C)   b1_ref : (U, Ch, 1)   unit conv1x1 (C  -> Ch)
    w2_ref : (U, 9, Ch, Ch) b2_ref: (U, Ch, 1)  unit conv3x3 (Ch -> Ch), tap k=ky*3+kx
    w3_ref : (U, C, Ch)   b3_ref : (U, C, 1)    unit conv1x1 (Ch -> C)
    wf_ref : (C, C)       bf_ref : (C, 1)       final conv1x1 of branch b
    pad_ref: (Ch, lpad + H*W + W + 1)  VMEM halo scratch for the 3x3 taps
    Units 0..n_a-1 are branch a, units n_a..n_a+n_b-1 are branch b.
    """
    C, HW = x_ref.shape
    Ch = w1_ref.shape[1]
    cd = compute_dtype

    # Lane masks killing the 3x3 taps that would wrap across a row boundary
    # (hoisted once, reused by all units).
    col = jax.lax.broadcasted_iota(jnp.int32, (1, HW), 1) % W
    not_first_col = col != 0          # masks dx = -1 taps at x == 0
    not_last_col = col != W - 1       # masks dx = +1 taps at x == W - 1

    # Zero only the halo borders; the interior is fully overwritten by each unit.
    pad_ref[:, pl.ds(0, lpad)] = jnp.zeros((Ch, lpad), pad_ref.dtype)
    pad_ref[:, pl.ds(lpad + HW, W + 1)] = jnp.zeros((Ch, W + 1), pad_ref.dtype)

    x = x_ref[...].astype(jnp.float32)                                  # (C, HW)

    def conv1x1(w, bias, t):
        # (C_out, C_in) @ (C_in, HW): HW stays on the MXU lane axis.
        return jnp.dot(w.astype(cd), t.astype(cd),
                       preferred_element_type=jnp.float32) + bias

    def residual_unit(t, u):
        h = jnp.maximum(conv1x1(w1_ref[u], b1_ref[u], t), 0.0)          # (Ch, HW)
        # conv3x3 (padding=1): one store into the flat halo scratch, then nine
        # shifted static-offset loads accumulated as small matmuls (no im2col).
        pad_ref[:, pl.ds(lpad, HW)] = h.astype(pad_ref.dtype)
        acc = jnp.zeros((Ch, HW), jnp.float32)
        for k in range(9):
            dy, dx = k // 3 - 1, k % 3 - 1
            src = pad_ref[:, pl.ds(lpad + dy * W + dx, HW)]
            if dx == -1:
                src = jnp.where(not_first_col, src, 0.0)
            elif dx == 1:
                src = jnp.where(not_last_col, src, 0.0)
            acc = acc + jnp.dot(w2_ref[u, k].astype(cd), src.astype(cd),
                                preferred_element_type=jnp.float32)
        h = jnp.maximum(acc + b2_ref[u], 0.0)                           # (Ch, HW)
        # conv1x1 (Ch -> C) + residual + ReLU.
        return jnp.maximum(conv1x1(w3_ref[u], b3_ref[u], h) + t, 0.0)   # (C, HW)

    a = x
    for u in range(n_a):
        a = residual_unit(a, u)
    b = x
    for u in range(n_a, n_a + n_b):
        b = residual_unit(b, u)

    gate = jax.nn.sigmoid(conv1x1(wf_ref[...], bf_ref[...], b))
    o_ref[...] = (a * gate + x).astype(o_ref.dtype)


# ---------------------------------------------------------------------------
# pallas_call wrapper (weight re-orientation + BlockSpecs)
# ---------------------------------------------------------------------------
def attention_block(x_nchw, params, *, compute_dtype=jnp.float32,
                    vmem_limit_bytes=48 * 1024 * 1024):
    """Forward pass matching the PyTorch AttentionBlock (NCHW in, NCHW out)."""
    B, C, H, W = x_nchw.shape
    HW = H * W
    Ch = C // 2
    x = x_nchw.reshape(B, C, HW)          # channels-first, flat spatial (free)

    units = list(params["conv_a"]) + list(params["conv_b_units"])
    n_a = len(params["conv_a"])
    n_b = len(params["conv_b_units"])
    # Stack all residual units and reorient every weight to (C_out, C_in).
    w1 = jnp.stack([u["w1"].T for u in units])                          # (U, Ch, C)
    b1 = jnp.stack([u["b1"].reshape(Ch, 1) for u in units])             # (U, Ch, 1)
    w2 = jnp.stack([jnp.transpose(u["w2"], (0, 2, 1)) for u in units])  # (U, 9, Ch, Ch)
    b2 = jnp.stack([u["b2"].reshape(Ch, 1) for u in units])             # (U, Ch, 1)
    w3 = jnp.stack([u["w3"].T for u in units])                          # (U, C, Ch)
    b3 = jnp.stack([u["b3"].reshape(C, 1) for u in units])              # (U, C, 1)
    fb = params["conv_b_final"]
    wf = fb["w"].T                                                      # (C, C)
    bf = fb["b"].reshape(C, 1)                                          # (C, 1)

    # Lane-aligned interior offset inside the flat halo scratch.
    lpad = ((W + 1 + 127) // 128) * 128

    kern = functools.partial(_attention_block_kernel, W=W, lpad=lpad,
                             n_a=n_a, n_b=n_b, compute_dtype=compute_dtype)

    def _full(shape):
        n = len(shape)
        return pl.BlockSpec(shape, lambda b: (0,) * n)

    act_spec = pl.BlockSpec((None, C, HW), lambda b: (b, 0, 0))
    U = n_a + n_b

    out = pl.pallas_call(
        kern,
        out_shape=jax.ShapeDtypeStruct((B, C, HW), x.dtype),
        grid=(B,),
        in_specs=[act_spec,
                  _full((U, Ch, C)), _full((U, Ch, 1)),
                  _full((U, 9, Ch, Ch)), _full((U, Ch, 1)),
                  _full((U, C, Ch)), _full((U, C, 1)),
                  _full((C, C)), _full((C, 1))],
        out_specs=act_spec,
        scratch_shapes=[pltpu.VMEM((Ch, lpad + HW + W + 1), compute_dtype)],
        compiler_params=pltpu.CompilerParams(
            dimension_semantics=("parallel",),
            vmem_limit_bytes=vmem_limit_bytes),
    )(x, w1, b1, w2, b2, w3, b3, wf, bf)
    return out.reshape(B, C, H, W)


# ---------------------------------------------------------------------------
# Deterministic parameter init (shapes from the PyTorch __init__)
# ---------------------------------------------------------------------------
def init_params(key, N):
    cnt = [0]

    def nxt():
        cnt[0] += 1
        return jax.random.fold_in(key, cnt[0])

    def ru_params():
        h = N // 2
        return {
            "w1": 0.2 * jax.random.normal(nxt(), (N, h), jnp.float32),
            "b1": 0.1 * jax.random.normal(nxt(), (1, h), jnp.float32),
            "w2": 0.2 * jax.random.normal(nxt(), (9, h, h), jnp.float32),
            "b2": 0.1 * jax.random.normal(nxt(), (1, h), jnp.float32),
            "w3": 0.2 * jax.random.normal(nxt(), (h, N), jnp.float32),
            "b3": 0.1 * jax.random.normal(nxt(), (1, N), jnp.float32),
        }

    return {
        "conv_a": [ru_params() for _ in range(3)],
        "conv_b_units": [ru_params() for _ in range(3)],
        "conv_b_final": {
            "w": 0.2 * jax.random.normal(nxt(), (N, N), jnp.float32),
            "b": 0.1 * jax.random.normal(nxt(), (1, N), jnp.float32),
        },
    }


# ---------------------------------------------------------------------------
# Pure-JAX reference (for correctness check)
# ---------------------------------------------------------------------------
def _conv_ref(x_nhwc, w_hwio, b, pad):
    y = jax.lax.conv_general_dilated(
        x_nhwc, w_hwio, window_strides=(1, 1), padding=pad,
        dimension_numbers=("NHWC", "HWIO", "NHWC"))
    return y + b.reshape(1, 1, 1, -1)


def _ru_ref(x, p):
    h = jax.nn.relu(_conv_ref(x, p["w1"].reshape(1, 1, *p["w1"].shape), p["b1"],
                              [(0, 0), (0, 0)]))
    h = jax.nn.relu(_conv_ref(h, p["w2"].reshape(3, 3, *p["w2"].shape[1:]), p["b2"],
                              [(1, 1), (1, 1)]))
    h = _conv_ref(h, p["w3"].reshape(1, 1, *p["w3"].shape), p["b3"],
                  [(0, 0), (0, 0)])
    return jax.nn.relu(h + x)


def attention_block_ref(x_nchw, params):
    x = jnp.transpose(x_nchw, (0, 2, 3, 1))
    a = x
    for p in params["conv_a"]:
        a = _ru_ref(a, p)
    b = x
    for p in params["conv_b_units"]:
        b = _ru_ref(b, p)
    fb = params["conv_b_final"]
    b = _conv_ref(b, fb["w"].reshape(1, 1, *fb["w"].shape), fb["b"],
                  [(0, 0), (0, 0)])
    out = a * jax.nn.sigmoid(b) + x
    return jnp.transpose(out, (0, 3, 1, 2))


# ---------------------------------------------------------------------------
if __name__ == "__main__":
    B, N, H, W = 2, 8, 16, 16  # N must be even (N // 2 hidden channels)
    x = jax.random.normal(jax.random.PRNGKey(0), (B, N, H, W), jnp.float32)
    params = init_params(jax.random.PRNGKey(42), N)

    out = jax.jit(attention_block)(x, params)
    out = jax.block_until_ready(out)

    ref = attention_block_ref(x, params)
    assert out.shape == (B, N, H, W)
    assert jnp.allclose(out, ref, atol=1e-3, rtol=1e-3), (
        float(jnp.max(jnp.abs(out - ref))))

    print("KERNEL_OK")
</pallas_src>

<mosaic_0001>
module attributes {stable_mosaic.version = 11 : i64} {
  func.func @_attention_block_kernel(%arg0: i32, %arg1: memref<1x8x256xf32, #tpu.memory_space<vmem>>, %arg2: memref<6x4x8xf32, #tpu.memory_space<vmem>>, %arg3: memref<6x4x1xf32, #tpu.memory_space<vmem>>, %arg4: memref<6x9x4x4xf32, #tpu.memory_space<vmem>>, %arg5: memref<6x4x1xf32, #tpu.memory_space<vmem>>, %arg6: memref<6x8x4xf32, #tpu.memory_space<vmem>>, %arg7: memref<6x8x1xf32, #tpu.memory_space<vmem>>, %arg8: memref<8x8xf32, #tpu.memory_space<vmem>>, %arg9: memref<8x1xf32, #tpu.memory_space<vmem>>, %arg10: memref<1x8x256xf32, #tpu.memory_space<vmem>>, %arg11: memref<4x401xf32, #tpu.memory_space<vmem>>) attributes {dimension_semantics = [#tpu.dimension_semantics<parallel>], iteration_bounds = array<i64: 2>, scalar_prefetch = 0 : i64, scratch_operands = 1 : i64, tpu.core_type = #tpu.core_type<tc>, window_params = [{transform_indices = @transform_0, window_bounds = array<i64: 1, 8, 256>}, {pipeline_mode = #tpu.pipeline_mode<synchronous>, transform_indices = @transform_1, window_bounds = array<i64: 6, 4, 8>}, {pipeline_mode = #tpu.pipeline_mode<synchronous>, transform_indices = @transform_2, window_bounds = array<i64: 6, 4, 1>}, {pipeline_mode = #tpu.pipeline_mode<synchronous>, transform_indices = @transform_3, window_bounds = array<i64: 6, 9, 4, 4>}, {pipeline_mode = #tpu.pipeline_mode<synchronous>, transform_indices = @transform_4, window_bounds = array<i64: 6, 4, 1>}, {pipeline_mode = #tpu.pipeline_mode<synchronous>, transform_indices = @transform_5, window_bounds = array<i64: 6, 8, 4>}, {pipeline_mode = #tpu.pipeline_mode<synchronous>, transform_indices = @transform_6, window_bounds = array<i64: 6, 8, 1>}, {pipeline_mode = #tpu.pipeline_mode<synchronous>, transform_indices = @transform_7, window_bounds = array<i64: 8, 8>}, {pipeline_mode = #tpu.pipeline_mode<synchronous>, transform_indices = @transform_8, window_bounds = array<i64: 8, 1>}, {transform_indices = @transform_9, window_bounds = array<i64: 1, 8, 256>}]} {
    %0 = tpu.iota {dimensions = array<i32: 1>} : vector<1x256xi32>
    %c16_i32 = arith.constant 16 : i32
    %c0_i32 = arith.constant 0 : i32
    %1 = arith.cmpi eq, %c16_i32, %c0_i32 : i32
    %c1_i32 = arith.constant 1 : i32
    %2 = arith.select %1, %c1_i32, %c16_i32 : i32
    %3 = vector.broadcast %2 : i32 to vector<1x256xi32>
    %4 = arith.remsi %0, %3 : vector<1x256xi32>
    %c0_i32_0 = arith.constant 0 : i32
    %5 = vector.broadcast %c0_i32_0 : i32 to vector<1x256xi32>
    %6 = arith.cmpi ne, %4, %5 : vector<1x256xi32>
    %c0_i32_1 = arith.constant 0 : i32
    %7 = vector.broadcast %c0_i32_1 : i32 to vector<1x256xi32>
    %8 = arith.cmpi slt, %4, %7 : vector<1x256xi32>
    %c0_i32_2 = arith.constant 0 : i32
    %9 = arith.cmpi slt, %2, %c0_i32_2 : i32
    %10 = vector.broadcast %9 : i1 to vector<1x256xi1>
    %11 = vector.broadcast %10 : vector<1x256xi1> to vector<1x256xi1>
    %12 = arith.xori %8, %11 : vector<1x256xi1>
    %13 = arith.andi %12, %6 : vector<1x256xi1>
    %14 = vector.broadcast %2 : i32 to vector<1x256xi32>
    %15 = arith.addi %4, %14 : vector<1x256xi32>
    %16 = arith.select %13, %15, %4 : vector<1x256xi1>, vector<1x256xi32>
    %c0_i32_3 = arith.constant 0 : i32
    %17 = vector.broadcast %c0_i32_3 : i32 to vector<1x256xi32>
    %18 = arith.cmpi ne, %16, %17 : vector<1x256xi32>
    %c15_i32 = arith.constant 15 : i32
    %19 = vector.broadcast %c15_i32 : i32 to vector<1x256xi32>
    %20 = arith.cmpi ne, %16, %19 : vector<1x256xi32>
    %cst = arith.constant 0.000000e+00 : f32
    %21 = vector.broadcast %cst : f32 to vector<4x128xf32>
    %c0 = arith.constant 0 : index
    %c0_4 = arith.constant 0 : index
    %22 = vector.load %arg11[%c0, %c0_4] : memref<4x401xf32, #tpu.memory_space<vmem>>, vector<4x128xf32>
    tpu.vector_store %arg11[%c0, %c0_4], %21 {strides = array<i32>} : memref<4x401xf32, #tpu.memory_space<vmem>>, vector<4x128xf32>,
    %cst_5 = arith.constant 0.000000e+00 : f32
    %23 = vector.broadcast %cst_5 : f32 to vector<4x17xf32>
    %c0_6 = arith.constant 0 : index
    %c384 = arith.constant 384 : index
    %24 = vector.load %arg11[%c0_6, %c384] : memref<4x401xf32, #tpu.memory_space<vmem>>, vector<4x17xf32>
    tpu.vector_store %arg11[%c0_6, %c384], %23 {strides = array<i32>} : memref<4x401xf32, #tpu.memory_space<vmem>>, vector<4x17xf32>,
    %c0_7 = arith.constant 0 : index
    %c0_8 = arith.constant 0 : index
    %c0_9 = arith.constant 0 : index
    %25 = vector.load %arg1[%c0_7, %c0_8, %c0_9] : memref<1x8x256xf32, #tpu.memory_space<vmem>>, vector<1x8x256xf32>
    %26 = vector.shape_cast %25 : vector<1x8x256xf32> to vector<8x256xf32>
    %c0_10 = arith.constant 0 : index
    %c0_11 = arith.constant 0 : index
    %c0_12 = arith.constant 0 : index
    %27 = vector.load %arg2[%c0_10, %c0_11, %c0_12] : memref<6x4x8xf32, #tpu.memory_space<vmem>>, vector<1x4x8xf32>
    %28 = vector.shape_cast %27 : vector<1x4x8xf32> to vector<4x8xf32>
    %c0_13 = arith.constant 0 : index
    %c0_14 = arith.constant 0 : index
    %c0_15 = arith.constant 0 : index
    %29 = vector.load %arg3[%c0_13, %c0_14, %c0_15] : memref<6x4x1xf32, #tpu.memory_space<vmem>>, vector<1x4x1xf32>
    %30 = vector.shape_cast %29 : vector<1x4x1xf32> to vector<4x1xf32>
    %cst_16 = arith.constant dense<0.000000e+00> : vector<4x256xf32>
    %31 = tpu.matmul %28, %26, %cst_16 {dimension_numbers = #tpu.dot_dimension_numbers<[1], [0], [0], [1], [0, 0, 1, 1], [], []>} : vector<4x8xf32>, vector<8x256xf32>, vector<4x256xf32> -> vector<4x256xf32>
    %32 = vector.broadcast %30 : vector<4x1xf32> to vector<4x256xf32>
    %33 = arith.addf %31, %32 : vector<4x256xf32>
    %cst_17 = arith.constant 0.000000e+00 : f32
    %34 = vector.broadcast %cst_17 : f32 to vector<4x256xf32>
    %35 = arith.maximumf %33, %34 : vector<4x256xf32>
    %c0_18 = arith.constant 0 : index
    %c128 = arith.constant 128 : index
    %36 = vector.load %arg11[%c0_18, %c128] : memref<4x401xf32, #tpu.memory_space<vmem>>, vector<4x256xf32>
    tpu.vector_store %arg11[%c0_18, %c128], %35 {strides = array<i32>} : memref<4x401xf32, #tpu.memory_space<vmem>>, vector<4x256xf32>,
    %cst_19 = arith.constant 0.000000e+00 : f32
    %37 = vector.broadcast %cst_19 : f32 to vector<4x256xf32>
    %c0_20 = arith.constant 0 : index
    %c111 = arith.constant 111 : index
    %38 = vector.load %arg11[%c0_20, %c111] : memref<4x401xf32, #tpu.memory_space<vmem>>, vector<4x256xf32>
    %cst_21 = arith.constant 0.000000e+00 : f32
    %39 = vector.shape_cast %18 : vector<1x256xi1> to vector<1x256xi1>
    %40 = vector.broadcast %39 : vector<1x256xi1> to vector<4x256xi1>
    %41 = vector.broadcast %cst_21 : f32 to vector<4x256xf32>
    %42 = arith.select %40, %38, %41 : vector<4x256xi1>, vector<4x256xf32>
    %c0_22 = arith.constant 0 : index
    %c0_23 = arith.constant 0 : index
    %c0_24 = arith.constant 0 : index
    %c0_25 = arith.constant 0 : index
    %43 = vector.load %arg4[%c0_22, %c0_23, %c0_24, %c0_25] : memref<6x9x4x4xf32, #tpu.memory_space<vmem>>, vector<1x1x4x4xf32>
    %44 = vector.shape_cast %43 : vector<1x1x4x4xf32> to vector<4x4xf32>
    %cst_26 = arith.constant dense<0.000000e+00> : vector<4x256xf32>
    %45 = tpu.matmul %44, %42, %cst_26 {dimension_numbers = #tpu.dot_dimension_numbers<[1], [0], [0], [1], [0, 0, 1, 1], [], []>} : vector<4x4xf32>, vector<4x256xf32>, vector<4x256xf32> -> vector<4x256xf32>
    %46 = arith.addf %37, %45 : vector<4x256xf32>
    %c0_27 = arith.constant 0 : index
    %c112 = arith.constant 112 : index
    %47 = vector.load %arg11[%c0_27, %c112] : memref<4x401xf32, #tpu.memory_space<vmem>>, vector<4x256xf32>
    %c0_28 = arith.constant 0 : index
    %c1 = arith.constant 1 : index
    %c0_29 = arith.constant 0 : index
    %c0_30 = arith.constant 0 : index
    %48 = vector.load %arg4[%c0_28, %c1, %c0_29, %c0_30] : memref<6x9x4x4xf32, #tpu.memory_space<vmem>>, vector<1x1x4x4xf32>
    %49 = vector.shape_cast %48 : vector<1x1x4x4xf32> to vector<4x4xf32>
    %cst_31 = arith.constant dense<0.000000e+00> : vector<4x256xf32>
    %50 = tpu.matmul %49, %47, %cst_31 {dimension_numbers = #tpu.dot_dimension_numbers<[1], [0], [0], [1], [0, 0, 1, 1], [], []>} : vector<4x4xf32>, vector<4x256xf32>, vector<4x256xf32> -> vector<4x256xf32>
    %51 = arith.addf %46, %50 : vector<4x256xf32>
    %c0_32 = arith.constant 0 : index
    %c113 = arith.constant 113 : index
    %52 = vector.load %arg11[%c0_32, %c113] : memref<4x401xf32, #tpu.memory_space<vmem>>, vector<4x256xf32>
    %cst_33 = arith.constant 0.000000e+00 : f32
    %53 = vector.shape_cast %20 : vector<1x256xi1> to vector<1x256xi1>
    %54 = vector.broadcast %53 : vector<1x256xi1> to vector<4x256xi1>
    %55 = vector.broadcast %cst_33 : f32 to vector<4x256xf32>
    %56 = arith.select %54, %52, %55 : vector<4x256xi1>, vector<4x256xf32>
    %c0_34 = arith.constant 0 : index
    %c2 = arith.constant 2 : index
    %c0_35 = arith.constant 0 : index
    %c0_36 = arith.constant 0 : index
    %57 = vector.load %arg4[%c0_34, %c2, %c0_35, %c0_36] : memref<6x9x4x4xf32, #tpu.memory_space<vmem>>, vector<1x1x4x4xf32>
    %58 = vector.shape_cast %57 : vector<1x1x4x4xf32> to vector<4x4xf32>
    %cst_37 = arith.constant dense<0.000000e+00> : vector<4x256xf32>
    %59 = tpu.matmul %58, %56, %cst_37 {dimension_numbers = #tpu.dot_dimension_numbers<[1], [0], [0], [1], [0, 0, 1, 1], [], []>} : vector<4x4xf32>, vector<4x256xf32>, vector<4x256xf32> -> vector<4x256xf32>
    %60 = arith.addf %51, %59 : vector<4x256xf32>
    %c0_38 = arith.constant 0 : index
    %c127 = arith.constant 127 : index
    %61 = vector.load %arg11[%c0_38, %c127] : memref<4x401xf32, #tpu.memory_space<vmem>>, vector<4x256xf32>
    %cst_39 = arith.constant 0.000000e+00 : f32
    %62 = vector.shape_cast %18 : vector<1x256xi1> to vector<1x256xi1>
    %63 = vector.broadcast %62 : vector<1x256xi1> to vector<4x256xi1>
    %64 = vector.broadcast %cst_39 : f32 to vector<4x256xf32>
    %65 = arith.select %63, %61, %64 : vector<4x256xi1>, vector<4x256xf32>
    %c0_40 = arith.constant 0 : index
    %c3 = arith.constant 3 : index
    %c0_41 = arith.constant 0 : index
    %c0_42 = arith.constant 0 : index
    %66 = vector.load %arg4[%c0_40, %c3, %c0_41, %c0_42] : memref<6x9x4x4xf32, #tpu.memory_space<vmem>>, vector<1x1x4x4xf32>
    %67 = vector.shape_cast %66 : vector<1x1x4x4xf32> to vector<4x4xf32>
    %cst_43 = arith.constant dense<0.000000e+00> : vector<4x256xf32>
    %68 = tpu.matmul %67, %65, %cst_43 {dimension_numbers = #tpu.dot_dimension_numbers<[1], [0], [0], [1], [0, 0, 1, 1], [], []>} : vector<4x4xf32>, vector<4x256xf32>, vector<4x256xf32> -> vector<4x256xf32>
    %69 = arith.addf %60, %68 : vector<4x256xf32>
    %c0_44 = arith.constant 0 : index
    %c128_45 = arith.constant 128 : index
    %70 = vector.load %arg11[%c0_44, %c128_45] : memref<4x401xf32, #tpu.memory_space<vmem>>, vector<4x256xf32>
    %c0_46 = arith.constant 0 : index
    %c4 = arith.constant 4 : index
    %c0_47 = arith.constant 0 : index
    %c0_48 = arith.constant 0 : index
    %71 = vector.load %arg4[%c0_46, %c4, %c0_47, %c0_48] : memref<6x9x4x4xf32, #tpu.memory_space<vmem>>, vector<1x1x4x4xf32>
    %72 = vector.shape_cast %71 : vector<1x1x4x4xf32> to vector<4x4xf32>
    %cst_49 = arith.constant dense<0.000000e+00> : vector<4x256xf32>
    %73 = tpu.matmul %72, %70, %cst_49 {dimension_numbers = #tpu.dot_dimension_numbers<[1], [0], [0], [1], [0, 0, 1, 1], [], []>} : vector<4x4xf32>, vector<4x256xf32>, vector<4x256xf32> -> vector<4x256xf32>
    %74 = arith.addf %69, %73 : vector<4x256xf32>
    %c0_50 = arith.constant 0 : index
    %c129 = arith.constant 129 : index
    %75 = vector.load %arg11[%c0_50, %c129] : memref<4x401xf32, #tpu.memory_space<vmem>>, vector<4x256xf32>
    %cst_51 = arith.constant 0.000000e+00 : f32
    %76 = vector.shape_cast %20 : vector<1x256xi1> to vector<1x256xi1>
    %77 = vector.broadcast %76 : vector<1x256xi1> to vector<4x256xi1>
    %78 = vector.broadcast %cst_51 : f32 to vector<4x256xf32>
    %79 = arith.select %77, %75, %78 : vector<4x256xi1>, vector<4x256xf32>
    %c0_52 = arith.constant 0 : index
    %c5 = arith.constant 5 : index
    %c0_53 = arith.constant 0 : index
    %c0_54 = arith.constant 0 : index
    %80 = vector.load %arg4[%c0_52, %c5, %c0_53, %c0_54] : memref<6x9x4x4xf32, #tpu.memory_space<vmem>>, vector<1x1x4x4xf32>
    %81 = vector.shape_cast %80 : vector<1x1x4x4xf32> to vector<4x4xf32>
    %cst_55 = arith.constant dense<0.000000e+00> : vector<4x256xf32>
    %82 = tpu.matmul %81, %79, %cst_55 {dimension_numbers = #tpu.dot_dimension_numbers<[1], [0], [0], [1], [0, 0, 1, 1], [], []>} : vector<4x4xf32>, vector<4x256xf32>, vector<4x256xf32> -> vector<4x256xf32>
    %83 = arith.addf %74, %82 : vector<4x256xf32>
    %c0_56 = arith.constant 0 : index
    %c143 = arith.constant 143 : index
    %84 = vector.load %arg11[%c0_56, %c143] : memref<4x401xf32, #tpu.memory_space<vmem>>, vector<4x256xf32>
    %cst_57 = arith.constant 0.000000e+00 : f32
    %85 = vector.shape_cast %18 : vector<1x256xi1> to vector<1x256xi1>
    %86 = vector.broadcast %85 : vector<1x256xi1> to vector<4x256xi1>
    %87 = vector.broadcast %cst_57 : f32 to vector<4x256xf32>
    %88 = arith.select %86, %84, %87 : vector<4x256xi1>, vector<4x256xf32>
    %c0_58 = arith.constant 0 : index
    %c6 = arith.constant 6 : index
    %c0_59 = arith.constant 0 : index
    %c0_60 = arith.constant 0 : index
    %89 = vector.load %arg4[%c0_58, %c6, %c0_59, %c0_60] : memref<6x9x4x4xf32, #tpu.memory_space<vmem>>, vector<1x1x4x4xf32>
    %90 = vector.shape_cast %89 : vector<1x1x4x4xf32> to vector<4x4xf32>
    %cst_61 = arith.constant dense<0.000000e+00> : vector<4x256xf32>
    %91 = tpu.matmul %90, %88, %cst_61 {dimension_numbers = #tpu.dot_dimension_numbers<[1], [0], [0], [1], [0, 0, 1, 1], [], []>} : vector<4x4xf32>, vector<4x256xf32>, vector<4x256xf32> -> vector<4x256xf32>
    %92 = arith.addf %83, %91 : vector<4x256xf32>
    %c0_62 = arith.constant 0 : index
    %c144 = arith.constant 144 : index
    %93 = vector.load %arg11[%c0_62, %c144] : memref<4x401xf32, #tpu.memory_space<vmem>>, vector<4x256xf32>
    %c0_63 = arith.constant 0 : index
    %c7 = arith.constant 7 : index
    %c0_64 = arith.constant 0 : index
    %c0_65 = arith.constant 0 : index
    %94 = vector.load %arg4[%c0_63, %c7, %c0_64, %c0_65] : memref<6x9x4x4xf32, #tpu.memory_space<vmem>>, vector<1x1x4x4xf32>
    %95 = vector.shape_cast %94 : vector<1x1x4x4xf32> to vector<4x4xf32>
    %cst_66 = arith.constant dense<0.000000e+00> : vector<4x256xf32>
    %96 = tpu.matmul %95, %93, %cst_66 {dimension_numbers = #tpu.dot_dimension_numbers<[1], [0], [0], [1], [0, 0, 1, 1], [], []>} : vector<4x4xf32>, vector<4x256xf32>, vector<4x256xf32> -> vector<4x256xf32>
    %97 = arith.addf %92, %96 : vector<4x256xf32>
    %c0_67 = arith.constant 0 : index
    %c145 = arith.constant 145 : index
    %98 = vector.load %arg11[%c0_67, %c145] : memref<4x401xf32, #tpu.memory_space<vmem>>, vector<4x256xf32>
    %cst_68 = arith.constant 0.000000e+00 : f32
    %99 = vector.shape_cast %20 : vector<1x256xi1> to vector<1x256xi1>
    %100 = vector.broadcast %99 : vector<1x256xi1> to vector<4x256xi1>
    %101 = vector.broadcast %cst_68 : f32 to vector<4x256xf32>
    %102 = arith.select %100, %98, %101 : vector<4x256xi1>, vector<4x256xf32>
    %c0_69 = arith.constant 0 : index
    %c8 = arith.constant 8 : index
    %c0_70 = arith.constant 0 : index
    %c0_71 = arith.constant 0 : index
    %103 = vector.load %arg4[%c0_69, %c8, %c0_70, %c0_71] : memref<6x9x4x4xf32, #tpu.memory_space<vmem>>, vector<1x1x4x4xf32>
    %104 = vector.shape_cast %103 : vector<1x1x4x4xf32> to vector<4x4xf32>
    %cst_72 = arith.constant dense<0.000000e+00> : vector<4x256xf32>
    %105 = tpu.matmul %104, %102, %cst_72 {dimension_numbers = #tpu.dot_dimension_numbers<[1], [0], [0], [1], [0, 0, 1, 1], [], []>} : vector<4x4xf32>, vector<4x256xf32>, vector<4x256xf32> -> vector<4x256xf32>
    %106 = arith.addf %97, %105 : vector<4x256xf32>
    %c0_73 = arith.constant 0 : index
    %c0_74 = arith.constant 0 : index
    %c0_75 = arith.constant 0 : index
    %107 = vector.load %arg5[%c0_73, %c0_74, %c0_75] : memref<6x4x1xf32, #tpu.memory_space<vmem>>, vector<1x4x1xf32>
    %108 = vector.shape_cast %107 : vector<1x4x1xf32> to vector<4x1xf32>
    %109 = vector.broadcast %108 : vector<4x1xf32> to vector<4x256xf32>
    %110 = arith.addf %106, %109 : vector<4x256xf32>
    %cst_76 = arith.constant 0.000000e+00 : f32
    %111 = vector.broadcast %cst_76 : f32 to vector<4x256xf32>
    %112 = arith.maximumf %110, %111 : vector<4x256xf32>
    %c0_77 = arith.constant 0 : index
    %c0_78 = arith.constant 0 : index
    %c0_79 = arith.constant 0 : index
    %113 = vector.load %arg6[%c0_77, %c0_78, %c0_79] : memref<6x8x4xf32, #tpu.memory_space<vmem>>, vector<1x8x4xf32>
    %114 = vector.shape_cast %113 : vector<1x8x4xf32> to vector<8x4xf32>
    %c0_80 = arith.constant 0 : index
    %c0_81 = arith.constant 0 : index
    %c0_82 = arith.constant 0 : index
    %115 = vector.load %arg7[%c0_80, %c0_81, %c0_82] : memref<6x8x1xf32, #tpu.memory_space<vmem>>, vector<1x8x1xf32>
    %116 = vector.shape_cast %115 : vector<1x8x1xf32> to vector<8x1xf32>
    %cst_83 = arith.constant dense<0.000000e+00> : vector<8x256xf32>
    %117 = tpu.matmul %114, %112, %cst_83 {dimension_numbers = #tpu.dot_dimension_numbers<[1], [0], [0], [1], [0, 0, 1, 1], [], []>} : vector<8x4xf32>, vector<4x256xf32>, vector<8x256xf32> -> vector<8x256xf32>
    %118 = vector.broadcast %116 : vector<8x1xf32> to vector<8x256xf32>
    %119 = arith.addf %117, %118 : vector<8x256xf32>
    %120 = arith.addf %119, %26 : vector<8x256xf32>
    %cst_84 = arith.constant 0.000000e+00 : f32
    %121 = vector.broadcast %cst_84 : f32 to vector<8x256xf32>
    %122 = arith.maximumf %120, %121 : vector<8x256xf32>
    %c1_85 = arith.constant 1 : index
    %c0_86 = arith.constant 0 : index
    %c0_87 = arith.constant 0 : index
    %123 = vector.load %arg2[%c1_85, %c0_86, %c0_87] : memref<6x4x8xf32, #tpu.memory_space<vmem>>, vector<1x4x8xf32>
    %124 = vector.shape_cast %123 : vector<1x4x8xf32> to vector<4x8xf32>
    %c1_88 = arith.constant 1 : index
    %c0_89 = arith.constant 0 : index
    %c0_90 = arith.constant 0 : index
    %125 = vector.load %arg3[%c1_88, %c0_89, %c0_90] : memref<6x4x1xf32, #tpu.memory_space<vmem>>, vector<1x4x1xf32>
    %126 = vector.shape_cast %125 : vector<1x4x1xf32> to vector<4x1xf32>
    %cst_91 = arith.constant dense<0.000000e+00> : vector<4x256xf32>
    %127 = tpu.matmul %124, %122, %cst_91 {dimension_numbers = #tpu.dot_dimension_numbers<[1], [0], [0], [1], [0, 0, 1, 1], [], []>} : vector<4x8xf32>, vector<8x256xf32>, vector<4x256xf32> -> vector<4x256xf32>
    %128 = vector.broadcast %126 : vector<4x1xf32> to vector<4x256xf32>
    %129 = arith.addf %127, %128 : vector<4x256xf32>
    %cst_92 = arith.constant 0.000000e+00 : f32
    %130 = vector.broadcast %cst_92 : f32 to vector<4x256xf32>
    %131 = arith.maximumf %129, %130 : vector<4x256xf32>
    %c0_93 = arith.constant 0 : index
    %c128_94 = arith.constant 128 : index
    %132 = vector.load %arg11[%c0_93, %c128_94] : memref<4x401xf32, #tpu.memory_space<vmem>>, vector<4x256xf32>
    tpu.vector_store %arg11[%c0_93, %c128_94], %131 {strides = array<i32>} : memref<4x401xf32, #tpu.memory_space<vmem>>, vector<4x256xf32>,
    %cst_95 = arith.constant 0.000000e+00 : f32
    %133 = vector.broadcast %cst_95 : f32 to vector<4x256xf32>
    %c0_96 = arith.constant 0 : index
    %c111_97 = arith.constant 111 : index
    %134 = vector.load %arg11[%c0_96, %c111_97] : memref<4x401xf32, #tpu.memory_space<vmem>>, vector<4x256xf32>
    %cst_98 = arith.constant 0.000000e+00 : f32
    %135 = vector.shape_cast %18 : vector<1x256xi1> to vector<1x256xi1>
    %136 = vector.broadcast %135 : vector<1x256xi1> to vector<4x256xi1>
    %137 = vector.broadcast %cst_98 : f32 to vector<4x256xf32>
    %138 = arith.select %136, %134, %137 : vector<4x256xi1>, vector<4x256xf32>
    %c1_99 = arith.constant 1 : index
    %c0_100 = arith.constant 0 : index
    %c0_101 = arith.constant 0 : index
    %c0_102 = arith.constant 0 : index
    %139 = vector.load %arg4[%c1_99, %c0_100, %c0_101, %c0_102] : memref<6x9x4x4xf32, #tpu.memory_space<vmem>>, vector<1x1x4x4xf32>
    %140 = vector.shape_cast %139 : vector<1x1x4x4xf32> to vector<4x4xf32>
    %cst_103 = arith.constant dense<0.000000e+00> : vector<4x256xf32>
    %141 = tpu.matmul %140, %138, %cst_103 {dimension_numbers = #tpu.dot_dimension_numbers<[1], [0], [0], [1], [0, 0, 1, 1], [], []>} : vector<4x4xf32>, vector<4x256xf32>, vector<4x256xf32> -> vector<4x256xf32>
    %142 = arith.addf %133, %141 : vector<4x256xf32>
    %c0_104 = arith.constant 0 : index
    %c112_105 = arith.constant 112 : index
    %143 = vector.load %arg11[%c0_104, %c112_105] : memref<4x401xf32, #tpu.memory_space<vmem>>, vector<4x256xf32>
    %c1_106 = arith.constant 1 : index
    %c1_107 = arith.constant 1 : index
    %c0_108 = arith.constant 0 : index
    %c0_109 = arith.constant 0 : index
    %144 = vector.load %arg4[%c1_106, %c1_107, %c0_108, %c0_109] : memref<6x9x4x4xf32, #tpu.memory_space<vmem>>, vector<1x1x4x4xf32>
    %145 = vector.shape_cast %144 : vector<1x1x4x4xf32> to vector<4x4xf32>
    %cst_110 = arith.constant dense<0.000000e+00> : vector<4x256xf32>
    %146 = tpu.matmul %145, %143, %cst_110 {dimension_numbers = #tpu.dot_dimension_numbers<[1], [0], [0], [1], [0, 0, 1, 1], [], []>} : vector<4x4xf32>, vector<4x256xf32>, vector<4x256xf32> -> vector<4x256xf32>
    %147 = arith.addf %142, %146 : vector<4x256xf32>
    %c0_111 = arith.constant 0 : index
    %c113_112 = arith.constant 113 : index
    %148 = vector.load %arg11[%c0_111, %c113_112] : memref<4x401xf32, #tpu.memory_space<vmem>>, vector<4x256xf32>
    %cst_113 = arith.constant 0.000000e+00 : f32
    %149 = vector.shape_cast %20 : vector<1x256xi1> to vector<1x256xi1>
    %150 = vector.broadcast %149 : vector<1x256xi1> to vector<4x256xi1>
    %151 = vector.broadcast %cst_113 : f32 to vector<4x256xf32>
    %152 = arith.select %150, %148, %151 : vector<4x256xi1>, vector<4x256xf32>
    %c1_114 = arith.constant 1 : index
    %c2_115 = arith.constant 2 : index
    %c0_116 = arith.constant 0 : index
    %c0_117 = arith.constant 0 : index
    %153 = vector.load %arg4[%c1_114, %c2_115, %c0_116, %c0_117] : memref<6x9x4x4xf32, #tpu.memory_space<vmem>>, vector<1x1x4x4xf32>
    %154 = vector.shape_cast %153 : vector<1x1x4x4xf32> to vector<4x4xf32>
    %cst_118 = arith.constant dense<0.000000e+00> : vector<4x256xf32>
    %155 = tpu.matmul %154, %152, %cst_118 {dimension_numbers = #tpu.dot_dimension_numbers<[1], [0], [0], [1], [0, 0, 1, 1], [], []>} : vector<4x4xf32>, vector<4x256xf32>, vector<4x256xf32> -> vector<4x256xf32>
    %156 = arith.addf %147, %155 : vector<4x256xf32>
    %c0_119 = arith.constant 0 : index
    %c127_120 = arith.constant 127 : index
    %157 = vector.load %arg11[%c0_119, %c127_120] : memref<4x401xf32, #tpu.memory_space<vmem>>, vector<4x256xf32>
    %cst_121 = arith.constant 0.000000e+00 : f32
    %158 = vector.shape_cast %18 : vector<1x256xi1> to vector<1x256xi1>
    %159 = vector.broadcast %158 : vector<1x256xi1> to vector<4x256xi1>
    %160 = vector.broadcast %cst_121 : f32 to vector<4x256xf32>
    %161 = arith.select %159, %157, %160 : vector<4x256xi1>, vector<4x256xf32>
    %c1_122 = arith.constant 1 : index
    %c3_123 = arith.constant 3 : index
    %c0_124 = arith.constant 0 : index
    %c0_125 = arith.constant 0 : index
    %162 = vector.load %arg4[%c1_122, %c3_123, %c0_124, %c0_125] : memref<6x9x4x4xf32, #tpu.memory_space<vmem>>, vector<1x1x4x4xf32>
    %163 = vector.shape_cast %162 : vector<1x1x4x4xf32> to vector<4x4xf32>
    %cst_126 = arith.constant dense<0.000000e+00> : vector<4x256xf32>
    %164 = tpu.matmul %163, %161, %cst_126 {dimension_numbers = #tpu.dot_dimension_numbers<[1], [0], [0], [1], [0, 0, 1, 1], [], []>} : vector<4x4xf32>, vector<4x256xf32>, vector<4x256xf32> -> vector<4x256xf32>
    %165 = arith.addf %156, %164 : vector<4x256xf32>
    %c0_127 = arith.constant 0 : index
    %c128_128 = arith.constant 128 : index
    %166 = vector.load %arg11[%c0_127, %c128_128] : memref<4x401xf32, #tpu.memory_space<vmem>>, vector<4x256xf32>
    %c1_129 = arith.constant 1 : index
    %c4_130 = arith.constant 4 : index
    %c0_131 = arith.constant 0 : index
    %c0_132 = arith.constant 0 : index
    %167 = vector.load %arg4[%c1_129, %c4_130, %c0_131, %c0_132] : memref<6x9x4x4xf32, #tpu.memory_space<vmem>>, vector<1x1x4x4xf32>
    %168 = vector.shape_cast %167 : vector<1x1x4x4xf32> to vector<4x4xf32>
    %cst_133 = arith.constant dense<0.000000e+00> : vector<4x256xf32>
    %169 = tpu.matmul %168, %166, %cst_133 {dimension_numbers = #tpu.dot_dimension_numbers<[1], [0], [0], [1], [0, 0, 1, 1], [], []>} : vector<4x4xf32>, vector<4x256xf32>, vector<4x256xf32> -> vector<4x256xf32>
    %170 = arith.addf %165, %169 : vector<4x256xf32>
    %c0_134 = arith.constant 0 : index
    %c129_135 = arith.constant 129 : index
    %171 = vector.load %arg11[%c0_134, %c129_135] : memref<4x401xf32, #tpu.memory_space<vmem>>, vector<4x256xf32>
    %cst_136 = arith.constant 0.000000e+00 : f32
    %172 = vector.shape_cast %20 : vector<1x256xi1> to vector<1x256xi1>
    %173 = vector.broadcast %172 : vector<1x256xi1> to vector<4x256xi1>
    %174 = vector.broadcast %cst_136 : f32 to vector<4x256xf32>
    %175 = arith.select %173, %171, %174 : vector<4x256xi1>, vector<4x256xf32>
    %c1_137 = arith.constant 1 : index
    %c5_138 = arith.constant 5 : index
    %c0_139 = arith.constant 0 : index
    %c0_140 = arith.constant 0 : index
    %176 = vector.load %arg4[%c1_137, %c5_138, %c0_139, %c0_140] : memref<6x9x4x4xf32, #tpu.memory_space<vmem>>, vector<1x1x4x4xf32>
    %177 = vector.shape_cast %176 : vector<1x1x4x4xf32> to vector<4x4xf32>
    %cst_141 = arith.constant dense<0.000000e+00> : vector<4x256xf32>
    %178 = tpu.matmul %177, %175, %cst_141 {dimension_numbers = #tpu.dot_dimension_numbers<[1], [0], [0], [1], [0, 0, 1, 1], [], []>} : vector<4x4xf32>, vector<4x256xf32>, vector<4x256xf32> -> vector<4x256xf32>
    %179 = arith.addf %170, %178 : vector<4x256xf32>
    %c0_142 = arith.constant 0 : index
    %c143_143 = arith.constant 143 : index
    %180 = vector.load %arg11[%c0_142, %c143_143] : memref<4x401xf32, #tpu.memory_space<vmem>>, vector<4x256xf32>
    %cst_144 = arith.constant 0.000000e+00 : f32
    %181 = vector.shape_cast %18 : vector<1x256xi1> to vector<1x256xi1>
    %182 = vector.broadcast %181 : vector<1x256xi1> to vector<4x256xi1>
    %183 = vector.broadcast %cst_144 : f32 to vector<4x256xf32>
    %184 = arith.select %182, %180, %183 : vector<4x256xi1>, vector<4x256xf32>
    %c1_145 = arith.constant 1 : index
    %c6_146 = arith.constant 6 : index
    %c0_147 = arith.constant 0 : index
    %c0_148 = arith.constant 0 : index
    %185 = vector.load %arg4[%c1_145, %c6_146, %c0_147, %c0_148] : memref<6x9x4x4xf32, #tpu.memory_space<vmem>>, vector<1x1x4x4xf32>
    %186 = vector.shape_cast %185 : vector<1x1x4x4xf32> to vector<4x4xf32>
    %cst_149 = arith.constant dense<0.000000e+00> : vector<4x256xf32>
    %187 = tpu.matmul %186, %184, %cst_149 {dimension_numbers = #tpu.dot_dimension_numbers<[1], [0], [0], [1], [0, 0, 1, 1], [], []>} : vector<4x4xf32>, vector<4x256xf32>, vector<4x256xf32> -> vector<4x256xf32>
    %188 = arith.addf %179, %187 : vector<4x256xf32>
    %c0_150 = arith.constant 0 : index
    %c144_151 = arith.constant 144 : index
    %189 = vector.load %arg11[%c0_150, %c144_151] : memref<4x401xf32, #tpu.memory_space<vmem>>, vector<4x256xf32>
    %c1_152 = arith.constant 1 : index
    %c7_153 = arith.constant 7 : index
    %c0_154 = arith.constant 0 : index
    %c0_155 = arith.constant 0 : index
    %190 = vector.load %arg4[%c1_152, %c7_153, %c0_154, %c0_155] : memref<6x9x4x4xf32, #tpu.memory_space<vmem>>, vector<1x1x4x4xf32>
    %191 = vector.shape_cast %190 : vector<1x1x4x4xf32> to vector<4x4xf32>
    %cst_156 = arith.constant dense<0.000000e+00> : vector<4x256xf32>
    %192 = tpu.matmul %191, %189, %cst_156 {dimension_numbers = #tpu.dot_dimension_numbers<[1], [0], [0], [1], [0, 0, 1, 1], [], []>} : vector<4x4xf32>, vector<4x256xf32>, vector<4x256xf32> -> vector<4x256xf32>
    %193 = arith.addf %188, %192 : vector<4x256xf32>
    %c0_157 = arith.constant 0 : index
    %c145_158 = arith.constant 145 : index
    %194 = vector.load %arg11[%c0_157, %c145_158] : memref<4x401xf32, #tpu.memory_space<vmem>>, vector<4x256xf32>
    %cst_159 = arith.constant 0.000000e+00 : f32
    %195 = vector.shape_cast %20 : vector<1x256xi1> to vector<1x256xi1>
    %196 = vector.broadcast %195 : vector<1x256xi1> to vector<4x256xi1>
    %197 = vector.broadcast %cst_159 : f32 to vector<4x256xf32>
    %198 = arith.select %196, %194, %197 : vector<4x256xi1>, vector<4x256xf32>
    %c1_160 = arith.constant 1 : index
    %c8_161 = arith.constant 8 : index
    %c0_162 = arith.constant 0 : index
    %c0_163 = arith.constant 0 : index
    %199 = vector.load %arg4[%c1_160, %c8_161, %c0_162, %c0_163] : memref<6x9x4x4xf32, #tpu.memory_space<vmem>>, vector<1x1x4x4xf32>
    %200 = vector.shape_cast %199 : vector<1x1x4x4xf32> to vector<4x4xf32>
    %cst_164 = arith.constant dense<0.000000e+00> : vector<4x256xf32>
    %201 = tpu.matmul %200, %198, %cst_164 {dimension_numbers = #tpu.dot_dimension_numbers<[1], [0], [0], [1], [0, 0, 1, 1], [], []>} : vector<4x4xf32>, vector<4x256xf32>, vector<4x256xf32> -> vector<4x256xf32>
    %202 = arith.addf %193, %201 : vector<4x256xf32>
    %c1_165 = arith.constant 1 : index
    %c0_166 = arith.constant 0 : index
    %c0_167 = arith.constant 0 : index
    %203 = vector.load %arg5[%c1_165, %c0_166, %c0_167] : memref<6x4x1xf32, #tpu.memory_space<vmem>>, vector<1x4x1xf32>
    %204 = vector.shape_cast %203 : vector<1x4x1xf32> to vector<4x1xf32>
    %205 = vector.broadcast %204 : vector<4x1xf32> to vector<4x256xf32>
    %206 = arith.addf %202, %205 : vector<4x256xf32>
    %cst_168 = arith.constant 0.000000e+00 : f32
    %207 = vector.broadcast %cst_168 : f32 to vector<4x256xf32>
    %208 = arith.maximumf %206, %207 : vector<4x256xf32>
    %c1_169 = arith.constant 1 : index
    %c0_170 = arith.constant 0 : index
    %c0_171 = arith.constant 0 : index
    %209 = vector.load %arg6[%c1_169, %c0_170, %c0_171] : memref<6x8x4xf32, #tpu.memory_space<vmem>>, vector<1x8x4xf32>
    %210 = vector.shape_cast %209 : vector<1x8x4xf32> to vector<8x4xf32>
    %c1_172 = arith.constant 1 : index
    %c0_173 = arith.constant 0 : index
    %c0_174 = arith.constant 0 : index
    %211 = vector.load %arg7[%c1_172, %c0_173, %c0_174] : memref<6x8x1xf32, #tpu.memory_space<vmem>>, vector<1x8x1xf32>
    %212 = vector.shape_cast %211 : vector<1x8x1xf32> to vector<8x1xf32>
    %cst_175 = arith.constant dense<0.000000e+00> : vector<8x256xf32>
    %213 = tpu.matmul %210, %208, %cst_175 {dimension_numbers = #tpu.dot_dimension_numbers<[1], [0], [0], [1], [0, 0, 1, 1], [], []>} : vector<8x4xf32>, vector<4x256xf32>, vector<8x256xf32> -> vector<8x256xf32>
    %214 = vector.broadcast %212 : vector<8x1xf32> to vector<8x256xf32>
    %215 = arith.addf %213, %214 : vector<8x256xf32>
    %216 = arith.addf %215, %122 : vector<8x256xf32>
    %cst_176 = arith.constant 0.000000e+00 : f32
    %217 = vector.broadcast %cst_176 : f32 to vector<8x256xf32>
    %218 = arith.maximumf %216, %217 : vector<8x256xf32>
    %c2_177 = arith.constant 2 : index
    %c0_178 = arith.constant 0 : index
    %c0_179 = arith.constant 0 : index
    %219 = vector.load %arg2[%c2_177, %c0_178, %c0_179] : memref<6x4x8xf32, #tpu.memory_space<vmem>>, vector<1x4x8xf32>
    %220 = vector.shape_cast %219 : vector<1x4x8xf32> to vector<4x8xf32>
    %c2_180 = arith.constant 2 : index
    %c0_181 = arith.constant 0 : index
    %c0_182 = arith.constant 0 : index
    %221 = vector.load %arg3[%c2_180, %c0_181, %c0_182] : memref<6x4x1xf32, #tpu.memory_space<vmem>>, vector<1x4x1xf32>
    %222 = vector.shape_cast %221 : vector<1x4x1xf32> to vector<4x1xf32>
    %cst_183 = arith.constant dense<0.000000e+00> : vector<4x256xf32>
    %223 = tpu.matmul %220, %218, %cst_183 {dimension_numbers = #tpu.dot_dimension_numbers<[1], [0], [0], [1], [0, 0, 1, 1], [], []>} : vector<4x8xf32>, vector<8x256xf32>, vector<4x256xf32> -> vector<4x256xf32>
    %224 = vector.broadcast %222 : vector<4x1xf32> to vector<4x256xf32>
    %225 = arith.addf %223, %224 : vector<4x256xf32>
    %cst_184 = arith.constant 0.000000e+00 : f32
    %226 = vector.broadcast %cst_184 : f32 to vector<4x256xf32>
    %227 = arith.maximumf %225, %226 : vector<4x256xf32>
    %c0_185 = arith.constant 0 : index
    %c128_186 = arith.constant 128 : index
    %228 = vector.load %arg11[%c0_185, %c128_186] : memref<4x401xf32, #tpu.memory_space<vmem>>, vector<4x256xf32>
    tpu.vector_store %arg11[%c0_185, %c128_186], %227 {strides = array<i32>} : memref<4x401xf32, #tpu.memory_space<vmem>>, vector<4x256xf32>,
    %cst_187 = arith.constant 0.000000e+00 : f32
    %229 = vector.broadcast %cst_187 : f32 to vector<4x256xf32>
    %c0_188 = arith.constant 0 : index
    %c111_189 = arith.constant 111 : index
    %230 = vector.load %arg11[%c0_188, %c111_189] : memref<4x401xf32, #tpu.memory_space<vmem>>, vector<4x256xf32>
    %cst_190 = arith.constant 0.000000e+00 : f32
    %231 = vector.shape_cast %18 : vector<1x256xi1> to vector<1x256xi1>
    %232 = vector.broadcast %231 : vector<1x256xi1> to vector<4x256xi1>
    %233 = vector.broadcast %cst_190 : f32 to vector<4x256xf32>
    %234 = arith.select %232, %230, %233 : vector<4x256xi1>, vector<4x256xf32>
    %c2_191 = arith.constant 2 : index
    %c0_192 = arith.constant 0 : index
    %c0_193 = arith.constant 0 : index
    %c0_194 = arith.constant 0 : index
    %235 = vector.load %arg4[%c2_191, %c0_192, %c0_193, %c0_194] : memref<6x9x4x4xf32, #tpu.memory_space<vmem>>, vector<1x1x4x4xf32>
    %236 = vector.shape_cast %235 : vector<1x1x4x4xf32> to vector<4x4xf32>
    %cst_195 = arith.constant dense<0.000000e+00> : vector<4x256xf32>
    %237 = tpu.matmul %236, %234, %cst_195 {dimension_numbers = #tpu.dot_dimension_numbers<[1], [0], [0], [1], [0, 0, 1, 1], [], []>} : vector<4x4xf32>, vector<4x256xf32>, vector<4x256xf32> -> vector<4x256xf32>
    %238 = arith.addf %229, %237 : vector<4x256xf32>
    %c0_196 = arith.constant 0 : index
    %c112_197 = arith.constant 112 : index
    %239 = vector.load %arg11[%c0_196, %c112_197] : memref<4x401xf32, #tpu.memory_space<vmem>>, vector<4x256xf32>
    %c2_198 = arith.constant 2 : index
    %c1_199 = arith.constant 1 : index
    %c0_200 = arith.constant 0 : index
    %c0_201 = arith.constant 0 : index
    %240 = vector.load %arg4[%c2_198, %c1_199, %c0_200, %c0_201] : memref<6x9x4x4xf32, #tpu.memory_space<vmem>>, vector<1x1x4x4xf32>
    %241 = vector.shape_cast %240 : vector<1x1x4x4xf32> to vector<4x4xf32>
    %cst_202 = arith.constant dense<0.000000e+00> : vector<4x256xf32>
    %242 = tpu.matmul %241, %239, %cst_202 {dimension_numbers = #tpu.dot_dimension_numbers<[1], [0], [0], [1], [0, 0, 1, 1], [], []>} : vector<4x4xf32>, vector<4x256xf32>, vector<4x256xf32> -> vector<4x256xf32>
    %243 = arith.addf %238, %242 : vector<4x256xf32>
    %c0_203 = arith.constant 0 : index
    %c113_204 = arith.constant 113 : index
    %244 = vector.load %arg11[%c0_203, %c113_204] : memref<4x401xf32, #tpu.memory_space<vmem>>, vector<4x256xf32>
    %cst_205 = arith.constant 0.000000e+00 : f32
    %245 = vector.shape_cast %20 : vector<1x256xi1> to vector<1x256xi1>
    %246 = vector.broadcast %245 : vector<1x256xi1> to vector<4x256xi1>
    %247 = vector.broadcast %cst_205 : f32 to vector<4x256xf32>
    %248 = arith.select %246, %244, %247 : vector<4x256xi1>, vector<4x256xf32>
    %c2_206 = arith.constant 2 : index
    %c2_207 = arith.constant 2 : index
    %c0_208 = arith.constant 0 : index
    %c0_209 = arith.constant 0 : index
    %249 = vector.load %arg4[%c2_206, %c2_207, %c0_208, %c0_209] : memref<6x9x4x4xf32, #tpu.memory_space<vmem>>, vector<1x1x4x4xf32>
    %250 = vector.shape_cast %249 : vector<1x1x4x4xf32> to vector<4x4xf32>
    %cst_210 = arith.constant dense<0.000000e+00> : vector<4x256xf32>
    %251 = tpu.matmul %250, %248, %cst_210 {dimension_numbers = #tpu.dot_dimension_numbers<[1], [0], [0], [1], [0, 0, 1, 1], [], []>} : vector<4x4xf32>, vector<4x256xf32>, vector<4x256xf32> -> vector<4x256xf32>
    %252 = arith.addf %243, %251 : vector<4x256xf32>
    %c0_211 = arith.constant 0 : index
    %c127_212 = arith.constant 127 : index
    %253 = vector.load %arg11[%c0_211, %c127_212] : memref<4x401xf32, #tpu.memory_space<vmem>>, vector<4x256xf32>
    %cst_213 = arith.constant 0.000000e+00 : f32
    %254 = vector.shape_cast %18 : vector<1x256xi1> to vector<1x256xi1>
    %255 = vector.broadcast %254 : vector<1x256xi1> to vector<4x256xi1>
    %256 = vector.broadcast %cst_213 : f32 to vector<4x256xf32>
    %257 = arith.select %255, %253, %256 : vector<4x256xi1>, vector<4x256xf32>
    %c2_214 = arith.constant 2 : index
    %c3_215 = arith.constant 3 : index
    %c0_216 = arith.constant 0 : index
    %c0_217 = arith.constant 0 : index
    %258 = vector.load %arg4[%c2_214, %c3_215, %c0_216, %c0_217] : memref<6x9x4x4xf32, #tpu.memory_space<vmem>>, vector<1x1x4x4xf32>
    %259 = vector.shape_cast %258 : vector<1x1x4x4xf32> to vector<4x4xf32>
    %cst_218 = arith.constant dense<0.000000e+00> : vector<4x256xf32>
    %260 = tpu.matmul %259, %257, %cst_218 {dimension_numbers = #tpu.dot_dimension_numbers<[1], [0], [0], [1], [0, 0, 1, 1], [], []>} : vector<4x4xf32>, vector<4x256xf32>, vector<4x256xf32> -> vector<4x256xf32>
    %261 = arith.addf %252, %260 : vector<4x256xf32>
    %c0_219 = arith.constant 0 : index
    %c128_220 = arith.constant 128 : index
    %262 = vector.load %arg11[%c0_219, %c128_220] : memref<4x401xf32, #tpu.memory_space<vmem>>, vector<4x256xf32>
    %c2_221 = arith.constant 2 : index
    %c4_222 = arith.constant 4 : index
    %c0_223 = arith.constant 0 : index
    %c0_224 = arith.constant 0 : index
    %263 = vector.load %arg4[%c2_221, %c4_222, %c0_223, %c0_224] : memref<6x9x4x4xf32, #tpu.memory_space<vmem>>, vector<1x1x4x4xf32>
    %264 = vector.shape_cast %263 : vector<1x1x4x4xf32> to vector<4x4xf32>
    %cst_225 = arith.constant dense<0.000000e+00> : vector<4x256xf32>
    %265 = tpu.matmul %264, %262, %cst_225 {dimension_numbers = #tpu.dot_dimension_numbers<[1], [0], [0], [1], [0, 0, 1, 1], [], []>} : vector<4x4xf32>, vector<4x256xf32>, vector<4x256xf32> -> vector<4x256xf32>
    %266 = arith.addf %261, %265 : vector<4x256xf32>
    %c0_226 = arith.constant 0 : index
    %c129_227 = arith.constant 129 : index
    %267 = vector.load %arg11[%c0_226, %c129_227] : memref<4x401xf32, #tpu.memory_space<vmem>>, vector<4x256xf32>
    %cst_228 = arith.constant 0.000000e+00 : f32
    %268 = vector.shape_cast %20 : vector<1x256xi1> to vector<1x256xi1>
    %269 = vector.broadcast %268 : vector<1x256xi1> to vector<4x256xi1>
    %270 = vector.broadcast %cst_228 : f32 to vector<4x256xf32>
    %271 = arith.select %269, %267, %270 : vector<4x256xi1>, vector<4x256xf32>
    %c2_229 = arith.constant 2 : index
    %c5_230 = arith.constant 5 : index
    %c0_231 = arith.constant 0 : index
    %c0_232 = arith.constant 0 : index
    %272 = vector.load %arg4[%c2_229, %c5_230, %c0_231, %c0_232] : memref<6x9x4x4xf32, #tpu.memory_space<vmem>>, vector<1x1x4x4xf32>
    %273 = vector.shape_cast %272 : vector<1x1x4x4xf32> to vector<4x4xf32>
    %cst_233 = arith.constant dense<0.000000e+00> : vector<4x256xf32>
    %274 = tpu.matmul %273, %271, %cst_233 {dimension_numbers = #tpu.dot_dimension_numbers<[1], [0], [0], [1], [0, 0, 1, 1], [], []>} : vector<4x4xf32>, vector<4x256xf32>, vector<4x256xf32> -> vector<4x256xf32>
    %275 = arith.addf %266, %274 : vector<4x256xf32>
    %c0_234 = arith.constant 0 : index
    %c143_235 = arith.constant 143 : index
    %276 = vector.load %arg11[%c0_234, %c143_235] : memref<4x401xf32, #tpu.memory_space<vmem>>, vector<4x256xf32>
    %cst_236 = arith.constant 0.000000e+00 : f32
    %277 = vector.shape_cast %18 : vector<1x256xi1> to vector<1x256xi1>
    %278 = vector.broadcast %277 : vector<1x256xi1> to vector<4x256xi1>
    %279 = vector.broadcast %cst_236 : f32 to vector<4x256xf32>
    %280 = arith.select %278, %276, %279 : vector<4x256xi1>, vector<4x256xf32>
    %c2_237 = arith.constant 2 : index
    %c6_238 = arith.constant 6 : index
    %c0_239 = arith.constant 0 : index
    %c0_240 = arith.constant 0 : index
    %281 = vector.load %arg4[%c2_237, %c6_238, %c0_239, %c0_240] : memref<6x9x4x4xf32, #tpu.memory_space<vmem>>, vector<1x1x4x4xf32>
    %282 = vector.shape_cast %281 : vector<1x1x4x4xf32> to vector<4x4xf32>
    %cst_241 = arith.constant dense<0.000000e+00> : vector<4x256xf32>
    %283 = tpu.matmul %282, %280, %cst_241 {dimension_numbers = #tpu.dot_dimension_numbers<[1], [0], [0], [1], [0, 0, 1, 1], [], []>} : vector<4x4xf32>, vector<4x256xf32>, vector<4x256xf32> -> vector<4x256xf32>
    %284 = arith.addf %275, %283 : vector<4x256xf32>
    %c0_242 = arith.constant 0 : index
    %c144_243 = arith.constant 144 : index
    %285 = vector.load %arg11[%c0_242, %c144_243] : memref<4x401xf32, #tpu.memory_space<vmem>>, vector<4x256xf32>
    %c2_244 = arith.constant 2 : index
    %c7_245 = arith.constant 7 : index
    %c0_246 = arith.constant 0 : index
    %c0_247 = arith.constant 0 : index
    %286 = vector.load %arg4[%c2_244, %c7_245, %c0_246, %c0_247] : memref<6x9x4x4xf32, #tpu.memory_space<vmem>>, vector<1x1x4x4xf32>
    %287 = vector.shape_cast %286 : vector<1x1x4x4xf32> to vector<4x4xf32>
    %cst_248 = arith.constant dense<0.000000e+00> : vector<4x256xf32>
    %288 = tpu.matmul %287, %285, %cst_248 {dimension_numbers = #tpu.dot_dimension_numbers<[1], [0], [0], [1], [0, 0, 1, 1], [], []>} : vector<4x4xf32>, vector<4x256xf32>, vector<4x256xf32> -> vector<4x256xf32>
    %289 = arith.addf %284, %288 : vector<4x256xf32>
    %c0_249 = arith.constant 0 : index
    %c145_250 = arith.constant 145 : index
    %290 = vector.load %arg11[%c0_249, %c145_250] : memref<4x401xf32, #tpu.memory_space<vmem>>, vector<4x256xf32>
    %cst_251 = arith.constant 0.000000e+00 : f32
    %291 = vector.shape_cast %20 : vector<1x256xi1> to vector<1x256xi1>
    %292 = vector.broadcast %291 : vector<1x256xi1> to vector<4x256xi1>
    %293 = vector.broadcast %cst_251 : f32 to vector<4x256xf32>
    %294 = arith.select %292, %290, %293 : vector<4x256xi1>, vector<4x256xf32>
    %c2_252 = arith.constant 2 : index
    %c8_253 = arith.constant 8 : index
    %c0_254 = arith.constant 0 : index
    %c0_255 = arith.constant 0 : index
    %295 = vector.load %arg4[%c2_252, %c8_253, %c0_254, %c0_255] : memref<6x9x4x4xf32, #tpu.memory_space<vmem>>, vector<1x1x4x4xf32>
    %296 = vector.shape_cast %295 : vector<1x1x4x4xf32> to vector<4x4xf32>
    %cst_256 = arith.constant dense<0.000000e+00> : vector<4x256xf32>
    %297 = tpu.matmul %296, %294, %cst_256 {dimension_numbers = #tpu.dot_dimension_numbers<[1], [0], [0], [1], [0, 0, 1, 1], [], []>} : vector<4x4xf32>, vector<4x256xf32>, vector<4x256xf32> -> vector<4x256xf32>
    %298 = arith.addf %289, %297 : vector<4x256xf32>
    %c2_257 = arith.constant 2 : index
    %c0_258 = arith.constant 0 : index
    %c0_259 = arith.constant 0 : index
    %299 = vector.load %arg5[%c2_257, %c0_258, %c0_259] : memref<6x4x1xf32, #tpu.memory_space<vmem>>, vector<1x4x1xf32>
    %300 = vector.shape_cast %299 : vector<1x4x1xf32> to vector<4x1xf32>
    %301 = vector.broadcast %300 : vector<4x1xf32> to vector<4x256xf32>
    %302 = arith.addf %298, %301 : vector<4x256xf32>
    %cst_260 = arith.constant 0.000000e+00 : f32
    %303 = vector.broadcast %cst_260 : f32 to vector<4x256xf32>
    %304 = arith.maximumf %302, %303 : vector<4x256xf32>
    %c2_261 = arith.constant 2 : index
    %c0_262 = arith.constant 0 : index
    %c0_263 = arith.constant 0 : index
    %305 = vector.load %arg6[%c2_261, %c0_262, %c0_263] : memref<6x8x4xf32, #tpu.memory_space<vmem>>, vector<1x8x4xf32>
    %306 = vector.shape_cast %305 : vector<1x8x4xf32> to vector<8x4xf32>
    %c2_264 = arith.constant 2 : index
    %c0_265 = arith.constant 0 : index
    %c0_266 = arith.constant 0 : index
    %307 = vector.load %arg7[%c2_264, %c0_265, %c0_266] : memref<6x8x1xf32, #tpu.memory_space<vmem>>, vector<1x8x1xf32>
    %308 = vector.shape_cast %307 : vector<1x8x1xf32> to vector<8x1xf32>
    %cst_267 = arith.constant dense<0.000000e+00> : vector<8x256xf32>
    %309 = tpu.matmul %306, %304, %cst_267 {dimension_numbers = #tpu.dot_dimension_numbers<[1], [0], [0], [1], [0, 0, 1, 1], [], []>} : vector<8x4xf32>, vector<4x256xf32>, vector<8x256xf32> -> vector<8x256xf32>
    %310 = vector.broadcast %308 : vector<8x1xf32> to vector<8x256xf32>
    %311 = arith.addf %309, %310 : vector<8x256xf32>
    %312 = arith.addf %311, %218 : vector<8x256xf32>
    %cst_268 = arith.constant 0.000000e+00 : f32
    %313 = vector.broadcast %cst_268 : f32 to vector<8x256xf32>
    %314 = arith.maximumf %312, %313 : vector<8x256xf32>
    %c3_269 = arith.constant 3 : index
    %c0_270 = arith.constant 0 : index
    %c0_271 = arith.constant 0 : index
    %315 = vector.load %arg2[%c3_269, %c0_270, %c0_271] : memref<6x4x8xf32, #tpu.memory_space<vmem>>, vector<1x4x8xf32>
    %316 = vector.shape_cast %315 : vector<1x4x8xf32> to vector<4x8xf32>
    %c3_272 = arith.constant 3 : index
    %c0_273 = arith.constant 0 : index
    %c0_274 = arith.constant 0 : index
    %317 = vector.load %arg3[%c3_272, %c0_273, %c0_274] : memref<6x4x1xf32, #tpu.memory_space<vmem>>, vector<1x4x1xf32>
    %318 = vector.shape_cast %317 : vector<1x4x1xf32> to vector<4x1xf32>
    %cst_275 = arith.constant dense<0.000000e+00> : vector<4x256xf32>
    %319 = tpu.matmul %316, %26, %cst_275 {dimension_numbers = #tpu.dot_dimension_numbers<[1], [0], [0], [1], [0, 0, 1, 1], [], []>} : vector<4x8xf32>, vector<8x256xf32>, vector<4x256xf32> -> vector<4x256xf32>
    %320 = vector.broadcast %318 : vector<4x1xf32> to vector<4x256xf32>
    %321 = arith.addf %319, %320 : vector<4x256xf32>
    %cst_276 = arith.constant 0.000000e+00 : f32
    %322 = vector.broadcast %cst_276 : f32 to vector<4x256xf32>
    %323 = arith.maximumf %321, %322 : vector<4x256xf32>
    %c0_277 = arith.constant 0 : index
    %c128_278 = arith.constant 128 : index
    %324 = vector.load %arg11[%c0_277, %c128_278] : memref<4x401xf32, #tpu.memory_space<vmem>>, vector<4x256xf32>
    tpu.vector_store %arg11[%c0_277, %c128_278], %323 {strides = array<i32>} : memref<4x401xf32, #tpu.memory_space<vmem>>, vector<4x256xf32>,
    %cst_279 = arith.constant 0.000000e+00 : f32
    %325 = vector.broadcast %cst_279 : f32 to vector<4x256xf32>
    %c0_280 = arith.constant 0 : index
    %c111_281 = arith.constant 111 : index
    %326 = vector.load %arg11[%c0_280, %c111_281] : memref<4x401xf32, #tpu.memory_space<vmem>>, vector<4x256xf32>
    %cst_282 = arith.constant 0.000000e+00 : f32
    %327 = vector.shape_cast %18 : vector<1x256xi1> to vector<1x256xi1>
    %328 = vector.broadcast %327 : vector<1x256xi1> to vector<4x256xi1>
    %329 = vector.broadcast %cst_282 : f32 to vector<4x256xf32>
    %330 = arith.select %328, %326, %329 : vector<4x256xi1>, vector<4x256xf32>
    %c3_283 = arith.constant 3 : index
    %c0_284 = arith.constant 0 : index
    %c0_285 = arith.constant 0 : index
    %c0_286 = arith.constant 0 : index
    %331 = vector.load %arg4[%c3_283, %c0_284, %c0_285, %c0_286] : memref<6x9x4x4xf32, #tpu.memory_space<vmem>>, vector<1x1x4x4xf32>
    %332 = vector.shape_cast %331 : vector<1x1x4x4xf32> to vector<4x4xf32>
    %cst_287 = arith.constant dense<0.000000e+00> : vector<4x256xf32>
    %333 = tpu.matmul %332, %330, %cst_287 {dimension_numbers = #tpu.dot_dimension_numbers<[1], [0], [0], [1], [0, 0, 1, 1], [], []>} : vector<4x4xf32>, vector<4x256xf32>, vector<4x256xf32> -> vector<4x256xf32>
    %334 = arith.addf %325, %333 : vector<4x256xf32>
    %c0_288 = arith.constant 0 : index
    %c112_289 = arith.constant 112 : index
    %335 = vector.load %arg11[%c0_288, %c112_289] : memref<4x401xf32, #tpu.memory_space<vmem>>, vector<4x256xf32>
    %c3_290 = arith.constant 3 : index
    %c1_291 = arith.constant 1 : index
    %c0_292 = arith.constant 0 : index
    %c0_293 = arith.constant 0 : index
    %336 = vector.load %arg4[%c3_290, %c1_291, %c0_292, %c0_293] : memref<6x9x4x4xf32, #tpu.memory_space<vmem>>, vector<1x1x4x4xf32>
    %337 = vector.shape_cast %336 : vector<1x1x4x4xf32> to vector<4x4xf32>
    %cst_294 = arith.constant dense<0.000000e+00> : vector<4x256xf32>
    %338 = tpu.matmul %337, %335, %cst_294 {dimension_numbers = #tpu.dot_dimension_numbers<[1], [0], [0], [1], [0, 0, 1, 1], [], []>} : vector<4x4xf32>, vector<4x256xf32>, vector<4x256xf32> -> vector<4x256xf32>
    %339 = arith.addf %334, %338 : vector<4x256xf32>
    %c0_295 = arith.constant 0 : index
    %c113_296 = arith.constant 113 : index
    %340 = vector.load %arg11[%c0_295, %c113_296] : memref<4x401xf32, #tpu.memory_space<vmem>>, vector<4x256xf32>
    %cst_297 = arith.constant 0.000000e+00 : f32
    %341 = vector.shape_cast %20 : vector<1x256xi1> to vector<1x256xi1>
    %342 = vector.broadcast %341 : vector<1x256xi1> to vector<4x256xi1>
    %343 = vector.broadcast %cst_297 : f32 to vector<4x256xf32>
    %344 = arith.select %342, %340, %343 : vector<4x256xi1>, vector<4x256xf32>
    %c3_298 = arith.constant 3 : index
    %c2_299 = arith.constant 2 : index
    %c0_300 = arith.constant 0 : index
    %c0_301 = arith.constant 0 : index
    %345 = vector.load %arg4[%c3_298, %c2_299, %c0_300, %c0_301] : memref<6x9x4x4xf32, #tpu.memory_space<vmem>>, vector<1x1x4x4xf32>
    %346 = vector.shape_cast %345 : vector<1x1x4x4xf32> to vector<4x4xf32>
    %cst_302 = arith.constant dense<0.000000e+00> : vector<4x256xf32>
    %347 = tpu.matmul %346, %344, %cst_302 {dimension_numbers = #tpu.dot_dimension_numbers<[1], [0], [0], [1], [0, 0, 1, 1], [], []>} : vector<4x4xf32>, vector<4x256xf32>, vector<4x256xf32> -> vector<4x256xf32>
    %348 = arith.addf %339, %347 : vector<4x256xf32>
    %c0_303 = arith.constant 0 : index
    %c127_304 = arith.constant 127 : index
    %349 = vector.load %arg11[%c0_303, %c127_304] : memref<4x401xf32, #tpu.memory_space<vmem>>, vector<4x256xf32>
    %cst_305 = arith.constant 0.000000e+00 : f32
    %350 = vector.shape_cast %18 : vector<1x256xi1> to vector<1x256xi1>
    %351 = vector.broadcast %350 : vector<1x256xi1> to vector<4x256xi1>
    %352 = vector.broadcast %cst_305 : f32 to vector<4x256xf32>
    %353 = arith.select %351, %349, %352 : vector<4x256xi1>, vector<4x256xf32>
    %c3_306 = arith.constant 3 : index
    %c3_307 = arith.constant 3 : index
    %c0_308 = arith.constant 0 : index
    %c0_309 = arith.constant 0 : index
    %354 = vector.load %arg4[%c3_306, %c3_307, %c0_308, %c0_309] : memref<6x9x4x4xf32, #tpu.memory_space<vmem>>, vector<1x1x4x4xf32>
    %355 = vector.shape_cast %354 : vector<1x1x4x4xf32> to vector<4x4xf32>
    %cst_310 = arith.constant dense<0.000000e+00> : vector<4x256xf32>
    %356 = tpu.matmul %355, %353, %cst_310 {dimension_numbers = #tpu.dot_dimension_numbers<[1], [0], [0], [1], [0, 0, 1, 1], [], []>} : vector<4x4xf32>, vector<4x256xf32>, vector<4x256xf32> -> vector<4x256xf32>
    %357 = arith.addf %348, %356 : vector<4x256xf32>
    %c0_311 = arith.constant 0 : index
    %c128_312 = arith.constant 128 : index
    %358 = vector.load %arg11[%c0_311, %c128_312] : memref<4x401xf32, #tpu.memory_space<vmem>>, vector<4x256xf32>
    %c3_313 = arith.constant 3 : index
    %c4_314 = arith.constant 4 : index
    %c0_315 = arith.constant 0 : index
    %c0_316 = arith.constant 0 : index
    %359 = vector.load %arg4[%c3_313, %c4_314, %c0_315, %c0_316] : memref<6x9x4x4xf32, #tpu.memory_space<vmem>>, vector<1x1x4x4xf32>
    %360 = vector.shape_cast %359 : vector<1x1x4x4xf32> to vector<4x4xf32>
    %cst_317 = arith.constant dense<0.000000e+00> : vector<4x256xf32>
    %361 = tpu.matmul %360, %358, %cst_317 {dimension_numbers = #tpu.dot_dimension_numbers<[1], [0], [0], [1], [0, 0, 1, 1], [], []>} : vector<4x4xf32>, vector<4x256xf32>, vector<4x256xf32> -> vector<4x256xf32>
    %362 = arith.addf %357, %361 : vector<4x256xf32>
    %c0_318 = arith.constant 0 : index
    %c129_319 = arith.constant 129 : index
    %363 = vector.load %arg11[%c0_318, %c129_319] : memref<4x401xf32, #tpu.memory_space<vmem>>, vector<4x256xf32>
    %cst_320 = arith.constant 0.000000e+00 : f32
    %364 = vector.shape_cast %20 : vector<1x256xi1> to vector<1x256xi1>
    %365 = vector.broadcast %364 : vector<1x256xi1> to vector<4x256xi1>
    %366 = vector.broadcast %cst_320 : f32 to vector<4x256xf32>
    %367 = arith.select %365, %363, %366 : vector<4x256xi1>, vector<4x256xf32>
    %c3_321 = arith.constant 3 : index
    %c5_322 = arith.constant 5 : index
    %c0_323 = arith.constant 0 : index
    %c0_324 = arith.constant 0 : index
    %368 = vector.load %arg4[%c3_321, %c5_322, %c0_323, %c0_324] : memref<6x9x4x4xf32, #tpu.memory_space<vmem>>, vector<1x1x4x4xf32>
    %369 = vector.shape_cast %368 : vector<1x1x4x4xf32> to vector<4x4xf32>
    %cst_325 = arith.constant dense<0.000000e+00> : vector<4x256xf32>
    %370 = tpu.matmul %369, %367, %cst_325 {dimension_numbers = #tpu.dot_dimension_numbers<[1], [0], [0], [1], [0, 0, 1, 1], [], []>} : vector<4x4xf32>, vector<4x256xf32>, vector<4x256xf32> -> vector<4x256xf32>
    %371 = arith.addf %362, %370 : vector<4x256xf32>
    %c0_326 = arith.constant 0 : index
    %c143_327 = arith.constant 143 : index
    %372 = vector.load %arg11[%c0_326, %c143_327] : memref<4x401xf32, #tpu.memory_space<vmem>>, vector<4x256xf32>
    %cst_328 = arith.constant 0.000000e+00 : f32
    %373 = vector.shape_cast %18 : vector<1x256xi1> to vector<1x256xi1>
    %374 = vector.broadcast %373 : vector<1x256xi1> to vector<4x256xi1>
    %375 = vector.broadcast %cst_328 : f32 to vector<4x256xf32>
    %376 = arith.select %374, %372, %375 : vector<4x256xi1>, vector<4x256xf32>
    %c3_329 = arith.constant 3 : index
    %c6_330 = arith.constant 6 : index
    %c0_331 = arith.constant 0 : index
    %c0_332 = arith.constant 0 : index
    %377 = vector.load %arg4[%c3_329, %c6_330, %c0_331, %c0_332] : memref<6x9x4x4xf32, #tpu.memory_space<vmem>>, vector<1x1x4x4xf32>
    %378 = vector.shape_cast %377 : vector<1x1x4x4xf32> to vector<4x4xf32>
    %cst_333 = arith.constant dense<0.000000e+00> : vector<4x256xf32>
    %379 = tpu.matmul %378, %376, %cst_333 {dimension_numbers = #tpu.dot_dimension_numbers<[1], [0], [0], [1], [0, 0, 1, 1], [], []>} : vector<4x4xf32>, vector<4x256xf32>, vector<4x256xf32> -> vector<4x256xf32>
    %380 = arith.addf %371, %379 : vector<4x256xf32>
    %c0_334 = arith.constant 0 : index
    %c144_335 = arith.constant 144 : index
    %381 = vector.load %arg11[%c0_334, %c144_335] : memref<4x401xf32, #tpu.memory_space<vmem>>, vector<4x256xf32>
    %c3_336 = arith.constant 3 : index
    %c7_337 = arith.constant 7 : index
    %c0_338 = arith.constant 0 : index
    %c0_339 = arith.constant 0 : index
    %382 = vector.load %arg4[%c3_336, %c7_337, %c0_338, %c0_339] : memref<6x9x4x4xf32, #tpu.memory_space<vmem>>, vector<1x1x4x4xf32>
    %383 = vector.shape_cast %382 : vector<1x1x4x4xf32> to vector<4x4xf32>
    %cst_340 = arith.constant dense<0.000000e+00> : vector<4x256xf32>
    %384 = tpu.matmul %383, %381, %cst_340 {dimension_numbers = #tpu.dot_dimension_numbers<[1], [0], [0], [1], [0, 0, 1, 1], [], []>} : vector<4x4xf32>, vector<4x256xf32>, vector<4x256xf32> -> vector<4x256xf32>
    %385 = arith.addf %380, %384 : vector<4x256xf32>
    %c0_341 = arith.constant 0 : index
    %c145_342 = arith.constant 145 : index
    %386 = vector.load %arg11[%c0_341, %c145_342] : memref<4x401xf32, #tpu.memory_space<vmem>>, vector<4x256xf32>
    %cst_343 = arith.constant 0.000000e+00 : f32
    %387 = vector.shape_cast %20 : vector<1x256xi1> to vector<1x256xi1>
    %388 = vector.broadcast %387 : vector<1x256xi1> to vector<4x256xi1>
    %389 = vector.broadcast %cst_343 : f32 to vector<4x256xf32>
    %390 = arith.select %388, %386, %389 : vector<4x256xi1>, vector<4x256xf32>
    %c3_344 = arith.constant 3 : index
    %c8_345 = arith.constant 8 : index
    %c0_346 = arith.constant 0 : index
    %c0_347 = arith.constant 0 : index
    %391 = vector.load %arg4[%c3_344, %c8_345, %c0_346, %c0_347] : memref<6x9x4x4xf32, #tpu.memory_space<vmem>>, vector<1x1x4x4xf32>
    %392 = vector.shape_cast %391 : vector<1x1x4x4xf32> to vector<4x4xf32>
    %cst_348 = arith.constant dense<0.000000e+00> : vector<4x256xf32>
    %393 = tpu.matmul %392, %390, %cst_348 {dimension_numbers = #tpu.dot_dimension_numbers<[1], [0], [0], [1], [0, 0, 1, 1], [], []>} : vector<4x4xf32>, vector<4x256xf32>, vector<4x256xf32> -> vector<4x256xf32>
    %394 = arith.addf %385, %393 : vector<4x256xf32>
    %c3_349 = arith.constant 3 : index
    %c0_350 = arith.constant 0 : index
    %c0_351 = arith.constant 0 : index
    %395 = vector.load %arg5[%c3_349, %c0_350, %c0_351] : memref<6x4x1xf32, #tpu.memory_space<vmem>>, vector<1x4x1xf32>
    %396 = vector.shape_cast %395 : vector<1x4x1xf32> to vector<4x1xf32>
    %397 = vector.broadcast %396 : vector<4x1xf32> to vector<4x256xf32>
    %398 = arith.addf %394, %397 : vector<4x256xf32>
    %cst_352 = arith.constant 0.000000e+00 : f32
    %399 = vector.broadcast %cst_352 : f32 to vector<4x256xf32>
    %400 = arith.maximumf %398, %399 : vector<4x256xf32>
    %c3_353 = arith.constant 3 : index
    %c0_354 = arith.constant 0 : index
    %c0_355 = arith.constant 0 : index
    %401 = vector.load %arg6[%c3_353, %c0_354, %c0_355] : memref<6x8x4xf32, #tpu.memory_space<vmem>>, vector<1x8x4xf32>
    %402 = vector.shape_cast %401 : vector<1x8x4xf32> to vector<8x4xf32>
    %c3_356 = arith.constant 3 : index
    %c0_357 = arith.constant 0 : index
    %c0_358 = arith.constant 0 : index
    %403 = vector.load %arg7[%c3_356, %c0_357, %c0_358] : memref<6x8x1xf32, #tpu.memory_space<vmem>>, vector<1x8x1xf32>
    %404 = vector.shape_cast %403 : vector<1x8x1xf32> to vector<8x1xf32>
    %cst_359 = arith.constant dense<0.000000e+00> : vector<8x256xf32>
    %405 = tpu.matmul %402, %400, %cst_359 {dimension_numbers = #tpu.dot_dimension_numbers<[1], [0], [0], [1], [0, 0, 1, 1], [], []>} : vector<8x4xf32>, vector<4x256xf32>, vector<8x256xf32> -> vector<8x256xf32>
    %406 = vector.broadcast %404 : vector<8x1xf32> to vector<8x256xf32>
    %407 = arith.addf %405, %406 : vector<8x256xf32>
    %408 = arith.addf %407, %26 : vector<8x256xf32>
    %cst_360 = arith.constant 0.000000e+00 : f32
    %409 = vector.broadcast %cst_360 : f32 to vector<8x256xf32>
    %410 = arith.maximumf %408, %409 : vector<8x256xf32>
    %c4_361 = arith.constant 4 : index
    %c0_362 = arith.constant 0 : index
    %c0_363 = arith.constant 0 : index
    %411 = vector.load %arg2[%c4_361, %c0_362, %c0_363] : memref<6x4x8xf32, #tpu.memory_space<vmem>>, vector<1x4x8xf32>
    %412 = vector.shape_cast %411 : vector<1x4x8xf32> to vector<4x8xf32>
    %c4_364 = arith.constant 4 : index
    %c0_365 = arith.constant 0 : index
    %c0_366 = arith.constant 0 : index
    %413 = vector.load %arg3[%c4_364, %c0_365, %c0_366] : memref<6x4x1xf32, #tpu.memory_space<vmem>>, vector<1x4x1xf32>
    %414 = vector.shape_cast %413 : vector<1x4x1xf32> to vector<4x1xf32>
    %cst_367 = arith.constant dense<0.000000e+00> : vector<4x256xf32>
    %415 = tpu.matmul %412, %410, %cst_367 {dimension_numbers = #tpu.dot_dimension_numbers<[1], [0], [0], [1], [0, 0, 1, 1], [], []>} : vector<4x8xf32>, vector<8x256xf32>, vector<4x256xf32> -> vector<4x256xf32>
    %416 = vector.broadcast %414 : vector<4x1xf32> to vector<4x256xf32>
    %417 = arith.addf %415, %416 : vector<4x256xf32>
    %cst_368 = arith.constant 0.000000e+00 : f32
    %418 = vector.broadcast %cst_368 : f32 to vector<4x256xf32>
    %419 = arith.maximumf %417, %418 : vector<4x256xf32>
    %c0_369 = arith.constant 0 : index
    %c128_370 = arith.constant 128 : index
    %420 = vector.load %arg11[%c0_369, %c128_370] : memref<4x401xf32, #tpu.memory_space<vmem>>, vector<4x256xf32>
    tpu.vector_store %arg11[%c0_369, %c128_370], %419 {strides = array<i32>} : memref<4x401xf32, #tpu.memory_space<vmem>>, vector<4x256xf32>,
    %cst_371 = arith.constant 0.000000e+00 : f32
    %421 = vector.broadcast %cst_371 : f32 to vector<4x256xf32>
    %c0_372 = arith.constant 0 : index
    %c111_373 = arith.constant 111 : index
    %422 = vector.load %arg11[%c0_372, %c111_373] : memref<4x401xf32, #tpu.memory_space<vmem>>, vector<4x256xf32>
    %cst_374 = arith.constant 0.000000e+00 : f32
    %423 = vector.shape_cast %18 : vector<1x256xi1> to vector<1x256xi1>
    %424 = vector.broadcast %423 : vector<1x256xi1> to vector<4x256xi1>
    %425 = vector.broadcast %cst_374 : f32 to vector<4x256xf32>
    %426 = arith.select %424, %422, %425 : vector<4x256xi1>, vector<4x256xf32>
    %c4_375 = arith.constant 4 : index
    %c0_376 = arith.constant 0 : index
    %c0_377 = arith.constant 0 : index
    %c0_378 = arith.constant 0 : index
    %427 = vector.load %arg4[%c4_375, %c0_376, %c0_377, %c0_378] : memref<6x9x4x4xf32, #tpu.memory_space<vmem>>, vector<1x1x4x4xf32>
    %428 = vector.shape_cast %427 : vector<1x1x4x4xf32> to vector<4x4xf32>
    %cst_379 = arith.constant dense<0.000000e+00> : vector<4x256xf32>
    %429 = tpu.matmul %428, %426, %cst_379 {dimension_numbers = #tpu.dot_dimension_numbers<[1], [0], [0], [1], [0, 0, 1, 1], [], []>} : vector<4x4xf32>, vector<4x256xf32>, vector<4x256xf32> -> vector<4x256xf32>
    %430 = arith.addf %421, %429 : vector<4x256xf32>
    %c0_380 = arith.constant 0 : index
    %c112_381 = arith.constant 112 : index
    %431 = vector.load %arg11[%c0_380, %c112_381] : memref<4x401xf32, #tpu.memory_space<vmem>>, vector<4x256xf32>
    %c4_382 = arith.constant 4 : index
    %c1_383 = arith.constant 1 : index
    %c0_384 = arith.constant 0 : index
    %c0_385 = arith.constant 0 : index
    %432 = vector.load %arg4[%c4_382, %c1_383, %c0_384, %c0_385] : memref<6x9x4x4xf32, #tpu.memory_space<vmem>>, vector<1x1x4x4xf32>
    %433 = vector.shape_cast %432 : vector<1x1x4x4xf32> to vector<4x4xf32>
    %cst_386 = arith.constant dense<0.000000e+00> : vector<4x256xf32>
    %434 = tpu.matmul %433, %431, %cst_386 {dimension_numbers = #tpu.dot_dimension_numbers<[1], [0], [0], [1], [0, 0, 1, 1], [], []>} : vector<4x4xf32>, vector<4x256xf32>, vector<4x256xf32> -> vector<4x256xf32>
    %435 = arith.addf %430, %434 : vector<4x256xf32>
    %c0_387 = arith.constant 0 : index
    %c113_388 = arith.constant 113 : index
    %436 = vector.load %arg11[%c0_387, %c113_388] : memref<4x401xf32, #tpu.memory_space<vmem>>, vector<4x256xf32>
    %cst_389 = arith.constant 0.000000e+00 : f32
    %437 = vector.shape_cast %20 : vector<1x256xi1> to vector<1x256xi1>
    %438 = vector.broadcast %437 : vector<1x256xi1> to vector<4x256xi1>
    %439 = vector.broadcast %cst_389 : f32 to vector<4x256xf32>
    %440 = arith.select %438, %436, %439 : vector<4x256xi1>, vector<4x256xf32>
    %c4_390 = arith.constant 4 : index
    %c2_391 = arith.constant 2 : index
    %c0_392 = arith.constant 0 : index
    %c0_393 = arith.constant 0 : index
    %441 = vector.load %arg4[%c4_390, %c2_391, %c0_392, %c0_393] : memref<6x9x4x4xf32, #tpu.memory_space<vmem>>, vector<1x1x4x4xf32>
    %442 = vector.shape_cast %441 : vector<1x1x4x4xf32> to vector<4x4xf32>
    %cst_394 = arith.constant dense<0.000000e+00> : vector<4x256xf32>
    %443 = tpu.matmul %442, %440, %cst_394 {dimension_numbers = #tpu.dot_dimension_numbers<[1], [0], [0], [1], [0, 0, 1, 1], [], []>} : vector<4x4xf32>, vector<4x256xf32>, vector<4x256xf32> -> vector<4x256xf32>
    %444 = arith.addf %435, %443 : vector<4x256xf32>
    %c0_395 = arith.constant 0 : index
    %c127_396 = arith.constant 127 : index
    %445 = vector.load %arg11[%c0_395, %c127_396] : memref<4x401xf32, #tpu.memory_space<vmem>>, vector<4x256xf32>
    %cst_397 = arith.constant 0.000000e+00 : f32
    %446 = vector.shape_cast %18 : vector<1x256xi1> to vector<1x256xi1>
    %447 = vector.broadcast %446 : vector<1x256xi1> to vector<4x256xi1>
    %448 = vector.broadcast %cst_397 : f32 to vector<4x256xf32>
    %449 = arith.select %447, %445, %448 : vector<4x256xi1>, vector<4x256xf32>
    %c4_398 = arith.constant 4 : index
    %c3_399 = arith.constant 3 : index
    %c0_400 = arith.constant 0 : index
    %c0_401 = arith.constant 0 : index
    %450 = vector.load %arg4[%c4_398, %c3_399, %c0_400, %c0_401] : memref<6x9x4x4xf32, #tpu.memory_space<vmem>>, vector<1x1x4x4xf32>
    %451 = vector.shape_cast %450 : vector<1x1x4x4xf32> to vector<4x4xf32>
    %cst_402 = arith.constant dense<0.000000e+00> : vector<4x256xf32>
    %452 = tpu.matmul %451, %449, %cst_402 {dimension_numbers = #tpu.dot_dimension_numbers<[1], [0], [0], [1], [0, 0, 1, 1], [], []>} : vector<4x4xf32>, vector<4x256xf32>, vector<4x256xf32> -> vector<4x256xf32>
    %453 = arith.addf %444, %452 : vector<4x256xf32>
    %c0_403 = arith.constant 0 : index
    %c128_404 = arith.constant 128 : index
    %454 = vector.load %arg11[%c0_403, %c128_404] : memref<4x401xf32, #tpu.memory_space<vmem>>, vector<4x256xf32>
    %c4_405 = arith.constant 4 : index
    %c4_406 = arith.constant 4 : index
    %c0_407 = arith.constant 0 : index
    %c0_408 = arith.constant 0 : index
    %455 = vector.load %arg4[%c4_405, %c4_406, %c0_407, %c0_408] : memref<6x9x4x4xf32, #tpu.memory_space<vmem>>, vector<1x1x4x4xf32>
    %456 = vector.shape_cast %455 : vector<1x1x4x4xf32> to vector<4x4xf32>
    %cst_409 = arith.constant dense<0.000000e+00> : vector<4x256xf32>
    %457 = tpu.matmul %456, %454, %cst_409 {dimension_numbers = #tpu.dot_dimension_numbers<[1], [0], [0], [1], [0, 0, 1, 1], [], []>} : vector<4x4xf32>, vector<4x256xf32>, vector<4x256xf32> -> vector<4x256xf32>
    %458 = arith.addf %453, %457 : vector<4x256xf32>
    %c0_410 = arith.constant 0 : index
    %c129_411 = arith.constant 129 : index
    %459 = vector.load %arg11[%c0_410, %c129_411] : memref<4x401xf32, #tpu.memory_space<vmem>>, vector<4x256xf32>
    %cst_412 = arith.constant 0.000000e+00 : f32
    %460 = vector.shape_cast %20 : vector<1x256xi1> to vector<1x256xi1>
    %461 = vector.broadcast %460 : vector<1x256xi1> to vector<4x256xi1>
    %462 = vector.broadcast %cst_412 : f32 to vector<4x256xf32>
    %463 = arith.select %461, %459, %462 : vector<4x256xi1>, vector<4x256xf32>
    %c4_413 = arith.constant 4 : index
    %c5_414 = arith.constant 5 : index
    %c0_415 = arith.constant 0 : index
    %c0_416 = arith.constant 0 : index
    %464 = vector.load %arg4[%c4_413, %c5_414, %c0_415, %c0_416] : memref<6x9x4x4xf32, #tpu.memory_space<vmem>>, vector<1x1x4x4xf32>
    %465 = vector.shape_cast %464 : vector<1x1x4x4xf32> to vector<4x4xf32>
    %cst_417 = arith.constant dense<0.000000e+00> : vector<4x256xf32>
    %466 = tpu.matmul %465, %463, %cst_417 {dimension_numbers = #tpu.dot_dimension_numbers<[1], [0], [0], [1], [0, 0, 1, 1], [], []>} : vector<4x4xf32>, vector<4x256xf32>, vector<4x256xf32> -> vector<4x256xf32>
    %467 = arith.addf %458, %466 : vector<4x256xf32>
    %c0_418 = arith.constant 0 : index
    %c143_419 = arith.constant 143 : index
    %468 = vector.load %arg11[%c0_418, %c143_419] : memref<4x401xf32, #tpu.memory_space<vmem>>, vector<4x256xf32>
    %cst_420 = arith.constant 0.000000e+00 : f32
    %469 = vector.shape_cast %18 : vector<1x256xi1> to vector<1x256xi1>
    %470 = vector.broadcast %469 : vector<1x256xi1> to vector<4x256xi1>
    %471 = vector.broadcast %cst_420 : f32 to vector<4x256xf32>
    %472 = arith.select %470, %468, %471 : vector<4x256xi1>, vector<4x256xf32>
    %c4_421 = arith.constant 4 : index
    %c6_422 = arith.constant 6 : index
    %c0_423 = arith.constant 0 : index
    %c0_424 = arith.constant 0 : index
    %473 = vector.load %arg4[%c4_421, %c6_422, %c0_423, %c0_424] : memref<6x9x4x4xf32, #tpu.memory_space<vmem>>, vector<1x1x4x4xf32>
    %474 = vector.shape_cast %473 : vector<1x1x4x4xf32> to vector<4x4xf32>
    %cst_425 = arith.constant dense<0.000000e+00> : vector<4x256xf32>
    %475 = tpu.matmul %474, %472, %cst_425 {dimension_numbers = #tpu.dot_dimension_numbers<[1], [0], [0], [1], [0, 0, 1, 1], [], []>} : vector<4x4xf32>, vector<4x256xf32>, vector<4x256xf32> -> vector<4x256xf32>
    %476 = arith.addf %467, %475 : vector<4x256xf32>
    %c0_426 = arith.constant 0 : index
    %c144_427 = arith.constant 144 : index
    %477 = vector.load %arg11[%c0_426, %c144_427] : memref<4x401xf32, #tpu.memory_space<vmem>>, vector<4x256xf32>
    %c4_428 = arith.constant 4 : index
    %c7_429 = arith.constant 7 : index
    %c0_430 = arith.constant 0 : index
    %c0_431 = arith.constant 0 : index
    %478 = vector.load %arg4[%c4_428, %c7_429, %c0_430, %c0_431] : memref<6x9x4x4xf32, #tpu.memory_space<vmem>>, vector<1x1x4x4xf32>
    %479 = vector.shape_cast %478 : vector<1x1x4x4xf32> to vector<4x4xf32>
    %cst_432 = arith.constant dense<0.000000e+00> : vector<4x256xf32>
    %480 = tpu.matmul %479, %477, %cst_432 {dimension_numbers = #tpu.dot_dimension_numbers<[1], [0], [0], [1], [0, 0, 1, 1], [], []>} : vector<4x4xf32>, vector<4x256xf32>, vector<4x256xf32> -> vector<4x256xf32>
    %481 = arith.addf %476, %480 : vector<4x256xf32>
    %c0_433 = arith.constant 0 : index
    %c145_434 = arith.constant 145 : index
    %482 = vector.load %arg11[%c0_433, %c145_434] : memref<4x401xf32, #tpu.memory_space<vmem>>, vector<4x256xf32>
    %cst_435 = arith.constant 0.000000e+00 : f32
    %483 = vector.shape_cast %20 : vector<1x256xi1> to vector<1x256xi1>
    %484 = vector.broadcast %483 : vector<1x256xi1> to vector<4x256xi1>
    %485 = vector.broadcast %cst_435 : f32 to vector<4x256xf32>
    %486 = arith.select %484, %482, %485 : vector<4x256xi1>, vector<4x256xf32>
    %c4_436 = arith.constant 4 : index
    %c8_437 = arith.constant 8 : index
    %c0_438 = arith.constant 0 : index
    %c0_439 = arith.constant 0 : index
    %487 = vector.load %arg4[%c4_436, %c8_437, %c0_438, %c0_439] : memref<6x9x4x4xf32, #tpu.memory_space<vmem>>, vector<1x1x4x4xf32>
    %488 = vector.shape_cast %487 : vector<1x1x4x4xf32> to vector<4x4xf32>
    %cst_440 = arith.constant dense<0.000000e+00> : vector<4x256xf32>
    %489 = tpu.matmul %488, %486, %cst_440 {dimension_numbers = #tpu.dot_dimension_numbers<[1], [0], [0], [1], [0, 0, 1, 1], [], []>} : vector<4x4xf32>, vector<4x256xf32>, vector<4x256xf32> -> vector<4x256xf32>
    %490 = arith.addf %481, %489 : vector<4x256xf32>
    %c4_441 = arith.constant 4 : index
    %c0_442 = arith.constant 0 : index
    %c0_443 = arith.constant 0 : index
    %491 = vector.load %arg5[%c4_441, %c0_442, %c0_443] : memref<6x4x1xf32, #tpu.memory_space<vmem>>, vector<1x4x1xf32>
    %492 = vector.shape_cast %491 : vector<1x4x1xf32> to vector<4x1xf32>
    %493 = vector.broadcast %492 : vector<4x1xf32> to vector<4x256xf32>
    %494 = arith.addf %490, %493 : vector<4x256xf32>
    %cst_444 = arith.constant 0.000000e+00 : f32
    %495 = vector.broadcast %cst_444 : f32 to vector<4x256xf32>
    %496 = arith.maximumf %494, %495 : vector<4x256xf32>
    %c4_445 = arith.constant 4 : index
    %c0_446 = arith.constant 0 : index
    %c0_447 = arith.constant 0 : index
    %497 = vector.load %arg6[%c4_445, %c0_446, %c0_447] : memref<6x8x4xf32, #tpu.memory_space<vmem>>, vector<1x8x4xf32>
    %498 = vector.shape_cast %497 : vector<1x8x4xf32> to vector<8x4xf32>
    %c4_448 = arith.constant 4 : index
    %c0_449 = arith.constant 0 : index
    %c0_450 = arith.constant 0 : index
    %499 = vector.load %arg7[%c4_448, %c0_449, %c0_450] : memref<6x8x1xf32, #tpu.memory_space<vmem>>, vector<1x8x1xf32>
    %500 = vector.shape_cast %499 : vector<1x8x1xf32> to vector<8x1xf32>
    %cst_451 = arith.constant dense<0.000000e+00> : vector<8x256xf32>
    %501 = tpu.matmul %498, %496, %cst_451 {dimension_numbers = #tpu.dot_dimension_numbers<[1], [0], [0], [1], [0, 0, 1, 1], [], []>} : vector<8x4xf32>, vector<4x256xf32>, vector<8x256xf32> -> vector<8x256xf32>
    %502 = vector.broadcast %500 : vector<8x1xf32> to vector<8x256xf32>
    %503 = arith.addf %501, %502 : vector<8x256xf32>
    %504 = arith.addf %503, %410 : vector<8x256xf32>
    %cst_452 = arith.constant 0.000000e+00 : f32
    %505 = vector.broadcast %cst_452 : f32 to vector<8x256xf32>
    %506 = arith.maximumf %504, %505 : vector<8x256xf32>
    %c5_453 = arith.constant 5 : index
    %c0_454 = arith.constant 0 : index
    %c0_455 = arith.constant 0 : index
    %507 = vector.load %arg2[%c5_453, %c0_454, %c0_455] : memref<6x4x8xf32, #tpu.memory_space<vmem>>, vector<1x4x8xf32>
    %508 = vector.shape_cast %507 : vector<1x4x8xf32> to vector<4x8xf32>
    %c5_456 = arith.constant 5 : index
    %c0_457 = arith.constant 0 : index
    %c0_458 = arith.constant 0 : index
    %509 = vector.load %arg3[%c5_456, %c0_457, %c0_458] : memref<6x4x1xf32, #tpu.memory_space<vmem>>, vector<1x4x1xf32>
    %510 = vector.shape_cast %509 : vector<1x4x1xf32> to vector<4x1xf32>
    %cst_459 = arith.constant dense<0.000000e+00> : vector<4x256xf32>
    %511 = tpu.matmul %508, %506, %cst_459 {dimension_numbers = #tpu.dot_dimension_numbers<[1], [0], [0], [1], [0, 0, 1, 1], [], []>} : vector<4x8xf32>, vector<8x256xf32>, vector<4x256xf32> -> vector<4x256xf32>
    %512 = vector.broadcast %510 : vector<4x1xf32> to vector<4x256xf32>
    %513 = arith.addf %511, %512 : vector<4x256xf32>
    %cst_460 = arith.constant 0.000000e+00 : f32
    %514 = vector.broadcast %cst_460 : f32 to vector<4x256xf32>
    %515 = arith.maximumf %513, %514 : vector<4x256xf32>
    %c0_461 = arith.constant 0 : index
    %c128_462 = arith.constant 128 : index
    %516 = vector.load %arg11[%c0_461, %c128_462] : memref<4x401xf32, #tpu.memory_space<vmem>>, vector<4x256xf32>
    tpu.vector_store %arg11[%c0_461, %c128_462], %515 {strides = array<i32>} : memref<4x401xf32, #tpu.memory_space<vmem>>, vector<4x256xf32>,
    %cst_463 = arith.constant 0.000000e+00 : f32
    %517 = vector.broadcast %cst_463 : f32 to vector<4x256xf32>
    %c0_464 = arith.constant 0 : index
    %c111_465 = arith.constant 111 : index
    %518 = vector.load %arg11[%c0_464, %c111_465] : memref<4x401xf32, #tpu.memory_space<vmem>>, vector<4x256xf32>
    %cst_466 = arith.constant 0.000000e+00 : f32
    %519 = vector.shape_cast %18 : vector<1x256xi1> to vector<1x256xi1>
    %520 = vector.broadcast %519 : vector<1x256xi1> to vector<4x256xi1>
    %521 = vector.broadcast %cst_466 : f32 to vector<4x256xf32>
    %522 = arith.select %520, %518, %521 : vector<4x256xi1>, vector<4x256xf32>
    %c5_467 = arith.constant 5 : index
    %c0_468 = arith.constant 0 : index
    %c0_469 = arith.constant 0 : index
    %c0_470 = arith.constant 0 : index
    %523 = vector.load %arg4[%c5_467, %c0_468, %c0_469, %c0_470] : memref<6x9x4x4xf32, #tpu.memory_space<vmem>>, vector<1x1x4x4xf32>
    %524 = vector.shape_cast %523 : vector<1x1x4x4xf32> to vector<4x4xf32>
    %cst_471 = arith.constant dense<0.000000e+00> : vector<4x256xf32>
    %525 = tpu.matmul %524, %522, %cst_471 {dimension_numbers = #tpu.dot_dimension_numbers<[1], [0], [0], [1], [0, 0, 1, 1], [], []>} : vector<4x4xf32>, vector<4x256xf32>, vector<4x256xf32> -> vector<4x256xf32>
    %526 = arith.addf %517, %525 : vector<4x256xf32>
    %c0_472 = arith.constant 0 : index
    %c112_473 = arith.constant 112 : index
    %527 = vector.load %arg11[%c0_472, %c112_473] : memref<4x401xf32, #tpu.memory_space<vmem>>, vector<4x256xf32>
    %c5_474 = arith.constant 5 : index
    %c1_475 = arith.constant 1 : index
    %c0_476 = arith.constant 0 : index
    %c0_477 = arith.constant 0 : index
    %528 = vector.load %arg4[%c5_474, %c1_475, %c0_476, %c0_477] : memref<6x9x4x4xf32, #tpu.memory_space<vmem>>, vector<1x1x4x4xf32>
    %529 = vector.shape_cast %528 : vector<1x1x4x4xf32> to vector<4x4xf32>
    %cst_478 = arith.constant dense<0.000000e+00> : vector<4x256xf32>
    %530 = tpu.matmul %529, %527, %cst_478 {dimension_numbers = #tpu.dot_dimension_numbers<[1], [0], [0], [1], [0, 0, 1, 1], [], []>} : vector<4x4xf32>, vector<4x256xf32>, vector<4x256xf32> -> vector<4x256xf32>
    %531 = arith.addf %526, %530 : vector<4x256xf32>
    %c0_479 = arith.constant 0 : index
    %c113_480 = arith.constant 113 : index
    %532 = vector.load %arg11[%c0_479, %c113_480] : memref<4x401xf32, #tpu.memory_space<vmem>>, vector<4x256xf32>
    %cst_481 = arith.constant 0.000000e+00 : f32
    %533 = vector.shape_cast %20 : vector<1x256xi1> to vector<1x256xi1>
    %534 = vector.broadcast %533 : vector<1x256xi1> to vector<4x256xi1>
    %535 = vector.broadcast %cst_481 : f32 to vector<4x256xf32>
    %536 = arith.select %534, %532, %535 : vector<4x256xi1>, vector<4x256xf32>
    %c5_482 = arith.constant 5 : index
    %c2_483 = arith.constant 2 : index
    %c0_484 = arith.constant 0 : index
    %c0_485 = arith.constant 0 : index
    %537 = vector.load %arg4[%c5_482, %c2_483, %c0_484, %c0_485] : memref<6x9x4x4xf32, #tpu.memory_space<vmem>>, vector<1x1x4x4xf32>
    %538 = vector.shape_cast %537 : vector<1x1x4x4xf32> to vector<4x4xf32>
    %cst_486 = arith.constant dense<0.000000e+00> : vector<4x256xf32>
    %539 = tpu.matmul %538, %536, %cst_486 {dimension_numbers = #tpu.dot_dimension_numbers<[1], [0], [0], [1], [0, 0, 1, 1], [], []>} : vector<4x4xf32>, vector<4x256xf32>, vector<4x256xf32> -> vector<4x256xf32>
    %540 = arith.addf %531, %539 : vector<4x256xf32>
    %c0_487 = arith.constant 0 : index
    %c127_488 = arith.constant 127 : index
    %541 = vector.load %arg11[%c0_487, %c127_488] : memref<4x401xf32, #tpu.memory_space<vmem>>, vector<4x256xf32>
    %cst_489 = arith.constant 0.000000e+00 : f32
    %542 = vector.shape_cast %18 : vector<1x256xi1> to vector<1x256xi1>
    %543 = vector.broadcast %542 : vector<1x256xi1> to vector<4x256xi1>
    %544 = vector.broadcast %cst_489 : f32 to vector<4x256xf32>
    %545 = arith.select %543, %541, %544 : vector<4x256xi1>, vector<4x256xf32>
    %c5_490 = arith.constant 5 : index
    %c3_491 = arith.constant 3 : index
    %c0_492 = arith.constant 0 : index
    %c0_493 = arith.constant 0 : index
    %546 = vector.load %arg4[%c5_490, %c3_491, %c0_492, %c0_493] : memref<6x9x4x4xf32, #tpu.memory_space<vmem>>, vector<1x1x4x4xf32>
    %547 = vector.shape_cast %546 : vector<1x1x4x4xf32> to vector<4x4xf32>
    %cst_494 = arith.constant dense<0.000000e+00> : vector<4x256xf32>
    %548 = tpu.matmul %547, %545, %cst_494 {dimension_numbers = #tpu.dot_dimension_numbers<[1], [0], [0], [1], [0, 0, 1, 1], [], []>} : vector<4x4xf32>, vector<4x256xf32>, vector<4x256xf32> -> vector<4x256xf32>
    %549 = arith.addf %540, %548 : vector<4x256xf32>
    %c0_495 = arith.constant 0 : index
    %c128_496 = arith.constant 128 : index
    %550 = vector.load %arg11[%c0_495, %c128_496] : memref<4x401xf32, #tpu.memory_space<vmem>>, vector<4x256xf32>
    %c5_497 = arith.constant 5 : index
    %c4_498 = arith.constant 4 : index
    %c0_499 = arith.constant 0 : index
    %c0_500 = arith.constant 0 : index
    %551 = vector.load %arg4[%c5_497, %c4_498, %c0_499, %c0_500] : memref<6x9x4x4xf32, #tpu.memory_space<vmem>>, vector<1x1x4x4xf32>
    %552 = vector.shape_cast %551 : vector<1x1x4x4xf32> to vector<4x4xf32>
    %cst_501 = arith.constant dense<0.000000e+00> : vector<4x256xf32>
    %553 = tpu.matmul %552, %550, %cst_501 {dimension_numbers = #tpu.dot_dimension_numbers<[1], [0], [0], [1], [0, 0, 1, 1], [], []>} : vector<4x4xf32>, vector<4x256xf32>, vector<4x256xf32> -> vector<4x256xf32>
    %554 = arith.addf %549, %553 : vector<4x256xf32>
    %c0_502 = arith.constant 0 : index
    %c129_503 = arith.constant 129 : index
    %555 = vector.load %arg11[%c0_502, %c129_503] : memref<4x401xf32, #tpu.memory_space<vmem>>, vector<4x256xf32>
    %cst_504 = arith.constant 0.000000e+00 : f32
    %556 = vector.shape_cast %20 : vector<1x256xi1> to vector<1x256xi1>
    %557 = vector.broadcast %556 : vector<1x256xi1> to vector<4x256xi1>
    %558 = vector.broadcast %cst_504 : f32 to vector<4x256xf32>
    %559 = arith.select %557, %555, %558 : vector<4x256xi1>, vector<4x256xf32>
    %c5_505 = arith.constant 5 : index
    %c5_506 = arith.constant 5 : index
    %c0_507 = arith.constant 0 : index
    %c0_508 = arith.constant 0 : index
    %560 = vector.load %arg4[%c5_505, %c5_506, %c0_507, %c0_508] : memref<6x9x4x4xf32, #tpu.memory_space<vmem>>, vector<1x1x4x4xf32>
    %561 = vector.shape_cast %560 : vector<1x1x4x4xf32> to vector<4x4xf32>
    %cst_509 = arith.constant dense<0.000000e+00> : vector<4x256xf32>
    %562 = tpu.matmul %561, %559, %cst_509 {dimension_numbers = #tpu.dot_dimension_numbers<[1], [0], [0], [1], [0, 0, 1, 1], [], []>} : vector<4x4xf32>, vector<4x256xf32>, vector<4x256xf32> -> vector<4x256xf32>
    %563 = arith.addf %554, %562 : vector<4x256xf32>
    %c0_510 = arith.constant 0 : index
    %c143_511 = arith.constant 143 : index
    %564 = vector.load %arg11[%c0_510, %c143_511] : memref<4x401xf32, #tpu.memory_space<vmem>>, vector<4x256xf32>
    %cst_512 = arith.constant 0.000000e+00 : f32
    %565 = vector.shape_cast %18 : vector<1x256xi1> to vector<1x256xi1>
    %566 = vector.broadcast %565 : vector<1x256xi1> to vector<4x256xi1>
    %567 = vector.broadcast %cst_512 : f32 to vector<4x256xf32>
    %568 = arith.select %566, %564, %567 : vector<4x256xi1>, vector<4x256xf32>
    %c5_513 = arith.constant 5 : index
    %c6_514 = arith.constant 6 : index
    %c0_515 = arith.constant 0 : index
    %c0_516 = arith.constant 0 : index
    %569 = vector.load %arg4[%c5_513, %c6_514, %c0_515, %c0_516] : memref<6x9x4x4xf32, #tpu.memory_space<vmem>>, vector<1x1x4x4xf32>
    %570 = vector.shape_cast %569 : vector<1x1x4x4xf32> to vector<4x4xf32>
    %cst_517 = arith.constant dense<0.000000e+00> : vector<4x256xf32>
    %571 = tpu.matmul %570, %568, %cst_517 {dimension_numbers = #tpu.dot_dimension_numbers<[1], [0], [0], [1], [0, 0, 1, 1], [], []>} : vector<4x4xf32>, vector<4x256xf32>, vector<4x256xf32> -> vector<4x256xf32>
    %572 = arith.addf %563, %571 : vector<4x256xf32>
    %c0_518 = arith.constant 0 : index
    %c144_519 = arith.constant 144 : index
    %573 = vector.load %arg11[%c0_518, %c144_519] : memref<4x401xf32, #tpu.memory_space<vmem>>, vector<4x256xf32>
    %c5_520 = arith.constant 5 : index
    %c7_521 = arith.constant 7 : index
    %c0_522 = arith.constant 0 : index
    %c0_523 = arith.constant 0 : index
    %574 = vector.load %arg4[%c5_520, %c7_521, %c0_522, %c0_523] : memref<6x9x4x4xf32, #tpu.memory_space<vmem>>, vector<1x1x4x4xf32>
    %575 = vector.shape_cast %574 : vector<1x1x4x4xf32> to vector<4x4xf32>
    %cst_524 = arith.constant dense<0.000000e+00> : vector<4x256xf32>
    %576 = tpu.matmul %575, %573, %cst_524 {dimension_numbers = #tpu.dot_dimension_numbers<[1], [0], [0], [1], [0, 0, 1, 1], [], []>} : vector<4x4xf32>, vector<4x256xf32>, vector<4x256xf32> -> vector<4x256xf32>
    %577 = arith.addf %572, %576 : vector<4x256xf32>
    %c0_525 = arith.constant 0 : index
    %c145_526 = arith.constant 145 : index
    %578 = vector.load %arg11[%c0_525, %c145_526] : memref<4x401xf32, #tpu.memory_space<vmem>>, vector<4x256xf32>
    %cst_527 = arith.constant 0.000000e+00 : f32
    %579 = vector.shape_cast %20 : vector<1x256xi1> to vector<1x256xi1>
    %580 = vector.broadcast %579 : vector<1x256xi1> to vector<4x256xi1>
    %581 = vector.broadcast %cst_527 : f32 to vector<4x256xf32>
    %582 = arith.select %580, %578, %581 : vector<4x256xi1>, vector<4x256xf32>
    %c5_528 = arith.constant 5 : index
    %c8_529 = arith.constant 8 : index
    %c0_530 = arith.constant 0 : index
    %c0_531 = arith.constant 0 : index
    %583 = vector.load %arg4[%c5_528, %c8_529, %c0_530, %c0_531] : memref<6x9x4x4xf32, #tpu.memory_space<vmem>>, vector<1x1x4x4xf32>
    %584 = vector.shape_cast %583 : vector<1x1x4x4xf32> to vector<4x4xf32>
    %cst_532 = arith.constant dense<0.000000e+00> : vector<4x256xf32>
    %585 = tpu.matmul %584, %582, %cst_532 {dimension_numbers = #tpu.dot_dimension_numbers<[1], [0], [0], [1], [0, 0, 1, 1], [], []>} : vector<4x4xf32>, vector<4x256xf32>, vector<4x256xf32> -> vector<4x256xf32>
    %586 = arith.addf %577, %585 : vector<4x256xf32>
    %c5_533 = arith.constant 5 : index
    %c0_534 = arith.constant 0 : index
    %c0_535 = arith.constant 0 : index
    %587 = vector.load %arg5[%c5_533, %c0_534, %c0_535] : memref<6x4x1xf32, #tpu.memory_space<vmem>>, vector<1x4x1xf32>
    %588 = vector.shape_cast %587 : vector<1x4x1xf32> to vector<4x1xf32>
    %589 = vector.broadcast %588 : vector<4x1xf32> to vector<4x256xf32>
    %590 = arith.addf %586, %589 : vector<4x256xf32>
    %cst_536 = arith.constant 0.000000e+00 : f32
    %591 = vector.broadcast %cst_536 : f32 to vector<4x256xf32>
    %592 = arith.maximumf %590, %591 : vector<4x256xf32>
    %c5_537 = arith.constant 5 : index
    %c0_538 = arith.constant 0 : index
    %c0_539 = arith.constant 0 : index
    %593 = vector.load %arg6[%c5_537, %c0_538, %c0_539] : memref<6x8x4xf32, #tpu.memory_space<vmem>>, vector<1x8x4xf32>
    %594 = vector.shape_cast %593 : vector<1x8x4xf32> to vector<8x4xf32>
    %c5_540 = arith.constant 5 : index
    %c0_541 = arith.constant 0 : index
    %c0_542 = arith.constant 0 : index
    %595 = vector.load %arg7[%c5_540, %c0_541, %c0_542] : memref<6x8x1xf32, #tpu.memory_space<vmem>>, vector<1x8x1xf32>
    %596 = vector.shape_cast %595 : vector<1x8x1xf32> to vector<8x1xf32>
    %cst_543 = arith.constant dense<0.000000e+00> : vector<8x256xf32>
    %597 = tpu.matmul %594, %592, %cst_543 {dimension_numbers = #tpu.dot_dimension_numbers<[1], [0], [0], [1], [0, 0, 1, 1], [], []>} : vector<8x4xf32>, vector<4x256xf32>, vector<8x256xf32> -> vector<8x256xf32>
    %598 = vector.broadcast %596 : vector<8x1xf32> to vector<8x256xf32>
    %599 = arith.addf %597, %598 : vector<8x256xf32>
    %600 = arith.addf %599, %506 : vector<8x256xf32>
    %cst_544 = arith.constant 0.000000e+00 : f32
    %601 = vector.broadcast %cst_544 : f32 to vector<8x256xf32>
    %602 = arith.maximumf %600, %601 : vector<8x256xf32>
    %c0_545 = arith.constant 0 : index
    %c0_546 = arith.constant 0 : index
    %603 = vector.load %arg8[%c0_545, %c0_546] : memref<8x8xf32, #tpu.memory_space<vmem>>, vector<8x8xf32>
    %c0_547 = arith.constant 0 : index
    %c0_548 = arith.constant 0 : index
    %604 = vector.load %arg9[%c0_547, %c0_548] : memref<8x1xf32, #tpu.memory_space<vmem>>, vector<8x1xf32>
    %cst_549 = arith.constant dense<0.000000e+00> : vector<8x256xf32>
    %605 = tpu.matmul %603, %602, %cst_549 {dimension_numbers = #tpu.dot_dimension_numbers<[1], [0], [0], [1], [0, 0, 1, 1], [], []>} : vector<8x8xf32>, vector<8x256xf32>, vector<8x256xf32> -> vector<8x256xf32>
    %606 = vector.broadcast %604 : vector<8x1xf32> to vector<8x256xf32>
    %607 = arith.addf %605, %606 : vector<8x256xf32>
    %608 = arith.negf %607 : vector<8x256xf32>
    %609 = math.exp %608 : vector<8x256xf32>
    %cst_550 = arith.constant 1.000000e+00 : f32
    %610 = vector.broadcast %cst_550 : f32 to vector<8x256xf32>
    %611 = arith.addf %610, %609 : vector<8x256xf32>
    %612 = arith.divf %610, %611 : vector<8x256xf32>
    %613 = arith.mulf %314, %612 : vector<8x256xf32>
    %614 = arith.addf %613, %26 : vector<8x256xf32>
    %c0_551 = arith.constant 0 : index
    %c0_552 = arith.constant 0 : index
    %c0_553 = arith.constant 0 : index
    %615 = vector.load %arg10[%c0_551, %c0_552, %c0_553] : memref<1x8x256xf32, #tpu.memory_space<vmem>>, vector<1x8x256xf32>
    %616 = vector.shape_cast %615 : vector<1x8x256xf32> to vector<8x256xf32>
    %617 = vector.shape_cast %614 : vector<8x256xf32> to vector<1x8x256xf32>
    tpu.vector_store %arg10[%c0_551, %c0_552, %c0_553], %617 {strides = array<i32>} : memref<1x8x256xf32, #tpu.memory_space<vmem>>, vector<1x8x256xf32>,
    return
  }
  func.func @transform_0(%arg0: i32) -> (i32, i32, i32) {
    %c0_i32 = arith.constant 0 : i32
    %c0_i32_0 = arith.constant 0 : i32
    %c0_i32_1 = arith.constant 0 : i32
    return %arg0, %c0_i32, %c0_i32_0 : i32, i32, i32
  }
  func.func @transform_1(%arg0: i32) -> (i32, i32, i32) {
    %c0_i32 = arith.constant 0 : i32
    %c0_i32_0 = arith.constant 0 : i32
    %c0_i32_1 = arith.constant 0 : i32
    %c0_i32_2 = arith.constant 0 : i32
    return %c0_i32, %c0_i32_0, %c0_i32_1 : i32, i32, i32
  }
  func.func @transform_2(%arg0: i32) -> (i32, i32, i32) {
    %c0_i32 = arith.constant 0 : i32
    %c0_i32_0 = arith.constant 0 : i32
    %c0_i32_1 = arith.constant 0 : i32
    %c0_i32_2 = arith.constant 0 : i32
    return %c0_i32, %c0_i32_0, %c0_i32_1 : i32, i32, i32
  }
  func.func @transform_3(%arg0: i32) -> (i32, i32, i32, i32) {
    %c0_i32 = arith.constant 0 : i32
    %c0_i32_0 = arith.constant 0 : i32
    %c0_i32_1 = arith.constant 0 : i32
    %c0_i32_2 = arith.constant 0 : i32
    %c0_i32_3 = arith.constant 0 : i32
    return %c0_i32, %c0_i32_0, %c0_i32_1, %c0_i32_2 : i32, i32, i32, i32
  }
  func.func @transform_4(%arg0: i32) -> (i32, i32, i32) {
    %c0_i32 = arith.constant 0 : i32
    %c0_i32_0 = arith.constant 0 : i32
    %c0_i32_1 = arith.constant 0 : i32
    %c0_i32_2 = arith.constant 0 : i32
    return %c0_i32, %c0_i32_0, %c0_i32_1 : i32, i32, i32
  }
  func.func @transform_5(%arg0: i32) -> (i32, i32, i32) {
    %c0_i32 = arith.constant 0 : i32
    %c0_i32_0 = arith.constant 0 : i32
    %c0_i32_1 = arith.constant 0 : i32
    %c0_i32_2 = arith.constant 0 : i32
    return %c0_i32, %c0_i32_0, %c0_i32_1 : i32, i32, i32
  }
  func.func @transform_6(%arg0: i32) -> (i32, i32, i32) {
    %c0_i32 = arith.constant 0 : i32
    %c0_i32_0 = arith.constant 0 : i32
    %c0_i32_1 = arith.constant 0 : i32
    %c0_i32_2 = arith.constant 0 : i32
    return %c0_i32, %c0_i32_0, %c0_i32_1 : i32, i32, i32
  }
  func.func @transform_7(%arg0: i32) -> (i32, i32) {
    %c0_i32 = arith.constant 0 : i32
    %c0_i32_0 = arith.constant 0 : i32
    %c0_i32_1 = arith.constant 0 : i32
    return %c0_i32, %c0_i32_0 : i32, i32
  }
  func.func @transform_8(%arg0: i32) -> (i32, i32) {
    %c0_i32 = arith.constant 0 : i32
    %c0_i32_0 = arith.constant 0 : i32
    %c0_i32_1 = arith.constant 0 : i32
    return %c0_i32, %c0_i32_0 : i32, i32
  }
  func.func @transform_9(%arg0: i32) -> (i32, i32, i32) {
    %c0_i32 = arith.constant 0 : i32
    %c0_i32_0 = arith.constant 0 : i32
    %c0_i32_1 = arith.constant 0 : i32
    return %arg0, %c0_i32, %c0_i32_0 : i32, i32, i32
  }
}

</mosaic_0001>

<llo_original>
// kernel: attention_block.1
$region0: #{attention_block.1}
  #allocation0 [shape = 'u32[]', space=smem, size = 0x4, offset = 0x4, fixed_abs, tag = 'smem constant byte address 0x4 - core index']
  #allocation1 [shape = 'u32[72,128]{1,0:T(1,128)}', space=vmem, size = 0x9000, scoped, tag = 'internal scratch']
  #allocation2 [shape = 'f32[4,401]{1,0:T(4,128)}', space=vmem, size = 0x2000, scoped, tag = 'scratch operand']
  %s0 = inlined_call_operand.vmem [shape: f32[2,8,256], index: 0, kind: input, shape index: {}]
  %s1 = inlined_call_operand.vmem [shape: f32[6,4,8], index: 1, kind: input, shape index: {}]
  %s2 = inlined_call_operand.vmem [shape: f32[6,4,1], index: 2, kind: input, shape index: {}]
  %s3 = inlined_call_operand.vmem [shape: f32[6,9,4,4], index: 3, kind: input, shape index: {}]
  %s4 = inlined_call_operand.vmem [shape: f32[6,4,1], index: 4, kind: input, shape index: {}]
  %s5 = inlined_call_operand.vmem [shape: f32[6,8,4], index: 5, kind: input, shape index: {}]
  %s6 = inlined_call_operand.vmem [shape: f32[6,8,1], index: 6, kind: input, shape index: {}]
  %s7 = inlined_call_operand.vmem [shape: f32[8,8], index: 7, kind: input, shape index: {}]
  %s8 = inlined_call_operand.vmem [shape: f32[8,1], index: 8, kind: input, shape index: {}]
  %s9 = inlined_call_operand.vmem [shape: f32[2,8,256], index: 9, kind: output, shape index: {}]
  %s10 = sld [smem:[#allocation0]]
  $region69: #{attention_block.1} parent=0
    _
  %s12 = ssub.s32 1, %s10
  %s13 = scalar_select 0, %s12, %s10
  loop: start=0, step=1, limit=4
  $region2: #{attention_block.1} parent=0 // loop_pre_header
    _
  $region3: #{attention_block.1} parent=0 // loop_header
    %s15 = sphi 0, %s19
    %p16 = scmp.ge.s32.totalorder %s15, 4
    %s25 = sphi 0, %s27
    %s28 = sphi 0, %s25
    %s29 = sphi 0, %s28
    %s45 = sphi 0, %s29
    %s49 = sphi 0, %s49
    %s51 = sphi 0, %s49
    %s52 = sphi 0, %s51
    %s66 = sphi 0, %s52
    %s70 = sphi 0, %s70
    %s72 = sphi 0, %s70
    %s73 = sphi 0, %s72
    %s87 = sphi 0, %s73
    %s91 = sphi 0, %s91
    %s93 = sphi 0, %s91
    %s94 = sphi 0, %s93
    %s108 = sphi 0, %s94
    %s112 = sphi 0, %s112
    %s114 = sphi 0, %s112
    %s115 = sphi 0, %s114
    %s129 = sphi 0, %s115
    %s133 = sphi 0, %s133
    %s135 = sphi 0, %s133
    %s136 = sphi 0, %s135
    %s150 = sphi 0, %s136
    %s154 = sphi 0, %s154
    %s156 = sphi 0, %s154
    %s157 = sphi 0, %s156
    %s171 = sphi 0, %s157
    %s175 = sphi 0, %s175
    %s177 = sphi 0, %s175
    %s178 = sphi 0, %s177
    %s192 = sphi 0, %s178
    %s196 = sphi 0, %s196
    %s198 = sphi 0, %s196
    %s199 = sphi 0, %s198
    %s213 = sphi 0, %s199
    %s219 = sphi 0, %s221
    %s222 = sphi 0, %s219
    %s223 = sphi 0, %s222
    %s239 = sphi 0, %s223
  $region4: #{attention_block.1} parent=0 // loop_header_branch
    %18 = sbr.rel (%p16) target = $region8
  $region5: #{attention_block.1} parent=0 // loop_body
    %s20 = ssub.s32 %s15, 1
    %s21 = ssub.s32 %s15, 2
    %s22 = sadd.s32 %s15, 1
    %s23 = ssub.s32 %s15, %s22
    %p24 = scmp.eq.s32.totalorder %s23, 0
    %s26 = sadd.s32 %s25, 1
    %s27 = scalar_select %p24, %s25, %s26
    %p30 = pneg %p24
    %p31 = scmp.eq.s32.totalorder %s15, 1
    %p32 = por %p30, %p31
    %p33 = scmp.ne.s32.totalorder %s25, %s28
    %p34 = scmp.eq.s32.totalorder %s15, 0
    %p35 = por %p33, %p34
    %p36 = scmp.ne.s32.totalorder %s25, %s28
    %p37 = scmp.eq.s32.totalorder %s20, 1
    %p38 = por %p36, %p37
    %p39 = scmp.ne.s32.totalorder %s28, %s29
    %p40 = scmp.eq.s32.totalorder %s20, 0
    %p41 = por %p39, %p40
    %p42 = scmp.ne.s32.totalorder %s28, %s29
    %p43 = scmp.eq.s32.totalorder %s21, 1
    %p44 = por %p42, %p43
    %p46 = scmp.ne.s32.totalorder %s29, %s45
    %p47 = scmp.eq.s32.totalorder %s21, 0
    %p48 = por %p46, %p47
    %s50 = sadd.s32 %s49, 1
    %p53 = scmp.eq.s32.totalorder %s15, 1
    %p54 = scmp.ne.s32.totalorder %s49, %s51
    %p55 = scmp.eq.s32.totalorder %s15, 0
    %p56 = por %p54, %p55
    %p57 = scmp.ne.s32.totalorder %s49, %s51
    %p58 = scmp.eq.s32.totalorder %s20, 1
    %p59 = por %p57, %p58
    %p60 = scmp.ne.s32.totalorder %s51, %s52
    %p61 = scmp.eq.s32.totalorder %s20, 0
    %p62 = por %p60, %p61
    %p63 = scmp.ne.s32.totalorder %s51, %s52
    %p64 = scmp.eq.s32.totalorder %s21, 1
    %p65 = por %p63, %p64
    %p67 = scmp.ne.s32.totalorder %s52, %s66
    %p68 = scmp.eq.s32.totalorder %s21, 0
    %p69 = por %p67, %p68
    %s71 = sadd.s32 %s70, 1
    %p74 = scmp.eq.s32.totalorder %s15, 1
    %p75 = scmp.ne.s32.totalorder %s70, %s72
    %p76 = scmp.eq.s32.totalorder %s15, 0
    %p77 = por %p75, %p76
    %p78 = scmp.ne.s32.totalorder %s70, %s72
    %p79 = scmp.eq.s32.totalorder %s20, 1
    %p80 = por %p78, %p79
    %p81 = scmp.ne.s32.totalorder %s72, %s73
    %p82 = scmp.eq.s32.totalorder %s20, 0
    %p83 = por %p81, %p82
    %p84 = scmp.ne.s32.totalorder %s72, %s73
    %p85 = scmp.eq.s32.totalorder %s21, 1
    %p86 = por %p84, %p85
    %p88 = scmp.ne.s32.totalorder %s73, %s87
    %p89 = scmp.eq.s32.totalorder %s21, 0
    %p90 = por %p88, %p89
    %s92 = sadd.s32 %s91, 1
    %p95 = scmp.eq.s32.totalorder %s15, 1
    %p96 = scmp.ne.s32.totalorder %s91, %s93
    %p97 = scmp.eq.s32.totalorder %s15, 0
    %p98 = por %p96, %p97
    %p99 = scmp.ne.s32.totalorder %s91, %s93
    %p100 = scmp.eq.s32.totalorder %s20, 1
    %p101 = por %p99, %p100
    %p102 = scmp.ne.s32.totalorder %s93, %s94
    %p103 = scmp.eq.s32.totalorder %s20, 0
    %p104 = por %p102, %p103
    %p105 = scmp.ne.s32.totalorder %s93, %s94
    %p106 = scmp.eq.s32.totalorder %s21, 1
    %p107 = por %p105, %p106
    %p109 = scmp.ne.s32.totalorder %s94, %s108
    %p110 = scmp.eq.s32.totalorder %s21, 0
    %p111 = por %p109, %p110
    %s113 = sadd.s32 %s112, 1
    %p116 = scmp.eq.s32.totalorder %s15, 1
    %p117 = scmp.ne.s32.totalorder %s112, %s114
    %p118 = scmp.eq.s32.totalorder %s15, 0
    %p119 = por %p117, %p118
    %p120 = scmp.ne.s32.totalorder %s112, %s114
    %p121 = scmp.eq.s32.totalorder %s20, 1
    %p122 = por %p120, %p121
    %p123 = scmp.ne.s32.totalorder %s114, %s115
    %p124 = scmp.eq.s32.totalorder %s20, 0
    %p125 = por %p123, %p124
    %p126 = scmp.ne.s32.totalorder %s114, %s115
    %p127 = scmp.eq.s32.totalorder %s21, 1
    %p128 = por %p126, %p127
    %p130 = scmp.ne.s32.totalorder %s115, %s129
    %p131 = scmp.eq.s32.totalorder %s21, 0
    %p132 = por %p130, %p131
    %s134 = sadd.s32 %s133, 1
    %p137 = scmp.eq.s32.totalorder %s15, 1
    %p138 = scmp.ne.s32.totalorder %s133, %s135
    %p139 = scmp.eq.s32.totalorder %s15, 0
    %p140 = por %p138, %p139
    %p141 = scmp.ne.s32.totalorder %s133, %s135
    %p142 = scmp.eq.s32.totalorder %s20, 1
    %p143 = por %p141, %p142
    %p144 = scmp.ne.s32.totalorder %s135, %s136
    %p145 = scmp.eq.s32.totalorder %s20, 0
    %p146 = por %p144, %p145
    %p147 = scmp.ne.s32.totalorder %s135, %s136
    %p148 = scmp.eq.s32.totalorder %s21, 1
    %p149 = por %p147, %p148
    %p151 = scmp.ne.s32.totalorder %s136, %s150
    %p152 = scmp.eq.s32.totalorder %s21, 0
    %p153 = por %p151, %p152
    %s155 = sadd.s32 %s154, 1
    %p158 = scmp.eq.s32.totalorder %s15, 1
    %p159 = scmp.ne.s32.totalorder %s154, %s156
    %p160 = scmp.eq.s32.totalorder %s15, 0
    %p161 = por %p159, %p160
    %p162 = scmp.ne.s32.totalorder %s154, %s156
    %p163 = scmp.eq.s32.totalorder %s20, 1
    %p164 = por %p162, %p163
    %p165 = scmp.ne.s32.totalorder %s156, %s157
    %p166 = scmp.eq.s32.totalorder %s20, 0
    %p167 = por %p165, %p166
    %p168 = scmp.ne.s32.totalorder %s156, %s157
    %p169 = scmp.eq.s32.totalorder %s21, 1
    %p170 = por %p168, %p169
    %p172 = scmp.ne.s32.totalorder %s157, %s171
    %p173 = scmp.eq.s32.totalorder %s21, 0
    %p174 = por %p172, %p173
    %s176 = sadd.s32 %s175, 1
    %p179 = scmp.eq.s32.totalorder %s15, 1
    %p180 = scmp.ne.s32.totalorder %s175, %s177
    %p181 = scmp.eq.s32.totalorder %s15, 0
    %p182 = por %p180, %p181
    %p183 = scmp.ne.s32.totalorder %s175, %s177
    %p184 = scmp.eq.s32.totalorder %s20, 1
    %p185 = por %p183, %p184
    %p186 = scmp.ne.s32.totalorder %s177, %s178
    %p187 = scmp.eq.s32.totalorder %s20, 0
    %p188 = por %p186, %p187
    %p189 = scmp.ne.s32.totalorder %s177, %s178
    %p190 = scmp.eq.s32.totalorder %s21, 1
    %p191 = por %p189, %p190
    %p193 = scmp.ne.s32.totalorder %s178, %s192
    %p194 = scmp.eq.s32.totalorder %s21, 0
    %p195 = por %p193, %p194
    %s197 = sadd.s32 %s196, 1
    %p200 = scmp.eq.s32.totalorder %s15, 1
    %p201 = scmp.ne.s32.totalorder %s196, %s198
    %p202 = scmp.eq.s32.totalorder %s15, 0
    %p203 = por %p201, %p202
    %p204 = scmp.ne.s32.totalorder %s196, %s198
    %p205 = scmp.eq.s32.totalorder %s20, 1
    %p206 = por %p204, %p205
    %p207 = scmp.ne.s32.totalorder %s198, %s199
    %p208 = scmp.eq.s32.totalorder %s20, 0
    %p209 = por %p207, %p208
    %p210 = scmp.ne.s32.totalorder %s198, %s199
    %p211 = scmp.eq.s32.totalorder %s21, 1
    %p212 = por %p210, %p211
    %p214 = scmp.ne.s32.totalorder %s199, %s213
    %p215 = scmp.eq.s32.totalorder %s21, 0
    %p216 = por %p214, %p215
    %s217 = ssub.s32 %s15, %s22
    %p218 = scmp.eq.s32.totalorder %s217, 0
    %s220 = sadd.s32 %s219, 1
    %s221 = scalar_select %p218, %s219, %s220
    %p224 = pneg %p218
    %p225 = scmp.eq.s32.totalorder %s15, 1
    %p226 = por %p224, %p225
    %p227 = scmp.ne.s32.totalorder %s219, %s222
    %p228 = scmp.eq.s32.totalorder %s15, 0
    %p229 = por %p227, %p228
    %p230 = scmp.ne.s32.totalorder %s219, %s222
    %p231 = scmp.eq.s32.totalorder %s20, 1
    %p232 = por %p230, %p231
    %p233 = scmp.ne.s32.totalorder %s222, %s223
    %p234 = scmp.eq.s32.totalorder %s20, 0
    %p235 = por %p233, %p234
    %p236 = scmp.ne.s32.totalorder %s222, %s223
    %p237 = scmp.eq.s32.totalorder %s21, 1
    %p238 = por %p236, %p237
    %p240 = scmp.ne.s32.totalorder %s223, %s239
    %p241 = scmp.eq.s32.totalorder %s21, 0
    %p242 = por %p240, %p241
    %p243 = scmp.le.s32.totalorder 1, %s15
    %p244 = scmp.lt.s32.totalorder %s15, 3
    %p245 = pnand %p243, %p244
    %p246 = pneg %p245
    // Predicated region
    $region9: #{attention_block.1} parent=5 // pred_check
      _
    $region10: #{attention_block.1} parent=5 // pred_check_branch
      %248 = sbr.rel (%p245) target = $region12
    $region11: #{attention_block.1} parent=5 // pred_region
      %s249 = ssub.s32 %s15, 1
      // Predicated region
      $region13: #{attention_block.1} parent=11 // pred_check
        %p250 = pneg %p62
      $region14: #{attention_block.1} parent=11 // pred_check_branch
        %252 = sbr.rel (%p250) target = $region16
      $region15: #{attention_block.1} parent=11 // pred_region
        _
      $region16: #{attention_block.1} parent=11 // pred_fallthru
        _
      // Predicated region
      $region17: #{attention_block.1} parent=11 // pred_check
        %p253 = pneg %p83
      $region18: #{attention_block.1} parent=11 // pred_check_branch
        %255 = sbr.rel (%p253) target = $region20
      $region19: #{attention_block.1} parent=11 // pred_region
        _
      $region20: #{attention_block.1} parent=11 // pred_fallthru
        _
      // Predicated region
      $region21: #{attention_block.1} parent=11 // pred_check
        %p256 = pneg %p104
      $region22: #{attention_block.1} parent=11 // pred_check_branch
        %258 = sbr.rel (%p256) target = $region24
      $region23: #{attention_block.1} parent=11 // pred_region
        _
      $region24: #{attention_block.1} parent=11 // pred_fallthru
        _
      // Predicated region
      $region25: #{attention_block.1} parent=11 // pred_check
        %p259 = pneg %p125
      $region26: #{attention_block.1} parent=11 // pred_check_branch
        %261 = sbr.rel (%p259) target = $region28
      $region27: #{attention_block.1} parent=11 // pred_region
        _
      $region28: #{attention_block.1} parent=11 // pred_fallthru
        _
      // Predicated region
      $region29: #{attention_block.1} parent=11 // pred_check
        %p262 = pneg %p146
      $region30: #{attention_block.1} parent=11 // pred_check_branch
        %264 = sbr.rel (%p262) target = $region32
      $region31: #{attention_block.1} parent=11 // pred_region
        _
      $region32: #{attention_block.1} parent=11 // pred_fallthru
        _
      // Predicated region
      $region33: #{attention_block.1} parent=11 // pred_check
        %p265 = pneg %p167
      $region34: #{attention_block.1} parent=11 // pred_check_branch
        %267 = sbr.rel (%p265) target = $region36
      $region35: #{attention_block.1} parent=11 // pred_region
        _
      $region36: #{attention_block.1} parent=11 // pred_fallthru
        _
      // Predicated region
      $region37: #{attention_block.1} parent=11 // pred_check
        %p268 = pneg %p188
      $region38: #{attention_block.1} parent=11 // pred_check_branch
        %270 = sbr.rel (%p268) target = $region40
      $region39: #{attention_block.1} parent=11 // pred_region
        _
      $region40: #{attention_block.1} parent=11 // pred_fallthru
        _
      // Predicated region
      $region41: #{attention_block.1} parent=11 // pred_check
        %p271 = pneg %p209
      $region42: #{attention_block.1} parent=11 // pred_check_branch
        %273 = sbr.rel (%p271) target = $region44
      $region43: #{attention_block.1} parent=11 // pred_region
        _
      $region44: #{attention_block.1} parent=11 // pred_fallthru
        _
    $region12: #{attention_block.1} parent=5 // pred_fallthru
      _
    %p274 = scmp.lt.s32.totalorder %s15, 2
    // Predicated region
    $region45: #{attention_block.1} parent=5 // pred_check
      %p275 = pneg %p274
    $region46: #{attention_block.1} parent=5 // pred_check_branch
      %277 = sbr.rel (%p275) target = $region48
    $region47: #{attention_block.1} parent=5 // pred_region
      // Predicated region
      $region49: #{attention_block.1} parent=47 // pred_check
        %p278 = pneg %p35
      $region50: #{attention_block.1} parent=47 // pred_check_branch
        %280 = sbr.rel (%p278) target = $region52
      $region51: #{attention_block.1} parent=47 // pred_region
        %p281 = scmp.lt.s32.totalorder %s15, 1
        %s282 = scalar_select %p281, %s15, 1
        %s283 = smul.addr %s282, 2
        %s284 = smul.addr %s283, 8
        %s285 = scalar_lea.vmem %s0, %s284
      $region52: #{attention_block.1} parent=47 // pred_fallthru
        _
    $region48: #{attention_block.1} parent=5 // pred_fallthru
      _
    %p286 = scmp.le.s32.totalorder 1, %s15
    %p287 = scmp.lt.s32.totalorder %s15, 3
    %p288 = pnand %p286, %p287
    %p289 = pneg %p288
    // Predicated region
    $region53: #{attention_block.1} parent=5 // pred_check
      _
    $region54: #{attention_block.1} parent=5 // pred_check_branch
      %291 = sbr.rel (%p288) target = $region56
    $region55: #{attention_block.1} parent=5 // pred_region
      %s292 = ssub.s32 %s15, 1
      %p293 = scmp.lt.s32.totalorder %s20, 1
      %s294 = scalar_select %p293, %s20, 1
      %s295 = smul.addr %s294, 2
      %s296 = smul.addr %s295, 8
      %s297 = scalar_lea.vmem %s0, %s296
      %p298 = pneg %p41
      %p299 = pneg %p38
      %p300 = pneg %p62
      %p301 = pneg %p59
      %p302 = pneg %p83
      %p303 = pneg %p80
      %p304 = pneg %p104
      %p305 = pneg %p101
      %p306 = pneg %p125
      %p307 = pneg %p122
      %p308 = pneg %p146
      %p309 = pneg %p143
      %p310 = pneg %p167
      %p311 = pneg %p164
      %p312 = pneg %p188
      %p313 = pneg %p185
      %p314 = pneg %p209
      %p315 = pneg %p206
      %p316 = pneg %p235
      %p317 = pneg %p232
      %p318 = scmp.lt.s32.totalorder %s20, 1
      %s319 = scalar_select %p318, %s20, 1
      %s320 = smul.addr %s319, 2
      %s321 = smul.addr %s320, 8
      %s322 = scalar_lea.vmem %s9, %s321
      %p323 = scmp.lt.s32.totalorder %s20, 1
      %s324 = scalar_select %p323, %s20, 1
      %s325 = smul.addr %s324, 2
      %s326 = smul.addr %s325, 8
      %s327 = scalar_lea.vmem %s0, %s326
      %p328 = scmp.lt.s32.totalorder %s20, 1
      %s329 = scalar_select %p328, %s20, 1
      %s330 = smul.addr %s329, 2
      %s331 = smul.addr %s330, 8
      %s332 = scalar_lea.vmem %s9, %s331
      %v333 = vlaneseq
      %v334 = vand.u32 %v333, 127
      %v335 = vadd.s32 %v334, 128
      %vm336 = vcmp.lt.s32.totalorder %v334, 0
      %v337 = vsub.s32 0, %v334
      %v338 = vsel %vm336, %v337, %v334
      %v339 = vshrl.u32 %v338, 4
      %v340 = vand.u32 %v338, 15
      %v341 = vsub.s32 0, %v340
      %v342 = vsel %vm336, %v341, %v340
      %vm343 = vcmp.lt.s32.totalorder %v335, 0
      %v344 = vsub.s32 0, %v335
      %v345 = vsel %vm343, %v344, %v335
      %v346 = vshrl.u32 %v345, 4
      %v347 = vand.u32 %v345, 15
      %v348 = vsub.s32 0, %v347
      %v349 = vsel %vm343, %v348, %v347
      %vm350 = vcmp.ne.s32.totalorder %v342, 0
      %vm351 = vcmp.ne.s32.totalorder %v349, 0
      %vm352 = vcmp.lt.s32.totalorder %v342, 0
      %vm353 = vcmp.lt.s32.totalorder %v349, 0
      %vm354 = vmand %vm352, %vm350
      %vm355 = vmand %vm353, %vm351
      %v356 = vadd.s32 %v342, 16
      %v357 = vadd.s32 %v349, 16
      %v358 = vsel %vm354, %v356, %v342
      %v359 = vsel %vm355, %v357, %v349
      %vm360 = vcmp.ne.s32.totalorder %v358, 0
      %vm361 = vcmp.ne.s32.totalorder %v359, 0
      %vm362 = vcmp.ne.s32.totalorder %v358, 15
      %vm363 = vcmp.ne.s32.totalorder %v359, 15
      %364 = vst [vmem:[#allocation2] sm:$0xf] 0.0
      %vm365 = vcmask 134144
      %366 = vst.msk [vmem:[#allocation2 + $0xc] sm:$0xf] %vm365, 0.0
      %v367 = vld [vmem:[%s327] sm:$0xff]
      %v368 = vld [vmem:[%s327 + $0x8] sm:$0xff]
      %v369 = vld [vmem:[%s1] sm:$0xf]
      %v370 = vld [vmem:[%s2] sm:$0xf]
      %372 = vset.pattern.permute.xlu0 0
      %373 = vperm.xlu0 %372, %v370
      %v374 = vpop.permute.xlu0 %373
      %vm376 = vcmask 64512
      %v378 = vsel %vm376, %v369, 0
      %380 = vmatpush.msra.mxu0 0.0
      %381 = vmatpush.msra.mxu0 0.0
      %382 = vmatpush.msra.mxu0 0.0
      %383 = vmatpush.msra.mxu0 0.0
      %384 = vmatpush.msra.mxu0 0.0
      %385 = vmatpush.msra.mxu0 0.0
      %386 = vmatpush.msra.mxu0 0.0
      %387 = vmatpush.msra.mxu0 0.0
      %388 = vmatpush.msra.mxu0 0.0
      %389 = vmatpush.msra.mxu0 0.0
      %390 = vmatpush.msra.mxu0 0.0
      %391 = vmatpush.msra.mxu0 0.0
      %392 = vmatpush.msra.mxu0 0.0
      %393 = vmatpush.msra.mxu0 0.0
      %394 = vmatpush.msra.mxu0 0.0
      %395 = vmatpush.msra.mxu0 %v367
      %396 = vmatmul.f32.gmra.mxu0 %v378
      %v397 = vpop.f32.mrf.mxu0
      %v398 = vadd.f32 %v374, %v397
      %399 = vdwg.mxu0
      %400 = vmatpush.msra.mxu0 0.0
      %401 = vmatpush.msra.mxu0 0.0
      %402 = vmatpush.msra.mxu0 0.0
      %403 = vmatpush.msra.mxu0 0.0
      %404 = vmatpush.msra.mxu0 0.0
      %405 = vmatpush.msra.mxu0 0.0
      %406 = vmatpush.msra.mxu0 0.0
      %407 = vmatpush.msra.mxu0 0.0
      %408 = vmatpush.msra.mxu0 0.0
      %409 = vmatpush.msra.mxu0 0.0
      %410 = vmatpush.msra.mxu0 0.0
      %411 = vmatpush.msra.mxu0 0.0
      %412 = vmatpush.msra.mxu0 0.0
      %413 = vmatpush.msra.mxu0 0.0
      %414 = vmatpush.msra.mxu0 0.0
      %415 = vmatpush.msra.mxu0 %v368
      %416 = vmatmul.f32.gmra.mxu0 %v378
      %v417 = vpop.f32.mrf.mxu0
      %v418 = vadd.f32 %v374, %v417
      %419 = vdwg.mxu0
      %v420 = vmax.f32 %v398, 0.0
      %v421 = vmax.f32 %v418, 0.0
      %v424 = vrot.slane %v421, 4
      %vm425 = vcmask 1043456
      %v426 = vsel %vm425, %v420, %v424
      %428 = vst [vmem:[#allocation2 + $0x4] sm:$0xff] %v426
      %v429 = vld [vmem:[#allocation2] sm:$0xff]
      %v430 = vld [vmem:[#allocation2 + $0x8] sm:$0xf]
      %v431 = vsel %vm360, 1, 0
      %v432 = vsel %vm361, 1, 0
      %vm433 = vcmp.eq.s32.totalorder %v431, 1
      %vm434 = vcmp.eq.s32.totalorder %v432, 1
      %437 = vst [vmem:[#allocation1] ss:$2 sm:$0xff] %v429
      %s438 = scalar_lea.vmem [#allocation1], 16
      %439 = vst [vmem:[%s438] ss:$2 sm:$0xff] %v430
      %v440 = vld.sshfl [vmem:[#allocation1] sm:$0xff pattern:$0x75316420]
      %v441 = vld.sshfl [vmem:[#allocation1 + $0x8] sm:$0xff pattern:$0x75316420]
      %v442 = vld.sshfl [vmem:[#allocation1 + $0x10] sm:$0xff pattern:$0x75316420]
      %443 = vrot.lane.b32.xlu0 %v440, 17
      %v444 = vpop.permute.xlu0 %443
      %445 = vrot.lane.b32.xlu0 %v441, 17
      %v446 = vpop.permute.xlu0 %445
      %447 = vrot.lane.b32.xlu0 %v442, 17
      %v448 = vpop.permute.xlu0 %447
      %vm449 = vcmask 138240
      %v450 = vsel %vm449, %v444, %v446
      %v451 = vsel %vm449, %v446, %v448
      %v454 = vsel %vm433, %v450, 0.0
      %v455 = vsel %vm434, %v451, 0.0
      %v456 = vld [vmem:[%s3] sm:$0xf]
      %v457 = vld [vmem:[#allocation2] sm:$0xff]
      %v458 = vld [vmem:[#allocation2 + $0x8] sm:$0xf]
      %s459 = scalar_lea.vmem %s3, 4
      %v460 = vld [vmem:[%s459] sm:$0xf]
      %463 = vst [vmem:[#allocation1] ss:$2 sm:$0xff] %v457
      %s464 = scalar_lea.vmem [#allocation1], 16
      %465 = vst [vmem:[%s464] ss:$2 sm:$0xff] %v458
      %v466 = vld.sshfl [vmem:[#allocation1] sm:$0xff pattern:$0x75316420]
      %v467 = vld.sshfl [vmem:[#allocation1 + $0x8] sm:$0xff pattern:$0x75316420]
      %v468 = vld.sshfl [vmem:[#allocation1 + $0x10] sm:$0xff pattern:$0x75316420]
      %469 = vrot.lane.b32.xlu0 %v466, 16
      %v470 = vpop.permute.xlu0 %469
      %471 = vrot.lane.b32.xlu0 %v467, 16
      %v472 = vpop.permute.xlu0 %471
      %473 = vrot.lane.b32.xlu0 %v468, 16
      %v474 = vpop.permute.xlu0 %473
      %vm475 = vcmask 130048
      %v476 = vsel %vm475, %v470, %v472
      %v477 = vsel %vm475, %v472, %v474
      %vm478 = vcmask 31744
      %v480 = vsel %vm478, %v460, 0
      %v482 = vsel %vm425, %v476, 0
      %v484 = vsel %vm425, %v477, 0
      %486 = vmatpush.msra.mxu0 0.0
      %487 = vmatpush.msra.mxu0 0.0
      %488 = vmatpush.msra.mxu0 0.0
      %489 = vmatpush.msra.mxu0 0.0
      %490 = vmatpush.msra.mxu0 0.0
      %491 = vmatpush.msra.mxu0 0.0
      %492 = vmatpush.msra.mxu0 0.0
      %493 = vmatpush.msra.mxu0 0.0
      %494 = vmatpush.msra.mxu0 0.0
      %495 = vmatpush.msra.mxu0 0.0
      %496 = vmatpush.msra.mxu0 0.0
      %497 = vmatpush.msra.mxu0 0.0
      %498 = vmatpush.msra.mxu0 0.0
      %499 = vmatpush.msra.mxu0 0.0
      %500 = vmatpush.msra.mxu0 0.0
      %501 = vmatpush.msra.mxu0 %v482
      %502 = vmatmul.f32.gmra.mxu0 %v480
      %v503 = vpop.f32.mrf.mxu0
      %v504 = vadd.f32 0.0, %v503
      %505 = vdwg.mxu0
      %506 = vmatpush.msra.mxu0 0.0
      %507 = vmatpush.msra.mxu0 0.0
      %508 = vmatpush.msra.mxu0 0.0
      %509 = vmatpush.msra.mxu0 0.0
      %510 = vmatpush.msra.mxu0 0.0
      %511 = vmatpush.msra.mxu0 0.0
      %512 = vmatpush.msra.mxu0 0.0
      %513 = vmatpush.msra.mxu0 0.0
      %514 = vmatpush.msra.mxu0 0.0
      %515 = vmatpush.msra.mxu0 0.0
      %516 = vmatpush.msra.mxu0 0.0
      %517 = vmatpush.msra.mxu0 0.0
      %518 = vmatpush.msra.mxu0 0.0
      %519 = vmatpush.msra.mxu0 0.0
      %520 = vmatpush.msra.mxu0 0.0
      %521 = vmatpush.msra.mxu0 %v484
      %522 = vmatmul.f32.gmra.mxu0 %v480
      %v523 = vpop.f32.mrf.mxu0
      %v524 = vadd.f32 0.0, %v523
      %525 = vdwg.mxu0
      %v527 = vsel %vm478, %v456, 0
      %v530 = vsel %vm425, %v454, 0
      %v533 = vsel %vm425, %v455, 0
      %535 = vmatpush.msra.mxu0 0.0
      %536 = vmatpush.msra.mxu0 0.0
      %537 = vmatpush.msra.mxu0 0.0
      %538 = vmatpush.msra.mxu0 0.0
      %539 = vmatpush.msra.mxu0 0.0
      %540 = vmatpush.msra.mxu0 0.0
      %541 = vmatpush.msra.mxu0 0.0
      %542 = vmatpush.msra.mxu0 0.0
      %543 = vmatpush.msra.mxu0 0.0
      %544 = vmatpush.msra.mxu0 0.0
      %545 = vmatpush.msra.mxu0 0.0
      %546 = vmatpush.msra.mxu0 0.0
      %547 = vmatpush.msra.mxu0 0.0
      %548 = vmatpush.msra.mxu0 0.0
      %549 = vmatpush.msra.mxu0 0.0
      %550 = vmatpush.msra.mxu0 %v530
      %551 = vmatmul.f32.gmra.mxu0 %v527
      %v552 = vpop.f32.mrf.mxu0
      %v553 = vadd.f32 %v504, %v552
      %554 = vdwg.mxu0
      %555 = vmatpush.msra.mxu0 0.0
      %556 = vmatpush.msra.mxu0 0.0
      %557 = vmatpush.msra.mxu0 0.0
      %558 = vmatpush.msra.mxu0 0.0
      %559 = vmatpush.msra.mxu0 0.0
      %560 = vmatpush.msra.mxu0 0.0
      %561 = vmatpush.msra.mxu0 0.0
      %562 = vmatpush.msra.mxu0 0.0
      %563 = vmatpush.msra.mxu0 0.0
      %564 = vmatpush.msra.mxu0 0.0
      %565 = vmatpush.msra.mxu0 0.0
      %566 = vmatpush.msra.mxu0 0.0
      %567 = vmatpush.msra.mxu0 0.0
      %568 = vmatpush.msra.mxu0 0.0
      %569 = vmatpush.msra.mxu0 0.0
      %570 = vmatpush.msra.mxu0 %v533
      %571 = vmatmul.f32.gmra.mxu0 %v527
      %v572 = vpop.f32.mrf.mxu0
      %v573 = vadd.f32 %v524, %v572
      %574 = vdwg.mxu0
      %v575 = vld [vmem:[#allocation2] sm:$0xff]
      %v576 = vld [vmem:[#allocation2 + $0x8] sm:$0xf]
      %v577 = vsel %vm362, 1, 0
      %v578 = vsel %vm363, 1, 0
      %vm579 = vcmp.eq.s32.totalorder %v577, 1
      %vm580 = vcmp.eq.s32.totalorder %v578, 1
      %583 = vst [vmem:[#allocation1] ss:$2 sm:$0xff] %v575
      %s584 = scalar_lea.vmem [#allocation1], 16
      %585 = vst [vmem:[%s584] ss:$2 sm:$0xff] %v576
      %v586 = vld.sshfl [vmem:[#allocation1] sm:$0xff pattern:$0x75316420]
      %v587 = vld.sshfl [vmem:[#allocation1 + $0x8] sm:$0xff pattern:$0x75316420]
      %v588 = vld.sshfl [vmem:[#allocation1 + $0x10] sm:$0xff pattern:$0x75316420]
      %589 = vrot.lane.b32.xlu0 %v586, 15
      %v590 = vpop.permute.xlu0 %589
      %591 = vrot.lane.b32.xlu0 %v587, 15
      %v592 = vpop.permute.xlu0 %591
      %593 = vrot.lane.b32.xlu0 %v588, 15
      %v594 = vpop.permute.xlu0 %593
      %vm595 = vcmask 121856
      %v596 = vsel %vm595, %v590, %v592
      %v597 = vsel %vm595, %v592, %v594
      %v600 = vsel %vm579, %v596, 0.0
      %v601 = vsel %vm580, %v597, 0.0
      %s602 = scalar_lea.vmem %s3, 8
      %v603 = vld [vmem:[%s602] sm:$0xf]
      %v605 = vsel %vm478, %v603, 0
      %v608 = vsel %vm425, %v600, 0
      %v611 = vsel %vm425, %v601, 0
      %613 = vmatpush.msra.mxu0 0.0
      %614 = vmatpush.msra.mxu0 0.0
      %615 = vmatpush.msra.mxu0 0.0
      %616 = vmatpush.msra.mxu0 0.0
      %617 = vmatpush.msra.mxu0 0.0
      %618 = vmatpush.msra.mxu0 0.0
      %619 = vmatpush.msra.mxu0 0.0
      %620 = vmatpush.msra.mxu0 0.0
      %621 = vmatpush.msra.mxu0 0.0
      %622 = vmatpush.msra.mxu0 0.0
      %623 = vmatpush.msra.mxu0 0.0
      %624 = vmatpush.msra.mxu0 0.0
      %625 = vmatpush.msra.mxu0 0.0
      %626 = vmatpush.msra.mxu0 0.0
      %627 = vmatpush.msra.mxu0 0.0
      %628 = vmatpush.msra.mxu0 %v608
      %629 = vmatmul.f32.gmra.mxu0 %v605
      %v630 = vpop.f32.mrf.mxu0
      %v631 = vadd.f32 0.0, %v630
      %632 = vdwg.mxu0
      %633 = vmatpush.msra.mxu0 0.0
      %634 = vmatpush.msra.mxu0 0.0
      %635 = vmatpush.msra.mxu0 0.0
      %636 = vmatpush.msra.mxu0 0.0
      %637 = vmatpush.msra.mxu0 0.0
      %638 = vmatpush.msra.mxu0 0.0
      %639 = vmatpush.msra.mxu0 0.0
      %640 = vmatpush.msra.mxu0 0.0
      %641 = vmatpush.msra.mxu0 0.0
      %642 = vmatpush.msra.mxu0 0.0
      %643 = vmatpush.msra.mxu0 0.0
      %644 = vmatpush.msra.mxu0 0.0
      %645 = vmatpush.msra.mxu0 0.0
      %646 = vmatpush.msra.mxu0 0.0
      %647 = vmatpush.msra.mxu0 0.0
      %648 = vmatpush.msra.mxu0 %v611
      %649 = vmatmul.f32.gmra.mxu0 %v605
      %v650 = vpop.f32.mrf.mxu0
      %v651 = vadd.f32 0.0, %v650
      %652 = vdwg.mxu0
      %v653 = vadd.f32 %v553, %v631
      %v654 = vadd.f32 %v573, %v651
      %v655 = vld [vmem:[#allocation2] sm:$0xff]
      %v656 = vld [vmem:[#allocation2 + $0x8] sm:$0xf]
      %659 = vst [vmem:[#allocation1] ss:$2 sm:$0xff] %v655
      %s660 = scalar_lea.vmem [#allocation1], 16
      %661 = vst [vmem:[%s660] ss:$2 sm:$0xff] %v656
      %v662 = vld.sshfl [vmem:[#allocation1] sm:$0xff pattern:$0x75316420]
      %v663 = vld.sshfl [vmem:[#allocation1 + $0x8] sm:$0xff pattern:$0x75316420]
      %v664 = vld.sshfl [vmem:[#allocation1 + $0x10] sm:$0xff pattern:$0x75316420]
      %665 = vrot.lane.b32.xlu0 %v662, 1
      %v666 = vpop.permute.xlu0 %665
      %667 = vrot.lane.b32.xlu0 %v663, 1
      %v668 = vpop.permute.xlu0 %667
      %669 = vrot.lane.b32.xlu0 %v664, 1
      %v670 = vpop.permute.xlu0 %669
      %vm671 = vcmask 7168
      %v672 = vsel %vm671, %v666, %v668
      %v673 = vsel %vm671, %v668, %v670
      %v676 = vsel %vm433, %v672, 0.0
      %v677 = vsel %vm434, %v673, 0.0
      %s678 = scalar_lea.vmem %s3, 12
      %v679 = vld [vmem:[%s678] sm:$0xf]
      %v681 = vsel %vm478, %v679, 0
      %v684 = vsel %vm425, %v676, 0
      %v687 = vsel %vm425, %v677, 0
      %689 = vmatpush.msra.mxu0 0.0
      %690 = vmatpush.msra.mxu0 0.0
      %691 = vmatpush.msra.mxu0 0.0
      %692 = vmatpush.msra.mxu0 0.0
      %693 = vmatpush.msra.mxu0 0.0
      %694 = vmatpush.msra.mxu0 0.0
      %695 = vmatpush.msra.mxu0 0.0
      %696 = vmatpush.msra.mxu0 0.0
      %697 = vmatpush.msra.mxu0 0.0
      %698 = vmatpush.msra.mxu0 0.0
      %699 = vmatpush.msra.mxu0 0.0
      %700 = vmatpush.msra.mxu0 0.0
      %701 = vmatpush.msra.mxu0 0.0
      %702 = vmatpush.msra.mxu0 0.0
      %703 = vmatpush.msra.mxu0 0.0
      %704 = vmatpush.msra.mxu0 %v684
      %705 = vmatmul.f32.gmra.mxu0 %v681
      %v706 = vpop.f32.mrf.mxu0
      %v707 = vadd.f32 0.0, %v706
      %708 = vdwg.mxu0
      %709 = vmatpush.msra.mxu0 0.0
      %710 = vmatpush.msra.mxu0 0.0
      %711 = vmatpush.msra.mxu0 0.0
      %712 = vmatpush.msra.mxu0 0.0
      %713 = vmatpush.msra.mxu0 0.0
      %714 = vmatpush.msra.mxu0 0.0
      %715 = vmatpush.msra.mxu0 0.0
      %716 = vmatpush.msra.mxu0 0.0
      %717 = vmatpush.msra.mxu0 0.0
      %718 = vmatpush.msra.mxu0 0.0
      %719 = vmatpush.msra.mxu0 0.0
      %720 = vmatpush.msra.mxu0 0.0
      %721 = vmatpush.msra.mxu0 0.0
      %722 = vmatpush.msra.mxu0 0.0
      %723 = vmatpush.msra.mxu0 0.0
      %724 = vmatpush.msra.mxu0 %v687
      %725 = vmatmul.f32.gmra.mxu0 %v681
      %v726 = vpop.f32.mrf.mxu0
      %v727 = vadd.f32 0.0, %v726
      %728 = vdwg.mxu0
      %v729 = vadd.f32 %v653, %v707
      %v730 = vadd.f32 %v654, %v727
      %v731 = vld [vmem:[#allocation2 + $0x4] sm:$0xff]
      %s732 = scalar_lea.vmem %s3, 16
      %v733 = vld [vmem:[%s732] sm:$0xf]
      %735 = vst [vmem:[#allocation1] ss:$2 sm:$0xff] %v731
      %v736 = vld.sshfl [vmem:[#allocation1] sm:$0xff pattern:$0x75316420]
      %v737 = vld.sshfl [vmem:[#allocation1 + $0x8] sm:$0xff pattern:$0x75316420]
      %v739 = vsel %vm478, %v733, 0
      %v741 = vsel %vm425, %v736, 0
      %v743 = vsel %vm425, %v737, 0
      %745 = vmatpush.msra.mxu0 0.0
      %746 = vmatpush.msra.mxu0 0.0
      %747 = vmatpush.msra.mxu0 0.0
      %748 = vmatpush.msra.mxu0 0.0
      %749 = vmatpush.msra.mxu0 0.0
      %750 = vmatpush.msra.mxu0 0.0
      %751 = vmatpush.msra.mxu0 0.0
      %752 = vmatpush.msra.mxu0 0.0
      %753 = vmatpush.msra.mxu0 0.0
      %754 = vmatpush.msra.mxu0 0.0
      %755 = vmatpush.msra.mxu0 0.0
      %756 = vmatpush.msra.mxu0 0.0
      %757 = vmatpush.msra.mxu0 0.0
      %758 = vmatpush.msra.mxu0 0.0
      %759 = vmatpush.msra.mxu0 0.0
      %760 = vmatpush.msra.mxu0 %v741
      %761 = vmatmul.f32.gmra.mxu0 %v739
      %v762 = vpop.f32.mrf.mxu0
      %v763 = vadd.f32 0.0, %v762
      %764 = vdwg.mxu0
      %765 = vmatpush.msra.mxu0 0.0
      %766 = vmatpush.msra.mxu0 0.0
      %767 = vmatpush.msra.mxu0 0.0
      %768 = vmatpush.msra.mxu0 0.0
      %769 = vmatpush.msra.mxu0 0.0
      %770 = vmatpush.msra.mxu0 0.0
      %771 = vmatpush.msra.mxu0 0.0
      %772 = vmatpush.msra.mxu0 0.0
      %773 = vmatpush.msra.mxu0 0.0
      %774 = vmatpush.msra.mxu0 0.0
      %775 = vmatpush.msra.mxu0 0.0
      %776 = vmatpush.msra.mxu0 0.0
      %777 = vmatpush.msra.mxu0 0.0
      %778 = vmatpush.msra.mxu0 0.0
      %779 = vmatpush.msra.mxu0 0.0
      %780 = vmatpush.msra.mxu0 %v743
      %781 = vmatmul.f32.gmra.mxu0 %v739
      %v782 = vpop.f32.mrf.mxu0
      %v783 = vadd.f32 0.0, %v782
      %784 = vdwg.mxu0
      %v785 = vadd.f32 %v729, %v763
      %v786 = vadd.f32 %v730, %v783
      %v787 = vld [vmem:[#allocation2 + $0x4] sm:$0xff]
      %v788 = vld [vmem:[#allocation2 + $0xc] sm:$0xf]
      %791 = vst [vmem:[#allocation1] ss:$2 sm:$0xff] %v787
      %s792 = scalar_lea.vmem [#allocation1], 16
      %793 = vst [vmem:[%s792] ss:$2 sm:$0xff] %v788
      %v794 = vld.sshfl [vmem:[#allocation1] sm:$0xff pattern:$0x75316420]
      %v795 = vld.sshfl [vmem:[#allocation1 + $0x8] sm:$0xff pattern:$0x75316420]
      %v796 = vld.sshfl [vmem:[#allocation1 + $0x10] sm:$0xff pattern:$0x75316420]
      %797 = vrot.lane.b32.xlu0 %v794, 127
      %v798 = vpop.permute.xlu0 %797
      %799 = vrot.lane.b32.xlu0 %v795, 127
      %v800 = vpop.permute.xlu0 %799
      %801 = vrot.lane.b32.xlu0 %v796, 127
      %v802 = vpop.permute.xlu0 %801
      %vm803 = vcmask 1039360
      %v804 = vsel %vm803, %v798, %v800
      %v805 = vsel %vm803, %v800, %v802
      %v808 = vsel %vm579, %v804, 0.0
      %v809 = vsel %vm580, %v805, 0.0
      %s810 = scalar_lea.vmem %s3, 20
      %v811 = vld [vmem:[%s810] sm:$0xf]
      %v813 = vsel %vm478, %v811, 0
      %v816 = vsel %vm425, %v808, 0
      %v819 = vsel %vm425, %v809, 0
      %821 = vmatpush.msra.mxu0 0.0
      %822 = vmatpush.msra.mxu0 0.0
      %823 = vmatpush.msra.mxu0 0.0
      %824 = vmatpush.msra.mxu0 0.0
      %825 = vmatpush.msra.mxu0 0.0
      %826 = vmatpush.msra.mxu0 0.0
      %827 = vmatpush.msra.mxu0 0.0
      %828 = vmatpush.msra.mxu0 0.0
      %829 = vmatpush.msra.mxu0 0.0
      %830 = vmatpush.msra.mxu0 0.0
      %831 = vmatpush.msra.mxu0 0.0
      %832 = vmatpush.msra.mxu0 0.0
      %833 = vmatpush.msra.mxu0 0.0
      %834 = vmatpush.msra.mxu0 0.0
      %835 = vmatpush.msra.mxu0 0.0
      %836 = vmatpush.msra.mxu0 %v816
      %837 = vmatmul.f32.gmra.mxu0 %v813
      %v838 = vpop.f32.mrf.mxu0
      %v839 = vadd.f32 0.0, %v838
      %840 = vdwg.mxu0
      %841 = vmatpush.msra.mxu0 0.0
      %842 = vmatpush.msra.mxu0 0.0
      %843 = vmatpush.msra.mxu0 0.0
      %844 = vmatpush.msra.mxu0 0.0
      %845 = vmatpush.msra.mxu0 0.0
      %846 = vmatpush.msra.mxu0 0.0
      %847 = vmatpush.msra.mxu0 0.0
      %848 = vmatpush.msra.mxu0 0.0
      %849 = vmatpush.msra.mxu0 0.0
      %850 = vmatpush.msra.mxu0 0.0
      %851 = vmatpush.msra.mxu0 0.0
      %852 = vmatpush.msra.mxu0 0.0
      %853 = vmatpush.msra.mxu0 0.0
      %854 = vmatpush.msra.mxu0 0.0
      %855 = vmatpush.msra.mxu0 0.0
      %856 = vmatpush.msra.mxu0 %v819
      %857 = vmatmul.f32.gmra.mxu0 %v813
      %v858 = vpop.f32.mrf.mxu0
      %v859 = vadd.f32 0.0, %v858
      %860 = vdwg.mxu0
      %v861 = vadd.f32 %v785, %v839
      %v862 = vadd.f32 %v786, %v859
      %v863 = vld [vmem:[#allocation2 + $0x4] sm:$0xff]
      %v864 = vld [vmem:[#allocation2 + $0xc] sm:$0xf]
      %867 = vst [vmem:[#allocation1] ss:$2 sm:$0xff] %v863
      %s868 = scalar_lea.vmem [#allocation1], 16
      %869 = vst [vmem:[%s868] ss:$2 sm:$0xff] %v864
      %v870 = vld.sshfl [vmem:[#allocation1] sm:$0xff pattern:$0x75316420]
      %v871 = vld.sshfl [vmem:[#allocation1 + $0x8] sm:$0xff pattern:$0x75316420]
      %v872 = vld.sshfl [vmem:[#allocation1 + $0x10] sm:$0xff pattern:$0x75316420]
      %873 = vrot.lane.b32.xlu0 %v870, 113
      %v874 = vpop.permute.xlu0 %873
      %875 = vrot.lane.b32.xlu0 %v871, 113
      %v876 = vpop.permute.xlu0 %875
      %877 = vrot.lane.b32.xlu0 %v872, 113
      %v878 = vpop.permute.xlu0 %877
      %vm879 = vcmask 924672
      %v880 = vsel %vm879, %v874, %v876
      %v881 = vsel %vm879, %v876, %v878
      %v884 = vsel %vm433, %v880, 0.0
      %v885 = vsel %vm434, %v881, 0.0
      %s886 = scalar_lea.vmem %s3, 24
      %v887 = vld [vmem:[%s886] sm:$0xf]
      %v889 = vsel %vm478, %v887, 0
      %v892 = vsel %vm425, %v884, 0
      %v895 = vsel %vm425, %v885, 0
      %897 = vmatpush.msra.mxu0 0.0
      %898 = vmatpush.msra.mxu0 0.0
      %899 = vmatpush.msra.mxu0 0.0
      %900 = vmatpush.msra.mxu0 0.0
      %901 = vmatpush.msra.mxu0 0.0
      %902 = vmatpush.msra.mxu0 0.0
      %903 = vmatpush.msra.mxu0 0.0
      %904 = vmatpush.msra.mxu0 0.0
      %905 = vmatpush.msra.mxu0 0.0
      %906 = vmatpush.msra.mxu0 0.0
      %907 = vmatpush.msra.mxu0 0.0
      %908 = vmatpush.msra.mxu0 0.0
      %909 = vmatpush.msra.mxu0 0.0
      %910 = vmatpush.msra.mxu0 0.0
      %911 = vmatpush.msra.mxu0 0.0
      %912 = vmatpush.msra.mxu0 %v892
      %913 = vmatmul.f32.gmra.mxu0 %v889
      %v914 = vpop.f32.mrf.mxu0
      %v915 = vadd.f32 0.0, %v914
      %916 = vdwg.mxu0
      %917 = vmatpush.msra.mxu0 0.0
      %918 = vmatpush.msra.mxu0 0.0
      %919 = vmatpush.msra.mxu0 0.0
      %920 = vmatpush.msra.mxu0 0.0
      %921 = vmatpush.msra.mxu0 0.0
      %922 = vmatpush.msra.mxu0 0.0
      %923 = vmatpush.msra.mxu0 0.0
      %924 = vmatpush.msra.mxu0 0.0
      %925 = vmatpush.msra.mxu0 0.0
      %926 = vmatpush.msra.mxu0 0.0
      %927 = vmatpush.msra.mxu0 0.0
      %928 = vmatpush.msra.mxu0 0.0
      %929 = vmatpush.msra.mxu0 0.0
      %930 = vmatpush.msra.mxu0 0.0
      %931 = vmatpush.msra.mxu0 0.0
      %932 = vmatpush.msra.mxu0 %v895
      %933 = vmatmul.f32.gmra.mxu0 %v889
      %v934 = vpop.f32.mrf.mxu0
      %v935 = vadd.f32 0.0, %v934
      %936 = vdwg.mxu0
      %v937 = vadd.f32 %v861, %v915
      %v938 = vadd.f32 %v862, %v935
      %v939 = vld [vmem:[#allocation2 + $0x4] sm:$0xff]
      %v940 = vld [vmem:[#allocation2 + $0xc] sm:$0xf]
      %s941 = scalar_lea.vmem %s3, 28
      %v942 = vld [vmem:[%s941] sm:$0xf]
      %945 = vst [vmem:[#allocation1] ss:$2 sm:$0xff] %v939
      %s946 = scalar_lea.vmem [#allocation1], 16
      %947 = vst [vmem:[%s946] ss:$2 sm:$0xff] %v940
      %v948 = vld.sshfl [vmem:[#allocation1] sm:$0xff pattern:$0x75316420]
      %v949 = vld.sshfl [vmem:[#allocation1 + $0x8] sm:$0xff pattern:$0x75316420]
      %v950 = vld.sshfl [vmem:[#allocation1 + $0x10] sm:$0xff pattern:$0x75316420]
      %951 = vrot.lane.b32.xlu0 %v948, 112
      %v952 = vpop.permute.xlu0 %951
      %953 = vrot.lane.b32.xlu0 %v949, 112
      %v954 = vpop.permute.xlu0 %953
      %955 = vrot.lane.b32.xlu0 %v950, 112
      %v956 = vpop.permute.xlu0 %955
      %vm957 = vcmask 916480
      %v958 = vsel %vm957, %v952, %v954
      %v959 = vsel %vm957, %v954, %v956
      %v961 = vsel %vm478, %v942, 0
      %v963 = vsel %vm425, %v958, 0
      %v965 = vsel %vm425, %v959, 0
      %967 = vmatpush.msra.mxu0 0.0
      %968 = vmatpush.msra.mxu0 0.0
      %969 = vmatpush.msra.mxu0 0.0
      %970 = vmatpush.msra.mxu0 0.0
      %971 = vmatpush.msra.mxu0 0.0
      %972 = vmatpush.msra.mxu0 0.0
      %973 = vmatpush.msra.mxu0 0.0
      %974 = vmatpush.msra.mxu0 0.0
      %975 = vmatpush.msra.mxu0 0.0
      %976 = vmatpush.msra.mxu0 0.0
      %977 = vmatpush.msra.mxu0 0.0
      %978 = vmatpush.msra.mxu0 0.0
      %979 = vmatpush.msra.mxu0 0.0
      %980 = vmatpush.msra.mxu0 0.0
      %981 = vmatpush.msra.mxu0 0.0
      %982 = vmatpush.msra.mxu0 %v963
      %983 = vmatmul.f32.gmra.mxu0 %v961
      %v984 = vpop.f32.mrf.mxu0
      %v985 = vadd.f32 0.0, %v984
      %986 = vdwg.mxu0
      %987 = vmatpush.msra.mxu0 0.0
      %988 = vmatpush.msra.mxu0 0.0
      %989 = vmatpush.msra.mxu0 0.0
      %990 = vmatpush.msra.mxu0 0.0
      %991 = vmatpush.msra.mxu0 0.0
      %992 = vmatpush.msra.mxu0 0.0
      %993 = vmatpush.msra.mxu0 0.0
      %994 = vmatpush.msra.mxu0 0.0
      %995 = vmatpush.msra.mxu0 0.0
      %996 = vmatpush.msra.mxu0 0.0
      %997 = vmatpush.msra.mxu0 0.0
      %998 = vmatpush.msra.mxu0 0.0
      %999 = vmatpush.msra.mxu0 0.0
      %1000 = vmatpush.msra.mxu0 0.0
      %1001 = vmatpush.msra.mxu0 0.0
      %1002 = vmatpush.msra.mxu0 %v965
      %1003 = vmatmul.f32.gmra.mxu0 %v961
      %v1004 = vpop.f32.mrf.mxu0
      %v1005 = vadd.f32 0.0, %v1004
      %1006 = vdwg.mxu0
      %v1007 = vadd.f32 %v937, %v985
      %v1008 = vadd.f32 %v938, %v1005
      %v1009 = vld [vmem:[#allocation2 + $0x4] sm:$0xff]
      %v1010 = vld [vmem:[#allocation2 + $0xc] sm:$0xf]
      %1013 = vst [vmem:[#allocation1] ss:$2 sm:$0xff] %v1009
      %s1014 = scalar_lea.vmem [#allocation1], 16
      %1015 = vst [vmem:[%s1014] ss:$2 sm:$0xff] %v1010
      %v1016 = vld.sshfl [vmem:[#allocation1] sm:$0xff pattern:$0x75316420]
      %v1017 = vld.sshfl [vmem:[#allocation1 + $0x8] sm:$0xff pattern:$0x75316420]
      %v1018 = vld.sshfl [vmem:[#allocation1 + $0x10] sm:$0xff pattern:$0x75316420]
      %1019 = vrot.lane.b32.xlu0 %v1016, 111
      %v1020 = vpop.permute.xlu0 %1019
      %1021 = vrot.lane.b32.xlu0 %v1017, 111
      %v1022 = vpop.permute.xlu0 %1021
      %1023 = vrot.lane.b32.xlu0 %v1018, 111
      %v1024 = vpop.permute.xlu0 %1023
      %vm1025 = vcmask 908288
      %v1026 = vsel %vm1025, %v1020, %v1022
      %v1027 = vsel %vm1025, %v1022, %v1024
      %v1030 = vsel %vm579, %v1026, 0.0
      %v1031 = vsel %vm580, %v1027, 0.0
      %s1032 = scalar_lea.vmem %s3, 32
      %v1033 = vld [vmem:[%s1032] sm:$0xf]
      %v1035 = vsel %vm478, %v1033, 0
      %v1038 = vsel %vm425, %v1030, 0
      %v1041 = vsel %vm425, %v1031, 0
      %1043 = vmatpush.msra.mxu0 0.0
      %1044 = vmatpush.msra.mxu0 0.0
      %1045 = vmatpush.msra.mxu0 0.0
      %1046 = vmatpush.msra.mxu0 0.0
      %1047 = vmatpush.msra.mxu0 0.0
      %1048 = vmatpush.msra.mxu0 0.0
      %1049 = vmatpush.msra.mxu0 0.0
      %1050 = vmatpush.msra.mxu0 0.0
      %1051 = vmatpush.msra.mxu0 0.0
      %1052 = vmatpush.msra.mxu0 0.0
      %1053 = vmatpush.msra.mxu0 0.0
      %1054 = vmatpush.msra.mxu0 0.0
      %1055 = vmatpush.msra.mxu0 0.0
      %1056 = vmatpush.msra.mxu0 0.0
      %1057 = vmatpush.msra.mxu0 0.0
      %1058 = vmatpush.msra.mxu0 %v1038
      %1059 = vmatmul.f32.gmra.mxu0 %v1035
      %v1060 = vpop.f32.mrf.mxu0
      %v1061 = vadd.f32 0.0, %v1060
      %1062 = vdwg.mxu0
      %1063 = vmatpush.msra.mxu0 0.0
      %1064 = vmatpush.msra.mxu0 0.0
      %1065 = vmatpush.msra.mxu0 0.0
      %1066 = vmatpush.msra.mxu0 0.0
      %1067 = vmatpush.msra.mxu0 0.0
      %1068 = vmatpush.msra.mxu0 0.0
      %1069 = vmatpush.msra.mxu0 0.0
      %1070 = vmatpush.msra.mxu0 0.0
      %1071 = vmatpush.msra.mxu0 0.0
      %1072 = vmatpush.msra.mxu0 0.0
      %1073 = vmatpush.msra.mxu0 0.0
      %1074 = vmatpush.msra.mxu0 0.0
      %1075 = vmatpush.msra.mxu0 0.0
      %1076 = vmatpush.msra.mxu0 0.0
      %1077 = vmatpush.msra.mxu0 0.0
      %1078 = vmatpush.msra.mxu0 %v1041
      %1079 = vmatmul.f32.gmra.mxu0 %v1035
      %v1080 = vpop.f32.mrf.mxu0
      %v1081 = vadd.f32 0.0, %v1080
      %1082 = vdwg.mxu0
      %v1083 = vadd.f32 %v1007, %v1061
      %v1084 = vadd.f32 %v1008, %v1081
      %v1085 = vld [vmem:[%s4] sm:$0xf]
      %1087 = vset.pattern.permute.xlu0 0
      %1088 = vperm.xlu0 %1087, %v1085
      %v1089 = vpop.permute.xlu0 %1088
      %v1091 = vadd.f32 %v1083, %v1089
      %v1092 = vadd.f32 %v1084, %v1089
      %v1093 = vmax.f32 %v1091, 0.0
      %v1094 = vmax.f32 %v1092, 0.0
      %v1095 = vld [vmem:[%s5] sm:$0xff]
      %v1096 = vld [vmem:[%s6] sm:$0xff]
      %1098 = vset.pattern.permute.xlu0 0
      %1099 = vperm.xlu0 %1098, %v1096
      %v1100 = vpop.permute.xlu0 %1099
      %v1103 = vsel %vm478, %v1095, 0
      %v1106 = vsel %vm425, %v1093, 0
      %v1109 = vsel %vm425, %v1094, 0
      %1111 = vmatpush.msra.mxu0 0.0
      %1112 = vmatpush.msra.mxu0 0.0
      %1113 = vmatpush.msra.mxu0 0.0
      %1114 = vmatpush.msra.mxu0 0.0
      %1115 = vmatpush.msra.mxu0 0.0
      %1116 = vmatpush.msra.mxu0 0.0
      %1117 = vmatpush.msra.mxu0 0.0
      %1118 = vmatpush.msra.mxu0 0.0
      %1119 = vmatpush.msra.mxu0 0.0
      %1120 = vmatpush.msra.mxu0 0.0
      %1121 = vmatpush.msra.mxu0 0.0
      %1122 = vmatpush.msra.mxu0 0.0
      %1123 = vmatpush.msra.mxu0 0.0
      %1124 = vmatpush.msra.mxu0 0.0
      %1125 = vmatpush.msra.mxu0 0.0
      %1126 = vmatpush.msra.mxu0 %v1106
      %1127 = vmatmul.f32.gmra.mxu0 %v1103
      %v1128 = vpop.f32.mrf.mxu0
      %v1129 = vadd.f32 %v1100, %v1128
      %1130 = vdwg.mxu0
      %1131 = vmatpush.msra.mxu0 0.0
      %1132 = vmatpush.msra.mxu0 0.0
      %1133 = vmatpush.msra.mxu0 0.0
      %1134 = vmatpush.msra.mxu0 0.0
      %1135 = vmatpush.msra.mxu0 0.0
      %1136 = vmatpush.msra.mxu0 0.0
      %1137 = vmatpush.msra.mxu0 0.0
      %1138 = vmatpush.msra.mxu0 0.0
      %1139 = vmatpush.msra.mxu0 0.0
      %1140 = vmatpush.msra.mxu0 0.0
      %1141 = vmatpush.msra.mxu0 0.0
      %1142 = vmatpush.msra.mxu0 0.0
      %1143 = vmatpush.msra.mxu0 0.0
      %1144 = vmatpush.msra.mxu0 0.0
      %1145 = vmatpush.msra.mxu0 0.0
      %1146 = vmatpush.msra.mxu0 %v1109
      %1147 = vmatmul.f32.gmra.mxu0 %v1103
      %v1148 = vpop.f32.mrf.mxu0
      %v1149 = vadd.f32 %v1100, %v1148
      %1150 = vdwg.mxu0
      %v1151 = vadd.f32 %v1129, %v367
      %v1152 = vadd.f32 %v1149, %v368
      %v1153 = vmax.f32 %v1151, 0.0
      %v1154 = vmax.f32 %v1152, 0.0
      %s1155 = scalar_lea.vmem %s1, 4
      %v1156 = vld [vmem:[%s1155] sm:$0xf]
      %s1157 = scalar_lea.vmem %s2, 4
      %v1158 = vld [vmem:[%s1157] sm:$0xf]
      %1160 = vset.pattern.permute.xlu0 0
      %1161 = vperm.xlu0 %1160, %v1158
      %v1162 = vpop.permute.xlu0 %1161
      %v1165 = vsel %vm376, %v1156, 0
      %1167 = vmatpush.msra.mxu0 0.0
      %1168 = vmatpush.msra.mxu0 0.0
      %1169 = vmatpush.msra.mxu0 0.0
      %1170 = vmatpush.msra.mxu0 0.0
      %1171 = vmatpush.msra.mxu0 0.0
      %1172 = vmatpush.msra.mxu0 0.0
      %1173 = vmatpush.msra.mxu0 0.0
      %1174 = vmatpush.msra.mxu0 0.0
      %1175 = vmatpush.msra.mxu0 0.0
      %1176 = vmatpush.msra.mxu0 0.0
      %1177 = vmatpush.msra.mxu0 0.0
      %1178 = vmatpush.msra.mxu0 0.0
      %1179 = vmatpush.msra.mxu0 0.0
      %1180 = vmatpush.msra.mxu0 0.0
      %1181 = vmatpush.msra.mxu0 0.0
      %1182 = vmatpush.msra.mxu0 %v1153
      %1183 = vmatmul.f32.gmra.mxu0 %v1165
      %v1184 = vpop.f32.mrf.mxu0
      %v1185 = vadd.f32 %v1162, %v1184
      %1186 = vdwg.mxu0
      %1187 = vmatpush.msra.mxu0 0.0
      %1188 = vmatpush.msra.mxu0 0.0
      %1189 = vmatpush.msra.mxu0 0.0
      %1190 = vmatpush.msra.mxu0 0.0
      %1191 = vmatpush.msra.mxu0 0.0
      %1192 = vmatpush.msra.mxu0 0.0
      %1193 = vmatpush.msra.mxu0 0.0
      %1194 = vmatpush.msra.mxu0 0.0
      %1195 = vmatpush.msra.mxu0 0.0
      %1196 = vmatpush.msra.mxu0 0.0
      %1197 = vmatpush.msra.mxu0 0.0
      %1198 = vmatpush.msra.mxu0 0.0
      %1199 = vmatpush.msra.mxu0 0.0
      %1200 = vmatpush.msra.mxu0 0.0
      %1201 = vmatpush.msra.mxu0 0.0
      %1202 = vmatpush.msra.mxu0 %v1154
      %1203 = vmatmul.f32.gmra.mxu0 %v1165
      %v1204 = vpop.f32.mrf.mxu0
      %v1205 = vadd.f32 %v1162, %v1204
      %1206 = vdwg.mxu0
      %v1207 = vmax.f32 %v1185, 0.0
      %v1208 = vmax.f32 %v1205, 0.0
      %v1211 = vrot.slane %v1208, 4
      %v1212 = vsel %vm425, %v1207, %v1211
      %1214 = vst [vmem:[#allocation2 + $0x4] sm:$0xff] %v1212
      %v1215 = vld [vmem:[#allocation2] sm:$0xff]
      %v1216 = vld [vmem:[#allocation2 + $0x8] sm:$0xf]
      %1219 = vst [vmem:[#allocation1] ss:$2 sm:$0xff] %v1215
      %s1220 = scalar_lea.vmem [#allocation1], 16
      %1221 = vst [vmem:[%s1220] ss:$2 sm:$0xff] %v1216
      %v1222 = vld.sshfl [vmem:[#allocation1] sm:$0xff pattern:$0x75316420]
      %v1223 = vld.sshfl [vmem:[#allocation1 + $0x8] sm:$0xff pattern:$0x75316420]
      %v1224 = vld.sshfl [vmem:[#allocation1 + $0x10] sm:$0xff pattern:$0x75316420]
      %1225 = vrot.lane.b32.xlu0 %v1222, 17
      %v1226 = vpop.permute.xlu0 %1225
      %1227 = vrot.lane.b32.xlu0 %v1223, 17
      %v1228 = vpop.permute.xlu0 %1227
      %1229 = vrot.lane.b32.xlu0 %v1224, 17
      %v1230 = vpop.permute.xlu0 %1229
      %v1231 = vsel %vm449, %v1226, %v1228
      %v1232 = vsel %vm449, %v1228, %v1230
      %v1235 = vsel %vm433, %v1231, 0.0
      %v1236 = vsel %vm434, %v1232, 0.0
      %s1237 = scalar_lea.vmem %s3, 36
      %v1238 = vld [vmem:[%s1237] sm:$0xf]
      %v1239 = vld [vmem:[#allocation2] sm:$0xff]
      %v1240 = vld [vmem:[#allocation2 + $0x8] sm:$0xf]
      %s1241 = scalar_lea.vmem %s3, 40
      %v1242 = vld [vmem:[%s1241] sm:$0xf]
      %1245 = vst [vmem:[#allocation1] ss:$2 sm:$0xff] %v1239
      %s1246 = scalar_lea.vmem [#allocation1], 16
      %1247 = vst [vmem:[%s1246] ss:$2 sm:$0xff] %v1240
      %v1248 = vld.sshfl [vmem:[#allocation1] sm:$0xff pattern:$0x75316420]
      %v1249 = vld.sshfl [vmem:[#allocation1 + $0x8] sm:$0xff pattern:$0x75316420]
      %v1250 = vld.sshfl [vmem:[#allocation1 + $0x10] sm:$0xff pattern:$0x75316420]
      %1251 = vrot.lane.b32.xlu0 %v1248, 16
      %v1252 = vpop.permute.xlu0 %1251
      %1253 = vrot.lane.b32.xlu0 %v1249, 16
      %v1254 = vpop.permute.xlu0 %1253
      %1255 = vrot.lane.b32.xlu0 %v1250, 16
      %v1256 = vpop.permute.xlu0 %1255
      %v1257 = vsel %vm475, %v1252, %v1254
      %v1258 = vsel %vm475, %v1254, %v1256
      %v1260 = vsel %vm478, %v1242, 0
      %v1262 = vsel %vm425, %v1257, 0
      %v1264 = vsel %vm425, %v1258, 0
      %1266 = vmatpush.msra.mxu0 0.0
      %1267 = vmatpush.msra.mxu0 0.0
      %1268 = vmatpush.msra.mxu0 0.0
      %1269 = vmatpush.msra.mxu0 0.0
      %1270 = vmatpush.msra.mxu0 0.0
      %1271 = vmatpush.msra.mxu0 0.0
      %1272 = vmatpush.msra.mxu0 0.0
      %1273 = vmatpush.msra.mxu0 0.0
      %1274 = vmatpush.msra.mxu0 0.0
      %1275 = vmatpush.msra.mxu0 0.0
      %1276 = vmatpush.msra.mxu0 0.0
      %1277 = vmatpush.msra.mxu0 0.0
      %1278 = vmatpush.msra.mxu0 0.0
      %1279 = vmatpush.msra.mxu0 0.0
      %1280 = vmatpush.msra.mxu0 0.0
      %1281 = vmatpush.msra.mxu0 %v1262
      %1282 = vmatmul.f32.gmra.mxu0 %v1260
      %v1283 = vpop.f32.mrf.mxu0
      %v1284 = vadd.f32 0.0, %v1283
      %1285 = vdwg.mxu0
      %1286 = vmatpush.msra.mxu0 0.0
      %1287 = vmatpush.msra.mxu0 0.0
      %1288 = vmatpush.msra.mxu0 0.0
      %1289 = vmatpush.msra.mxu0 0.0
      %1290 = vmatpush.msra.mxu0 0.0
      %1291 = vmatpush.msra.mxu0 0.0
      %1292 = vmatpush.msra.mxu0 0.0
      %1293 = vmatpush.msra.mxu0 0.0
      %1294 = vmatpush.msra.mxu0 0.0
      %1295 = vmatpush.msra.mxu0 0.0
      %1296 = vmatpush.msra.mxu0 0.0
      %1297 = vmatpush.msra.mxu0 0.0
      %1298 = vmatpush.msra.mxu0 0.0
      %1299 = vmatpush.msra.mxu0 0.0
      %1300 = vmatpush.msra.mxu0 0.0
      %1301 = vmatpush.msra.mxu0 %v1264
      %1302 = vmatmul.f32.gmra.mxu0 %v1260
      %v1303 = vpop.f32.mrf.mxu0
      %v1304 = vadd.f32 0.0, %v1303
      %1305 = vdwg.mxu0
      %v1307 = vsel %vm478, %v1238, 0
      %v1310 = vsel %vm425, %v1235, 0
      %v1313 = vsel %vm425, %v1236, 0
      %1315 = vmatpush.msra.mxu0 0.0
      %1316 = vmatpush.msra.mxu0 0.0
      %1317 = vmatpush.msra.mxu0 0.0
      %1318 = vmatpush.msra.mxu0 0.0
      %1319 = vmatpush.msra.mxu0 0.0
      %1320 = vmatpush.msra.mxu0 0.0
      %1321 = vmatpush.msra.mxu0 0.0
      %1322 = vmatpush.msra.mxu0 0.0
      %1323 = vmatpush.msra.mxu0 0.0
      %1324 = vmatpush.msra.mxu0 0.0
      %1325 = vmatpush.msra.mxu0 0.0
      %1326 = vmatpush.msra.mxu0 0.0
      %1327 = vmatpush.msra.mxu0 0.0
      %1328 = vmatpush.msra.mxu0 0.0
      %1329 = vmatpush.msra.mxu0 0.0
      %1330 = vmatpush.msra.mxu0 %v1310
      %1331 = vmatmul.f32.gmra.mxu0 %v1307
      %v1332 = vpop.f32.mrf.mxu0
      %v1333 = vadd.f32 %v1284, %v1332
      %1334 = vdwg.mxu0
      %1335 = vmatpush.msra.mxu0 0.0
      %1336 = vmatpush.msra.mxu0 0.0
      %1337 = vmatpush.msra.mxu0 0.0
      %1338 = vmatpush.msra.mxu0 0.0
      %1339 = vmatpush.msra.mxu0 0.0
      %1340 = vmatpush.msra.mxu0 0.0
      %1341 = vmatpush.msra.mxu0 0.0
      %1342 = vmatpush.msra.mxu0 0.0
      %1343 = vmatpush.msra.mxu0 0.0
      %1344 = vmatpush.msra.mxu0 0.0
      %1345 = vmatpush.msra.mxu0 0.0
      %1346 = vmatpush.msra.mxu0 0.0
      %1347 = vmatpush.msra.mxu0 0.0
      %1348 = vmatpush.msra.mxu0 0.0
      %1349 = vmatpush.msra.mxu0 0.0
      %1350 = vmatpush.msra.mxu0 %v1313
      %1351 = vmatmul.f32.gmra.mxu0 %v1307
      %v1352 = vpop.f32.mrf.mxu0
      %v1353 = vadd.f32 %v1304, %v1352
      %1354 = vdwg.mxu0
      %v1355 = vld [vmem:[#allocation2] sm:$0xff]
      %v1356 = vld [vmem:[#allocation2 + $0x8] sm:$0xf]
      %1359 = vst [vmem:[#allocation1] ss:$2 sm:$0xff] %v1355
      %s1360 = scalar_lea.vmem [#allocation1], 16
      %1361 = vst [vmem:[%s1360] ss:$2 sm:$0xff] %v1356
      %v1362 = vld.sshfl [vmem:[#allocation1] sm:$0xff pattern:$0x75316420]
      %v1363 = vld.sshfl [vmem:[#allocation1 + $0x8] sm:$0xff pattern:$0x75316420]
      %v1364 = vld.sshfl [vmem:[#allocation1 + $0x10] sm:$0xff pattern:$0x75316420]
      %1365 = vrot.lane.b32.xlu0 %v1362, 15
      %v1366 = vpop.permute.xlu0 %1365
      %1367 = vrot.lane.b32.xlu0 %v1363, 15
      %v1368 = vpop.permute.xlu0 %1367
      %1369 = vrot.lane.b32.xlu0 %v1364, 15
      %v1370 = vpop.permute.xlu0 %1369
      %v1371 = vsel %vm595, %v1366, %v1368
      %v1372 = vsel %vm595, %v1368, %v1370
      %v1375 = vsel %vm579, %v1371, 0.0
      %v1376 = vsel %vm580, %v1372, 0.0
      %s1377 = scalar_lea.vmem %s3, 44
      %v1378 = vld [vmem:[%s1377] sm:$0xf]
      %v1380 = vsel %vm478, %v1378, 0
      %v1383 = vsel %vm425, %v1375, 0
      %v1386 = vsel %vm425, %v1376, 0
      %1388 = vmatpush.msra.mxu0 0.0
      %1389 = vmatpush.msra.mxu0 0.0
      %1390 = vmatpush.msra.mxu0 0.0
      %1391 = vmatpush.msra.mxu0 0.0
      %1392 = vmatpush.msra.mxu0 0.0
      %1393 = vmatpush.msra.mxu0 0.0
      %1394 = vmatpush.msra.mxu0 0.0
      %1395 = vmatpush.msra.mxu0 0.0
      %1396 = vmatpush.msra.mxu0 0.0
      %1397 = vmatpush.msra.mxu0 0.0
      %1398 = vmatpush.msra.mxu0 0.0
      %1399 = vmatpush.msra.mxu0 0.0
      %1400 = vmatpush.msra.mxu0 0.0
      %1401 = vmatpush.msra.mxu0 0.0
      %1402 = vmatpush.msra.mxu0 0.0
      %1403 = vmatpush.msra.mxu0 %v1383
      %1404 = vmatmul.f32.gmra.mxu0 %v1380
      %v1405 = vpop.f32.mrf.mxu0
      %v1406 = vadd.f32 0.0, %v1405
      %1407 = vdwg.mxu0
      %1408 = vmatpush.msra.mxu0 0.0
      %1409 = vmatpush.msra.mxu0 0.0
      %1410 = vmatpush.msra.mxu0 0.0
      %1411 = vmatpush.msra.mxu0 0.0
      %1412 = vmatpush.msra.mxu0 0.0
      %1413 = vmatpush.msra.mxu0 0.0
      %1414 = vmatpush.msra.mxu0 0.0
      %1415 = vmatpush.msra.mxu0 0.0
      %1416 = vmatpush.msra.mxu0 0.0
      %1417 = vmatpush.msra.mxu0 0.0
      %1418 = vmatpush.msra.mxu0 0.0
      %1419 = vmatpush.msra.mxu0 0.0
      %1420 = vmatpush.msra.mxu0 0.0
      %1421 = vmatpush.msra.mxu0 0.0
      %1422 = vmatpush.msra.mxu0 0.0
      %1423 = vmatpush.msra.mxu0 %v1386
      %1424 = vmatmul.f32.gmra.mxu0 %v1380
      %v1425 = vpop.f32.mrf.mxu0
      %v1426 = vadd.f32 0.0, %v1425
      %1427 = vdwg.mxu0
      %v1428 = vadd.f32 %v1333, %v1406
      %v1429 = vadd.f32 %v1353, %v1426
      %v1430 = vld [vmem:[#allocation2] sm:$0xff]
      %v1431 = vld [vmem:[#allocation2 + $0x8] sm:$0xf]
      %1434 = vst [vmem:[#allocation1] ss:$2 sm:$0xff] %v1430
      %s1435 = scalar_lea.vmem [#allocation1], 16
      %1436 = vst [vmem:[%s1435] ss:$2 sm:$0xff] %v1431
      %v1437 = vld.sshfl [vmem:[#allocation1] sm:$0xff pattern:$0x75316420]
      %v1438 = vld.sshfl [vmem:[#allocation1 + $0x8] sm:$0xff pattern:$0x75316420]
      %v1439 = vld.sshfl [vmem:[#allocation1 + $0x10] sm:$0xff pattern:$0x75316420]
      %1440 = vrot.lane.b32.xlu0 %v1437, 1
      %v1441 = vpop.permute.xlu0 %1440
      %1442 = vrot.lane.b32.xlu0 %v1438, 1
      %v1443 = vpop.permute.xlu0 %1442
      %1444 = vrot.lane.b32.xlu0 %v1439, 1
      %v1445 = vpop.permute.xlu0 %1444
      %v1446 = vsel %vm671, %v1441, %v1443
      %v1447 = vsel %vm671, %v1443, %v1445
      %v1450 = vsel %vm433, %v1446, 0.0
      %v1451 = vsel %vm434, %v1447, 0.0
      %s1452 = scalar_lea.vmem %s3, 48
      %v1453 = vld [vmem:[%s1452] sm:$0xf]
      %v1455 = vsel %vm478, %v1453, 0
      %v1458 = vsel %vm425, %v1450, 0
      %v1461 = vsel %vm425, %v1451, 0
      %1463 = vmatpush.msra.mxu0 0.0
      %1464 = vmatpush.msra.mxu0 0.0
      %1465 = vmatpush.msra.mxu0 0.0
      %1466 = vmatpush.msra.mxu0 0.0
      %1467 = vmatpush.msra.mxu0 0.0
      %1468 = vmatpush.msra.mxu0 0.0
      %1469 = vmatpush.msra.mxu0 0.0
      %1470 = vmatpush.msra.mxu0 0.0
      %1471 = vmatpush.msra.mxu0 0.0
      %1472 = vmatpush.msra.mxu0 0.0
      %1473 = vmatpush.msra.mxu0 0.0
      %1474 = vmatpush.msra.mxu0 0.0
      %1475 = vmatpush.msra.mxu0 0.0
      %1476 = vmatpush.msra.mxu0 0.0
      %1477 = vmatpush.msra.mxu0 0.0
      %1478 = vmatpush.msra.mxu0 %v1458
      %1479 = vmatmul.f32.gmra.mxu0 %v1455
      %v1480 = vpop.f32.mrf.mxu0
      %v1481 = vadd.f32 0.0, %v1480
      %1482 = vdwg.mxu0
      %1483 = vmatpush.msra.mxu0 0.0
      %1484 = vmatpush.msra.mxu0 0.0
      %1485 = vmatpush.msra.mxu0 0.0
      %1486 = vmatpush.msra.mxu0 0.0
      %1487 = vmatpush.msra.mxu0 0.0
      %1488 = vmatpush.msra.mxu0 0.0
      %1489 = vmatpush.msra.mxu0 0.0
      %1490 = vmatpush.msra.mxu0 0.0
      %1491 = vmatpush.msra.mxu0 0.0
      %1492 = vmatpush.msra.mxu0 0.0
      %1493 = vmatpush.msra.mxu0 0.0
      %1494 = vmatpush.msra.mxu0 0.0
      %1495 = vmatpush.msra.mxu0 0.0
      %1496 = vmatpush.msra.mxu0 0.0
      %1497 = vmatpush.msra.mxu0 0.0
      %1498 = vmatpush.msra.mxu0 %v1461
      %1499 = vmatmul.f32.gmra.mxu0 %v1455
      %v1500 = vpop.f32.mrf.mxu0
      %v1501 = vadd.f32 0.0, %v1500
      %1502 = vdwg.mxu0
      %v1503 = vadd.f32 %v1428, %v1481
      %v1504 = vadd.f32 %v1429, %v1501
      %v1505 = vld [vmem:[#allocation2 + $0x4] sm:$0xff]
      %s1506 = scalar_lea.vmem %s3, 52
      %v1507 = vld [vmem:[%s1506] sm:$0xf]
      %1509 = vst [vmem:[#allocation1] ss:$2 sm:$0xff] %v1505
      %v1510 = vld.sshfl [vmem:[#allocation1] sm:$0xff pattern:$0x75316420]
      %v1511 = vld.sshfl [vmem:[#allocation1 + $0x8] sm:$0xff pattern:$0x75316420]
      %v1513 = vsel %vm478, %v1507, 0
      %v1515 = vsel %vm425, %v1510, 0
      %v1517 = vsel %vm425, %v1511, 0
      %1519 = vmatpush.msra.mxu0 0.0
      %1520 = vmatpush.msra.mxu0 0.0
      %1521 = vmatpush.msra.mxu0 0.0
      %1522 = vmatpush.msra.mxu0 0.0
      %1523 = vmatpush.msra.mxu0 0.0
      %1524 = vmatpush.msra.mxu0 0.0
      %1525 = vmatpush.msra.mxu0 0.0
      %1526 = vmatpush.msra.mxu0 0.0
      %1527 = vmatpush.msra.mxu0 0.0
      %1528 = vmatpush.msra.mxu0 0.0
      %1529 = vmatpush.msra.mxu0 0.0
      %1530 = vmatpush.msra.mxu0 0.0
      %1531 = vmatpush.msra.mxu0 0.0
      %1532 = vmatpush.msra.mxu0 0.0
      %1533 = vmatpush.msra.mxu0 0.0
      %1534 = vmatpush.msra.mxu0 %v1515
      %1535 = vmatmul.f32.gmra.mxu0 %v1513
      %v1536 = vpop.f32.mrf.mxu0
      %v1537 = vadd.f32 0.0, %v1536
      %1538 = vdwg.mxu0
      %1539 = vmatpush.msra.mxu0 0.0
      %1540 = vmatpush.msra.mxu0 0.0
      %1541 = vmatpush.msra.mxu0 0.0
      %1542 = vmatpush.msra.mxu0 0.0
      %1543 = vmatpush.msra.mxu0 0.0
      %1544 = vmatpush.msra.mxu0 0.0
      %1545 = vmatpush.msra.mxu0 0.0
      %1546 = vmatpush.msra.mxu0 0.0
      %1547 = vmatpush.msra.mxu0 0.0
      %1548 = vmatpush.msra.mxu0 0.0
      %1549 = vmatpush.msra.mxu0 0.0
      %1550 = vmatpush.msra.mxu0 0.0
      %1551 = vmatpush.msra.mxu0 0.0
      %1552 = vmatpush.msra.mxu0 0.0
      %1553 = vmatpush.msra.mxu0 0.0
      %1554 = vmatpush.msra.mxu0 %v1517
      %1555 = vmatmul.f32.gmra.mxu0 %v1513
      %v1556 = vpop.f32.mrf.mxu0
      %v1557 = vadd.f32 0.0, %v1556
      %1558 = vdwg.mxu0
      %v1559 = vadd.f32 %v1503, %v1537
      %v1560 = vadd.f32 %v1504, %v1557
      %v1561 = vld [vmem:[#allocation2 + $0x4] sm:$0xff]
      %v1562 = vld [vmem:[#allocation2 + $0xc] sm:$0xf]
      %1565 = vst [vmem:[#allocation1] ss:$2 sm:$0xff] %v1561
      %s1566 = scalar_lea.vmem [#allocation1], 16
      %1567 = vst [vmem:[%s1566] ss:$2 sm:$0xff] %v1562
      %v1568 = vld.sshfl [vmem:[#allocation1] sm:$0xff pattern:$0x75316420]
      %v1569 = vld.sshfl [vmem:[#allocation1 + $0x8] sm:$0xff pattern:$0x75316420]
      %v1570 = vld.sshfl [vmem:[#allocation1 + $0x10] sm:$0xff pattern:$0x75316420]
      %1571 = vrot.lane.b32.xlu0 %v1568, 127
      %v1572 = vpop.permute.xlu0 %1571
      %1573 = vrot.lane.b32.xlu0 %v1569, 127
      %v1574 = vpop.permute.xlu0 %1573
      %1575 = vrot.lane.b32.xlu0 %v1570, 127
      %v1576 = vpop.permute.xlu0 %1575
      %v1577 = vsel %vm803, %v1572, %v1574
      %v1578 = vsel %vm803, %v1574, %v1576
      %v1581 = vsel %vm579, %v1577, 0.0
      %v1582 = vsel %vm580, %v1578, 0.0
      %s1583 = scalar_lea.vmem %s3, 56
      %v1584 = vld [vmem:[%s1583] sm:$0xf]
      %v1586 = vsel %vm478, %v1584, 0
      %v1589 = vsel %vm425, %v1581, 0
      %v1592 = vsel %vm425, %v1582, 0
      %1594 = vmatpush.msra.mxu0 0.0
      %1595 = vmatpush.msra.mxu0 0.0
      %1596 = vmatpush.msra.mxu0 0.0
      %1597 = vmatpush.msra.mxu0 0.0
      %1598 = vmatpush.msra.mxu0 0.0
      %1599 = vmatpush.msra.mxu0 0.0
      %1600 = vmatpush.msra.mxu0 0.0
      %1601 = vmatpush.msra.mxu0 0.0
      %1602 = vmatpush.msra.mxu0 0.0
      %1603 = vmatpush.msra.mxu0 0.0
      %1604 = vmatpush.msra.mxu0 0.0
      %1605 = vmatpush.msra.mxu0 0.0
      %1606 = vmatpush.msra.mxu0 0.0
      %1607 = vmatpush.msra.mxu0 0.0
      %1608 = vmatpush.msra.mxu0 0.0
      %1609 = vmatpush.msra.mxu0 %v1589
      %1610 = vmatmul.f32.gmra.mxu0 %v1586
      %v1611 = vpop.f32.mrf.mxu0
      %v1612 = vadd.f32 0.0, %v1611
      %1613 = vdwg.mxu0
      %1614 = vmatpush.msra.mxu0 0.0
      %1615 = vmatpush.msra.mxu0 0.0
      %1616 = vmatpush.msra.mxu0 0.0
      %1617 = vmatpush.msra.mxu0 0.0
      %1618 = vmatpush.msra.mxu0 0.0
      %1619 = vmatpush.msra.mxu0 0.0
      %1620 = vmatpush.msra.mxu0 0.0
      %1621 = vmatpush.msra.mxu0 0.0
      %1622 = vmatpush.msra.mxu0 0.0
      %1623 = vmatpush.msra.mxu0 0.0
      %1624 = vmatpush.msra.mxu0 0.0
      %1625 = vmatpush.msra.mxu0 0.0
      %1626 = vmatpush.msra.mxu0 0.0
      %1627 = vmatpush.msra.mxu0 0.0
      %1628 = vmatpush.msra.mxu0 0.0
      %1629 = vmatpush.msra.mxu0 %v1592
      %1630 = vmatmul.f32.gmra.mxu0 %v1586
      %v1631 = vpop.f32.mrf.mxu0
      %v1632 = vadd.f32 0.0, %v1631
      %1633 = vdwg.mxu0
      %v1634 = vadd.f32 %v1559, %v1612
      %v1635 = vadd.f32 %v1560, %v1632
      %v1636 = vld [vmem:[#allocation2 + $0x4] sm:$0xff]
      %v1637 = vld [vmem:[#allocation2 + $0xc] sm:$0xf]
      %1640 = vst [vmem:[#allocation1] ss:$2 sm:$0xff] %v1636
      %s1641 = scalar_lea.vmem [#allocation1], 16
      %1642 = vst [vmem:[%s1641] ss:$2 sm:$0xff] %v1637
      %v1643 = vld.sshfl [vmem:[#allocation1] sm:$0xff pattern:$0x75316420]
      %v1644 = vld.sshfl [vmem:[#allocation1 + $0x8] sm:$0xff pattern:$0x75316420]
      %v1645 = vld.sshfl [vmem:[#allocation1 + $0x10] sm:$0xff pattern:$0x75316420]
      %1646 = vrot.lane.b32.xlu0 %v1643, 113
      %v1647 = vpop.permute.xlu0 %1646
      %1648 = vrot.lane.b32.xlu0 %v1644, 113
      %v1649 = vpop.permute.xlu0 %1648
      %1650 = vrot.lane.b32.xlu0 %v1645, 113
      %v1651 = vpop.permute.xlu0 %1650
      %v1652 = vsel %vm879, %v1647, %v1649
      %v1653 = vsel %vm879, %v1649, %v1651
      %v1656 = vsel %vm433, %v1652, 0.0
      %v1657 = vsel %vm434, %v1653, 0.0
      %s1658 = scalar_lea.vmem %s3, 60
      %v1659 = vld [vmem:[%s1658] sm:$0xf]
      %v1661 = vsel %vm478, %v1659, 0
      %v1664 = vsel %vm425, %v1656, 0
      %v1667 = vsel %vm425, %v1657, 0
      %1669 = vmatpush.msra.mxu0 0.0
      %1670 = vmatpush.msra.mxu0 0.0
      %1671 = vmatpush.msra.mxu0 0.0
      %1672 = vmatpush.msra.mxu0 0.0
      %1673 = vmatpush.msra.mxu0 0.0
      %1674 = vmatpush.msra.mxu0 0.0
      %1675 = vmatpush.msra.mxu0 0.0
      %1676 = vmatpush.msra.mxu0 0.0
      %1677 = vmatpush.msra.mxu0 0.0
      %1678 = vmatpush.msra.mxu0 0.0
      %1679 = vmatpush.msra.mxu0 0.0
      %1680 = vmatpush.msra.mxu0 0.0
      %1681 = vmatpush.msra.mxu0 0.0
      %1682 = vmatpush.msra.mxu0 0.0
      %1683 = vmatpush.msra.mxu0 0.0
      %1684 = vmatpush.msra.mxu0 %v1664
      %1685 = vmatmul.f32.gmra.mxu0 %v1661
      %v1686 = vpop.f32.mrf.mxu0
      %v1687 = vadd.f32 0.0, %v1686
      %1688 = vdwg.mxu0
      %1689 = vmatpush.msra.mxu0 0.0
      %1690 = vmatpush.msra.mxu0 0.0
      %1691 = vmatpush.msra.mxu0 0.0
      %1692 = vmatpush.msra.mxu0 0.0
      %1693 = vmatpush.msra.mxu0 0.0
      %1694 = vmatpush.msra.mxu0 0.0
      %1695 = vmatpush.msra.mxu0 0.0
      %1696 = vmatpush.msra.mxu0 0.0
      %1697 = vmatpush.msra.mxu0 0.0
      %1698 = vmatpush.msra.mxu0 0.0
      %1699 = vmatpush.msra.mxu0 0.0
      %1700 = vmatpush.msra.mxu0 0.0
      %1701 = vmatpush.msra.mxu0 0.0
      %1702 = vmatpush.msra.mxu0 0.0
      %1703 = vmatpush.msra.mxu0 0.0
      %1704 = vmatpush.msra.mxu0 %v1667
      %1705 = vmatmul.f32.gmra.mxu0 %v1661
      %v1706 = vpop.f32.mrf.mxu0
      %v1707 = vadd.f32 0.0, %v1706
      %1708 = vdwg.mxu0
      %v1709 = vadd.f32 %v1634, %v1687
      %v1710 = vadd.f32 %v1635, %v1707
      %v1711 = vld [vmem:[#allocation2 + $0x4] sm:$0xff]
      %v1712 = vld [vmem:[#allocation2 + $0xc] sm:$0xf]
      %s1713 = scalar_lea.vmem %s3, 64
      %v1714 = vld [vmem:[%s1713] sm:$0xf]
      %1717 = vst [vmem:[#allocation1] ss:$2 sm:$0xff] %v1711
      %s1718 = scalar_lea.vmem [#allocation1], 16
      %1719 = vst [vmem:[%s1718] ss:$2 sm:$0xff] %v1712
      %v1720 = vld.sshfl [vmem:[#allocation1] sm:$0xff pattern:$0x75316420]
      %v1721 = vld.sshfl [vmem:[#allocation1 + $0x8] sm:$0xff pattern:$0x75316420]
      %v1722 = vld.sshfl [vmem:[#allocation1 + $0x10] sm:$0xff pattern:$0x75316420]
      %1723 = vrot.lane.b32.xlu0 %v1720, 112
      %v1724 = vpop.permute.xlu0 %1723
      %1725 = vrot.lane.b32.xlu0 %v1721, 112
      %v1726 = vpop.permute.xlu0 %1725
      %1727 = vrot.lane.b32.xlu0 %v1722, 112
      %v1728 = vpop.permute.xlu0 %1727
      %v1729 = vsel %vm957, %v1724, %v1726
      %v1730 = vsel %vm957, %v1726, %v1728
      %v1732 = vsel %vm478, %v1714, 0
      %v1734 = vsel %vm425, %v1729, 0
      %v1736 = vsel %vm425, %v1730, 0
      %1738 = vmatpush.msra.mxu0 0.0
      %1739 = vmatpush.msra.mxu0 0.0
      %1740 = vmatpush.msra.mxu0 0.0
      %1741 = vmatpush.msra.mxu0 0.0
      %1742 = vmatpush.msra.mxu0 0.0
      %1743 = vmatpush.msra.mxu0 0.0
      %1744 = vmatpush.msra.mxu0 0.0
      %1745 = vmatpush.msra.mxu0 0.0
      %1746 = vmatpush.msra.mxu0 0.0
      %1747 = vmatpush.msra.mxu0 0.0
      %1748 = vmatpush.msra.mxu0 0.0
      %1749 = vmatpush.msra.mxu0 0.0
      %1750 = vmatpush.msra.mxu0 0.0
      %1751 = vmatpush.msra.mxu0 0.0
      %1752 = vmatpush.msra.mxu0 0.0
      %1753 = vmatpush.msra.mxu0 %v1734
      %1754 = vmatmul.f32.gmra.mxu0 %v1732
      %v1755 = vpop.f32.mrf.mxu0
      %v1756 = vadd.f32 0.0, %v1755
      %1757 = vdwg.mxu0
      %1758 = vmatpush.msra.mxu0 0.0
      %1759 = vmatpush.msra.mxu0 0.0
      %1760 = vmatpush.msra.mxu0 0.0
      %1761 = vmatpush.msra.mxu0 0.0
      %1762 = vmatpush.msra.mxu0 0.0
      %1763 = vmatpush.msra.mxu0 0.0
      %1764 = vmatpush.msra.mxu0 0.0
      %1765 = vmatpush.msra.mxu0 0.0
      %1766 = vmatpush.msra.mxu0 0.0
      %1767 = vmatpush.msra.mxu0 0.0
      %1768 = vmatpush.msra.mxu0 0.0
      %1769 = vmatpush.msra.mxu0 0.0
      %1770 = vmatpush.msra.mxu0 0.0
      %1771 = vmatpush.msra.mxu0 0.0
      %1772 = vmatpush.msra.mxu0 0.0
      %1773 = vmatpush.msra.mxu0 %v1736
      %1774 = vmatmul.f32.gmra.mxu0 %v1732
      %v1775 = vpop.f32.mrf.mxu0
      %v1776 = vadd.f32 0.0, %v1775
      %1777 = vdwg.mxu0
      %v1778 = vadd.f32 %v1709, %v1756
      %v1779 = vadd.f32 %v1710, %v1776
      %v1780 = vld [vmem:[#allocation2 + $0x4] sm:$0xff]
      %v1781 = vld [vmem:[#allocation2 + $0xc] sm:$0xf]
      %1784 = vst [vmem:[#allocation1] ss:$2 sm:$0xff] %v1780
      %s1785 = scalar_lea.vmem [#allocation1], 16
      %1786 = vst [vmem:[%s1785] ss:$2 sm:$0xff] %v1781
      %v1787 = vld.sshfl [vmem:[#allocation1] sm:$0xff pattern:$0x75316420]
      %v1788 = vld.sshfl [vmem:[#allocation1 + $0x8] sm:$0xff pattern:$0x75316420]
      %v1789 = vld.sshfl [vmem:[#allocation1 + $0x10] sm:$0xff pattern:$0x75316420]
      %1790 = vrot.lane.b32.xlu0 %v1787, 111
      %v1791 = vpop.permute.xlu0 %1790
      %1792 = vrot.lane.b32.xlu0 %v1788, 111
      %v1793 = vpop.permute.xlu0 %1792
      %1794 = vrot.lane.b32.xlu0 %v1789, 111
      %v1795 = vpop.permute.xlu0 %1794
      %v1796 = vsel %vm1025, %v1791, %v1793
      %v1797 = vsel %vm1025, %v1793, %v1795
      %v1800 = vsel %vm579, %v1796, 0.0
      %v1801 = vsel %vm580, %v1797, 0.0
      %s1802 = scalar_lea.vmem %s3, 68
      %v1803 = vld [vmem:[%s1802] sm:$0xf]
      %v1805 = vsel %vm478, %v1803, 0
      %v1808 = vsel %vm425, %v1800, 0
      %v1811 = vsel %vm425, %v1801, 0
      %1813 = vmatpush.msra.mxu0 0.0
      %1814 = vmatpush.msra.mxu0 0.0
      %1815 = vmatpush.msra.mxu0 0.0
      %1816 = vmatpush.msra.mxu0 0.0
      %1817 = vmatpush.msra.mxu0 0.0
      %1818 = vmatpush.msra.mxu0 0.0
      %1819 = vmatpush.msra.mxu0 0.0
      %1820 = vmatpush.msra.mxu0 0.0
      %1821 = vmatpush.msra.mxu0 0.0
      %1822 = vmatpush.msra.mxu0 0.0
      %1823 = vmatpush.msra.mxu0 0.0
      %1824 = vmatpush.msra.mxu0 0.0
      %1825 = vmatpush.msra.mxu0 0.0
      %1826 = vmatpush.msra.mxu0 0.0
      %1827 = vmatpush.msra.mxu0 0.0
      %1828 = vmatpush.msra.mxu0 %v1808
      %1829 = vmatmul.f32.gmra.mxu0 %v1805
      %v1830 = vpop.f32.mrf.mxu0
      %v1831 = vadd.f32 0.0, %v1830
      %1832 = vdwg.mxu0
      %1833 = vmatpush.msra.mxu0 0.0
      %1834 = vmatpush.msra.mxu0 0.0
      %1835 = vmatpush.msra.mxu0 0.0
      %1836 = vmatpush.msra.mxu0 0.0
      %1837 = vmatpush.msra.mxu0 0.0
      %1838 = vmatpush.msra.mxu0 0.0
      %1839 = vmatpush.msra.mxu0 0.0
      %1840 = vmatpush.msra.mxu0 0.0
      %1841 = vmatpush.msra.mxu0 0.0
      %1842 = vmatpush.msra.mxu0 0.0
      %1843 = vmatpush.msra.mxu0 0.0
      %1844 = vmatpush.msra.mxu0 0.0
      %1845 = vmatpush.msra.mxu0 0.0
      %1846 = vmatpush.msra.mxu0 0.0
      %1847 = vmatpush.msra.mxu0 0.0
      %1848 = vmatpush.msra.mxu0 %v1811
      %1849 = vmatmul.f32.gmra.mxu0 %v1805
      %v1850 = vpop.f32.mrf.mxu0
      %v1851 = vadd.f32 0.0, %v1850
      %1852 = vdwg.mxu0
      %v1853 = vadd.f32 %v1778, %v1831
      %v1854 = vadd.f32 %v1779, %v1851
      %s1855 = scalar_lea.vmem %s4, 4
      %v1856 = vld [vmem:[%s1855] sm:$0xf]
      %1858 = vset.pattern.permute.xlu0 0
      %1859 = vperm.xlu0 %1858, %v1856
      %v1860 = vpop.permute.xlu0 %1859
      %v1862 = vadd.f32 %v1853, %v1860
      %v1863 = vadd.f32 %v1854, %v1860
      %v1864 = vmax.f32 %v1862, 0.0
      %v1865 = vmax.f32 %v1863, 0.0
      %s1866 = scalar_lea.vmem %s5, 8
      %v1867 = vld [vmem:[%s1866] sm:$0xff]
      %s1868 = scalar_lea.vmem %s6, 8
      %v1869 = vld [vmem:[%s1868] sm:$0xff]
      %1871 = vset.pattern.permute.xlu0 0
      %1872 = vperm.xlu0 %1871, %v1869
      %v1873 = vpop.permute.xlu0 %1872
      %v1876 = vsel %vm478, %v1867, 0
      %v1879 = vsel %vm425, %v1864, 0
      %v1882 = vsel %vm425, %v1865, 0
      %1884 = vmatpush.msra.mxu0 0.0
      %1885 = vmatpush.msra.mxu0 0.0
      %1886 = vmatpush.msra.mxu0 0.0
      %1887 = vmatpush.msra.mxu0 0.0
      %1888 = vmatpush.msra.mxu0 0.0
      %1889 = vmatpush.msra.mxu0 0.0
      %1890 = vmatpush.msra.mxu0 0.0
      %1891 = vmatpush.msra.mxu0 0.0
      %1892 = vmatpush.msra.mxu0 0.0
      %1893 = vmatpush.msra.mxu0 0.0
      %1894 = vmatpush.msra.mxu0 0.0
      %1895 = vmatpush.msra.mxu0 0.0
      %1896 = vmatpush.msra.mxu0 0.0
      %1897 = vmatpush.msra.mxu0 0.0
      %1898 = vmatpush.msra.mxu0 0.0
      %1899 = vmatpush.msra.mxu0 %v1879
      %1900 = vmatmul.f32.gmra.mxu0 %v1876
      %v1901 = vpop.f32.mrf.mxu0
      %v1902 = vadd.f32 %v1873, %v1901
      %1903 = vdwg.mxu0
      %1904 = vmatpush.msra.mxu0 0.0
      %1905 = vmatpush.msra.mxu0 0.0
      %1906 = vmatpush.msra.mxu0 0.0
      %1907 = vmatpush.msra.mxu0 0.0
      %1908 = vmatpush.msra.mxu0 0.0
      %1909 = vmatpush.msra.mxu0 0.0
      %1910 = vmatpush.msra.mxu0 0.0
      %1911 = vmatpush.msra.mxu0 0.0
      %1912 = vmatpush.msra.mxu0 0.0
      %1913 = vmatpush.msra.mxu0 0.0
      %1914 = vmatpush.msra.mxu0 0.0
      %1915 = vmatpush.msra.mxu0 0.0
      %1916 = vmatpush.msra.mxu0 0.0
      %1917 = vmatpush.msra.mxu0 0.0
      %1918 = vmatpush.msra.mxu0 0.0
      %1919 = vmatpush.msra.mxu0 %v1882
      %1920 = vmatmul.f32.gmra.mxu0 %v1876
      %v1921 = vpop.f32.mrf.mxu0
      %v1922 = vadd.f32 %v1873, %v1921
      %1923 = vdwg.mxu0
      %v1924 = vadd.f32 %v1902, %v1153
      %v1925 = vadd.f32 %v1922, %v1154
      %v1926 = vmax.f32 %v1924, 0.0
      %v1927 = vmax.f32 %v1925, 0.0
      %s1928 = scalar_lea.vmem %s1, 8
      %v1929 = vld [vmem:[%s1928] sm:$0xf]
      %s1930 = scalar_lea.vmem %s2, 8
      %v1931 = vld [vmem:[%s1930] sm:$0xf]
      %1933 = vset.pattern.permute.xlu0 0
      %1934 = vperm.xlu0 %1933, %v1931
      %v1935 = vpop.permute.xlu0 %1934
      %v1938 = vsel %vm376, %v1929, 0
      %1940 = vmatpush.msra.mxu0 0.0
      %1941 = vmatpush.msra.mxu0 0.0
      %1942 = vmatpush.msra.mxu0 0.0
      %1943 = vmatpush.msra.mxu0 0.0
      %1944 = vmatpush.msra.mxu0 0.0
      %1945 = vmatpush.msra.mxu0 0.0
      %1946 = vmatpush.msra.mxu0 0.0
      %1947 = vmatpush.msra.mxu0 0.0
      %1948 = vmatpush.msra.mxu0 0.0
      %1949 = vmatpush.msra.mxu0 0.0
      %1950 = vmatpush.msra.mxu0 0.0
      %1951 = vmatpush.msra.mxu0 0.0
      %1952 = vmatpush.msra.mxu0 0.0
      %1953 = vmatpush.msra.mxu0 0.0
      %1954 = vmatpush.msra.mxu0 0.0
      %1955 = vmatpush.msra.mxu0 %v1926
      %1956 = vmatmul.f32.gmra.mxu0 %v1938
      %v1957 = vpop.f32.mrf.mxu0
      %v1958 = vadd.f32 %v1935, %v1957
      %1959 = vdwg.mxu0
      %1960 = vmatpush.msra.mxu0 0.0
      %1961 = vmatpush.msra.mxu0 0.0
      %1962 = vmatpush.msra.mxu0 0.0
      %1963 = vmatpush.msra.mxu0 0.0
      %1964 = vmatpush.msra.mxu0 0.0
      %1965 = vmatpush.msra.mxu0 0.0
      %1966 = vmatpush.msra.mxu0 0.0
      %1967 = vmatpush.msra.mxu0 0.0
      %1968 = vmatpush.msra.mxu0 0.0
      %1969 = vmatpush.msra.mxu0 0.0
      %1970 = vmatpush.msra.mxu0 0.0
      %1971 = vmatpush.msra.mxu0 0.0
      %1972 = vmatpush.msra.mxu0 0.0
      %1973 = vmatpush.msra.mxu0 0.0
      %1974 = vmatpush.msra.mxu0 0.0
      %1975 = vmatpush.msra.mxu0 %v1927
      %1976 = vmatmul.f32.gmra.mxu0 %v1938
      %v1977 = vpop.f32.mrf.mxu0
      %v1978 = vadd.f32 %v1935, %v1977
      %1979 = vdwg.mxu0
      %v1980 = vmax.f32 %v1958, 0.0
      %v1981 = vmax.f32 %v1978, 0.0
      %v1984 = vrot.slane %v1981, 4
      %v1985 = vsel %vm425, %v1980, %v1984
      %1987 = vst [vmem:[#allocation2 + $0x4] sm:$0xff] %v1985
      %v1988 = vld [vmem:[#allocation2] sm:$0xff]
      %v1989 = vld [vmem:[#allocation2 + $0x8] sm:$0xf]
      %1992 = vst [vmem:[#allocation1] ss:$2 sm:$0xff] %v1988
      %s1993 = scalar_lea.vmem [#allocation1], 16
      %1994 = vst [vmem:[%s1993] ss:$2 sm:$0xff] %v1989
      %v1995 = vld.sshfl [vmem:[#allocation1] sm:$0xff pattern:$0x75316420]
      %v1996 = vld.sshfl [vmem:[#allocation1 + $0x8] sm:$0xff pattern:$0x75316420]
      %v1997 = vld.sshfl [vmem:[#allocation1 + $0x10] sm:$0xff pattern:$0x75316420]
      %1998 = vrot.lane.b32.xlu0 %v1995, 17
      %v1999 = vpop.permute.xlu0 %1998
      %2000 = vrot.lane.b32.xlu0 %v1996, 17
      %v2001 = vpop.permute.xlu0 %2000
      %2002 = vrot.lane.b32.xlu0 %v1997, 17
      %v2003 = vpop.permute.xlu0 %2002
      %v2004 = vsel %vm449, %v1999, %v2001
      %v2005 = vsel %vm449, %v2001, %v2003
      %v2008 = vsel %vm433, %v2004, 0.0
      %v2009 = vsel %vm434, %v2005, 0.0
      %s2010 = scalar_lea.vmem %s3, 72
      %v2011 = vld [vmem:[%s2010] sm:$0xf]
      %v2012 = vld [vmem:[#allocation2] sm:$0xff]
      %v2013 = vld [vmem:[#allocation2 + $0x8] sm:$0xf]
      %s2014 = scalar_lea.vmem %s3, 76
      %v2015 = vld [vmem:[%s2014] sm:$0xf]
      %2018 = vst [vmem:[#allocation1] ss:$2 sm:$0xff] %v2012
      %s2019 = scalar_lea.vmem [#allocation1], 16
      %2020 = vst [vmem:[%s2019] ss:$2 sm:$0xff] %v2013
      %v2021 = vld.sshfl [vmem:[#allocation1] sm:$0xff pattern:$0x75316420]
      %v2022 = vld.sshfl [vmem:[#allocation1 + $0x8] sm:$0xff pattern:$0x75316420]
      %v2023 = vld.sshfl [vmem:[#allocation1 + $0x10] sm:$0xff pattern:$0x75316420]
      %2024 = vrot.lane.b32.xlu0 %v2021, 16
      %v2025 = vpop.permute.xlu0 %2024
      %2026 = vrot.lane.b32.xlu0 %v2022, 16
      %v2027 = vpop.permute.xlu0 %2026
      %2028 = vrot.lane.b32.xlu0 %v2023, 16
      %v2029 = vpop.permute.xlu0 %2028
      %v2030 = vsel %vm475, %v2025, %v2027
      %v2031 = vsel %vm475, %v2027, %v2029
      %v2033 = vsel %vm478, %v2015, 0
      %v2035 = vsel %vm425, %v2030, 0
      %v2037 = vsel %vm425, %v2031, 0
      %2039 = vmatpush.msra.mxu0 0.0
      %2040 = vmatpush.msra.mxu0 0.0
      %2041 = vmatpush.msra.mxu0 0.0
      %2042 = vmatpush.msra.mxu0 0.0
      %2043 = vmatpush.msra.mxu0 0.0
      %2044 = vmatpush.msra.mxu0 0.0
      %2045 = vmatpush.msra.mxu0 0.0
      %2046 = vmatpush.msra.mxu0 0.0
      %2047 = vmatpush.msra.mxu0 0.0
      %2048 = vmatpush.msra.mxu0 0.0
      %2049 = vmatpush.msra.mxu0 0.0
      %2050 = vmatpush.msra.mxu0 0.0
      %2051 = vmatpush.msra.mxu0 0.0
      %2052 = vmatpush.msra.mxu0 0.0
      %2053 = vmatpush.msra.mxu0 0.0
      %2054 = vmatpush.msra.mxu0 %v2035
      %2055 = vmatmul.f32.gmra.mxu0 %v2033
      %v2056 = vpop.f32.mrf.mxu0
      %v2057 = vadd.f32 0.0, %v2056
      %2058 = vdwg.mxu0
      %2059 = vmatpush.msra.mxu0 0.0
      %2060 = vmatpush.msra.mxu0 0.0
      %2061 = vmatpush.msra.mxu0 0.0
      %2062 = vmatpush.msra.mxu0 0.0
      %2063 = vmatpush.msra.mxu0 0.0
      %2064 = vmatpush.msra.mxu0 0.0
      %2065 = vmatpush.msra.mxu0 0.0
      %2066 = vmatpush.msra.mxu0 0.0
      %2067 = vmatpush.msra.mxu0 0.0
      %2068 = vmatpush.msra.mxu0 0.0
      %2069 = vmatpush.msra.mxu0 0.0
      %2070 = vmatpush.msra.mxu0 0.0
      %2071 = vmatpush.msra.mxu0 0.0
      %2072 = vmatpush.msra.mxu0 0.0
      %2073 = vmatpush.msra.mxu0 0.0
      %2074 = vmatpush.msra.mxu0 %v2037
      %2075 = vmatmul.f32.gmra.mxu0 %v2033
      %v2076 = vpop.f32.mrf.mxu0
      %v2077 = vadd.f32 0.0, %v2076
      %2078 = vdwg.mxu0
      %v2080 = vsel %vm478, %v2011, 0
      %v2083 = vsel %vm425, %v2008, 0
      %v2086 = vsel %vm425, %v2009, 0
      %2088 = vmatpush.msra.mxu0 0.0
      %2089 = vmatpush.msra.mxu0 0.0
      %2090 = vmatpush.msra.mxu0 0.0
      %2091 = vmatpush.msra.mxu0 0.0
      %2092 = vmatpush.msra.mxu0 0.0
      %2093 = vmatpush.msra.mxu0 0.0
      %2094 = vmatpush.msra.mxu0 0.0
      %2095 = vmatpush.msra.mxu0 0.0
      %2096 = vmatpush.msra.mxu0 0.0
      %2097 = vmatpush.msra.mxu0 0.0
      %2098 = vmatpush.msra.mxu0 0.0
      %2099 = vmatpush.msra.mxu0 0.0
      %2100 = vmatpush.msra.mxu0 0.0
      %2101 = vmatpush.msra.mxu0 0.0
      %2102 = vmatpush.msra.mxu0 0.0
      %2103 = vmatpush.msra.mxu0 %v2083
      %2104 = vmatmul.f32.gmra.mxu0 %v2080
      %v2105 = vpop.f32.mrf.mxu0
      %v2106 = vadd.f32 %v2057, %v2105
      %2107 = vdwg.mxu0
      %2108 = vmatpush.msra.mxu0 0.0
      %2109 = vmatpush.msra.mxu0 0.0
      %2110 = vmatpush.msra.mxu0 0.0
      %2111 = vmatpush.msra.mxu0 0.0
      %2112 = vmatpush.msra.mxu0 0.0
      %2113 = vmatpush.msra.mxu0 0.0
      %2114 = vmatpush.msra.mxu0 0.0
      %2115 = vmatpush.msra.mxu0 0.0
      %2116 = vmatpush.msra.mxu0 0.0
      %2117 = vmatpush.msra.mxu0 0.0
      %2118 = vmatpush.msra.mxu0 0.0
      %2119 = vmatpush.msra.mxu0 0.0
      %2120 = vmatpush.msra.mxu0 0.0
      %2121 = vmatpush.msra.mxu0 0.0
      %2122 = vmatpush.msra.mxu0 0.0
      %2123 = vmatpush.msra.mxu0 %v2086
      %2124 = vmatmul.f32.gmra.mxu0 %v2080
      %v2125 = vpop.f32.mrf.mxu0
      %v2126 = vadd.f32 %v2077, %v2125
      %2127 = vdwg.mxu0
      %v2128 = vld [vmem:[#allocation2] sm:$0xff]
      %v2129 = vld [vmem:[#allocation2 + $0x8] sm:$0xf]
      %2132 = vst [vmem:[#allocation1] ss:$2 sm:$0xff] %v2128
      %s2133 = scalar_lea.vmem [#allocation1], 16
      %2134 = vst [vmem:[%s2133] ss:$2 sm:$0xff] %v2129
      %v2135 = vld.sshfl [vmem:[#allocation1] sm:$0xff pattern:$0x75316420]
      %v2136 = vld.sshfl [vmem:[#allocation1 + $0x8] sm:$0xff pattern:$0x75316420]
      %v2137 = vld.sshfl [vmem:[#allocation1 + $0x10] sm:$0xff pattern:$0x75316420]
      %2138 = vrot.lane.b32.xlu0 %v2135, 15
      %v2139 = vpop.permute.xlu0 %2138
      %2140 = vrot.lane.b32.xlu0 %v2136, 15
      %v2141 = vpop.permute.xlu0 %2140
      %2142 = vrot.lane.b32.xlu0 %v2137, 15
      %v2143 = vpop.permute.xlu0 %2142
      %v2144 = vsel %vm595, %v2139, %v2141
      %v2145 = vsel %vm595, %v2141, %v2143
      %v2148 = vsel %vm579, %v2144, 0.0
      %v2149 = vsel %vm580, %v2145, 0.0
      %s2150 = scalar_lea.vmem %s3, 80
      %v2151 = vld [vmem:[%s2150] sm:$0xf]
      %v2153 = vsel %vm478, %v2151, 0
      %v2156 = vsel %vm425, %v2148, 0
      %v2159 = vsel %vm425, %v2149, 0
      %2161 = vmatpush.msra.mxu0 0.0
      %2162 = vmatpush.msra.mxu0 0.0
      %2163 = vmatpush.msra.mxu0 0.0
      %2164 = vmatpush.msra.mxu0 0.0
      %2165 = vmatpush.msra.mxu0 0.0
      %2166 = vmatpush.msra.mxu0 0.0
      %2167 = vmatpush.msra.mxu0 0.0
      %2168 = vmatpush.msra.mxu0 0.0
      %2169 = vmatpush.msra.mxu0 0.0
      %2170 = vmatpush.msra.mxu0 0.0
      %2171 = vmatpush.msra.mxu0 0.0
      %2172 = vmatpush.msra.mxu0 0.0
      %2173 = vmatpush.msra.mxu0 0.0
      %2174 = vmatpush.msra.mxu0 0.0
      %2175 = vmatpush.msra.mxu0 0.0
      %2176 = vmatpush.msra.mxu0 %v2156
      %2177 = vmatmul.f32.gmra.mxu0 %v2153
      %v2178 = vpop.f32.mrf.mxu0
      %v2179 = vadd.f32 0.0, %v2178
      %2180 = vdwg.mxu0
      %2181 = vmatpush.msra.mxu0 0.0
      %2182 = vmatpush.msra.mxu0 0.0
      %2183 = vmatpush.msra.mxu0 0.0
      %2184 = vmatpush.msra.mxu0 0.0
      %2185 = vmatpush.msra.mxu0 0.0
      %2186 = vmatpush.msra.mxu0 0.0
      %2187 = vmatpush.msra.mxu0 0.0
      %2188 = vmatpush.msra.mxu0 0.0
      %2189 = vmatpush.msra.mxu0 0.0
      %2190 = vmatpush.msra.mxu0 0.0
      %2191 = vmatpush.msra.mxu0 0.0
      %2192 = vmatpush.msra.mxu0 0.0
      %2193 = vmatpush.msra.mxu0 0.0
      %2194 = vmatpush.msra.mxu0 0.0
      %2195 = vmatpush.msra.mxu0 0.0
      %2196 = vmatpush.msra.mxu0 %v2159
      %2197 = vmatmul.f32.gmra.mxu0 %v2153
      %v2198 = vpop.f32.mrf.mxu0
      %v2199 = vadd.f32 0.0, %v2198
      %2200 = vdwg.mxu0
      %v2201 = vadd.f32 %v2106, %v2179
      %v2202 = vadd.f32 %v2126, %v2199
      %v2203 = vld [vmem:[#allocation2] sm:$0xff]
      %v2204 = vld [vmem:[#allocation2 + $0x8] sm:$0xf]
      %2207 = vst [vmem:[#allocation1] ss:$2 sm:$0xff] %v2203
      %s2208 = scalar_lea.vmem [#allocation1], 16
      %2209 = vst [vmem:[%s2208] ss:$2 sm:$0xff] %v2204
      %v2210 = vld.sshfl [vmem:[#allocation1] sm:$0xff pattern:$0x75316420]
      %v2211 = vld.sshfl [vmem:[#allocation1 + $0x8] sm:$0xff pattern:$0x75316420]
      %v2212 = vld.sshfl [vmem:[#allocation1 + $0x10] sm:$0xff pattern:$0x75316420]
      %2213 = vrot.lane.b32.xlu0 %v2210, 1
      %v2214 = vpop.permute.xlu0 %2213
      %2215 = vrot.lane.b32.xlu0 %v2211, 1
      %v2216 = vpop.permute.xlu0 %2215
      %2217 = vrot.lane.b32.xlu0 %v2212, 1
      %v2218 = vpop.permute.xlu0 %2217
      %v2219 = vsel %vm671, %v2214, %v2216
      %v2220 = vsel %vm671, %v2216, %v2218
      %v2223 = vsel %vm433, %v2219, 0.0
      %v2224 = vsel %vm434, %v2220, 0.0
      %s2225 = scalar_lea.vmem %s3, 84
      %v2226 = vld [vmem:[%s2225] sm:$0xf]
      %v2228 = vsel %vm478, %v2226, 0
      %v2231 = vsel %vm425, %v2223, 0
      %v2234 = vsel %vm425, %v2224, 0
      %2236 = vmatpush.msra.mxu0 0.0
      %2237 = vmatpush.msra.mxu0 0.0
      %2238 = vmatpush.msra.mxu0 0.0
      %2239 = vmatpush.msra.mxu0 0.0
      %2240 = vmatpush.msra.mxu0 0.0
      %2241 = vmatpush.msra.mxu0 0.0
      %2242 = vmatpush.msra.mxu0 0.0
      %2243 = vmatpush.msra.mxu0 0.0
      %2244 = vmatpush.msra.mxu0 0.0
      %2245 = vmatpush.msra.mxu0 0.0
      %2246 = vmatpush.msra.mxu0 0.0
      %2247 = vmatpush.msra.mxu0 0.0
      %2248 = vmatpush.msra.mxu0 0.0
      %2249 = vmatpush.msra.mxu0 0.0
      %2250 = vmatpush.msra.mxu0 0.0
      %2251 = vmatpush.msra.mxu0 %v2231
      %2252 = vmatmul.f32.gmra.mxu0 %v2228
      %v2253 = vpop.f32.mrf.mxu0
      %v2254 = vadd.f32 0.0, %v2253
      %2255 = vdwg.mxu0
      %2256 = vmatpush.msra.mxu0 0.0
      %2257 = vmatpush.msra.mxu0 0.0
      %2258 = vmatpush.msra.mxu0 0.0
      %2259 = vmatpush.msra.mxu0 0.0
      %2260 = vmatpush.msra.mxu0 0.0
      %2261 = vmatpush.msra.mxu0 0.0
      %2262 = vmatpush.msra.mxu0 0.0
      %2263 = vmatpush.msra.mxu0 0.0
      %2264 = vmatpush.msra.mxu0 0.0
      %2265 = vmatpush.msra.mxu0 0.0
      %2266 = vmatpush.msra.mxu0 0.0
      %2267 = vmatpush.msra.mxu0 0.0
      %2268 = vmatpush.msra.mxu0 0.0
      %2269 = vmatpush.msra.mxu0 0.0
      %2270 = vmatpush.msra.mxu0 0.0
      %2271 = vmatpush.msra.mxu0 %v2234
      %2272 = vmatmul.f32.gmra.mxu0 %v2228
      %v2273 = vpop.f32.mrf.mxu0
      %v2274 = vadd.f32 0.0, %v2273
      %2275 = vdwg.mxu0
      %v2276 = vadd.f32 %v2201, %v2254
      %v2277 = vadd.f32 %v2202, %v2274
      %v2278 = vld [vmem:[#allocation2 + $0x4] sm:$0xff]
      %s2279 = scalar_lea.vmem %s3, 88
      %v2280 = vld [vmem:[%s2279] sm:$0xf]
      %2282 = vst [vmem:[#allocation1] ss:$2 sm:$0xff] %v2278
      %v2283 = vld.sshfl [vmem:[#allocation1] sm:$0xff pattern:$0x75316420]
      %v2284 = vld.sshfl [vmem:[#allocation1 + $0x8] sm:$0xff pattern:$0x75316420]
      %v2286 = vsel %vm478, %v2280, 0
      %v2288 = vsel %vm425, %v2283, 0
      %v2290 = vsel %vm425, %v2284, 0
      %2292 = vmatpush.msra.mxu0 0.0
      %2293 = vmatpush.msra.mxu0 0.0
      %2294 = vmatpush.msra.mxu0 0.0
      %2295 = vmatpush.msra.mxu0 0.0
      %2296 = vmatpush.msra.mxu0 0.0
      %2297 = vmatpush.msra.mxu0 0.0
      %2298 = vmatpush.msra.mxu0 0.0
      %2299 = vmatpush.msra.mxu0 0.0
      %2300 = vmatpush.msra.mxu0 0.0
      %2301 = vmatpush.msra.mxu0 0.0
      %2302 = vmatpush.msra.mxu0 0.0
      %2303 = vmatpush.msra.mxu0 0.0
      %2304 = vmatpush.msra.mxu0 0.0
      %2305 = vmatpush.msra.mxu0 0.0
      %2306 = vmatpush.msra.mxu0 0.0
      %2307 = vmatpush.msra.mxu0 %v2288
      %2308 = vmatmul.f32.gmra.mxu0 %v2286
      %v2309 = vpop.f32.mrf.mxu0
      %v2310 = vadd.f32 0.0, %v2309
      %2311 = vdwg.mxu0
      %2312 = vmatpush.msra.mxu0 0.0
      %2313 = vmatpush.msra.mxu0 0.0
      %2314 = vmatpush.msra.mxu0 0.0
      %2315 = vmatpush.msra.mxu0 0.0
      %2316 = vmatpush.msra.mxu0 0.0
      %2317 = vmatpush.msra.mxu0 0.0
      %2318 = vmatpush.msra.mxu0 0.0
      %2319 = vmatpush.msra.mxu0 0.0
      %2320 = vmatpush.msra.mxu0 0.0
      %2321 = vmatpush.msra.mxu0 0.0
      %2322 = vmatpush.msra.mxu0 0.0
      %2323 = vmatpush.msra.mxu0 0.0
      %2324 = vmatpush.msra.mxu0 0.0
      %2325 = vmatpush.msra.mxu0 0.0
      %2326 = vmatpush.msra.mxu0 0.0
      %2327 = vmatpush.msra.mxu0 %v2290
      %2328 = vmatmul.f32.gmra.mxu0 %v2286
      %v2329 = vpop.f32.mrf.mxu0
      %v2330 = vadd.f32 0.0, %v2329
      %2331 = vdwg.mxu0
      %v2332 = vadd.f32 %v2276, %v2310
      %v2333 = vadd.f32 %v2277, %v2330
      %v2334 = vld [vmem:[#allocation2 + $0x4] sm:$0xff]
      %v2335 = vld [vmem:[#allocation2 + $0xc] sm:$0xf]
      %2338 = vst [vmem:[#allocation1] ss:$2 sm:$0xff] %v2334
      %s2339 = scalar_lea.vmem [#allocation1], 16
      %2340 = vst [vmem:[%s2339] ss:$2 sm:$0xff] %v2335
      %v2341 = vld.sshfl [vmem:[#allocation1] sm:$0xff pattern:$0x75316420]
      %v2342 = vld.sshfl [vmem:[#allocation1 + $0x8] sm:$0xff pattern:$0x75316420]
      %v2343 = vld.sshfl [vmem:[#allocation1 + $0x10] sm:$0xff pattern:$0x75316420]
      %2344 = vrot.lane.b32.xlu0 %v2341, 127
      %v2345 = vpop.permute.xlu0 %2344
      %2346 = vrot.lane.b32.xlu0 %v2342, 127
      %v2347 = vpop.permute.xlu0 %2346
      %2348 = vrot.lane.b32.xlu0 %v2343, 127
      %v2349 = vpop.permute.xlu0 %2348
      %v2350 = vsel %vm803, %v2345, %v2347
      %v2351 = vsel %vm803, %v2347, %v2349
      %v2354 = vsel %vm579, %v2350, 0.0
      %v2355 = vsel %vm580, %v2351, 0.0
      %s2356 = scalar_lea.vmem %s3, 92
      %v2357 = vld [vmem:[%s2356] sm:$0xf]
      %v2359 = vsel %vm478, %v2357, 0
      %v2362 = vsel %vm425, %v2354, 0
      %v2365 = vsel %vm425, %v2355, 0
      %2367 = vmatpush.msra.mxu0 0.0
      %2368 = vmatpush.msra.mxu0 0.0
      %2369 = vmatpush.msra.mxu0 0.0
      %2370 = vmatpush.msra.mxu0 0.0
      %2371 = vmatpush.msra.mxu0 0.0
      %2372 = vmatpush.msra.mxu0 0.0
      %2373 = vmatpush.msra.mxu0 0.0
      %2374 = vmatpush.msra.mxu0 0.0
      %2375 = vmatpush.msra.mxu0 0.0
      %2376 = vmatpush.msra.mxu0 0.0
      %2377 = vmatpush.msra.mxu0 0.0
      %2378 = vmatpush.msra.mxu0 0.0
      %2379 = vmatpush.msra.mxu0 0.0
      %2380 = vmatpush.msra.mxu0 0.0
      %2381 = vmatpush.msra.mxu0 0.0
      %2382 = vmatpush.msra.mxu0 %v2362
      %2383 = vmatmul.f32.gmra.mxu0 %v2359
      %v2384 = vpop.f32.mrf.mxu0
      %v2385 = vadd.f32 0.0, %v2384
      %2386 = vdwg.mxu0
      %2387 = vmatpush.msra.mxu0 0.0
      %2388 = vmatpush.msra.mxu0 0.0
      %2389 = vmatpush.msra.mxu0 0.0
      %2390 = vmatpush.msra.mxu0 0.0
      %2391 = vmatpush.msra.mxu0 0.0
      %2392 = vmatpush.msra.mxu0 0.0
      %2393 = vmatpush.msra.mxu0 0.0
      %2394 = vmatpush.msra.mxu0 0.0
      %2395 = vmatpush.msra.mxu0 0.0
      %2396 = vmatpush.msra.mxu0 0.0
      %2397 = vmatpush.msra.mxu0 0.0
      %2398 = vmatpush.msra.mxu0 0.0
      %2399 = vmatpush.msra.mxu0 0.0
      %2400 = vmatpush.msra.mxu0 0.0
      %2401 = vmatpush.msra.mxu0 0.0
      %2402 = vmatpush.msra.mxu0 %v2365
      %2403 = vmatmul.f32.gmra.mxu0 %v2359
      %v2404 = vpop.f32.mrf.mxu0
      %v2405 = vadd.f32 0.0, %v2404
      %2406 = vdwg.mxu0
      %v2407 = vadd.f32 %v2332, %v2385
      %v2408 = vadd.f32 %v2333, %v2405
      %v2409 = vld [vmem:[#allocation2 + $0x4] sm:$0xff]
      %v2410 = vld [vmem:[#allocation2 + $0xc] sm:$0xf]
      %2413 = vst [vmem:[#allocation1] ss:$2 sm:$0xff] %v2409
      %s2414 = scalar_lea.vmem [#allocation1], 16
      %2415 = vst [vmem:[%s2414] ss:$2 sm:$0xff] %v2410
      %v2416 = vld.sshfl [vmem:[#allocation1] sm:$0xff pattern:$0x75316420]
      %v2417 = vld.sshfl [vmem:[#allocation1 + $0x8] sm:$0xff pattern:$0x75316420]
      %v2418 = vld.sshfl [vmem:[#allocation1 + $0x10] sm:$0xff pattern:$0x75316420]
      %2419 = vrot.lane.b32.xlu0 %v2416, 113
      %v2420 = vpop.permute.xlu0 %2419
      %2421 = vrot.lane.b32.xlu0 %v2417, 113
      %v2422 = vpop.permute.xlu0 %2421
      %2423 = vrot.lane.b32.xlu0 %v2418, 113
      %v2424 = vpop.permute.xlu0 %2423
      %v2425 = vsel %vm879, %v2420, %v2422
      %v2426 = vsel %vm879, %v2422, %v2424
      %v2429 = vsel %vm433, %v2425, 0.0
      %v2430 = vsel %vm434, %v2426, 0.0
      %s2431 = scalar_lea.vmem %s3, 96
      %v2432 = vld [vmem:[%s2431] sm:$0xf]
      %v2434 = vsel %vm478, %v2432, 0
      %v2437 = vsel %vm425, %v2429, 0
      %v2440 = vsel %vm425, %v2430, 0
      %2442 = vmatpush.msra.mxu0 0.0
      %2443 = vmatpush.msra.mxu0 0.0
      %2444 = vmatpush.msra.mxu0 0.0
      %2445 = vmatpush.msra.mxu0 0.0
      %2446 = vmatpush.msra.mxu0 0.0
      %2447 = vmatpush.msra.mxu0 0.0
      %2448 = vmatpush.msra.mxu0 0.0
      %2449 = vmatpush.msra.mxu0 0.0
      %2450 = vmatpush.msra.mxu0 0.0
      %2451 = vmatpush.msra.mxu0 0.0
      %2452 = vmatpush.msra.mxu0 0.0
      %2453 = vmatpush.msra.mxu0 0.0
      %2454 = vmatpush.msra.mxu0 0.0
      %2455 = vmatpush.msra.mxu0 0.0
      %2456 = vmatpush.msra.mxu0 0.0
      %2457 = vmatpush.msra.mxu0 %v2437
      %2458 = vmatmul.f32.gmra.mxu0 %v2434
      %v2459 = vpop.f32.mrf.mxu0
      %v2460 = vadd.f32 0.0, %v2459
      %2461 = vdwg.mxu0
      %2462 = vmatpush.msra.mxu0 0.0
      %2463 = vmatpush.msra.mxu0 0.0
      %2464 = vmatpush.msra.mxu0 0.0
      %2465 = vmatpush.msra.mxu0 0.0
      %2466 = vmatpush.msra.mxu0 0.0
      %2467 = vmatpush.msra.mxu0 0.0
      %2468 = vmatpush.msra.mxu0 0.0
      %2469 = vmatpush.msra.mxu0 0.0
      %2470 = vmatpush.msra.mxu0 0.0
      %2471 = vmatpush.msra.mxu0 0.0
      %2472 = vmatpush.msra.mxu0 0.0
      %2473 = vmatpush.msra.mxu0 0.0
      %2474 = vmatpush.msra.mxu0 0.0
      %2475 = vmatpush.msra.mxu0 0.0
      %2476 = vmatpush.msra.mxu0 0.0
      %2477 = vmatpush.msra.mxu0 %v2440
      %2478 = vmatmul.f32.gmra.mxu0 %v2434
      %v2479 = vpop.f32.mrf.mxu0
      %v2480 = vadd.f32 0.0, %v2479
      %2481 = vdwg.mxu0
      %v2482 = vadd.f32 %v2407, %v2460
      %v2483 = vadd.f32 %v2408, %v2480
      %v2484 = vld [vmem:[#allocation2 + $0x4] sm:$0xff]
      %v2485 = vld [vmem:[#allocation2 + $0xc] sm:$0xf]
      %s2486 = scalar_lea.vmem %s3, 100
      %v2487 = vld [vmem:[%s2486] sm:$0xf]
      %2490 = vst [vmem:[#allocation1] ss:$2 sm:$0xff] %v2484
      %s2491 = scalar_lea.vmem [#allocation1], 16
      %2492 = vst [vmem:[%s2491] ss:$2 sm:$0xff] %v2485
      %v2493 = vld.sshfl [vmem:[#allocation1] sm:$0xff pattern:$0x75316420]
      %v2494 = vld.sshfl [vmem:[#allocation1 + $0x8] sm:$0xff pattern:$0x75316420]
      %v2495 = vld.sshfl [vmem:[#allocation1 + $0x10] sm:$0xff pattern:$0x75316420]
      %2496 = vrot.lane.b32.xlu0 %v2493, 112
      %v2497 = vpop.permute.xlu0 %2496
      %2498 = vrot.lane.b32.xlu0 %v2494, 112
      %v2499 = vpop.permute.xlu0 %2498
      %2500 = vrot.lane.b32.xlu0 %v2495, 112
      %v2501 = vpop.permute.xlu0 %2500
      %v2502 = vsel %vm957, %v2497, %v2499
      %v2503 = vsel %vm957, %v2499, %v2501
      %v2505 = vsel %vm478, %v2487, 0
      %v2507 = vsel %vm425, %v2502, 0
      %v2509 = vsel %vm425, %v2503, 0
      %2511 = vmatpush.msra.mxu0 0.0
      %2512 = vmatpush.msra.mxu0 0.0
      %2513 = vmatpush.msra.mxu0 0.0
      %2514 = vmatpush.msra.mxu0 0.0
      %2515 = vmatpush.msra.mxu0 0.0
      %2516 = vmatpush.msra.mxu0 0.0
      %2517 = vmatpush.msra.mxu0 0.0
      %2518 = vmatpush.msra.mxu0 0.0
      %2519 = vmatpush.msra.mxu0 0.0
      %2520 = vmatpush.msra.mxu0 0.0
      %2521 = vmatpush.msra.mxu0 0.0
      %2522 = vmatpush.msra.mxu0 0.0
      %2523 = vmatpush.msra.mxu0 0.0
      %2524 = vmatpush.msra.mxu0 0.0
      %2525 = vmatpush.msra.mxu0 0.0
      %2526 = vmatpush.msra.mxu0 %v2507
      %2527 = vmatmul.f32.gmra.mxu0 %v2505
      %v2528 = vpop.f32.mrf.mxu0
      %v2529 = vadd.f32 0.0, %v2528
      %2530 = vdwg.mxu0
      %2531 = vmatpush.msra.mxu0 0.0
      %2532 = vmatpush.msra.mxu0 0.0
      %2533 = vmatpush.msra.mxu0 0.0
      %2534 = vmatpush.msra.mxu0 0.0
      %2535 = vmatpush.msra.mxu0 0.0
      %2536 = vmatpush.msra.mxu0 0.0
      %2537 = vmatpush.msra.mxu0 0.0
      %2538 = vmatpush.msra.mxu0 0.0
      %2539 = vmatpush.msra.mxu0 0.0
      %2540 = vmatpush.msra.mxu0 0.0
      %2541 = vmatpush.msra.mxu0 0.0
      %2542 = vmatpush.msra.mxu0 0.0
      %2543 = vmatpush.msra.mxu0 0.0
      %2544 = vmatpush.msra.mxu0 0.0
      %2545 = vmatpush.msra.mxu0 0.0
      %2546 = vmatpush.msra.mxu0 %v2509
      %2547 = vmatmul.f32.gmra.mxu0 %v2505
      %v2548 = vpop.f32.mrf.mxu0
      %v2549 = vadd.f32 0.0, %v2548
      %2550 = vdwg.mxu0
      %v2551 = vadd.f32 %v2482, %v2529
      %v2552 = vadd.f32 %v2483, %v2549
      %v2553 = vld [vmem:[#allocation2 + $0x4] sm:$0xff]
      %v2554 = vld [vmem:[#allocation2 + $0xc] sm:$0xf]
      %2557 = vst [vmem:[#allocation1] ss:$2 sm:$0xff] %v2553
      %s2558 = scalar_lea.vmem [#allocation1], 16
      %2559 = vst [vmem:[%s2558] ss:$2 sm:$0xff] %v2554
      %v2560 = vld.sshfl [vmem:[#allocation1] sm:$0xff pattern:$0x75316420]
      %v2561 = vld.sshfl [vmem:[#allocation1 + $0x8] sm:$0xff pattern:$0x75316420]
      %v2562 = vld.sshfl [vmem:[#allocation1 + $0x10] sm:$0xff pattern:$0x75316420]
      %2563 = vrot.lane.b32.xlu0 %v2560, 111
      %v2564 = vpop.permute.xlu0 %2563
      %2565 = vrot.lane.b32.xlu0 %v2561, 111
      %v2566 = vpop.permute.xlu0 %2565
      %2567 = vrot.lane.b32.xlu0 %v2562, 111
      %v2568 = vpop.permute.xlu0 %2567
      %v2569 = vsel %vm1025, %v2564, %v2566
      %v2570 = vsel %vm1025, %v2566, %v2568
      %v2573 = vsel %vm579, %v2569, 0.0
      %v2574 = vsel %vm580, %v2570, 0.0
      %s2575 = scalar_lea.vmem %s3, 104
      %v2576 = vld [vmem:[%s2575] sm:$0xf]
      %v2578 = vsel %vm478, %v2576, 0
      %v2581 = vsel %vm425, %v2573, 0
      %v2584 = vsel %vm425, %v2574, 0
      %2586 = vmatpush.msra.mxu0 0.0
      %2587 = vmatpush.msra.mxu0 0.0
      %2588 = vmatpush.msra.mxu0 0.0
      %2589 = vmatpush.msra.mxu0 0.0
      %2590 = vmatpush.msra.mxu0 0.0
      %2591 = vmatpush.msra.mxu0 0.0
      %2592 = vmatpush.msra.mxu0 0.0
      %2593 = vmatpush.msra.mxu0 0.0
      %2594 = vmatpush.msra.mxu0 0.0
      %2595 = vmatpush.msra.mxu0 0.0
      %2596 = vmatpush.msra.mxu0 0.0
      %2597 = vmatpush.msra.mxu0 0.0
      %2598 = vmatpush.msra.mxu0 0.0
      %2599 = vmatpush.msra.mxu0 0.0
      %2600 = vmatpush.msra.mxu0 0.0
      %2601 = vmatpush.msra.mxu0 %v2581
      %2602 = vmatmul.f32.gmra.mxu0 %v2578
      %v2603 = vpop.f32.mrf.mxu0
      %v2604 = vadd.f32 0.0, %v2603
      %2605 = vdwg.mxu0
      %2606 = vmatpush.msra.mxu0 0.0
      %2607 = vmatpush.msra.mxu0 0.0
      %2608 = vmatpush.msra.mxu0 0.0
      %2609 = vmatpush.msra.mxu0 0.0
      %2610 = vmatpush.msra.mxu0 0.0
      %2611 = vmatpush.msra.mxu0 0.0
      %2612 = vmatpush.msra.mxu0 0.0
      %2613 = vmatpush.msra.mxu0 0.0
      %2614 = vmatpush.msra.mxu0 0.0
      %2615 = vmatpush.msra.mxu0 0.0
      %2616 = vmatpush.msra.mxu0 0.0
      %2617 = vmatpush.msra.mxu0 0.0
      %2618 = vmatpush.msra.mxu0 0.0
      %2619 = vmatpush.msra.mxu0 0.0
      %2620 = vmatpush.msra.mxu0 0.0
      %2621 = vmatpush.msra.mxu0 %v2584
      %2622 = vmatmul.f32.gmra.mxu0 %v2578
      %v2623 = vpop.f32.mrf.mxu0
      %v2624 = vadd.f32 0.0, %v2623
      %2625 = vdwg.mxu0
      %v2626 = vadd.f32 %v2551, %v2604
      %v2627 = vadd.f32 %v2552, %v2624
      %s2628 = scalar_lea.vmem %s4, 8
      %v2629 = vld [vmem:[%s2628] sm:$0xf]
      %2631 = vset.pattern.permute.xlu0 0
      %2632 = vperm.xlu0 %2631, %v2629
      %v2633 = vpop.permute.xlu0 %2632
      %v2635 = vadd.f32 %v2626, %v2633
      %v2636 = vadd.f32 %v2627, %v2633
      %v2637 = vmax.f32 %v2635, 0.0
      %v2638 = vmax.f32 %v2636, 0.0
      %s2639 = scalar_lea.vmem %s5, 16
      %v2640 = vld [vmem:[%s2639] sm:$0xff]
      %s2641 = scalar_lea.vmem %s6, 16
      %v2642 = vld [vmem:[%s2641] sm:$0xff]
      %2644 = vset.pattern.permute.xlu0 0
      %2645 = vperm.xlu0 %2644, %v2642
      %v2646 = vpop.permute.xlu0 %2645
      %v2649 = vsel %vm478, %v2640, 0
      %v2652 = vsel %vm425, %v2637, 0
      %v2655 = vsel %vm425, %v2638, 0
      %2657 = vmatpush.msra.mxu0 0.0
      %2658 = vmatpush.msra.mxu0 0.0
      %2659 = vmatpush.msra.mxu0 0.0
      %2660 = vmatpush.msra.mxu0 0.0
      %2661 = vmatpush.msra.mxu0 0.0
      %2662 = vmatpush.msra.mxu0 0.0
      %2663 = vmatpush.msra.mxu0 0.0
      %2664 = vmatpush.msra.mxu0 0.0
      %2665 = vmatpush.msra.mxu0 0.0
      %2666 = vmatpush.msra.mxu0 0.0
      %2667 = vmatpush.msra.mxu0 0.0
      %2668 = vmatpush.msra.mxu0 0.0
      %2669 = vmatpush.msra.mxu0 0.0
      %2670 = vmatpush.msra.mxu0 0.0
      %2671 = vmatpush.msra.mxu0 0.0
      %2672 = vmatpush.msra.mxu0 %v2652
      %2673 = vmatmul.f32.gmra.mxu0 %v2649
      %v2674 = vpop.f32.mrf.mxu0
      %v2675 = vadd.f32 %v2646, %v2674
      %2676 = vdwg.mxu0
      %2677 = vmatpush.msra.mxu0 0.0
      %2678 = vmatpush.msra.mxu0 0.0
      %2679 = vmatpush.msra.mxu0 0.0
      %2680 = vmatpush.msra.mxu0 0.0
      %2681 = vmatpush.msra.mxu0 0.0
      %2682 = vmatpush.msra.mxu0 0.0
      %2683 = vmatpush.msra.mxu0 0.0
      %2684 = vmatpush.msra.mxu0 0.0
      %2685 = vmatpush.msra.mxu0 0.0
      %2686 = vmatpush.msra.mxu0 0.0
      %2687 = vmatpush.msra.mxu0 0.0
      %2688 = vmatpush.msra.mxu0 0.0
      %2689 = vmatpush.msra.mxu0 0.0
      %2690 = vmatpush.msra.mxu0 0.0
      %2691 = vmatpush.msra.mxu0 0.0
      %2692 = vmatpush.msra.mxu0 %v2655
      %2693 = vmatmul.f32.gmra.mxu0 %v2649
      %v2694 = vpop.f32.mrf.mxu0
      %v2695 = vadd.f32 %v2646, %v2694
      %2696 = vdwg.mxu0
      %v2697 = vadd.f32 %v2675, %v1926
      %v2698 = vadd.f32 %v2695, %v1927
      %v2699 = vmax.f32 %v2697, 0.0
      %v2700 = vmax.f32 %v2698, 0.0
      %s2701 = scalar_lea.vmem %s1, 12
      %v2702 = vld [vmem:[%s2701] sm:$0xf]
      %s2703 = scalar_lea.vmem %s2, 12
      %v2704 = vld [vmem:[%s2703] sm:$0xf]
      %2706 = vset.pattern.permute.xlu0 0
      %2707 = vperm.xlu0 %2706, %v2704
      %v2708 = vpop.permute.xlu0 %2707
      %v2711 = vsel %vm376, %v2702, 0
      %2713 = vmatpush.msra.mxu0 0.0
      %2714 = vmatpush.msra.mxu0 0.0
      %2715 = vmatpush.msra.mxu0 0.0
      %2716 = vmatpush.msra.mxu0 0.0
      %2717 = vmatpush.msra.mxu0 0.0
      %2718 = vmatpush.msra.mxu0 0.0
      %2719 = vmatpush.msra.mxu0 0.0
      %2720 = vmatpush.msra.mxu0 0.0
      %2721 = vmatpush.msra.mxu0 0.0
      %2722 = vmatpush.msra.mxu0 0.0
      %2723 = vmatpush.msra.mxu0 0.0
      %2724 = vmatpush.msra.mxu0 0.0
      %2725 = vmatpush.msra.mxu0 0.0
      %2726 = vmatpush.msra.mxu0 0.0
      %2727 = vmatpush.msra.mxu0 0.0
      %2728 = vmatpush.msra.mxu0 %v367
      %2729 = vmatmul.f32.gmra.mxu0 %v2711
      %v2730 = vpop.f32.mrf.mxu0
      %v2731 = vadd.f32 %v2708, %v2730
      %2732 = vdwg.mxu0
      %2733 = vmatpush.msra.mxu0 0.0
      %2734 = vmatpush.msra.mxu0 0.0
      %2735 = vmatpush.msra.mxu0 0.0
      %2736 = vmatpush.msra.mxu0 0.0
      %2737 = vmatpush.msra.mxu0 0.0
      %2738 = vmatpush.msra.mxu0 0.0
      %2739 = vmatpush.msra.mxu0 0.0
      %2740 = vmatpush.msra.mxu0 0.0
      %2741 = vmatpush.msra.mxu0 0.0
      %2742 = vmatpush.msra.mxu0 0.0
      %2743 = vmatpush.msra.mxu0 0.0
      %2744 = vmatpush.msra.mxu0 0.0
      %2745 = vmatpush.msra.mxu0 0.0
      %2746 = vmatpush.msra.mxu0 0.0
      %2747 = vmatpush.msra.mxu0 0.0
      %2748 = vmatpush.msra.mxu0 %v368
      %2749 = vmatmul.f32.gmra.mxu0 %v2711
      %v2750 = vpop.f32.mrf.mxu0
      %v2751 = vadd.f32 %v2708, %v2750
      %2752 = vdwg.mxu0
      %v2753 = vmax.f32 %v2731, 0.0
      %v2754 = vmax.f32 %v2751, 0.0
      %v2757 = vrot.slane %v2754, 4
      %v2758 = vsel %vm425, %v2753, %v2757
      %2760 = vst [vmem:[#allocation2 + $0x4] sm:$0xff] %v2758
      %v2761 = vld [vmem:[#allocation2] sm:$0xff]
      %v2762 = vld [vmem:[#allocation2 + $0x8] sm:$0xf]
      %2765 = vst [vmem:[#allocation1] ss:$2 sm:$0xff] %v2761
      %s2766 = scalar_lea.vmem [#allocation1], 16
      %2767 = vst [vmem:[%s2766] ss:$2 sm:$0xff] %v2762
      %v2768 = vld.sshfl [vmem:[#allocation1] sm:$0xff pattern:$0x75316420]
      %v2769 = vld.sshfl [vmem:[#allocation1 + $0x8] sm:$0xff pattern:$0x75316420]
      %v2770 = vld.sshfl [vmem:[#allocation1 + $0x10] sm:$0xff pattern:$0x75316420]
      %2771 = vrot.lane.b32.xlu0 %v2768, 17
      %v2772 = vpop.permute.xlu0 %2771
      %2773 = vrot.lane.b32.xlu0 %v2769, 17
      %v2774 = vpop.permute.xlu0 %2773
      %2775 = vrot.lane.b32.xlu0 %v2770, 17
      %v2776 = vpop.permute.xlu0 %2775
      %v2777 = vsel %vm449, %v2772, %v2774
      %v2778 = vsel %vm449, %v2774, %v2776
      %v2781 = vsel %vm433, %v2777, 0.0
      %v2782 = vsel %vm434, %v2778, 0.0
      %s2783 = scalar_lea.vmem %s3, 108
      %v2784 = vld [vmem:[%s2783] sm:$0xf]
      %v2785 = vld [vmem:[#allocation2] sm:$0xff]
      %v2786 = vld [vmem:[#allocation2 + $0x8] sm:$0xf]
      %s2787 = scalar_lea.vmem %s3, 112
      %v2788 = vld [vmem:[%s2787] sm:$0xf]
      %2791 = vst [vmem:[#allocation1] ss:$2 sm:$0xff] %v2785
      %s2792 = scalar_lea.vmem [#allocation1], 16
      %2793 = vst [vmem:[%s2792] ss:$2 sm:$0xff] %v2786
      %v2794 = vld.sshfl [vmem:[#allocation1] sm:$0xff pattern:$0x75316420]
      %v2795 = vld.sshfl [vmem:[#allocation1 + $0x8] sm:$0xff pattern:$0x75316420]
      %v2796 = vld.sshfl [vmem:[#allocation1 + $0x10] sm:$0xff pattern:$0x75316420]
      %2797 = vrot.lane.b32.xlu0 %v2794, 16
      %v2798 = vpop.permute.xlu0 %2797
      %2799 = vrot.lane.b32.xlu0 %v2795, 16
      %v2800 = vpop.permute.xlu0 %2799
      %2801 = vrot.lane.b32.xlu0 %v2796, 16
      %v2802 = vpop.permute.xlu0 %2801
      %v2803 = vsel %vm475, %v2798, %v2800
      %v2804 = vsel %vm475, %v2800, %v2802
      %v2806 = vsel %vm478, %v2788, 0
      %v2808 = vsel %vm425, %v2803, 0
      %v2810 = vsel %vm425, %v2804, 0
      %2812 = vmatpush.msra.mxu0 0.0
      %2813 = vmatpush.msra.mxu0 0.0
      %2814 = vmatpush.msra.mxu0 0.0
      %2815 = vmatpush.msra.mxu0 0.0
      %2816 = vmatpush.msra.mxu0 0.0
      %2817 = vmatpush.msra.mxu0 0.0
      %2818 = vmatpush.msra.mxu0 0.0
      %2819 = vmatpush.msra.mxu0 0.0
      %2820 = vmatpush.msra.mxu0 0.0
      %2821 = vmatpush.msra.mxu0 0.0
      %2822 = vmatpush.msra.mxu0 0.0
      %2823 = vmatpush.msra.mxu0 0.0
      %2824 = vmatpush.msra.mxu0 0.0
      %2825 = vmatpush.msra.mxu0 0.0
      %2826 = vmatpush.msra.mxu0 0.0
      %2827 = vmatpush.msra.mxu0 %v2808
      %2828 = vmatmul.f32.gmra.mxu0 %v2806
      %v2829 = vpop.f32.mrf.mxu0
      %v2830 = vadd.f32 0.0, %v2829
      %2831 = vdwg.mxu0
      %2832 = vmatpush.msra.mxu0 0.0
      %2833 = vmatpush.msra.mxu0 0.0
      %2834 = vmatpush.msra.mxu0 0.0
      %2835 = vmatpush.msra.mxu0 0.0
      %2836 = vmatpush.msra.mxu0 0.0
      %2837 = vmatpush.msra.mxu0 0.0
      %2838 = vmatpush.msra.mxu0 0.0
      %2839 = vmatpush.msra.mxu0 0.0
      %2840 = vmatpush.msra.mxu0 0.0
      %2841 = vmatpush.msra.mxu0 0.0
      %2842 = vmatpush.msra.mxu0 0.0
      %2843 = vmatpush.msra.mxu0 0.0
      %2844 = vmatpush.msra.mxu0 0.0
      %2845 = vmatpush.msra.mxu0 0.0
      %2846 = vmatpush.msra.mxu0 0.0
      %2847 = vmatpush.msra.mxu0 %v2810
      %2848 = vmatmul.f32.gmra.mxu0 %v2806
      %v2849 = vpop.f32.mrf.mxu0
      %v2850 = vadd.f32 0.0, %v2849
      %2851 = vdwg.mxu0
      %v2853 = vsel %vm478, %v2784, 0
      %v2856 = vsel %vm425, %v2781, 0
      %v2859 = vsel %vm425, %v2782, 0
      %2861 = vmatpush.msra.mxu0 0.0
      %2862 = vmatpush.msra.mxu0 0.0
      %2863 = vmatpush.msra.mxu0 0.0
      %2864 = vmatpush.msra.mxu0 0.0
      %2865 = vmatpush.msra.mxu0 0.0
      %2866 = vmatpush.msra.mxu0 0.0
      %2867 = vmatpush.msra.mxu0 0.0
      %2868 = vmatpush.msra.mxu0 0.0
      %2869 = vmatpush.msra.mxu0 0.0
      %2870 = vmatpush.msra.mxu0 0.0
      %2871 = vmatpush.msra.mxu0 0.0
      %2872 = vmatpush.msra.mxu0 0.0
      %2873 = vmatpush.msra.mxu0 0.0
      %2874 = vmatpush.msra.mxu0 0.0
      %2875 = vmatpush.msra.mxu0 0.0
      %2876 = vmatpush.msra.mxu0 %v2856
      %2877 = vmatmul.f32.gmra.mxu0 %v2853
      %v2878 = vpop.f32.mrf.mxu0
      %v2879 = vadd.f32 %v2830, %v2878
      %2880 = vdwg.mxu0
      %2881 = vmatpush.msra.mxu0 0.0
      %2882 = vmatpush.msra.mxu0 0.0
      %2883 = vmatpush.msra.mxu0 0.0
      %2884 = vmatpush.msra.mxu0 0.0
      %2885 = vmatpush.msra.mxu0 0.0
      %2886 = vmatpush.msra.mxu0 0.0
      %2887 = vmatpush.msra.mxu0 0.0
      %2888 = vmatpush.msra.mxu0 0.0
      %2889 = vmatpush.msra.mxu0 0.0
      %2890 = vmatpush.msra.mxu0 0.0
      %2891 = vmatpush.msra.mxu0 0.0
      %2892 = vmatpush.msra.mxu0 0.0
      %2893 = vmatpush.msra.mxu0 0.0
      %2894 = vmatpush.msra.mxu0 0.0
      %2895 = vmatpush.msra.mxu0 0.0
      %2896 = vmatpush.msra.mxu0 %v2859
      %2897 = vmatmul.f32.gmra.mxu0 %v2853
      %v2898 = vpop.f32.mrf.mxu0
      %v2899 = vadd.f32 %v2850, %v2898
      %2900 = vdwg.mxu0
      %v2901 = vld [vmem:[#allocation2] sm:$0xff]
      %v2902 = vld [vmem:[#allocation2 + $0x8] sm:$0xf]
      %2905 = vst [vmem:[#allocation1] ss:$2 sm:$0xff] %v2901
      %s2906 = scalar_lea.vmem [#allocation1], 16
      %2907 = vst [vmem:[%s2906] ss:$2 sm:$0xff] %v2902
      %v2908 = vld.sshfl [vmem:[#allocation1] sm:$0xff pattern:$0x75316420]
      %v2909 = vld.sshfl [vmem:[#allocation1 + $0x8] sm:$0xff pattern:$0x75316420]
      %v2910 = vld.sshfl [vmem:[#allocation1 + $0x10] sm:$0xff pattern:$0x75316420]
      %2911 = vrot.lane.b32.xlu0 %v2908, 15
      %v2912 = vpop.permute.xlu0 %2911
      %2913 = vrot.lane.b32.xlu0 %v2909, 15
      %v2914 = vpop.permute.xlu0 %2913
      %2915 = vrot.lane.b32.xlu0 %v2910, 15
      %v2916 = vpop.permute.xlu0 %2915
      %v2917 = vsel %vm595, %v2912, %v2914
      %v2918 = vsel %vm595, %v2914, %v2916
      %v2921 = vsel %vm579, %v2917, 0.0
      %v2922 = vsel %vm580, %v2918, 0.0
      %s2923 = scalar_lea.vmem %s3, 116
      %v2924 = vld [vmem:[%s2923] sm:$0xf]
      %v2926 = vsel %vm478, %v2924, 0
      %v2929 = vsel %vm425, %v2921, 0
      %v2932 = vsel %vm425, %v2922, 0
      %2934 = vmatpush.msra.mxu0 0.0
      %2935 = vmatpush.msra.mxu0 0.0
      %2936 = vmatpush.msra.mxu0 0.0
      %2937 = vmatpush.msra.mxu0 0.0
      %2938 = vmatpush.msra.mxu0 0.0
      %2939 = vmatpush.msra.mxu0 0.0
      %2940 = vmatpush.msra.mxu0 0.0
      %2941 = vmatpush.msra.mxu0 0.0
      %2942 = vmatpush.msra.mxu0 0.0
      %2943 = vmatpush.msra.mxu0 0.0
      %2944 = vmatpush.msra.mxu0 0.0
      %2945 = vmatpush.msra.mxu0 0.0
      %2946 = vmatpush.msra.mxu0 0.0
      %2947 = vmatpush.msra.mxu0 0.0
      %2948 = vmatpush.msra.mxu0 0.0
      %2949 = vmatpush.msra.mxu0 %v2929
      %2950 = vmatmul.f32.gmra.mxu0 %v2926
      %v2951 = vpop.f32.mrf.mxu0
      %v2952 = vadd.f32 0.0, %v2951
      %2953 = vdwg.mxu0
      %2954 = vmatpush.msra.mxu0 0.0
      %2955 = vmatpush.msra.mxu0 0.0
      %2956 = vmatpush.msra.mxu0 0.0
      %2957 = vmatpush.msra.mxu0 0.0
      %2958 = vmatpush.msra.mxu0 0.0
      %2959 = vmatpush.msra.mxu0 0.0
      %2960 = vmatpush.msra.mxu0 0.0
      %2961 = vmatpush.msra.mxu0 0.0
      %2962 = vmatpush.msra.mxu0 0.0
      %2963 = vmatpush.msra.mxu0 0.0
      %2964 = vmatpush.msra.mxu0 0.0
      %2965 = vmatpush.msra.mxu0 0.0
      %2966 = vmatpush.msra.mxu0 0.0
      %2967 = vmatpush.msra.mxu0 0.0
      %2968 = vmatpush.msra.mxu0 0.0
      %2969 = vmatpush.msra.mxu0 %v2932
      %2970 = vmatmul.f32.gmra.mxu0 %v2926
      %v2971 = vpop.f32.mrf.mxu0
      %v2972 = vadd.f32 0.0, %v2971
      %2973 = vdwg.mxu0
      %v2974 = vadd.f32 %v2879, %v2952
      %v2975 = vadd.f32 %v2899, %v2972
      %v2976 = vld [vmem:[#allocation2] sm:$0xff]
      %v2977 = vld [vmem:[#allocation2 + $0x8] sm:$0xf]
      %2980 = vst [vmem:[#allocation1] ss:$2 sm:$0xff] %v2976
      %s2981 = scalar_lea.vmem [#allocation1], 16
      %2982 = vst [vmem:[%s2981] ss:$2 sm:$0xff] %v2977
      %v2983 = vld.sshfl [vmem:[#allocation1] sm:$0xff pattern:$0x75316420]
      %v2984 = vld.sshfl [vmem:[#allocation1 + $0x8] sm:$0xff pattern:$0x75316420]
      %v2985 = vld.sshfl [vmem:[#allocation1 + $0x10] sm:$0xff pattern:$0x75316420]
      %2986 = vrot.lane.b32.xlu0 %v2983, 1
      %v2987 = vpop.permute.xlu0 %2986
      %2988 = vrot.lane.b32.xlu0 %v2984, 1
      %v2989 = vpop.permute.xlu0 %2988
      %2990 = vrot.lane.b32.xlu0 %v2985, 1
      %v2991 = vpop.permute.xlu0 %2990
      %v2992 = vsel %vm671, %v2987, %v2989
      %v2993 = vsel %vm671, %v2989, %v2991
      %v2996 = vsel %vm433, %v2992, 0.0
      %v2997 = vsel %vm434, %v2993, 0.0
      %s2998 = scalar_lea.vmem %s3, 120
      %v2999 = vld [vmem:[%s2998] sm:$0xf]
      %v3001 = vsel %vm478, %v2999, 0
      %v3004 = vsel %vm425, %v2996, 0
      %v3007 = vsel %vm425, %v2997, 0
      %3009 = vmatpush.msra.mxu0 0.0
      %3010 = vmatpush.msra.mxu0 0.0
      %3011 = vmatpush.msra.mxu0 0.0
      %3012 = vmatpush.msra.mxu0 0.0
      %3013 = vmatpush.msra.mxu0 0.0
      %3014 = vmatpush.msra.mxu0 0.0
      %3015 = vmatpush.msra.mxu0 0.0
      %3016 = vmatpush.msra.mxu0 0.0
      %3017 = vmatpush.msra.mxu0 0.0
      %3018 = vmatpush.msra.mxu0 0.0
      %3019 = vmatpush.msra.mxu0 0.0
      %3020 = vmatpush.msra.mxu0 0.0
      %3021 = vmatpush.msra.mxu0 0.0
      %3022 = vmatpush.msra.mxu0 0.0
      %3023 = vmatpush.msra.mxu0 0.0
      %3024 = vmatpush.msra.mxu0 %v3004
      %3025 = vmatmul.f32.gmra.mxu0 %v3001
      %v3026 = vpop.f32.mrf.mxu0
      %v3027 = vadd.f32 0.0, %v3026
      %3028 = vdwg.mxu0
      %3029 = vmatpush.msra.mxu0 0.0
      %3030 = vmatpush.msra.mxu0 0.0
      %3031 = vmatpush.msra.mxu0 0.0
      %3032 = vmatpush.msra.mxu0 0.0
      %3033 = vmatpush.msra.mxu0 0.0
      %3034 = vmatpush.msra.mxu0 0.0
      %3035 = vmatpush.msra.mxu0 0.0
      %3036 = vmatpush.msra.mxu0 0.0
      %3037 = vmatpush.msra.mxu0 0.0
      %3038 = vmatpush.msra.mxu0 0.0
      %3039 = vmatpush.msra.mxu0 0.0
      %3040 = vmatpush.msra.mxu0 0.0
      %3041 = vmatpush.msra.mxu0 0.0
      %3042 = vmatpush.msra.mxu0 0.0
      %3043 = vmatpush.msra.mxu0 0.0
      %3044 = vmatpush.msra.mxu0 %v3007
      %3045 = vmatmul.f32.gmra.mxu0 %v3001
      %v3046 = vpop.f32.mrf.mxu0
      %v3047 = vadd.f32 0.0, %v3046
      %3048 = vdwg.mxu0
      %v3049 = vadd.f32 %v2974, %v3027
      %v3050 = vadd.f32 %v2975, %v3047
      %v3051 = vld [vmem:[#allocation2 + $0x4] sm:$0xff]
      %s3052 = scalar_lea.vmem %s3, 124
      %v3053 = vld [vmem:[%s3052] sm:$0xf]
      %3055 = vst [vmem:[#allocation1] ss:$2 sm:$0xff] %v3051
      %v3056 = vld.sshfl [vmem:[#allocation1] sm:$0xff pattern:$0x75316420]
      %v3057 = vld.sshfl [vmem:[#allocation1 + $0x8] sm:$0xff pattern:$0x75316420]
      %v3059 = vsel %vm478, %v3053, 0
      %v3061 = vsel %vm425, %v3056, 0
      %v3063 = vsel %vm425, %v3057, 0
      %3065 = vmatpush.msra.mxu0 0.0
      %3066 = vmatpush.msra.mxu0 0.0
      %3067 = vmatpush.msra.mxu0 0.0
      %3068 = vmatpush.msra.mxu0 0.0
      %3069 = vmatpush.msra.mxu0 0.0
      %3070 = vmatpush.msra.mxu0 0.0
      %3071 = vmatpush.msra.mxu0 0.0
      %3072 = vmatpush.msra.mxu0 0.0
      %3073 = vmatpush.msra.mxu0 0.0
      %3074 = vmatpush.msra.mxu0 0.0
      %3075 = vmatpush.msra.mxu0 0.0
      %3076 = vmatpush.msra.mxu0 0.0
      %3077 = vmatpush.msra.mxu0 0.0
      %3078 = vmatpush.msra.mxu0 0.0
      %3079 = vmatpush.msra.mxu0 0.0
      %3080 = vmatpush.msra.mxu0 %v3061
      %3081 = vmatmul.f32.gmra.mxu0 %v3059
      %v3082 = vpop.f32.mrf.mxu0
      %v3083 = vadd.f32 0.0, %v3082
      %3084 = vdwg.mxu0
      %3085 = vmatpush.msra.mxu0 0.0
      %3086 = vmatpush.msra.mxu0 0.0
      %3087 = vmatpush.msra.mxu0 0.0
      %3088 = vmatpush.msra.mxu0 0.0
      %3089 = vmatpush.msra.mxu0 0.0
      %3090 = vmatpush.msra.mxu0 0.0
      %3091 = vmatpush.msra.mxu0 0.0
      %3092 = vmatpush.msra.mxu0 0.0
      %3093 = vmatpush.msra.mxu0 0.0
      %3094 = vmatpush.msra.mxu0 0.0
      %3095 = vmatpush.msra.mxu0 0.0
      %3096 = vmatpush.msra.mxu0 0.0
      %3097 = vmatpush.msra.mxu0 0.0
      %3098 = vmatpush.msra.mxu0 0.0
      %3099 = vmatpush.msra.mxu0 0.0
      %3100 = vmatpush.msra.mxu0 %v3063
      %3101 = vmatmul.f32.gmra.mxu0 %v3059
      %v3102 = vpop.f32.mrf.mxu0
      %v3103 = vadd.f32 0.0, %v3102
      %3104 = vdwg.mxu0
      %v3105 = vadd.f32 %v3049, %v3083
      %v3106 = vadd.f32 %v3050, %v3103
      %v3107 = vld [vmem:[#allocation2 + $0x4] sm:$0xff]
      %v3108 = vld [vmem:[#allocation2 + $0xc] sm:$0xf]
      %3111 = vst [vmem:[#allocation1] ss:$2 sm:$0xff] %v3107
      %s3112 = scalar_lea.vmem [#allocation1], 16
      %3113 = vst [vmem:[%s3112] ss:$2 sm:$0xff] %v3108
      %v3114 = vld.sshfl [vmem:[#allocation1] sm:$0xff pattern:$0x75316420]
      %v3115 = vld.sshfl [vmem:[#allocation1 + $0x8] sm:$0xff pattern:$0x75316420]
      %v3116 = vld.sshfl [vmem:[#allocation1 + $0x10] sm:$0xff pattern:$0x75316420]
      %3117 = vrot.lane.b32.xlu0 %v3114, 127
      %v3118 = vpop.permute.xlu0 %3117
      %3119 = vrot.lane.b32.xlu0 %v3115, 127
      %v3120 = vpop.permute.xlu0 %3119
      %3121 = vrot.lane.b32.xlu0 %v3116, 127
      %v3122 = vpop.permute.xlu0 %3121
      %v3123 = vsel %vm803, %v3118, %v3120
      %v3124 = vsel %vm803, %v3120, %v3122
      %v3127 = vsel %vm579, %v3123, 0.0
      %v3128 = vsel %vm580, %v3124, 0.0
      %s3129 = scalar_lea.vmem %s3, 128
      %v3130 = vld [vmem:[%s3129] sm:$0xf]
      %v3132 = vsel %vm478, %v3130, 0
      %v3135 = vsel %vm425, %v3127, 0
      %v3138 = vsel %vm425, %v3128, 0
      %3140 = vmatpush.msra.mxu0 0.0
      %3141 = vmatpush.msra.mxu0 0.0
      %3142 = vmatpush.msra.mxu0 0.0
      %3143 = vmatpush.msra.mxu0 0.0
      %3144 = vmatpush.msra.mxu0 0.0
      %3145 = vmatpush.msra.mxu0 0.0
      %3146 = vmatpush.msra.mxu0 0.0
      %3147 = vmatpush.msra.mxu0 0.0
      %3148 = vmatpush.msra.mxu0 0.0
      %3149 = vmatpush.msra.mxu0 0.0
      %3150 = vmatpush.msra.mxu0 0.0
      %3151 = vmatpush.msra.mxu0 0.0
      %3152 = vmatpush.msra.mxu0 0.0
      %3153 = vmatpush.msra.mxu0 0.0
      %3154 = vmatpush.msra.mxu0 0.0
      %3155 = vmatpush.msra.mxu0 %v3135
      %3156 = vmatmul.f32.gmra.mxu0 %v3132
      %v3157 = vpop.f32.mrf.mxu0
      %v3158 = vadd.f32 0.0, %v3157
      %3159 = vdwg.mxu0
      %3160 = vmatpush.msra.mxu0 0.0
      %3161 = vmatpush.msra.mxu0 0.0
      %3162 = vmatpush.msra.mxu0 0.0
      %3163 = vmatpush.msra.mxu0 0.0
      %3164 = vmatpush.msra.mxu0 0.0
      %3165 = vmatpush.msra.mxu0 0.0
      %3166 = vmatpush.msra.mxu0 0.0
      %3167 = vmatpush.msra.mxu0 0.0
      %3168 = vmatpush.msra.mxu0 0.0
      %3169 = vmatpush.msra.mxu0 0.0
      %3170 = vmatpush.msra.mxu0 0.0
      %3171 = vmatpush.msra.mxu0 0.0
      %3172 = vmatpush.msra.mxu0 0.0
      %3173 = vmatpush.msra.mxu0 0.0
      %3174 = vmatpush.msra.mxu0 0.0
      %3175 = vmatpush.msra.mxu0 %v3138
      %3176 = vmatmul.f32.gmra.mxu0 %v3132
      %v3177 = vpop.f32.mrf.mxu0
      %v3178 = vadd.f32 0.0, %v3177
      %3179 = vdwg.mxu0
      %v3180 = vadd.f32 %v3105, %v3158
      %v3181 = vadd.f32 %v3106, %v3178
      %v3182 = vld [vmem:[#allocation2 + $0x4] sm:$0xff]
      %v3183 = vld [vmem:[#allocation2 + $0xc] sm:$0xf]
      %3186 = vst [vmem:[#allocation1] ss:$2 sm:$0xff] %v3182
      %s3187 = scalar_lea.vmem [#allocation1], 16
      %3188 = vst [vmem:[%s3187] ss:$2 sm:$0xff] %v3183
      %v3189 = vld.sshfl [vmem:[#allocation1] sm:$0xff pattern:$0x75316420]
      %v3190 = vld.sshfl [vmem:[#allocation1 + $0x8] sm:$0xff pattern:$0x75316420]
      %v3191 = vld.sshfl [vmem:[#allocation1 + $0x10] sm:$0xff pattern:$0x75316420]
      %3192 = vrot.lane.b32.xlu0 %v3189, 113
      %v3193 = vpop.permute.xlu0 %3192
      %3194 = vrot.lane.b32.xlu0 %v3190, 113
      %v3195 = vpop.permute.xlu0 %3194
      %3196 = vrot.lane.b32.xlu0 %v3191, 113
      %v3197 = vpop.permute.xlu0 %3196
      %v3198 = vsel %vm879, %v3193, %v3195
      %v3199 = vsel %vm879, %v3195, %v3197
      %v3202 = vsel %vm433, %v3198, 0.0
      %v3203 = vsel %vm434, %v3199, 0.0
      %s3204 = scalar_lea.vmem %s3, 132
      %v3205 = vld [vmem:[%s3204] sm:$0xf]
      %v3207 = vsel %vm478, %v3205, 0
      %v3210 = vsel %vm425, %v3202, 0
      %v3213 = vsel %vm425, %v3203, 0
      %3215 = vmatpush.msra.mxu0 0.0
      %3216 = vmatpush.msra.mxu0 0.0
      %3217 = vmatpush.msra.mxu0 0.0
      %3218 = vmatpush.msra.mxu0 0.0
      %3219 = vmatpush.msra.mxu0 0.0
      %3220 = vmatpush.msra.mxu0 0.0
      %3221 = vmatpush.msra.mxu0 0.0
      %3222 = vmatpush.msra.mxu0 0.0
      %3223 = vmatpush.msra.mxu0 0.0
      %3224 = vmatpush.msra.mxu0 0.0
      %3225 = vmatpush.msra.mxu0 0.0
      %3226 = vmatpush.msra.mxu0 0.0
      %3227 = vmatpush.msra.mxu0 0.0
      %3228 = vmatpush.msra.mxu0 0.0
      %3229 = vmatpush.msra.mxu0 0.0
      %3230 = vmatpush.msra.mxu0 %v3210
      %3231 = vmatmul.f32.gmra.mxu0 %v3207
      %v3232 = vpop.f32.mrf.mxu0
      %v3233 = vadd.f32 0.0, %v3232
      %3234 = vdwg.mxu0
      %3235 = vmatpush.msra.mxu0 0.0
      %3236 = vmatpush.msra.mxu0 0.0
      %3237 = vmatpush.msra.mxu0 0.0
      %3238 = vmatpush.msra.mxu0 0.0
      %3239 = vmatpush.msra.mxu0 0.0
      %3240 = vmatpush.msra.mxu0 0.0
      %3241 = vmatpush.msra.mxu0 0.0
      %3242 = vmatpush.msra.mxu0 0.0
      %3243 = vmatpush.msra.mxu0 0.0
      %3244 = vmatpush.msra.mxu0 0.0
      %3245 = vmatpush.msra.mxu0 0.0
      %3246 = vmatpush.msra.mxu0 0.0
      %3247 = vmatpush.msra.mxu0 0.0
      %3248 = vmatpush.msra.mxu0 0.0
      %3249 = vmatpush.msra.mxu0 0.0
      %3250 = vmatpush.msra.mxu0 %v3213
      %3251 = vmatmul.f32.gmra.mxu0 %v3207
      %v3252 = vpop.f32.mrf.mxu0
      %v3253 = vadd.f32 0.0, %v3252
      %3254 = vdwg.mxu0
      %v3255 = vadd.f32 %v3180, %v3233
      %v3256 = vadd.f32 %v3181, %v3253
      %v3257 = vld [vmem:[#allocation2 + $0x4] sm:$0xff]
      %v3258 = vld [vmem:[#allocation2 + $0xc] sm:$0xf]
      %s3259 = scalar_lea.vmem %s3, 136
      %v3260 = vld [vmem:[%s3259] sm:$0xf]
      %3263 = vst [vmem:[#allocation1] ss:$2 sm:$0xff] %v3257
      %s3264 = scalar_lea.vmem [#allocation1], 16
      %3265 = vst [vmem:[%s3264] ss:$2 sm:$0xff] %v3258
      %v3266 = vld.sshfl [vmem:[#allocation1] sm:$0xff pattern:$0x75316420]
      %v3267 = vld.sshfl [vmem:[#allocation1 + $0x8] sm:$0xff pattern:$0x75316420]
      %v3268 = vld.sshfl [vmem:[#allocation1 + $0x10] sm:$0xff pattern:$0x75316420]
      %3269 = vrot.lane.b32.xlu0 %v3266, 112
      %v3270 = vpop.permute.xlu0 %3269
      %3271 = vrot.lane.b32.xlu0 %v3267, 112
      %v3272 = vpop.permute.xlu0 %3271
      %3273 = vrot.lane.b32.xlu0 %v3268, 112
      %v3274 = vpop.permute.xlu0 %3273
      %v3275 = vsel %vm957, %v3270, %v3272
      %v3276 = vsel %vm957, %v3272, %v3274
      %v3278 = vsel %vm478, %v3260, 0
      %v3280 = vsel %vm425, %v3275, 0
      %v3282 = vsel %vm425, %v3276, 0
      %3284 = vmatpush.msra.mxu0 0.0
      %3285 = vmatpush.msra.mxu0 0.0
      %3286 = vmatpush.msra.mxu0 0.0
      %3287 = vmatpush.msra.mxu0 0.0
      %3288 = vmatpush.msra.mxu0 0.0
      %3289 = vmatpush.msra.mxu0 0.0
      %3290 = vmatpush.msra.mxu0 0.0
      %3291 = vmatpush.msra.mxu0 0.0
      %3292 = vmatpush.msra.mxu0 0.0
      %3293 = vmatpush.msra.mxu0 0.0
      %3294 = vmatpush.msra.mxu0 0.0
      %3295 = vmatpush.msra.mxu0 0.0
      %3296 = vmatpush.msra.mxu0 0.0
      %3297 = vmatpush.msra.mxu0 0.0
      %3298 = vmatpush.msra.mxu0 0.0
      %3299 = vmatpush.msra.mxu0 %v3280
      %3300 = vmatmul.f32.gmra.mxu0 %v3278
      %v3301 = vpop.f32.mrf.mxu0
      %v3302 = vadd.f32 0.0, %v3301
      %3303 = vdwg.mxu0
      %3304 = vmatpush.msra.mxu0 0.0
      %3305 = vmatpush.msra.mxu0 0.0
      %3306 = vmatpush.msra.mxu0 0.0
      %3307 = vmatpush.msra.mxu0 0.0
      %3308 = vmatpush.msra.mxu0 0.0
      %3309 = vmatpush.msra.mxu0 0.0
      %3310 = vmatpush.msra.mxu0 0.0
      %3311 = vmatpush.msra.mxu0 0.0
      %3312 = vmatpush.msra.mxu0 0.0
      %3313 = vmatpush.msra.mxu0 0.0
      %3314 = vmatpush.msra.mxu0 0.0
      %3315 = vmatpush.msra.mxu0 0.0
      %3316 = vmatpush.msra.mxu0 0.0
      %3317 = vmatpush.msra.mxu0 0.0
      %3318 = vmatpush.msra.mxu0 0.0
      %3319 = vmatpush.msra.mxu0 %v3282
      %3320 = vmatmul.f32.gmra.mxu0 %v3278
      %v3321 = vpop.f32.mrf.mxu0
      %v3322 = vadd.f32 0.0, %v3321
      %3323 = vdwg.mxu0
      %v3324 = vadd.f32 %v3255, %v3302
      %v3325 = vadd.f32 %v3256, %v3322
      %v3326 = vld [vmem:[#allocation2 + $0x4] sm:$0xff]
      %v3327 = vld [vmem:[#allocation2 + $0xc] sm:$0xf]
      %3330 = vst [vmem:[#allocation1] ss:$2 sm:$0xff] %v3326
      %s3331 = scalar_lea.vmem [#allocation1], 16
      %3332 = vst [vmem:[%s3331] ss:$2 sm:$0xff] %v3327
      %v3333 = vld.sshfl [vmem:[#allocation1] sm:$0xff pattern:$0x75316420]
      %v3334 = vld.sshfl [vmem:[#allocation1 + $0x8] sm:$0xff pattern:$0x75316420]
      %v3335 = vld.sshfl [vmem:[#allocation1 + $0x10] sm:$0xff pattern:$0x75316420]
      %3336 = vrot.lane.b32.xlu0 %v3333, 111
      %v3337 = vpop.permute.xlu0 %3336
      %3338 = vrot.lane.b32.xlu0 %v3334, 111
      %v3339 = vpop.permute.xlu0 %3338
      %3340 = vrot.lane.b32.xlu0 %v3335, 111
      %v3341 = vpop.permute.xlu0 %3340
      %v3342 = vsel %vm1025, %v3337, %v3339
      %v3343 = vsel %vm1025, %v3339, %v3341
      %v3346 = vsel %vm579, %v3342, 0.0
      %v3347 = vsel %vm580, %v3343, 0.0
      %s3348 = scalar_lea.vmem %s3, 140
      %v3349 = vld [vmem:[%s3348] sm:$0xf]
      %v3351 = vsel %vm478, %v3349, 0
      %v3354 = vsel %vm425, %v3346, 0
      %v3357 = vsel %vm425, %v3347, 0
      %3359 = vmatpush.msra.mxu0 0.0
      %3360 = vmatpush.msra.mxu0 0.0
      %3361 = vmatpush.msra.mxu0 0.0
      %3362 = vmatpush.msra.mxu0 0.0
      %3363 = vmatpush.msra.mxu0 0.0
      %3364 = vmatpush.msra.mxu0 0.0
      %3365 = vmatpush.msra.mxu0 0.0
      %3366 = vmatpush.msra.mxu0 0.0
      %3367 = vmatpush.msra.mxu0 0.0
      %3368 = vmatpush.msra.mxu0 0.0
      %3369 = vmatpush.msra.mxu0 0.0
      %3370 = vmatpush.msra.mxu0 0.0
      %3371 = vmatpush.msra.mxu0 0.0
      %3372 = vmatpush.msra.mxu0 0.0
      %3373 = vmatpush.msra.mxu0 0.0
      %3374 = vmatpush.msra.mxu0 %v3354
      %3375 = vmatmul.f32.gmra.mxu0 %v3351
      %v3376 = vpop.f32.mrf.mxu0
      %v3377 = vadd.f32 0.0, %v3376
      %3378 = vdwg.mxu0
      %3379 = vmatpush.msra.mxu0 0.0
      %3380 = vmatpush.msra.mxu0 0.0
      %3381 = vmatpush.msra.mxu0 0.0
      %3382 = vmatpush.msra.mxu0 0.0
      %3383 = vmatpush.msra.mxu0 0.0
      %3384 = vmatpush.msra.mxu0 0.0
      %3385 = vmatpush.msra.mxu0 0.0
      %3386 = vmatpush.msra.mxu0 0.0
      %3387 = vmatpush.msra.mxu0 0.0
      %3388 = vmatpush.msra.mxu0 0.0
      %3389 = vmatpush.msra.mxu0 0.0
      %3390 = vmatpush.msra.mxu0 0.0
      %3391 = vmatpush.msra.mxu0 0.0
      %3392 = vmatpush.msra.mxu0 0.0
      %3393 = vmatpush.msra.mxu0 0.0
      %3394 = vmatpush.msra.mxu0 %v3357
      %3395 = vmatmul.f32.gmra.mxu0 %v3351
      %v3396 = vpop.f32.mrf.mxu0
      %v3397 = vadd.f32 0.0, %v3396
      %3398 = vdwg.mxu0
      %v3399 = vadd.f32 %v3324, %v3377
      %v3400 = vadd.f32 %v3325, %v3397
      %s3401 = scalar_lea.vmem %s4, 12
      %v3402 = vld [vmem:[%s3401] sm:$0xf]
      %3404 = vset.pattern.permute.xlu0 0
      %3405 = vperm.xlu0 %3404, %v3402
      %v3406 = vpop.permute.xlu0 %3405
      %v3408 = vadd.f32 %v3399, %v3406
      %v3409 = vadd.f32 %v3400, %v3406
      %v3410 = vmax.f32 %v3408, 0.0
      %v3411 = vmax.f32 %v3409, 0.0
      %s3412 = scalar_lea.vmem %s5, 24
      %v3413 = vld [vmem:[%s3412] sm:$0xff]
      %s3414 = scalar_lea.vmem %s6, 24
      %v3415 = vld [vmem:[%s3414] sm:$0xff]
      %3417 = vset.pattern.permute.xlu0 0
      %3418 = vperm.xlu0 %3417, %v3415
      %v3419 = vpop.permute.xlu0 %3418
      %v3422 = vsel %vm478, %v3413, 0
      %v3425 = vsel %vm425, %v3410, 0
      %v3428 = vsel %vm425, %v3411, 0
      %3430 = vmatpush.msra.mxu0 0.0
      %3431 = vmatpush.msra.mxu0 0.0
      %3432 = vmatpush.msra.mxu0 0.0
      %3433 = vmatpush.msra.mxu0 0.0
      %3434 = vmatpush.msra.mxu0 0.0
      %3435 = vmatpush.msra.mxu0 0.0
      %3436 = vmatpush.msra.mxu0 0.0
      %3437 = vmatpush.msra.mxu0 0.0
      %3438 = vmatpush.msra.mxu0 0.0
      %3439 = vmatpush.msra.mxu0 0.0
      %3440 = vmatpush.msra.mxu0 0.0
      %3441 = vmatpush.msra.mxu0 0.0
      %3442 = vmatpush.msra.mxu0 0.0
      %3443 = vmatpush.msra.mxu0 0.0
      %3444 = vmatpush.msra.mxu0 0.0
      %3445 = vmatpush.msra.mxu0 %v3425
      %3446 = vmatmul.f32.gmra.mxu0 %v3422
      %v3447 = vpop.f32.mrf.mxu0
      %v3448 = vadd.f32 %v3419, %v3447
      %3449 = vdwg.mxu0
      %3450 = vmatpush.msra.mxu0 0.0
      %3451 = vmatpush.msra.mxu0 0.0
      %3452 = vmatpush.msra.mxu0 0.0
      %3453 = vmatpush.msra.mxu0 0.0
      %3454 = vmatpush.msra.mxu0 0.0
      %3455 = vmatpush.msra.mxu0 0.0
      %3456 = vmatpush.msra.mxu0 0.0
      %3457 = vmatpush.msra.mxu0 0.0
      %3458 = vmatpush.msra.mxu0 0.0
      %3459 = vmatpush.msra.mxu0 0.0
      %3460 = vmatpush.msra.mxu0 0.0
      %3461 = vmatpush.msra.mxu0 0.0
      %3462 = vmatpush.msra.mxu0 0.0
      %3463 = vmatpush.msra.mxu0 0.0
      %3464 = vmatpush.msra.mxu0 0.0
      %3465 = vmatpush.msra.mxu0 %v3428
      %3466 = vmatmul.f32.gmra.mxu0 %v3422
      %v3467 = vpop.f32.mrf.mxu0
      %v3468 = vadd.f32 %v3419, %v3467
      %3469 = vdwg.mxu0
      %v3470 = vadd.f32 %v3448, %v367
      %v3471 = vadd.f32 %v3468, %v368
      %v3472 = vmax.f32 %v3470, 0.0
      %v3473 = vmax.f32 %v3471, 0.0
      %s3474 = scalar_lea.vmem %s1, 16
      %v3475 = vld [vmem:[%s3474] sm:$0xf]
      %s3476 = scalar_lea.vmem %s2, 16
      %v3477 = vld [vmem:[%s3476] sm:$0xf]
      %3479 = vset.pattern.permute.xlu0 0
      %3480 = vperm.xlu0 %3479, %v3477
      %v3481 = vpop.permute.xlu0 %3480
      %v3484 = vsel %vm376, %v3475, 0
      %3486 = vmatpush.msra.mxu0 0.0
      %3487 = vmatpush.msra.mxu0 0.0
      %3488 = vmatpush.msra.mxu0 0.0
      %3489 = vmatpush.msra.mxu0 0.0
      %3490 = vmatpush.msra.mxu0 0.0
      %3491 = vmatpush.msra.mxu0 0.0
      %3492 = vmatpush.msra.mxu0 0.0
      %3493 = vmatpush.msra.mxu0 0.0
      %3494 = vmatpush.msra.mxu0 0.0
      %3495 = vmatpush.msra.mxu0 0.0
      %3496 = vmatpush.msra.mxu0 0.0
      %3497 = vmatpush.msra.mxu0 0.0
      %3498 = vmatpush.msra.mxu0 0.0
      %3499 = vmatpush.msra.mxu0 0.0
      %3500 = vmatpush.msra.mxu0 0.0
      %3501 = vmatpush.msra.mxu0 %v3472
      %3502 = vmatmul.f32.gmra.mxu0 %v3484
      %v3503 = vpop.f32.mrf.mxu0
      %v3504 = vadd.f32 %v3481, %v3503
      %3505 = vdwg.mxu0
      %3506 = vmatpush.msra.mxu0 0.0
      %3507 = vmatpush.msra.mxu0 0.0
      %3508 = vmatpush.msra.mxu0 0.0
      %3509 = vmatpush.msra.mxu0 0.0
      %3510 = vmatpush.msra.mxu0 0.0
      %3511 = vmatpush.msra.mxu0 0.0
      %3512 = vmatpush.msra.mxu0 0.0
      %3513 = vmatpush.msra.mxu0 0.0
      %3514 = vmatpush.msra.mxu0 0.0
      %3515 = vmatpush.msra.mxu0 0.0
      %3516 = vmatpush.msra.mxu0 0.0
      %3517 = vmatpush.msra.mxu0 0.0
      %3518 = vmatpush.msra.mxu0 0.0
      %3519 = vmatpush.msra.mxu0 0.0
      %3520 = vmatpush.msra.mxu0 0.0
      %3521 = vmatpush.msra.mxu0 %v3473
      %3522 = vmatmul.f32.gmra.mxu0 %v3484
      %v3523 = vpop.f32.mrf.mxu0
      %v3524 = vadd.f32 %v3481, %v3523
      %3525 = vdwg.mxu0
      %v3526 = vmax.f32 %v3504, 0.0
      %v3527 = vmax.f32 %v3524, 0.0
      %v3530 = vrot.slane %v3527, 4
      %v3531 = vsel %vm425, %v3526, %v3530
      %3533 = vst [vmem:[#allocation2 + $0x4] sm:$0xff] %v3531
      %v3534 = vld [vmem:[#allocation2] sm:$0xff]
      %v3535 = vld [vmem:[#allocation2 + $0x8] sm:$0xf]
      %3538 = vst [vmem:[#allocation1] ss:$2 sm:$0xff] %v3534
      %s3539 = scalar_lea.vmem [#allocation1], 16
      %3540 = vst [vmem:[%s3539] ss:$2 sm:$0xff] %v3535
      %v3541 = vld.sshfl [vmem:[#allocation1] sm:$0xff pattern:$0x75316420]
      %v3542 = vld.sshfl [vmem:[#allocation1 + $0x8] sm:$0xff pattern:$0x75316420]
      %v3543 = vld.sshfl [vmem:[#allocation1 + $0x10] sm:$0xff pattern:$0x75316420]
      %3544 = vrot.lane.b32.xlu0 %v3541, 17
      %v3545 = vpop.permute.xlu0 %3544
      %3546 = vrot.lane.b32.xlu0 %v3542, 17
      %v3547 = vpop.permute.xlu0 %3546
      %3548 = vrot.lane.b32.xlu0 %v3543, 17
      %v3549 = vpop.permute.xlu0 %3548
      %v3550 = vsel %vm449, %v3545, %v3547
      %v3551 = vsel %vm449, %v3547, %v3549
      %v3554 = vsel %vm433, %v3550, 0.0
      %v3555 = vsel %vm434, %v3551, 0.0
      %s3556 = scalar_lea.vmem %s3, 144
      %v3557 = vld [vmem:[%s3556] sm:$0xf]
      %v3558 = vld [vmem:[#allocation2] sm:$0xff]
      %v3559 = vld [vmem:[#allocation2 + $0x8] sm:$0xf]
      %s3560 = scalar_lea.vmem %s3, 148
      %v3561 = vld [vmem:[%s3560] sm:$0xf]
      %3564 = vst [vmem:[#allocation1] ss:$2 sm:$0xff] %v3558
      %s3565 = scalar_lea.vmem [#allocation1], 16
      %3566 = vst [vmem:[%s3565] ss:$2 sm:$0xff] %v3559
      %v3567 = vld.sshfl [vmem:[#allocation1] sm:$0xff pattern:$0x75316420]
      %v3568 = vld.sshfl [vmem:[#allocation1 + $0x8] sm:$0xff pattern:$0x75316420]
      %v3569 = vld.sshfl [vmem:[#allocation1 + $0x10] sm:$0xff pattern:$0x75316420]
      %3570 = vrot.lane.b32.xlu0 %v3567, 16
      %v3571 = vpop.permute.xlu0 %3570
      %3572 = vrot.lane.b32.xlu0 %v3568, 16
      %v3573 = vpop.permute.xlu0 %3572
      %3574 = vrot.lane.b32.xlu0 %v3569, 16
      %v3575 = vpop.permute.xlu0 %3574
      %v3576 = vsel %vm475, %v3571, %v3573
      %v3577 = vsel %vm475, %v3573, %v3575
      %v3579 = vsel %vm478, %v3561, 0
      %v3581 = vsel %vm425, %v3576, 0
      %v3583 = vsel %vm425, %v3577, 0
      %3585 = vmatpush.msra.mxu0 0.0
      %3586 = vmatpush.msra.mxu0 0.0
      %3587 = vmatpush.msra.mxu0 0.0
      %3588 = vmatpush.msra.mxu0 0.0
      %3589 = vmatpush.msra.mxu0 0.0
      %3590 = vmatpush.msra.mxu0 0.0
      %3591 = vmatpush.msra.mxu0 0.0
      %3592 = vmatpush.msra.mxu0 0.0
      %3593 = vmatpush.msra.mxu0 0.0
      %3594 = vmatpush.msra.mxu0 0.0
      %3595 = vmatpush.msra.mxu0 0.0
      %3596 = vmatpush.msra.mxu0 0.0
      %3597 = vmatpush.msra.mxu0 0.0
      %3598 = vmatpush.msra.mxu0 0.0
      %3599 = vmatpush.msra.mxu0 0.0
      %3600 = vmatpush.msra.mxu0 %v3581
      %3601 = vmatmul.f32.gmra.mxu0 %v3579
      %v3602 = vpop.f32.mrf.mxu0
      %v3603 = vadd.f32 0.0, %v3602
      %3604 = vdwg.mxu0
      %3605 = vmatpush.msra.mxu0 0.0
      %3606 = vmatpush.msra.mxu0 0.0
      %3607 = vmatpush.msra.mxu0 0.0
      %3608 = vmatpush.msra.mxu0 0.0
      %3609 = vmatpush.msra.mxu0 0.0
      %3610 = vmatpush.msra.mxu0 0.0
      %3611 = vmatpush.msra.mxu0 0.0
      %3612 = vmatpush.msra.mxu0 0.0
      %3613 = vmatpush.msra.mxu0 0.0
      %3614 = vmatpush.msra.mxu0 0.0
      %3615 = vmatpush.msra.mxu0 0.0
      %3616 = vmatpush.msra.mxu0 0.0
      %3617 = vmatpush.msra.mxu0 0.0
      %3618 = vmatpush.msra.mxu0 0.0
      %3619 = vmatpush.msra.mxu0 0.0
      %3620 = vmatpush.msra.mxu0 %v3583
      %3621 = vmatmul.f32.gmra.mxu0 %v3579
      %v3622 = vpop.f32.mrf.mxu0
      %v3623 = vadd.f32 0.0, %v3622
      %3624 = vdwg.mxu0
      %v3626 = vsel %vm478, %v3557, 0
      %v3629 = vsel %vm425, %v3554, 0
      %v3632 = vsel %vm425, %v3555, 0
      %3634 = vmatpush.msra.mxu0 0.0
      %3635 = vmatpush.msra.mxu0 0.0
      %3636 = vmatpush.msra.mxu0 0.0
      %3637 = vmatpush.msra.mxu0 0.0
      %3638 = vmatpush.msra.mxu0 0.0
      %3639 = vmatpush.msra.mxu0 0.0
      %3640 = vmatpush.msra.mxu0 0.0
      %3641 = vmatpush.msra.mxu0 0.0
      %3642 = vmatpush.msra.mxu0 0.0
      %3643 = vmatpush.msra.mxu0 0.0
      %3644 = vmatpush.msra.mxu0 0.0
      %3645 = vmatpush.msra.mxu0 0.0
      %3646 = vmatpush.msra.mxu0 0.0
      %3647 = vmatpush.msra.mxu0 0.0
      %3648 = vmatpush.msra.mxu0 0.0
      %3649 = vmatpush.msra.mxu0 %v3629
      %3650 = vmatmul.f32.gmra.mxu0 %v3626
      %v3651 = vpop.f32.mrf.mxu0
      %v3652 = vadd.f32 %v3603, %v3651
      %3653 = vdwg.mxu0
      %3654 = vmatpush.msra.mxu0 0.0
      %3655 = vmatpush.msra.mxu0 0.0
      %3656 = vmatpush.msra.mxu0 0.0
      %3657 = vmatpush.msra.mxu0 0.0
      %3658 = vmatpush.msra.mxu0 0.0
      %3659 = vmatpush.msra.mxu0 0.0
      %3660 = vmatpush.msra.mxu0 0.0
      %3661 = vmatpush.msra.mxu0 0.0
      %3662 = vmatpush.msra.mxu0 0.0
      %3663 = vmatpush.msra.mxu0 0.0
      %3664 = vmatpush.msra.mxu0 0.0
      %3665 = vmatpush.msra.mxu0 0.0
      %3666 = vmatpush.msra.mxu0 0.0
      %3667 = vmatpush.msra.mxu0 0.0
      %3668 = vmatpush.msra.mxu0 0.0
      %3669 = vmatpush.msra.mxu0 %v3632
      %3670 = vmatmul.f32.gmra.mxu0 %v3626
      %v3671 = vpop.f32.mrf.mxu0
      %v3672 = vadd.f32 %v3623, %v3671
      %3673 = vdwg.mxu0
      %v3674 = vld [vmem:[#allocation2] sm:$0xff]
      %v3675 = vld [vmem:[#allocation2 + $0x8] sm:$0xf]
      %3678 = vst [vmem:[#allocation1] ss:$2 sm:$0xff] %v3674
      %s3679 = scalar_lea.vmem [#allocation1], 16
      %3680 = vst [vmem:[%s3679] ss:$2 sm:$0xff] %v3675
      %v3681 = vld.sshfl [vmem:[#allocation1] sm:$0xff pattern:$0x75316420]
      %v3682 = vld.sshfl [vmem:[#allocation1 + $0x8] sm:$0xff pattern:$0x75316420]
      %v3683 = vld.sshfl [vmem:[#allocation1 + $0x10] sm:$0xff pattern:$0x75316420]
      %3684 = vrot.lane.b32.xlu0 %v3681, 15
      %v3685 = vpop.permute.xlu0 %3684
      %3686 = vrot.lane.b32.xlu0 %v3682, 15
      %v3687 = vpop.permute.xlu0 %3686
      %3688 = vrot.lane.b32.xlu0 %v3683, 15
      %v3689 = vpop.permute.xlu0 %3688
      %v3690 = vsel %vm595, %v3685, %v3687
      %v3691 = vsel %vm595, %v3687, %v3689
      %v3694 = vsel %vm579, %v3690, 0.0
      %v3695 = vsel %vm580, %v3691, 0.0
      %s3696 = scalar_lea.vmem %s3, 152
      %v3697 = vld [vmem:[%s3696] sm:$0xf]
      %v3699 = vsel %vm478, %v3697, 0
      %v3702 = vsel %vm425, %v3694, 0
      %v3705 = vsel %vm425, %v3695, 0
      %3707 = vmatpush.msra.mxu0 0.0
      %3708 = vmatpush.msra.mxu0 0.0
      %3709 = vmatpush.msra.mxu0 0.0
      %3710 = vmatpush.msra.mxu0 0.0
      %3711 = vmatpush.msra.mxu0 0.0
      %3712 = vmatpush.msra.mxu0 0.0
      %3713 = vmatpush.msra.mxu0 0.0
      %3714 = vmatpush.msra.mxu0 0.0
      %3715 = vmatpush.msra.mxu0 0.0
      %3716 = vmatpush.msra.mxu0 0.0
      %3717 = vmatpush.msra.mxu0 0.0
      %3718 = vmatpush.msra.mxu0 0.0
      %3719 = vmatpush.msra.mxu0 0.0
      %3720 = vmatpush.msra.mxu0 0.0
      %3721 = vmatpush.msra.mxu0 0.0
      %3722 = vmatpush.msra.mxu0 %v3702
      %3723 = vmatmul.f32.gmra.mxu0 %v3699
      %v3724 = vpop.f32.mrf.mxu0
      %v3725 = vadd.f32 0.0, %v3724
      %3726 = vdwg.mxu0
      %3727 = vmatpush.msra.mxu0 0.0
      %3728 = vmatpush.msra.mxu0 0.0
      %3729 = vmatpush.msra.mxu0 0.0
      %3730 = vmatpush.msra.mxu0 0.0
      %3731 = vmatpush.msra.mxu0 0.0
      %3732 = vmatpush.msra.mxu0 0.0
      %3733 = vmatpush.msra.mxu0 0.0
      %3734 = vmatpush.msra.mxu0 0.0
      %3735 = vmatpush.msra.mxu0 0.0
      %3736 = vmatpush.msra.mxu0 0.0
      %3737 = vmatpush.msra.mxu0 0.0
      %3738 = vmatpush.msra.mxu0 0.0
      %3739 = vmatpush.msra.mxu0 0.0
      %3740 = vmatpush.msra.mxu0 0.0
      %3741 = vmatpush.msra.mxu0 0.0
      %3742 = vmatpush.msra.mxu0 %v3705
      %3743 = vmatmul.f32.gmra.mxu0 %v3699
      %v3744 = vpop.f32.mrf.mxu0
      %v3745 = vadd.f32 0.0, %v3744
      %3746 = vdwg.mxu0
      %v3747 = vadd.f32 %v3652, %v3725
      %v3748 = vadd.f32 %v3672, %v3745
      %v3749 = vld [vmem:[#allocation2] sm:$0xff]
      %v3750 = vld [vmem:[#allocation2 + $0x8] sm:$0xf]
      %3753 = vst [vmem:[#allocation1] ss:$2 sm:$0xff] %v3749
      %s3754 = scalar_lea.vmem [#allocation1], 16
      %3755 = vst [vmem:[%s3754] ss:$2 sm:$0xff] %v3750
      %v3756 = vld.sshfl [vmem:[#allocation1] sm:$0xff pattern:$0x75316420]
      %v3757 = vld.sshfl [vmem:[#allocation1 + $0x8] sm:$0xff pattern:$0x75316420]
      %v3758 = vld.sshfl [vmem:[#allocation1 + $0x10] sm:$0xff pattern:$0x75316420]
      %3759 = vrot.lane.b32.xlu0 %v3756, 1
      %v3760 = vpop.permute.xlu0 %3759
      %3761 = vrot.lane.b32.xlu0 %v3757, 1
      %v3762 = vpop.permute.xlu0 %3761
      %3763 = vrot.lane.b32.xlu0 %v3758, 1
      %v3764 = vpop.permute.xlu0 %3763
      %v3765 = vsel %vm671, %v3760, %v3762
      %v3766 = vsel %vm671, %v3762, %v3764
      %v3769 = vsel %vm433, %v3765, 0.0
      %v3770 = vsel %vm434, %v3766, 0.0
      %s3771 = scalar_lea.vmem %s3, 156
      %v3772 = vld [vmem:[%s3771] sm:$0xf]
      %v3774 = vsel %vm478, %v3772, 0
      %v3777 = vsel %vm425, %v3769, 0
      %v3780 = vsel %vm425, %v3770, 0
      %3782 = vmatpush.msra.mxu0 0.0
      %3783 = vmatpush.msra.mxu0 0.0
      %3784 = vmatpush.msra.mxu0 0.0
      %3785 = vmatpush.msra.mxu0 0.0
      %3786 = vmatpush.msra.mxu0 0.0
      %3787 = vmatpush.msra.mxu0 0.0
      %3788 = vmatpush.msra.mxu0 0.0
      %3789 = vmatpush.msra.mxu0 0.0
      %3790 = vmatpush.msra.mxu0 0.0
      %3791 = vmatpush.msra.mxu0 0.0
      %3792 = vmatpush.msra.mxu0 0.0
      %3793 = vmatpush.msra.mxu0 0.0
      %3794 = vmatpush.msra.mxu0 0.0
      %3795 = vmatpush.msra.mxu0 0.0
      %3796 = vmatpush.msra.mxu0 0.0
      %3797 = vmatpush.msra.mxu0 %v3777
      %3798 = vmatmul.f32.gmra.mxu0 %v3774
      %v3799 = vpop.f32.mrf.mxu0
      %v3800 = vadd.f32 0.0, %v3799
      %3801 = vdwg.mxu0
      %3802 = vmatpush.msra.mxu0 0.0
      %3803 = vmatpush.msra.mxu0 0.0
      %3804 = vmatpush.msra.mxu0 0.0
      %3805 = vmatpush.msra.mxu0 0.0
      %3806 = vmatpush.msra.mxu0 0.0
      %3807 = vmatpush.msra.mxu0 0.0
      %3808 = vmatpush.msra.mxu0 0.0
      %3809 = vmatpush.msra.mxu0 0.0
      %3810 = vmatpush.msra.mxu0 0.0
      %3811 = vmatpush.msra.mxu0 0.0
      %3812 = vmatpush.msra.mxu0 0.0
      %3813 = vmatpush.msra.mxu0 0.0
      %3814 = vmatpush.msra.mxu0 0.0
      %3815 = vmatpush.msra.mxu0 0.0
      %3816 = vmatpush.msra.mxu0 0.0
      %3817 = vmatpush.msra.mxu0 %v3780
      %3818 = vmatmul.f32.gmra.mxu0 %v3774
      %v3819 = vpop.f32.mrf.mxu0
      %v3820 = vadd.f32 0.0, %v3819
      %3821 = vdwg.mxu0
      %v3822 = vadd.f32 %v3747, %v3800
      %v3823 = vadd.f32 %v3748, %v3820
      %v3824 = vld [vmem:[#allocation2 + $0x4] sm:$0xff]
      %s3825 = scalar_lea.vmem %s3, 160
      %v3826 = vld [vmem:[%s3825] sm:$0xf]
      %3828 = vst [vmem:[#allocation1] ss:$2 sm:$0xff] %v3824
      %v3829 = vld.sshfl [vmem:[#allocation1] sm:$0xff pattern:$0x75316420]
      %v3830 = vld.sshfl [vmem:[#allocation1 + $0x8] sm:$0xff pattern:$0x75316420]
      %v3832 = vsel %vm478, %v3826, 0
      %v3834 = vsel %vm425, %v3829, 0
      %v3836 = vsel %vm425, %v3830, 0
      %3838 = vmatpush.msra.mxu0 0.0
      %3839 = vmatpush.msra.mxu0 0.0
      %3840 = vmatpush.msra.mxu0 0.0
      %3841 = vmatpush.msra.mxu0 0.0
      %3842 = vmatpush.msra.mxu0 0.0
      %3843 = vmatpush.msra.mxu0 0.0
      %3844 = vmatpush.msra.mxu0 0.0
      %3845 = vmatpush.msra.mxu0 0.0
      %3846 = vmatpush.msra.mxu0 0.0
      %3847 = vmatpush.msra.mxu0 0.0
      %3848 = vmatpush.msra.mxu0 0.0
      %3849 = vmatpush.msra.mxu0 0.0
      %3850 = vmatpush.msra.mxu0 0.0
      %3851 = vmatpush.msra.mxu0 0.0
      %3852 = vmatpush.msra.mxu0 0.0
      %3853 = vmatpush.msra.mxu0 %v3834
      %3854 = vmatmul.f32.gmra.mxu0 %v3832
      %v3855 = vpop.f32.mrf.mxu0
      %v3856 = vadd.f32 0.0, %v3855
      %3857 = vdwg.mxu0
      %3858 = vmatpush.msra.mxu0 0.0
      %3859 = vmatpush.msra.mxu0 0.0
      %3860 = vmatpush.msra.mxu0 0.0
      %3861 = vmatpush.msra.mxu0 0.0
      %3862 = vmatpush.msra.mxu0 0.0
      %3863 = vmatpush.msra.mxu0 0.0
      %3864 = vmatpush.msra.mxu0 0.0
      %3865 = vmatpush.msra.mxu0 0.0
      %3866 = vmatpush.msra.mxu0 0.0
      %3867 = vmatpush.msra.mxu0 0.0
      %3868 = vmatpush.msra.mxu0 0.0
      %3869 = vmatpush.msra.mxu0 0.0
      %3870 = vmatpush.msra.mxu0 0.0
      %3871 = vmatpush.msra.mxu0 0.0
      %3872 = vmatpush.msra.mxu0 0.0
      %3873 = vmatpush.msra.mxu0 %v3836
      %3874 = vmatmul.f32.gmra.mxu0 %v3832
      %v3875 = vpop.f32.mrf.mxu0
      %v3876 = vadd.f32 0.0, %v3875
      %3877 = vdwg.mxu0
      %v3878 = vadd.f32 %v3822, %v3856
      %v3879 = vadd.f32 %v3823, %v3876
      %v3880 = vld [vmem:[#allocation2 + $0x4] sm:$0xff]
      %v3881 = vld [vmem:[#allocation2 + $0xc] sm:$0xf]
      %3884 = vst [vmem:[#allocation1] ss:$2 sm:$0xff] %v3880
      %s3885 = scalar_lea.vmem [#allocation1], 16
      %3886 = vst [vmem:[%s3885] ss:$2 sm:$0xff] %v3881
      %v3887 = vld.sshfl [vmem:[#allocation1] sm:$0xff pattern:$0x75316420]
      %v3888 = vld.sshfl [vmem:[#allocation1 + $0x8] sm:$0xff pattern:$0x75316420]
      %v3889 = vld.sshfl [vmem:[#allocation1 + $0x10] sm:$0xff pattern:$0x75316420]
      %3890 = vrot.lane.b32.xlu0 %v3887, 127
      %v3891 = vpop.permute.xlu0 %3890
      %3892 = vrot.lane.b32.xlu0 %v3888, 127
      %v3893 = vpop.permute.xlu0 %3892
      %3894 = vrot.lane.b32.xlu0 %v3889, 127
      %v3895 = vpop.permute.xlu0 %3894
      %v3896 = vsel %vm803, %v3891, %v3893
      %v3897 = vsel %vm803, %v3893, %v3895
      %v3900 = vsel %vm579, %v3896, 0.0
      %v3901 = vsel %vm580, %v3897, 0.0
      %s3902 = scalar_lea.vmem %s3, 164
      %v3903 = vld [vmem:[%s3902] sm:$0xf]
      %v3905 = vsel %vm478, %v3903, 0
      %v3908 = vsel %vm425, %v3900, 0
      %v3911 = vsel %vm425, %v3901, 0
      %3913 = vmatpush.msra.mxu0 0.0
      %3914 = vmatpush.msra.mxu0 0.0
      %3915 = vmatpush.msra.mxu0 0.0
      %3916 = vmatpush.msra.mxu0 0.0
      %3917 = vmatpush.msra.mxu0 0.0
      %3918 = vmatpush.msra.mxu0 0.0
      %3919 = vmatpush.msra.mxu0 0.0
      %3920 = vmatpush.msra.mxu0 0.0
      %3921 = vmatpush.msra.mxu0 0.0
      %3922 = vmatpush.msra.mxu0 0.0
      %3923 = vmatpush.msra.mxu0 0.0
      %3924 = vmatpush.msra.mxu0 0.0
      %3925 = vmatpush.msra.mxu0 0.0
      %3926 = vmatpush.msra.mxu0 0.0
      %3927 = vmatpush.msra.mxu0 0.0
      %3928 = vmatpush.msra.mxu0 %v3908
      %3929 = vmatmul.f32.gmra.mxu0 %v3905
      %v3930 = vpop.f32.mrf.mxu0
      %v3931 = vadd.f32 0.0, %v3930
      %3932 = vdwg.mxu0
      %3933 = vmatpush.msra.mxu0 0.0
      %3934 = vmatpush.msra.mxu0 0.0
      %3935 = vmatpush.msra.mxu0 0.0
      %3936 = vmatpush.msra.mxu0 0.0
      %3937 = vmatpush.msra.mxu0 0.0
      %3938 = vmatpush.msra.mxu0 0.0
      %3939 = vmatpush.msra.mxu0 0.0
      %3940 = vmatpush.msra.mxu0 0.0
      %3941 = vmatpush.msra.mxu0 0.0
      %3942 = vmatpush.msra.mxu0 0.0
      %3943 = vmatpush.msra.mxu0 0.0
      %3944 = vmatpush.msra.mxu0 0.0
      %3945 = vmatpush.msra.mxu0 0.0
      %3946 = vmatpush.msra.mxu0 0.0
      %3947 = vmatpush.msra.mxu0 0.0
      %3948 = vmatpush.msra.mxu0 %v3911
      %3949 = vmatmul.f32.gmra.mxu0 %v3905
      %v3950 = vpop.f32.mrf.mxu0
      %v3951 = vadd.f32 0.0, %v3950
      %3952 = vdwg.mxu0
      %v3953 = vadd.f32 %v3878, %v3931
      %v3954 = vadd.f32 %v3879, %v3951
      %v3955 = vld [vmem:[#allocation2 + $0x4] sm:$0xff]
      %v3956 = vld [vmem:[#allocation2 + $0xc] sm:$0xf]
      %3959 = vst [vmem:[#allocation1] ss:$2 sm:$0xff] %v3955
      %s3960 = scalar_lea.vmem [#allocation1], 16
      %3961 = vst [vmem:[%s3960] ss:$2 sm:$0xff] %v3956
      %v3962 = vld.sshfl [vmem:[#allocation1] sm:$0xff pattern:$0x75316420]
      %v3963 = vld.sshfl [vmem:[#allocation1 + $0x8] sm:$0xff pattern:$0x75316420]
      %v3964 = vld.sshfl [vmem:[#allocation1 + $0x10] sm:$0xff pattern:$0x75316420]
      %3965 = vrot.lane.b32.xlu0 %v3962, 113
      %v3966 = vpop.permute.xlu0 %3965
      %3967 = vrot.lane.b32.xlu0 %v3963, 113
      %v3968 = vpop.permute.xlu0 %3967
      %3969 = vrot.lane.b32.xlu0 %v3964, 113
      %v3970 = vpop.permute.xlu0 %3969
      %v3971 = vsel %vm879, %v3966, %v3968
      %v3972 = vsel %vm879, %v3968, %v3970
      %v3975 = vsel %vm433, %v3971, 0.0
      %v3976 = vsel %vm434, %v3972, 0.0
      %s3977 = scalar_lea.vmem %s3, 168
      %v3978 = vld [vmem:[%s3977] sm:$0xf]
      %v3980 = vsel %vm478, %v3978, 0
      %v3983 = vsel %vm425, %v3975, 0
      %v3986 = vsel %vm425, %v3976, 0
      %3988 = vmatpush.msra.mxu0 0.0
      %3989 = vmatpush.msra.mxu0 0.0
      %3990 = vmatpush.msra.mxu0 0.0
      %3991 = vmatpush.msra.mxu0 0.0
      %3992 = vmatpush.msra.mxu0 0.0
      %3993 = vmatpush.msra.mxu0 0.0
      %3994 = vmatpush.msra.mxu0 0.0
      %3995 = vmatpush.msra.mxu0 0.0
      %3996 = vmatpush.msra.mxu0 0.0
      %3997 = vmatpush.msra.mxu0 0.0
      %3998 = vmatpush.msra.mxu0 0.0
      %3999 = vmatpush.msra.mxu0 0.0
      %4000 = vmatpush.msra.mxu0 0.0
      %4001 = vmatpush.msra.mxu0 0.0
      %4002 = vmatpush.msra.mxu0 0.0
      %4003 = vmatpush.msra.mxu0 %v3983
      %4004 = vmatmul.f32.gmra.mxu0 %v3980
      %v4005 = vpop.f32.mrf.mxu0
      %v4006 = vadd.f32 0.0, %v4005
      %4007 = vdwg.mxu0
      %4008 = vmatpush.msra.mxu0 0.0
      %4009 = vmatpush.msra.mxu0 0.0
      %4010 = vmatpush.msra.mxu0 0.0
      %4011 = vmatpush.msra.mxu0 0.0
      %4012 = vmatpush.msra.mxu0 0.0
      %4013 = vmatpush.msra.mxu0 0.0
      %4014 = vmatpush.msra.mxu0 0.0
      %4015 = vmatpush.msra.mxu0 0.0
      %4016 = vmatpush.msra.mxu0 0.0
      %4017 = vmatpush.msra.mxu0 0.0
      %4018 = vmatpush.msra.mxu0 0.0
      %4019 = vmatpush.msra.mxu0 0.0
      %4020 = vmatpush.msra.mxu0 0.0
      %4021 = vmatpush.msra.mxu0 0.0
      %4022 = vmatpush.msra.mxu0 0.0
      %4023 = vmatpush.msra.mxu0 %v3986
      %4024 = vmatmul.f32.gmra.mxu0 %v3980
      %v4025 = vpop.f32.mrf.mxu0
      %v4026 = vadd.f32 0.0, %v4025
      %4027 = vdwg.mxu0
      %v4028 = vadd.f32 %v3953, %v4006
      %v4029 = vadd.f32 %v3954, %v4026
      %v4030 = vld [vmem:[#allocation2 + $0x4] sm:$0xff]
      %v4031 = vld [vmem:[#allocation2 + $0xc] sm:$0xf]
      %s4032 = scalar_lea.vmem %s3, 172
      %v4033 = vld [vmem:[%s4032] sm:$0xf]
      %4036 = vst [vmem:[#allocation1] ss:$2 sm:$0xff] %v4030
      %s4037 = scalar_lea.vmem [#allocation1], 16
      %4038 = vst [vmem:[%s4037] ss:$2 sm:$0xff] %v4031
      %v4039 = vld.sshfl [vmem:[#allocation1] sm:$0xff pattern:$0x75316420]
      %v4040 = vld.sshfl [vmem:[#allocation1 + $0x8] sm:$0xff pattern:$0x75316420]
      %v4041 = vld.sshfl [vmem:[#allocation1 + $0x10] sm:$0xff pattern:$0x75316420]
      %4042 = vrot.lane.b32.xlu0 %v4039, 112
      %v4043 = vpop.permute.xlu0 %4042
      %4044 = vrot.lane.b32.xlu0 %v4040, 112
      %v4045 = vpop.permute.xlu0 %4044
      %4046 = vrot.lane.b32.xlu0 %v4041, 112
      %v4047 = vpop.permute.xlu0 %4046
      %v4048 = vsel %vm957, %v4043, %v4045
      %v4049 = vsel %vm957, %v4045, %v4047
      %v4051 = vsel %vm478, %v4033, 0
      %v4053 = vsel %vm425, %v4048, 0
      %v4055 = vsel %vm425, %v4049, 0
      %4057 = vmatpush.msra.mxu0 0.0
      %4058 = vmatpush.msra.mxu0 0.0
      %4059 = vmatpush.msra.mxu0 0.0
      %4060 = vmatpush.msra.mxu0 0.0
      %4061 = vmatpush.msra.mxu0 0.0
      %4062 = vmatpush.msra.mxu0 0.0
      %4063 = vmatpush.msra.mxu0 0.0
      %4064 = vmatpush.msra.mxu0 0.0
      %4065 = vmatpush.msra.mxu0 0.0
      %4066 = vmatpush.msra.mxu0 0.0
      %4067 = vmatpush.msra.mxu0 0.0
      %4068 = vmatpush.msra.mxu0 0.0
      %4069 = vmatpush.msra.mxu0 0.0
      %4070 = vmatpush.msra.mxu0 0.0
      %4071 = vmatpush.msra.mxu0 0.0
      %4072 = vmatpush.msra.mxu0 %v4053
      %4073 = vmatmul.f32.gmra.mxu0 %v4051
      %v4074 = vpop.f32.mrf.mxu0
      %v4075 = vadd.f32 0.0, %v4074
      %4076 = vdwg.mxu0
      %4077 = vmatpush.msra.mxu0 0.0
      %4078 = vmatpush.msra.mxu0 0.0
      %4079 = vmatpush.msra.mxu0 0.0
      %4080 = vmatpush.msra.mxu0 0.0
      %4081 = vmatpush.msra.mxu0 0.0
      %4082 = vmatpush.msra.mxu0 0.0
      %4083 = vmatpush.msra.mxu0 0.0
      %4084 = vmatpush.msra.mxu0 0.0
      %4085 = vmatpush.msra.mxu0 0.0
      %4086 = vmatpush.msra.mxu0 0.0
      %4087 = vmatpush.msra.mxu0 0.0
      %4088 = vmatpush.msra.mxu0 0.0
      %4089 = vmatpush.msra.mxu0 0.0
      %4090 = vmatpush.msra.mxu0 0.0
      %4091 = vmatpush.msra.mxu0 0.0
      %4092 = vmatpush.msra.mxu0 %v4055
      %4093 = vmatmul.f32.gmra.mxu0 %v4051
      %v4094 = vpop.f32.mrf.mxu0
      %v4095 = vadd.f32 0.0, %v4094
      %4096 = vdwg.mxu0
      %v4097 = vadd.f32 %v4028, %v4075
      %v4098 = vadd.f32 %v4029, %v4095
      %v4099 = vld [vmem:[#allocation2 + $0x4] sm:$0xff]
      %v4100 = vld [vmem:[#allocation2 + $0xc] sm:$0xf]
      %4103 = vst [vmem:[#allocation1] ss:$2 sm:$0xff] %v4099
      %s4104 = scalar_lea.vmem [#allocation1], 16
      %4105 = vst [vmem:[%s4104] ss:$2 sm:$0xff] %v4100
      %v4106 = vld.sshfl [vmem:[#allocation1] sm:$0xff pattern:$0x75316420]
      %v4107 = vld.sshfl [vmem:[#allocation1 + $0x8] sm:$0xff pattern:$0x75316420]
      %v4108 = vld.sshfl [vmem:[#allocation1 + $0x10] sm:$0xff pattern:$0x75316420]
      %4109 = vrot.lane.b32.xlu0 %v4106, 111
      %v4110 = vpop.permute.xlu0 %4109
      %4111 = vrot.lane.b32.xlu0 %v4107, 111
      %v4112 = vpop.permute.xlu0 %4111
      %4113 = vrot.lane.b32.xlu0 %v4108, 111
      %v4114 = vpop.permute.xlu0 %4113
      %v4115 = vsel %vm1025, %v4110, %v4112
      %v4116 = vsel %vm1025, %v4112, %v4114
      %v4119 = vsel %vm579, %v4115, 0.0
      %v4120 = vsel %vm580, %v4116, 0.0
      %s4121 = scalar_lea.vmem %s3, 176
      %v4122 = vld [vmem:[%s4121] sm:$0xf]
      %v4124 = vsel %vm478, %v4122, 0
      %v4127 = vsel %vm425, %v4119, 0
      %v4130 = vsel %vm425, %v4120, 0
      %4132 = vmatpush.msra.mxu0 0.0
      %4133 = vmatpush.msra.mxu0 0.0
      %4134 = vmatpush.msra.mxu0 0.0
      %4135 = vmatpush.msra.mxu0 0.0
      %4136 = vmatpush.msra.mxu0 0.0
      %4137 = vmatpush.msra.mxu0 0.0
      %4138 = vmatpush.msra.mxu0 0.0
      %4139 = vmatpush.msra.mxu0 0.0
      %4140 = vmatpush.msra.mxu0 0.0
      %4141 = vmatpush.msra.mxu0 0.0
      %4142 = vmatpush.msra.mxu0 0.0
      %4143 = vmatpush.msra.mxu0 0.0
      %4144 = vmatpush.msra.mxu0 0.0
      %4145 = vmatpush.msra.mxu0 0.0
      %4146 = vmatpush.msra.mxu0 0.0
      %4147 = vmatpush.msra.mxu0 %v4127
      %4148 = vmatmul.f32.gmra.mxu0 %v4124
      %v4149 = vpop.f32.mrf.mxu0
      %v4150 = vadd.f32 0.0, %v4149
      %4151 = vdwg.mxu0
      %4152 = vmatpush.msra.mxu0 0.0
      %4153 = vmatpush.msra.mxu0 0.0
      %4154 = vmatpush.msra.mxu0 0.0
      %4155 = vmatpush.msra.mxu0 0.0
      %4156 = vmatpush.msra.mxu0 0.0
      %4157 = vmatpush.msra.mxu0 0.0
      %4158 = vmatpush.msra.mxu0 0.0
      %4159 = vmatpush.msra.mxu0 0.0
      %4160 = vmatpush.msra.mxu0 0.0
      %4161 = vmatpush.msra.mxu0 0.0
      %4162 = vmatpush.msra.mxu0 0.0
      %4163 = vmatpush.msra.mxu0 0.0
      %4164 = vmatpush.msra.mxu0 0.0
      %4165 = vmatpush.msra.mxu0 0.0
      %4166 = vmatpush.msra.mxu0 0.0
      %4167 = vmatpush.msra.mxu0 %v4130
      %4168 = vmatmul.f32.gmra.mxu0 %v4124
      %v4169 = vpop.f32.mrf.mxu0
      %v4170 = vadd.f32 0.0, %v4169
      %4171 = vdwg.mxu0
      %v4172 = vadd.f32 %v4097, %v4150
      %v4173 = vadd.f32 %v4098, %v4170
      %s4174 = scalar_lea.vmem %s4, 16
      %v4175 = vld [vmem:[%s4174] sm:$0xf]
      %4177 = vset.pattern.permute.xlu0 0
      %4178 = vperm.xlu0 %4177, %v4175
      %v4179 = vpop.permute.xlu0 %4178
      %v4181 = vadd.f32 %v4172, %v4179
      %v4182 = vadd.f32 %v4173, %v4179
      %v4183 = vmax.f32 %v4181, 0.0
      %v4184 = vmax.f32 %v4182, 0.0
      %s4185 = scalar_lea.vmem %s5, 32
      %v4186 = vld [vmem:[%s4185] sm:$0xff]
      %s4187 = scalar_lea.vmem %s6, 32
      %v4188 = vld [vmem:[%s4187] sm:$0xff]
      %4190 = vset.pattern.permute.xlu0 0
      %4191 = vperm.xlu0 %4190, %v4188
      %v4192 = vpop.permute.xlu0 %4191
      %v4195 = vsel %vm478, %v4186, 0
      %v4198 = vsel %vm425, %v4183, 0
      %v4201 = vsel %vm425, %v4184, 0
      %4203 = vmatpush.msra.mxu0 0.0
      %4204 = vmatpush.msra.mxu0 0.0
      %4205 = vmatpush.msra.mxu0 0.0
      %4206 = vmatpush.msra.mxu0 0.0
      %4207 = vmatpush.msra.mxu0 0.0
      %4208 = vmatpush.msra.mxu0 0.0
      %4209 = vmatpush.msra.mxu0 0.0
      %4210 = vmatpush.msra.mxu0 0.0
      %4211 = vmatpush.msra.mxu0 0.0
      %4212 = vmatpush.msra.mxu0 0.0
      %4213 = vmatpush.msra.mxu0 0.0
      %4214 = vmatpush.msra.mxu0 0.0
      %4215 = vmatpush.msra.mxu0 0.0
      %4216 = vmatpush.msra.mxu0 0.0
      %4217 = vmatpush.msra.mxu0 0.0
      %4218 = vmatpush.msra.mxu0 %v4198
      %4219 = vmatmul.f32.gmra.mxu0 %v4195
      %v4220 = vpop.f32.mrf.mxu0
      %v4221 = vadd.f32 %v4192, %v4220
      %4222 = vdwg.mxu0
      %4223 = vmatpush.msra.mxu0 0.0
      %4224 = vmatpush.msra.mxu0 0.0
      %4225 = vmatpush.msra.mxu0 0.0
      %4226 = vmatpush.msra.mxu0 0.0
      %4227 = vmatpush.msra.mxu0 0.0
      %4228 = vmatpush.msra.mxu0 0.0
      %4229 = vmatpush.msra.mxu0 0.0
      %4230 = vmatpush.msra.mxu0 0.0
      %4231 = vmatpush.msra.mxu0 0.0
      %4232 = vmatpush.msra.mxu0 0.0
      %4233 = vmatpush.msra.mxu0 0.0
      %4234 = vmatpush.msra.mxu0 0.0
      %4235 = vmatpush.msra.mxu0 0.0
      %4236 = vmatpush.msra.mxu0 0.0
      %4237 = vmatpush.msra.mxu0 0.0
      %4238 = vmatpush.msra.mxu0 %v4201
      %4239 = vmatmul.f32.gmra.mxu0 %v4195
      %v4240 = vpop.f32.mrf.mxu0
      %v4241 = vadd.f32 %v4192, %v4240
      %4242 = vdwg.mxu0
      %v4243 = vadd.f32 %v4221, %v3472
      %v4244 = vadd.f32 %v4241, %v3473
      %v4245 = vmax.f32 %v4243, 0.0
      %v4246 = vmax.f32 %v4244, 0.0
      %s4247 = scalar_lea.vmem %s1, 20
      %v4248 = vld [vmem:[%s4247] sm:$0xf]
      %s4249 = scalar_lea.vmem %s2, 20
      %v4250 = vld [vmem:[%s4249] sm:$0xf]
      %4252 = vset.pattern.permute.xlu0 0
      %4253 = vperm.xlu0 %4252, %v4250
      %v4254 = vpop.permute.xlu0 %4253
      %v4257 = vsel %vm376, %v4248, 0
      %4259 = vmatpush.msra.mxu0 0.0
      %4260 = vmatpush.msra.mxu0 0.0
      %4261 = vmatpush.msra.mxu0 0.0
      %4262 = vmatpush.msra.mxu0 0.0
      %4263 = vmatpush.msra.mxu0 0.0
      %4264 = vmatpush.msra.mxu0 0.0
      %4265 = vmatpush.msra.mxu0 0.0
      %4266 = vmatpush.msra.mxu0 0.0
      %4267 = vmatpush.msra.mxu0 0.0
      %4268 = vmatpush.msra.mxu0 0.0
      %4269 = vmatpush.msra.mxu0 0.0
      %4270 = vmatpush.msra.mxu0 0.0
      %4271 = vmatpush.msra.mxu0 0.0
      %4272 = vmatpush.msra.mxu0 0.0
      %4273 = vmatpush.msra.mxu0 0.0
      %4274 = vmatpush.msra.mxu0 %v4245
      %4275 = vmatmul.f32.gmra.mxu0 %v4257
      %v4276 = vpop.f32.mrf.mxu0
      %v4277 = vadd.f32 %v4254, %v4276
      %4278 = vdwg.mxu0
      %4279 = vmatpush.msra.mxu0 0.0
      %4280 = vmatpush.msra.mxu0 0.0
      %4281 = vmatpush.msra.mxu0 0.0
      %4282 = vmatpush.msra.mxu0 0.0
      %4283 = vmatpush.msra.mxu0 0.0
      %4284 = vmatpush.msra.mxu0 0.0
      %4285 = vmatpush.msra.mxu0 0.0
      %4286 = vmatpush.msra.mxu0 0.0
      %4287 = vmatpush.msra.mxu0 0.0
      %4288 = vmatpush.msra.mxu0 0.0
      %4289 = vmatpush.msra.mxu0 0.0
      %4290 = vmatpush.msra.mxu0 0.0
      %4291 = vmatpush.msra.mxu0 0.0
      %4292 = vmatpush.msra.mxu0 0.0
      %4293 = vmatpush.msra.mxu0 0.0
      %4294 = vmatpush.msra.mxu0 %v4246
      %4295 = vmatmul.f32.gmra.mxu0 %v4257
      %v4296 = vpop.f32.mrf.mxu0
      %v4297 = vadd.f32 %v4254, %v4296
      %4298 = vdwg.mxu0
      %v4299 = vmax.f32 %v4277, 0.0
      %v4300 = vmax.f32 %v4297, 0.0
      %v4303 = vrot.slane %v4300, 4
      %v4304 = vsel %vm425, %v4299, %v4303
      %4306 = vst [vmem:[#allocation2 + $0x4] sm:$0xff] %v4304
      %v4307 = vld [vmem:[#allocation2] sm:$0xff]
      %v4308 = vld [vmem:[#allocation2 + $0x8] sm:$0xf]
      %4311 = vst [vmem:[#allocation1] ss:$2 sm:$0xff] %v4307
      %s4312 = scalar_lea.vmem [#allocation1], 16
      %4313 = vst [vmem:[%s4312] ss:$2 sm:$0xff] %v4308
      %v4314 = vld.sshfl [vmem:[#allocation1] sm:$0xff pattern:$0x75316420]
      %v4315 = vld.sshfl [vmem:[#allocation1 + $0x8] sm:$0xff pattern:$0x75316420]
      %v4316 = vld.sshfl [vmem:[#allocation1 + $0x10] sm:$0xff pattern:$0x75316420]
      %4317 = vrot.lane.b32.xlu0 %v4314, 17
      %v4318 = vpop.permute.xlu0 %4317
      %4319 = vrot.lane.b32.xlu0 %v4315, 17
      %v4320 = vpop.permute.xlu0 %4319
      %4321 = vrot.lane.b32.xlu0 %v4316, 17
      %v4322 = vpop.permute.xlu0 %4321
      %v4323 = vsel %vm449, %v4318, %v4320
      %v4324 = vsel %vm449, %v4320, %v4322
      %v4327 = vsel %vm433, %v4323, 0.0
      %v4328 = vsel %vm434, %v4324, 0.0
      %s4329 = scalar_lea.vmem %s3, 180
      %v4330 = vld [vmem:[%s4329] sm:$0xf]
      %v4331 = vld [vmem:[#allocation2] sm:$0xff]
      %v4332 = vld [vmem:[#allocation2 + $0x8] sm:$0xf]
      %s4333 = scalar_lea.vmem %s3, 184
      %v4334 = vld [vmem:[%s4333] sm:$0xf]
      %4337 = vst [vmem:[#allocation1] ss:$2 sm:$0xff] %v4331
      %s4338 = scalar_lea.vmem [#allocation1], 16
      %4339 = vst [vmem:[%s4338] ss:$2 sm:$0xff] %v4332
      %v4340 = vld.sshfl [vmem:[#allocation1] sm:$0xff pattern:$0x75316420]
      %v4341 = vld.sshfl [vmem:[#allocation1 + $0x8] sm:$0xff pattern:$0x75316420]
      %v4342 = vld.sshfl [vmem:[#allocation1 + $0x10] sm:$0xff pattern:$0x75316420]
      %4343 = vrot.lane.b32.xlu0 %v4340, 16
      %v4344 = vpop.permute.xlu0 %4343
      %4345 = vrot.lane.b32.xlu0 %v4341, 16
      %v4346 = vpop.permute.xlu0 %4345
      %4347 = vrot.lane.b32.xlu0 %v4342, 16
      %v4348 = vpop.permute.xlu0 %4347
      %v4349 = vsel %vm475, %v4344, %v4346
      %v4350 = vsel %vm475, %v4346, %v4348
      %v4352 = vsel %vm478, %v4334, 0
      %v4354 = vsel %vm425, %v4349, 0
      %v4356 = vsel %vm425, %v4350, 0
      %4358 = vmatpush.msra.mxu0 0.0
      %4359 = vmatpush.msra.mxu0 0.0
      %4360 = vmatpush.msra.mxu0 0.0
      %4361 = vmatpush.msra.mxu0 0.0
      %4362 = vmatpush.msra.mxu0 0.0
      %4363 = vmatpush.msra.mxu0 0.0
      %4364 = vmatpush.msra.mxu0 0.0
      %4365 = vmatpush.msra.mxu0 0.0
      %4366 = vmatpush.msra.mxu0 0.0
      %4367 = vmatpush.msra.mxu0 0.0
      %4368 = vmatpush.msra.mxu0 0.0
      %4369 = vmatpush.msra.mxu0 0.0
      %4370 = vmatpush.msra.mxu0 0.0
      %4371 = vmatpush.msra.mxu0 0.0
      %4372 = vmatpush.msra.mxu0 0.0
      %4373 = vmatpush.msra.mxu0 %v4354
      %4374 = vmatmul.f32.gmra.mxu0 %v4352
      %v4375 = vpop.f32.mrf.mxu0
      %v4376 = vadd.f32 0.0, %v4375
      %4377 = vdwg.mxu0
      %4378 = vmatpush.msra.mxu0 0.0
      %4379 = vmatpush.msra.mxu0 0.0
      %4380 = vmatpush.msra.mxu0 0.0
      %4381 = vmatpush.msra.mxu0 0.0
      %4382 = vmatpush.msra.mxu0 0.0
      %4383 = vmatpush.msra.mxu0 0.0
      %4384 = vmatpush.msra.mxu0 0.0
      %4385 = vmatpush.msra.mxu0 0.0
      %4386 = vmatpush.msra.mxu0 0.0
      %4387 = vmatpush.msra.mxu0 0.0
      %4388 = vmatpush.msra.mxu0 0.0
      %4389 = vmatpush.msra.mxu0 0.0
      %4390 = vmatpush.msra.mxu0 0.0
      %4391 = vmatpush.msra.mxu0 0.0
      %4392 = vmatpush.msra.mxu0 0.0
      %4393 = vmatpush.msra.mxu0 %v4356
      %4394 = vmatmul.f32.gmra.mxu0 %v4352
      %v4395 = vpop.f32.mrf.mxu0
      %v4396 = vadd.f32 0.0, %v4395
      %4397 = vdwg.mxu0
      %v4399 = vsel %vm478, %v4330, 0
      %v4402 = vsel %vm425, %v4327, 0
      %v4405 = vsel %vm425, %v4328, 0
      %4407 = vmatpush.msra.mxu0 0.0
      %4408 = vmatpush.msra.mxu0 0.0
      %4409 = vmatpush.msra.mxu0 0.0
      %4410 = vmatpush.msra.mxu0 0.0
      %4411 = vmatpush.msra.mxu0 0.0
      %4412 = vmatpush.msra.mxu0 0.0
      %4413 = vmatpush.msra.mxu0 0.0
      %4414 = vmatpush.msra.mxu0 0.0
      %4415 = vmatpush.msra.mxu0 0.0
      %4416 = vmatpush.msra.mxu0 0.0
      %4417 = vmatpush.msra.mxu0 0.0
      %4418 = vmatpush.msra.mxu0 0.0
      %4419 = vmatpush.msra.mxu0 0.0
      %4420 = vmatpush.msra.mxu0 0.0
      %4421 = vmatpush.msra.mxu0 0.0
      %4422 = vmatpush.msra.mxu0 %v4402
      %4423 = vmatmul.f32.gmra.mxu0 %v4399
      %v4424 = vpop.f32.mrf.mxu0
      %v4425 = vadd.f32 %v4376, %v4424
      %4426 = vdwg.mxu0
      %4427 = vmatpush.msra.mxu0 0.0
      %4428 = vmatpush.msra.mxu0 0.0
      %4429 = vmatpush.msra.mxu0 0.0
      %4430 = vmatpush.msra.mxu0 0.0
      %4431 = vmatpush.msra.mxu0 0.0
      %4432 = vmatpush.msra.mxu0 0.0
      %4433 = vmatpush.msra.mxu0 0.0
      %4434 = vmatpush.msra.mxu0 0.0
      %4435 = vmatpush.msra.mxu0 0.0
      %4436 = vmatpush.msra.mxu0 0.0
      %4437 = vmatpush.msra.mxu0 0.0
      %4438 = vmatpush.msra.mxu0 0.0
      %4439 = vmatpush.msra.mxu0 0.0
      %4440 = vmatpush.msra.mxu0 0.0
      %4441 = vmatpush.msra.mxu0 0.0
      %4442 = vmatpush.msra.mxu0 %v4405
      %4443 = vmatmul.f32.gmra.mxu0 %v4399
      %v4444 = vpop.f32.mrf.mxu0
      %v4445 = vadd.f32 %v4396, %v4444
      %4446 = vdwg.mxu0
      %v4447 = vld [vmem:[#allocation2] sm:$0xff]
      %v4448 = vld [vmem:[#allocation2 + $0x8] sm:$0xf]
      %4451 = vst [vmem:[#allocation1] ss:$2 sm:$0xff] %v4447
      %s4452 = scalar_lea.vmem [#allocation1], 16
      %4453 = vst [vmem:[%s4452] ss:$2 sm:$0xff] %v4448
      %v4454 = vld.sshfl [vmem:[#allocation1] sm:$0xff pattern:$0x75316420]
      %v4455 = vld.sshfl [vmem:[#allocation1 + $0x8] sm:$0xff pattern:$0x75316420]
      %v4456 = vld.sshfl [vmem:[#allocation1 + $0x10] sm:$0xff pattern:$0x75316420]
      %4457 = vrot.lane.b32.xlu0 %v4454, 15
      %v4458 = vpop.permute.xlu0 %4457
      %4459 = vrot.lane.b32.xlu0 %v4455, 15
      %v4460 = vpop.permute.xlu0 %4459
      %4461 = vrot.lane.b32.xlu0 %v4456, 15
      %v4462 = vpop.permute.xlu0 %4461
      %v4463 = vsel %vm595, %v4458, %v4460
      %v4464 = vsel %vm595, %v4460, %v4462
      %v4467 = vsel %vm579, %v4463, 0.0
      %v4468 = vsel %vm580, %v4464, 0.0
      %s4469 = scalar_lea.vmem %s3, 188
      %v4470 = vld [vmem:[%s4469] sm:$0xf]
      %v4472 = vsel %vm478, %v4470, 0
      %v4475 = vsel %vm425, %v4467, 0
      %v4478 = vsel %vm425, %v4468, 0
      %4480 = vmatpush.msra.mxu0 0.0
      %4481 = vmatpush.msra.mxu0 0.0
      %4482 = vmatpush.msra.mxu0 0.0
      %4483 = vmatpush.msra.mxu0 0.0
      %4484 = vmatpush.msra.mxu0 0.0
      %4485 = vmatpush.msra.mxu0 0.0
      %4486 = vmatpush.msra.mxu0 0.0
      %4487 = vmatpush.msra.mxu0 0.0
      %4488 = vmatpush.msra.mxu0 0.0
      %4489 = vmatpush.msra.mxu0 0.0
      %4490 = vmatpush.msra.mxu0 0.0
      %4491 = vmatpush.msra.mxu0 0.0
      %4492 = vmatpush.msra.mxu0 0.0
      %4493 = vmatpush.msra.mxu0 0.0
      %4494 = vmatpush.msra.mxu0 0.0
      %4495 = vmatpush.msra.mxu0 %v4475
      %4496 = vmatmul.f32.gmra.mxu0 %v4472
      %v4497 = vpop.f32.mrf.mxu0
      %v4498 = vadd.f32 0.0, %v4497
      %4499 = vdwg.mxu0
      %4500 = vmatpush.msra.mxu0 0.0
      %4501 = vmatpush.msra.mxu0 0.0
      %4502 = vmatpush.msra.mxu0 0.0
      %4503 = vmatpush.msra.mxu0 0.0
      %4504 = vmatpush.msra.mxu0 0.0
      %4505 = vmatpush.msra.mxu0 0.0
      %4506 = vmatpush.msra.mxu0 0.0
      %4507 = vmatpush.msra.mxu0 0.0
      %4508 = vmatpush.msra.mxu0 0.0
      %4509 = vmatpush.msra.mxu0 0.0
      %4510 = vmatpush.msra.mxu0 0.0
      %4511 = vmatpush.msra.mxu0 0.0
      %4512 = vmatpush.msra.mxu0 0.0
      %4513 = vmatpush.msra.mxu0 0.0
      %4514 = vmatpush.msra.mxu0 0.0
      %4515 = vmatpush.msra.mxu0 %v4478
      %4516 = vmatmul.f32.gmra.mxu0 %v4472
      %v4517 = vpop.f32.mrf.mxu0
      %v4518 = vadd.f32 0.0, %v4517
      %4519 = vdwg.mxu0
      %v4520 = vadd.f32 %v4425, %v4498
      %v4521 = vadd.f32 %v4445, %v4518
      %v4522 = vld [vmem:[#allocation2] sm:$0xff]
      %v4523 = vld [vmem:[#allocation2 + $0x8] sm:$0xf]
      %4526 = vst [vmem:[#allocation1] ss:$2 sm:$0xff] %v4522
      %s4527 = scalar_lea.vmem [#allocation1], 16
      %4528 = vst [vmem:[%s4527] ss:$2 sm:$0xff] %v4523
      %v4529 = vld.sshfl [vmem:[#allocation1] sm:$0xff pattern:$0x75316420]
      %v4530 = vld.sshfl [vmem:[#allocation1 + $0x8] sm:$0xff pattern:$0x75316420]
      %v4531 = vld.sshfl [vmem:[#allocation1 + $0x10] sm:$0xff pattern:$0x75316420]
      %4532 = vrot.lane.b32.xlu0 %v4529, 1
      %v4533 = vpop.permute.xlu0 %4532
      %4534 = vrot.lane.b32.xlu0 %v4530, 1
      %v4535 = vpop.permute.xlu0 %4534
      %4536 = vrot.lane.b32.xlu0 %v4531, 1
      %v4537 = vpop.permute.xlu0 %4536
      %v4538 = vsel %vm671, %v4533, %v4535
      %v4539 = vsel %vm671, %v4535, %v4537
      %v4542 = vsel %vm433, %v4538, 0.0
      %v4543 = vsel %vm434, %v4539, 0.0
      %s4544 = scalar_lea.vmem %s3, 192
      %v4545 = vld [vmem:[%s4544] sm:$0xf]
      %v4547 = vsel %vm478, %v4545, 0
      %v4550 = vsel %vm425, %v4542, 0
      %v4553 = vsel %vm425, %v4543, 0
      %4555 = vmatpush.msra.mxu0 0.0
      %4556 = vmatpush.msra.mxu0 0.0
      %4557 = vmatpush.msra.mxu0 0.0
      %4558 = vmatpush.msra.mxu0 0.0
      %4559 = vmatpush.msra.mxu0 0.0
      %4560 = vmatpush.msra.mxu0 0.0
      %4561 = vmatpush.msra.mxu0 0.0
      %4562 = vmatpush.msra.mxu0 0.0
      %4563 = vmatpush.msra.mxu0 0.0
      %4564 = vmatpush.msra.mxu0 0.0
      %4565 = vmatpush.msra.mxu0 0.0
      %4566 = vmatpush.msra.mxu0 0.0
      %4567 = vmatpush.msra.mxu0 0.0
      %4568 = vmatpush.msra.mxu0 0.0
      %4569 = vmatpush.msra.mxu0 0.0
      %4570 = vmatpush.msra.mxu0 %v4550
      %4571 = vmatmul.f32.gmra.mxu0 %v4547
      %v4572 = vpop.f32.mrf.mxu0
      %v4573 = vadd.f32 0.0, %v4572
      %4574 = vdwg.mxu0
      %4575 = vmatpush.msra.mxu0 0.0
      %4576 = vmatpush.msra.mxu0 0.0
      %4577 = vmatpush.msra.mxu0 0.0
      %4578 = vmatpush.msra.mxu0 0.0
      %4579 = vmatpush.msra.mxu0 0.0
      %4580 = vmatpush.msra.mxu0 0.0
      %4581 = vmatpush.msra.mxu0 0.0
      %4582 = vmatpush.msra.mxu0 0.0
      %4583 = vmatpush.msra.mxu0 0.0
      %4584 = vmatpush.msra.mxu0 0.0
      %4585 = vmatpush.msra.mxu0 0.0
      %4586 = vmatpush.msra.mxu0 0.0
      %4587 = vmatpush.msra.mxu0 0.0
      %4588 = vmatpush.msra.mxu0 0.0
      %4589 = vmatpush.msra.mxu0 0.0
      %4590 = vmatpush.msra.mxu0 %v4553
      %4591 = vmatmul.f32.gmra.mxu0 %v4547
      %v4592 = vpop.f32.mrf.mxu0
      %v4593 = vadd.f32 0.0, %v4592
      %4594 = vdwg.mxu0
      %v4595 = vadd.f32 %v4520, %v4573
      %v4596 = vadd.f32 %v4521, %v4593
      %v4597 = vld [vmem:[#allocation2 + $0x4] sm:$0xff]
      %s4598 = scalar_lea.vmem %s3, 196
      %v4599 = vld [vmem:[%s4598] sm:$0xf]
      %4601 = vst [vmem:[#allocation1] ss:$2 sm:$0xff] %v4597
      %v4602 = vld.sshfl [vmem:[#allocation1] sm:$0xff pattern:$0x75316420]
      %v4603 = vld.sshfl [vmem:[#allocation1 + $0x8] sm:$0xff pattern:$0x75316420]
      %v4605 = vsel %vm478, %v4599, 0
      %v4607 = vsel %vm425, %v4602, 0
      %v4609 = vsel %vm425, %v4603, 0
      %4611 = vmatpush.msra.mxu0 0.0
      %4612 = vmatpush.msra.mxu0 0.0
      %4613 = vmatpush.msra.mxu0 0.0
      %4614 = vmatpush.msra.mxu0 0.0
      %4615 = vmatpush.msra.mxu0 0.0
      %4616 = vmatpush.msra.mxu0 0.0
      %4617 = vmatpush.msra.mxu0 0.0
      %4618 = vmatpush.msra.mxu0 0.0
      %4619 = vmatpush.msra.mxu0 0.0
      %4620 = vmatpush.msra.mxu0 0.0
      %4621 = vmatpush.msra.mxu0 0.0
      %4622 = vmatpush.msra.mxu0 0.0
      %4623 = vmatpush.msra.mxu0 0.0
      %4624 = vmatpush.msra.mxu0 0.0
      %4625 = vmatpush.msra.mxu0 0.0
      %4626 = vmatpush.msra.mxu0 %v4607
      %4627 = vmatmul.f32.gmra.mxu0 %v4605
      %v4628 = vpop.f32.mrf.mxu0
      %v4629 = vadd.f32 0.0, %v4628
      %4630 = vdwg.mxu0
      %4631 = vmatpush.msra.mxu0 0.0
      %4632 = vmatpush.msra.mxu0 0.0
      %4633 = vmatpush.msra.mxu0 0.0
      %4634 = vmatpush.msra.mxu0 0.0
      %4635 = vmatpush.msra.mxu0 0.0
      %4636 = vmatpush.msra.mxu0 0.0
      %4637 = vmatpush.msra.mxu0 0.0
      %4638 = vmatpush.msra.mxu0 0.0
      %4639 = vmatpush.msra.mxu0 0.0
      %4640 = vmatpush.msra.mxu0 0.0
      %4641 = vmatpush.msra.mxu0 0.0
      %4642 = vmatpush.msra.mxu0 0.0
      %4643 = vmatpush.msra.mxu0 0.0
      %4644 = vmatpush.msra.mxu0 0.0
      %4645 = vmatpush.msra.mxu0 0.0
      %4646 = vmatpush.msra.mxu0 %v4609
      %4647 = vmatmul.f32.gmra.mxu0 %v4605
      %v4648 = vpop.f32.mrf.mxu0
      %v4649 = vadd.f32 0.0, %v4648
      %4650 = vdwg.mxu0
      %v4651 = vadd.f32 %v4595, %v4629
      %v4652 = vadd.f32 %v4596, %v4649
      %v4653 = vld [vmem:[#allocation2 + $0x4] sm:$0xff]
      %v4654 = vld [vmem:[#allocation2 + $0xc] sm:$0xf]
      %4657 = vst [vmem:[#allocation1] ss:$2 sm:$0xff] %v4653
      %s4658 = scalar_lea.vmem [#allocation1], 16
      %4659 = vst [vmem:[%s4658] ss:$2 sm:$0xff] %v4654
      %v4660 = vld.sshfl [vmem:[#allocation1] sm:$0xff pattern:$0x75316420]
      %v4661 = vld.sshfl [vmem:[#allocation1 + $0x8] sm:$0xff pattern:$0x75316420]
      %v4662 = vld.sshfl [vmem:[#allocation1 + $0x10] sm:$0xff pattern:$0x75316420]
      %4663 = vrot.lane.b32.xlu0 %v4660, 127
      %v4664 = vpop.permute.xlu0 %4663
      %4665 = vrot.lane.b32.xlu0 %v4661, 127
      %v4666 = vpop.permute.xlu0 %4665
      %4667 = vrot.lane.b32.xlu0 %v4662, 127
      %v4668 = vpop.permute.xlu0 %4667
      %v4669 = vsel %vm803, %v4664, %v4666
      %v4670 = vsel %vm803, %v4666, %v4668
      %v4673 = vsel %vm579, %v4669, 0.0
      %v4674 = vsel %vm580, %v4670, 0.0
      %s4675 = scalar_lea.vmem %s3, 200
      %v4676 = vld [vmem:[%s4675] sm:$0xf]
      %v4678 = vsel %vm478, %v4676, 0
      %v4681 = vsel %vm425, %v4673, 0
      %v4684 = vsel %vm425, %v4674, 0
      %4686 = vmatpush.msra.mxu0 0.0
      %4687 = vmatpush.msra.mxu0 0.0
      %4688 = vmatpush.msra.mxu0 0.0
      %4689 = vmatpush.msra.mxu0 0.0
      %4690 = vmatpush.msra.mxu0 0.0
      %4691 = vmatpush.msra.mxu0 0.0
      %4692 = vmatpush.msra.mxu0 0.0
      %4693 = vmatpush.msra.mxu0 0.0
      %4694 = vmatpush.msra.mxu0 0.0
      %4695 = vmatpush.msra.mxu0 0.0
      %4696 = vmatpush.msra.mxu0 0.0
      %4697 = vmatpush.msra.mxu0 0.0
      %4698 = vmatpush.msra.mxu0 0.0
      %4699 = vmatpush.msra.mxu0 0.0
      %4700 = vmatpush.msra.mxu0 0.0
      %4701 = vmatpush.msra.mxu0 %v4681
      %4702 = vmatmul.f32.gmra.mxu0 %v4678
      %v4703 = vpop.f32.mrf.mxu0
      %v4704 = vadd.f32 0.0, %v4703
      %4705 = vdwg.mxu0
      %4706 = vmatpush.msra.mxu0 0.0
      %4707 = vmatpush.msra.mxu0 0.0
      %4708 = vmatpush.msra.mxu0 0.0
      %4709 = vmatpush.msra.mxu0 0.0
      %4710 = vmatpush.msra.mxu0 0.0
      %4711 = vmatpush.msra.mxu0 0.0
      %4712 = vmatpush.msra.mxu0 0.0
      %4713 = vmatpush.msra.mxu0 0.0
      %4714 = vmatpush.msra.mxu0 0.0
      %4715 = vmatpush.msra.mxu0 0.0
      %4716 = vmatpush.msra.mxu0 0.0
      %4717 = vmatpush.msra.mxu0 0.0
      %4718 = vmatpush.msra.mxu0 0.0
      %4719 = vmatpush.msra.mxu0 0.0
      %4720 = vmatpush.msra.mxu0 0.0
      %4721 = vmatpush.msra.mxu0 %v4684
      %4722 = vmatmul.f32.gmra.mxu0 %v4678
      %v4723 = vpop.f32.mrf.mxu0
      %v4724 = vadd.f32 0.0, %v4723
      %4725 = vdwg.mxu0
      %v4726 = vadd.f32 %v4651, %v4704
      %v4727 = vadd.f32 %v4652, %v4724
      %v4728 = vld [vmem:[#allocation2 + $0x4] sm:$0xff]
      %v4729 = vld [vmem:[#allocation2 + $0xc] sm:$0xf]
      %4732 = vst [vmem:[#allocation1] ss:$2 sm:$0xff] %v4728
      %s4733 = scalar_lea.vmem [#allocation1], 16
      %4734 = vst [vmem:[%s4733] ss:$2 sm:$0xff] %v4729
      %v4735 = vld.sshfl [vmem:[#allocation1] sm:$0xff pattern:$0x75316420]
      %v4736 = vld.sshfl [vmem:[#allocation1 + $0x8] sm:$0xff pattern:$0x75316420]
      %v4737 = vld.sshfl [vmem:[#allocation1 + $0x10] sm:$0xff pattern:$0x75316420]
      %4738 = vrot.lane.b32.xlu0 %v4735, 113
      %v4739 = vpop.permute.xlu0 %4738
      %4740 = vrot.lane.b32.xlu0 %v4736, 113
      %v4741 = vpop.permute.xlu0 %4740
      %4742 = vrot.lane.b32.xlu0 %v4737, 113
      %v4743 = vpop.permute.xlu0 %4742
      %v4744 = vsel %vm879, %v4739, %v4741
      %v4745 = vsel %vm879, %v4741, %v4743
      %v4748 = vsel %vm433, %v4744, 0.0
      %v4749 = vsel %vm434, %v4745, 0.0
      %s4750 = scalar_lea.vmem %s3, 204
      %v4751 = vld [vmem:[%s4750] sm:$0xf]
      %v4753 = vsel %vm478, %v4751, 0
      %v4756 = vsel %vm425, %v4748, 0
      %v4759 = vsel %vm425, %v4749, 0
      %4761 = vmatpush.msra.mxu0 0.0
      %4762 = vmatpush.msra.mxu0 0.0
      %4763 = vmatpush.msra.mxu0 0.0
      %4764 = vmatpush.msra.mxu0 0.0
      %4765 = vmatpush.msra.mxu0 0.0
      %4766 = vmatpush.msra.mxu0 0.0
      %4767 = vmatpush.msra.mxu0 0.0
      %4768 = vmatpush.msra.mxu0 0.0
      %4769 = vmatpush.msra.mxu0 0.0
      %4770 = vmatpush.msra.mxu0 0.0
      %4771 = vmatpush.msra.mxu0 0.0
      %4772 = vmatpush.msra.mxu0 0.0
      %4773 = vmatpush.msra.mxu0 0.0
      %4774 = vmatpush.msra.mxu0 0.0
      %4775 = vmatpush.msra.mxu0 0.0
      %4776 = vmatpush.msra.mxu0 %v4756
      %4777 = vmatmul.f32.gmra.mxu0 %v4753
      %v4778 = vpop.f32.mrf.mxu0
      %v4779 = vadd.f32 0.0, %v4778
      %4780 = vdwg.mxu0
      %4781 = vmatpush.msra.mxu0 0.0
      %4782 = vmatpush.msra.mxu0 0.0
      %4783 = vmatpush.msra.mxu0 0.0
      %4784 = vmatpush.msra.mxu0 0.0
      %4785 = vmatpush.msra.mxu0 0.0
      %4786 = vmatpush.msra.mxu0 0.0
      %4787 = vmatpush.msra.mxu0 0.0
      %4788 = vmatpush.msra.mxu0 0.0
      %4789 = vmatpush.msra.mxu0 0.0
      %4790 = vmatpush.msra.mxu0 0.0
      %4791 = vmatpush.msra.mxu0 0.0
      %4792 = vmatpush.msra.mxu0 0.0
      %4793 = vmatpush.msra.mxu0 0.0
      %4794 = vmatpush.msra.mxu0 0.0
      %4795 = vmatpush.msra.mxu0 0.0
      %4796 = vmatpush.msra.mxu0 %v4759
      %4797 = vmatmul.f32.gmra.mxu0 %v4753
      %v4798 = vpop.f32.mrf.mxu0
      %v4799 = vadd.f32 0.0, %v4798
      %4800 = vdwg.mxu0
      %v4801 = vadd.f32 %v4726, %v4779
      %v4802 = vadd.f32 %v4727, %v4799
      %v4803 = vld [vmem:[#allocation2 + $0x4] sm:$0xff]
      %v4804 = vld [vmem:[#allocation2 + $0xc] sm:$0xf]
      %s4805 = scalar_lea.vmem %s3, 208
      %v4806 = vld [vmem:[%s4805] sm:$0xf]
      %4809 = vst [vmem:[#allocation1] ss:$2 sm:$0xff] %v4803
      %s4810 = scalar_lea.vmem [#allocation1], 16
      %4811 = vst [vmem:[%s4810] ss:$2 sm:$0xff] %v4804
      %v4812 = vld.sshfl [vmem:[#allocation1] sm:$0xff pattern:$0x75316420]
      %v4813 = vld.sshfl [vmem:[#allocation1 + $0x8] sm:$0xff pattern:$0x75316420]
      %v4814 = vld.sshfl [vmem:[#allocation1 + $0x10] sm:$0xff pattern:$0x75316420]
      %4815 = vrot.lane.b32.xlu0 %v4812, 112
      %v4816 = vpop.permute.xlu0 %4815
      %4817 = vrot.lane.b32.xlu0 %v4813, 112
      %v4818 = vpop.permute.xlu0 %4817
      %4819 = vrot.lane.b32.xlu0 %v4814, 112
      %v4820 = vpop.permute.xlu0 %4819
      %v4821 = vsel %vm957, %v4816, %v4818
      %v4822 = vsel %vm957, %v4818, %v4820
      %v4824 = vsel %vm478, %v4806, 0
      %v4826 = vsel %vm425, %v4821, 0
      %v4828 = vsel %vm425, %v4822, 0
      %4830 = vmatpush.msra.mxu0 0.0
      %4831 = vmatpush.msra.mxu0 0.0
      %4832 = vmatpush.msra.mxu0 0.0
      %4833 = vmatpush.msra.mxu0 0.0
      %4834 = vmatpush.msra.mxu0 0.0
      %4835 = vmatpush.msra.mxu0 0.0
      %4836 = vmatpush.msra.mxu0 0.0
      %4837 = vmatpush.msra.mxu0 0.0
      %4838 = vmatpush.msra.mxu0 0.0
      %4839 = vmatpush.msra.mxu0 0.0
      %4840 = vmatpush.msra.mxu0 0.0
      %4841 = vmatpush.msra.mxu0 0.0
      %4842 = vmatpush.msra.mxu0 0.0
      %4843 = vmatpush.msra.mxu0 0.0
      %4844 = vmatpush.msra.mxu0 0.0
      %4845 = vmatpush.msra.mxu0 %v4826
      %4846 = vmatmul.f32.gmra.mxu0 %v4824
      %v4847 = vpop.f32.mrf.mxu0
      %v4848 = vadd.f32 0.0, %v4847
      %4849 = vdwg.mxu0
      %4850 = vmatpush.msra.mxu0 0.0
      %4851 = vmatpush.msra.mxu0 0.0
      %4852 = vmatpush.msra.mxu0 0.0
      %4853 = vmatpush.msra.mxu0 0.0
      %4854 = vmatpush.msra.mxu0 0.0
      %4855 = vmatpush.msra.mxu0 0.0
      %4856 = vmatpush.msra.mxu0 0.0
      %4857 = vmatpush.msra.mxu0 0.0
      %4858 = vmatpush.msra.mxu0 0.0
      %4859 = vmatpush.msra.mxu0 0.0
      %4860 = vmatpush.msra.mxu0 0.0
      %4861 = vmatpush.msra.mxu0 0.0
      %4862 = vmatpush.msra.mxu0 0.0
      %4863 = vmatpush.msra.mxu0 0.0
      %4864 = vmatpush.msra.mxu0 0.0
      %4865 = vmatpush.msra.mxu0 %v4828
      %4866 = vmatmul.f32.gmra.mxu0 %v4824
      %v4867 = vpop.f32.mrf.mxu0
      %v4868 = vadd.f32 0.0, %v4867
      %4869 = vdwg.mxu0
      %v4870 = vadd.f32 %v4801, %v4848
      %v4871 = vadd.f32 %v4802, %v4868
      %v4872 = vld [vmem:[#allocation2 + $0x4] sm:$0xff]
      %v4873 = vld [vmem:[#allocation2 + $0xc] sm:$0xf]
      %4876 = vst [vmem:[#allocation1] ss:$2 sm:$0xff] %v4872
      %s4877 = scalar_lea.vmem [#allocation1], 16
      %4878 = vst [vmem:[%s4877] ss:$2 sm:$0xff] %v4873
      %v4879 = vld.sshfl [vmem:[#allocation1] sm:$0xff pattern:$0x75316420]
      %v4880 = vld.sshfl [vmem:[#allocation1 + $0x8] sm:$0xff pattern:$0x75316420]
      %v4881 = vld.sshfl [vmem:[#allocation1 + $0x10] sm:$0xff pattern:$0x75316420]
      %4882 = vrot.lane.b32.xlu0 %v4879, 111
      %v4883 = vpop.permute.xlu0 %4882
      %4884 = vrot.lane.b32.xlu0 %v4880, 111
      %v4885 = vpop.permute.xlu0 %4884
      %4886 = vrot.lane.b32.xlu0 %v4881, 111
      %v4887 = vpop.permute.xlu0 %4886
      %v4888 = vsel %vm1025, %v4883, %v4885
      %v4889 = vsel %vm1025, %v4885, %v4887
      %v4892 = vsel %vm579, %v4888, 0.0
      %v4893 = vsel %vm580, %v4889, 0.0
      %s4894 = scalar_lea.vmem %s3, 212
      %v4895 = vld [vmem:[%s4894] sm:$0xf]
      %v4897 = vsel %vm478, %v4895, 0
      %v4900 = vsel %vm425, %v4892, 0
      %v4903 = vsel %vm425, %v4893, 0
      %4905 = vmatpush.msra.mxu0 0.0
      %4906 = vmatpush.msra.mxu0 0.0
      %4907 = vmatpush.msra.mxu0 0.0
      %4908 = vmatpush.msra.mxu0 0.0
      %4909 = vmatpush.msra.mxu0 0.0
      %4910 = vmatpush.msra.mxu0 0.0
      %4911 = vmatpush.msra.mxu0 0.0
      %4912 = vmatpush.msra.mxu0 0.0
      %4913 = vmatpush.msra.mxu0 0.0
      %4914 = vmatpush.msra.mxu0 0.0
      %4915 = vmatpush.msra.mxu0 0.0
      %4916 = vmatpush.msra.mxu0 0.0
      %4917 = vmatpush.msra.mxu0 0.0
      %4918 = vmatpush.msra.mxu0 0.0
      %4919 = vmatpush.msra.mxu0 0.0
      %4920 = vmatpush.msra.mxu0 %v4900
      %4921 = vmatmul.f32.gmra.mxu0 %v4897
      %v4922 = vpop.f32.mrf.mxu0
      %v4923 = vadd.f32 0.0, %v4922
      %4924 = vdwg.mxu0
      %4925 = vmatpush.msra.mxu0 0.0
      %4926 = vmatpush.msra.mxu0 0.0
      %4927 = vmatpush.msra.mxu0 0.0
      %4928 = vmatpush.msra.mxu0 0.0
      %4929 = vmatpush.msra.mxu0 0.0
      %4930 = vmatpush.msra.mxu0 0.0
      %4931 = vmatpush.msra.mxu0 0.0
      %4932 = vmatpush.msra.mxu0 0.0
      %4933 = vmatpush.msra.mxu0 0.0
      %4934 = vmatpush.msra.mxu0 0.0
      %4935 = vmatpush.msra.mxu0 0.0
      %4936 = vmatpush.msra.mxu0 0.0
      %4937 = vmatpush.msra.mxu0 0.0
      %4938 = vmatpush.msra.mxu0 0.0
      %4939 = vmatpush.msra.mxu0 0.0
      %4940 = vmatpush.msra.mxu0 %v4903
      %4941 = vmatmul.f32.gmra.mxu0 %v4897
      %v4942 = vpop.f32.mrf.mxu0
      %v4943 = vadd.f32 0.0, %v4942
      %4944 = vdwg.mxu0
      %v4945 = vadd.f32 %v4870, %v4923
      %v4946 = vadd.f32 %v4871, %v4943
      %s4947 = scalar_lea.vmem %s4, 20
      %v4948 = vld [vmem:[%s4947] sm:$0xf]
      %4950 = vset.pattern.permute.xlu0 0
      %4951 = vperm.xlu0 %4950, %v4948
      %v4952 = vpop.permute.xlu0 %4951
      %v4954 = vadd.f32 %v4945, %v4952
      %v4955 = vadd.f32 %v4946, %v4952
      %v4956 = vmax.f32 %v4954, 0.0
      %v4957 = vmax.f32 %v4955, 0.0
      %s4958 = scalar_lea.vmem %s5, 40
      %v4959 = vld [vmem:[%s4958] sm:$0xff]
      %s4960 = scalar_lea.vmem %s6, 40
      %v4961 = vld [vmem:[%s4960] sm:$0xff]
      %4963 = vset.pattern.permute.xlu0 0
      %4964 = vperm.xlu0 %4963, %v4961
      %v4965 = vpop.permute.xlu0 %4964
      %v4968 = vsel %vm478, %v4959, 0
      %v4971 = vsel %vm425, %v4956, 0
      %v4974 = vsel %vm425, %v4957, 0
      %4976 = vmatpush.msra.mxu0 0.0
      %4977 = vmatpush.msra.mxu0 0.0
      %4978 = vmatpush.msra.mxu0 0.0
      %4979 = vmatpush.msra.mxu0 0.0
      %4980 = vmatpush.msra.mxu0 0.0
      %4981 = vmatpush.msra.mxu0 0.0
      %4982 = vmatpush.msra.mxu0 0.0
      %4983 = vmatpush.msra.mxu0 0.0
      %4984 = vmatpush.msra.mxu0 0.0
      %4985 = vmatpush.msra.mxu0 0.0
      %4986 = vmatpush.msra.mxu0 0.0
      %4987 = vmatpush.msra.mxu0 0.0
      %4988 = vmatpush.msra.mxu0 0.0
      %4989 = vmatpush.msra.mxu0 0.0
      %4990 = vmatpush.msra.mxu0 0.0
      %4991 = vmatpush.msra.mxu0 %v4971
      %4992 = vmatmul.f32.gmra.mxu0 %v4968
      %v4993 = vpop.f32.mrf.mxu0
      %v4994 = vadd.f32 %v4965, %v4993
      %4995 = vdwg.mxu0
      %4996 = vmatpush.msra.mxu0 0.0
      %4997 = vmatpush.msra.mxu0 0.0
      %4998 = vmatpush.msra.mxu0 0.0
      %4999 = vmatpush.msra.mxu0 0.0
      %5000 = vmatpush.msra.mxu0 0.0
      %5001 = vmatpush.msra.mxu0 0.0
      %5002 = vmatpush.msra.mxu0 0.0
      %5003 = vmatpush.msra.mxu0 0.0
      %5004 = vmatpush.msra.mxu0 0.0
      %5005 = vmatpush.msra.mxu0 0.0
      %5006 = vmatpush.msra.mxu0 0.0
      %5007 = vmatpush.msra.mxu0 0.0
      %5008 = vmatpush.msra.mxu0 0.0
      %5009 = vmatpush.msra.mxu0 0.0
      %5010 = vmatpush.msra.mxu0 0.0
      %5011 = vmatpush.msra.mxu0 %v4974
      %5012 = vmatmul.f32.gmra.mxu0 %v4968
      %v5013 = vpop.f32.mrf.mxu0
      %v5014 = vadd.f32 %v4965, %v5013
      %5015 = vdwg.mxu0
      %v5016 = vadd.f32 %v4994, %v4245
      %v5017 = vadd.f32 %v5014, %v4246
      %v5018 = vmax.f32 %v5016, 0.0
      %v5019 = vmax.f32 %v5017, 0.0
      %v5020 = vld [vmem:[%s7] sm:$0xff]
      %v5021 = vld [vmem:[%s8] sm:$0xff]
      %5023 = vset.pattern.permute.xlu0 0
      %5024 = vperm.xlu0 %5023, %v5021
      %v5025 = vpop.permute.xlu0 %5024
      %v5028 = vsel %vm376, %v5020, 0
      %5030 = vmatpush.msra.mxu0 0.0
      %5031 = vmatpush.msra.mxu0 0.0
      %5032 = vmatpush.msra.mxu0 0.0
      %5033 = vmatpush.msra.mxu0 0.0
      %5034 = vmatpush.msra.mxu0 0.0
      %5035 = vmatpush.msra.mxu0 0.0
      %5036 = vmatpush.msra.mxu0 0.0
      %5037 = vmatpush.msra.mxu0 0.0
      %5038 = vmatpush.msra.mxu0 0.0
      %5039 = vmatpush.msra.mxu0 0.0
      %5040 = vmatpush.msra.mxu0 0.0
      %5041 = vmatpush.msra.mxu0 0.0
      %5042 = vmatpush.msra.mxu0 0.0
      %5043 = vmatpush.msra.mxu0 0.0
      %5044 = vmatpush.msra.mxu0 0.0
      %5045 = vmatpush.msra.mxu0 %v5018
      %5046 = vmatmul.f32.gmra.mxu0 %v5028
      %v5047 = vpop.f32.mrf.mxu0
      %v5048 = vadd.f32 %v5025, %v5047
      %5049 = vdwg.mxu0
      %5050 = vmatpush.msra.mxu0 0.0
      %5051 = vmatpush.msra.mxu0 0.0
      %5052 = vmatpush.msra.mxu0 0.0
      %5053 = vmatpush.msra.mxu0 0.0
      %5054 = vmatpush.msra.mxu0 0.0
      %5055 = vmatpush.msra.mxu0 0.0
      %5056 = vmatpush.msra.mxu0 0.0
      %5057 = vmatpush.msra.mxu0 0.0
      %5058 = vmatpush.msra.mxu0 0.0
      %5059 = vmatpush.msra.mxu0 0.0
      %5060 = vmatpush.msra.mxu0 0.0
      %5061 = vmatpush.msra.mxu0 0.0
      %5062 = vmatpush.msra.mxu0 0.0
      %5063 = vmatpush.msra.mxu0 0.0
      %5064 = vmatpush.msra.mxu0 0.0
      %5065 = vmatpush.msra.mxu0 %v5019
      %5066 = vmatmul.f32.gmra.mxu0 %v5028
      %v5067 = vpop.f32.mrf.mxu0
      %v5068 = vadd.f32 %v5025, %v5067
      %5069 = vdwg.mxu0
      %v5070 = vxor.u32 %v5048, 2147483648
      %v5071 = vxor.u32 %v5068, 2147483648
      %v5072 = vmul.f32 %v5070, 1.442695
      %v5073 = vpow.pop %v5072
      %v5074 = vmul.f32 %v5071, 1.442695
      %v5075 = vpow.pop %v5074
      %v5076 = vadd.f32 %v5073, 1.0
      %v5077 = vadd.f32 %v5075, 1.0
      %v5078 = vrcp.pop %v5076
      %v5079 = vmul.f32 %v5076, %v5078
      %v5080 = vsub.f32 1.0, %v5079
      %v5081 = vmul.f32 %v5078, %v5080
      %v5082 = vadd.f32 %v5078, %v5081
      %vm5083 = vweird.f32 %v5076
      %vm5084 = vweird.f32 %v5078
      %vm5085 = vmor %vm5083, %vm5084
      %v5086 = vsel %vm5085, %v5078, %v5082
      %v5087 = vand.u32 2147483647, %v5076
      %vm5088 = vcmp.eq.f32.partialorder %v5087, 8.507059e+37
      %v5089 = vand.u32 %v5076, 2147483648
      %v5090 = vor.u32 1.1754944e-38, %v5089
      %v5091 = vsel %vm5088, %v5090, %v5086
      %v5092 = vmul.f32 1.0, %v5091
      %v5093 = vrcp.pop %v5077
      %v5094 = vmul.f32 %v5077, %v5093
      %v5095 = vsub.f32 1.0, %v5094
      %v5096 = vmul.f32 %v5093, %v5095
      %v5097 = vadd.f32 %v5093, %v5096
      %vm5098 = vweird.f32 %v5077
      %vm5099 = vweird.f32 %v5093
      %vm5100 = vmor %vm5098, %vm5099
      %v5101 = vsel %vm5100, %v5093, %v5097
      %v5102 = vand.u32 2147483647, %v5077
      %vm5103 = vcmp.eq.f32.partialorder %v5102, 8.507059e+37
      %v5104 = vand.u32 %v5077, 2147483648
      %v5105 = vor.u32 1.1754944e-38, %v5104
      %v5106 = vsel %vm5103, %v5105, %v5101
      %v5107 = vmul.f32 1.0, %v5106
      %v5108 = vmul.f32 %v2699, %v5092
      %v5109 = vmul.f32 %v2700, %v5107
      %v5110 = vadd.f32 %v5108, %v367
      %v5111 = vadd.f32 %v5109, %v368
      %5112 = vst [vmem:[%s332] sm:$0xff] %v5110
      %5113 = vst [vmem:[%s332 + $0x8] sm:$0xff] %v5111
      %p5114 = scmp.lt.s32.totalorder %s20, 1
      %s5115 = scalar_select %p5114, %s20, 1
      %s5116 = smul.addr %s5115, 2
      %s5117 = smul.addr %s5116, 8
      %s5118 = scalar_lea.vmem %s9, %s5117
      // Predicated region
      $region57: #{attention_block.1} parent=55 // pred_check
        %p5119 = pneg %p232
      $region58: #{attention_block.1} parent=55 // pred_check_branch
        %5121 = sbr.rel (%p5119) target = $region60
      $region59: #{attention_block.1} parent=55 // pred_region
        _
      $region60: #{attention_block.1} parent=55 // pred_fallthru
        _
    $region56: #{attention_block.1} parent=5 // pred_fallthru
      _
    %p5122 = scmp.le.s32.totalorder 2, %s15
    // Predicated region
    $region61: #{attention_block.1} parent=5 // pred_check
      %p5123 = pneg %p5122
    $region62: #{attention_block.1} parent=5 // pred_check_branch
      %5125 = sbr.rel (%p5123) target = $region64
    $region63: #{attention_block.1} parent=5 // pred_region
      %s5126 = ssub.s32 %s15, 2
      // Predicated region
      $region65: #{attention_block.1} parent=63 // pred_check
        %p5127 = pneg %p238
      $region66: #{attention_block.1} parent=63 // pred_check_branch
        %5129 = sbr.rel (%p5127) target = $region68
      $region67: #{attention_block.1} parent=63 // pred_region
        %p5130 = scmp.lt.s32.totalorder %s21, 1
        %s5131 = scalar_select %p5130, %s21, 1
        %s5132 = smul.addr %s5131, 2
        %s5133 = smul.addr %s5132, 8
        %s5134 = scalar_lea.vmem %s9, %s5133
      $region68: #{attention_block.1} parent=63 // pred_fallthru
        _
    $region64: #{attention_block.1} parent=5 // pred_fallthru
      _
  $region6: #{attention_block.1} parent=0 // loop_footer
    %s19 = sadd.s32 1, %s15
  $region7: #{attention_block.1} parent=0 // loop_footer_branch
    %14 = sbr.rel target = $region3
  $region8: #{attention_block.1} parent=0 // loop_exit
    _

</llo_original>
